<compile_context>
chip_gen: v5e
topology: v5e:2x2
jax: 0.10.0
libtpu: 0.0.40
codegen_flags: <defaults>
</compile_context>

<pallas_src>
import functools

import jax
import jax.numpy as jnp
from jax.experimental import pallas as pl
from jax.experimental.pallas import tpu as pltpu


# ----------------------------- helpers ---------------------------------------
def _round_up(x, m):
    return ((x + m - 1) // m) * m


def _cdiv(a, b):
    return -(-a // b)


def _pick_row_tile(n, cap):
    """Largest row tile <= cap that divides n and is a sublane multiple (or n)."""
    if n <= cap:
        return n
    for d in range(cap, 7, -1):
        if n % d == 0 and d % 8 == 0:
            return d
    return n


def _vmem_limit(est_bytes):
    """Explicit scoped-VMEM limit derived from the actual block footprint."""
    est = int(est_bytes * 1.25) + (2 << 20)
    return max(32 << 20, min(est, 128 << 20))


def _pad_gate_cols(w_t, H, Hp):
    """w_t: (Din, 4H) -> (Din, 4Hp), zero-padding each gate block to Hp lanes."""
    Din = w_t.shape[0]
    w4 = w_t.reshape(Din, 4, H)
    w4 = jnp.pad(w4, ((0, 0), (0, 0), (0, Hp - H)))
    return w4.reshape(Din, 4 * Hp)


def _sigmoid(x):
    # sigmoid(x) = 0.5*tanh(0.5x)+0.5 : one EUP transcendental instead of exp+div.
    return 0.5 * jnp.tanh(0.5 * x) + 0.5


# ---------------- weight residency (single-buffered constant blocks) ----------
_WEIGHT_BUFFERING = [True]   # flipped off if pl.Buffered(1) is not supported


def _const_spec(shape, index_map, buffered):
    """BlockSpec for a grid-invariant (weight) operand; single-buffered if possible."""
    if buffered:
        try:
            return pl.BlockSpec(shape, index_map, pipeline_mode=pl.Buffered(1))
        except Exception:
            pass
    return pl.BlockSpec(shape, index_map)


def _call_maybe_buffered(build_and_call):
    if _WEIGHT_BUFFERING[0]:
        try:
            return build_and_call(True)
        except Exception:
            # Buffered(1) weight residency not supported by this jax/Mosaic
            # version -- fall back to default double-buffered weights.
            _WEIGHT_BUFFERING[0] = False
    return build_and_call(False)


# ------------------- fused bidirectional LSTM layer kernel --------------------
def _bilstm_fused_kernel(*refs, n_in, Tc, nc, Hp, t_real, unroll, needs_mask,
                         row_offsets, row_sizes, compute_dtype):
    xs_f = refs[0:n_in]                    # input parts, forward chunk  (c)
    xs_b = refs[n_in:2 * n_in]             # input parts, backward chunk (nc-1-c)
    (wih_f, wih_b, whh_f, whh_b, bias_f, bias_b,
     out_f, out_b,
     h_f, c_f, h_b, c_b, gx_f, gx_b) = refs[2 * n_in:]

    c_idx = pl.program_id(0)
    Bp = out_f.shape[1]

    @pl.when(c_idx == 0)
    def _():
        h_f[...] = jnp.zeros_like(h_f)
        c_f[...] = jnp.zeros_like(c_f)
        h_b[...] = jnp.zeros_like(h_b)
        c_b[...] = jnp.zeros_like(c_b)

    # Hoisted input projection: one big (Tc*Bp, Dp)x(Dp, 4Hp) MXU matmul per
    # direction per chunk (bf16 operands, f32 accumulation).
    def project(x_parts, wih_ref, bias_ref, gx_ref):
        acc = None
        for p, xp in enumerate(x_parts):
            off, rows = row_offsets[p], row_sizes[p]
            x2 = xp[...].reshape(Tc * Bp, rows).astype(compute_dtype)
            d = jnp.dot(x2, wih_ref[off:off + rows, :],
                        preferred_element_type=jnp.float32)
            acc = d if acc is None else acc + d
        acc = acc + bias_ref[...]                    # bias kept in f32
        gx_ref[...] = acc.reshape(Tc, Bp, 4 * Hp).astype(gx_ref.dtype)

    project(xs_f, wih_f, bias_f, gx_f)
    project(xs_b, wih_b, bias_b, gx_b)

    w_hh_f = whh_f[...]
    w_hh_b = whh_b[...]
    base_f = c_idx * Tc
    base_b = (nc - 1 - c_idx) * Tc

    def gates_to_state(gates, c_prev):
        # Hp is a multiple of 128 -> lane-aligned gate slices (PyTorch i,f,g,o).
        i = _sigmoid(gates[:, 0 * Hp:1 * Hp])
        f = _sigmoid(gates[:, 1 * Hp:2 * Hp])
        g = jnp.tanh(gates[:, 2 * Hp:3 * Hp])
        o = _sigmoid(gates[:, 3 * Hp:4 * Hp])
        c = f * c_prev + i * g
        h = o * jnp.tanh(c)
        return h, c

    def step(k, carry):
        tf = k              # forward local time
        tb = Tc - 1 - k     # backward local time (reversed within the chunk)
        # Two small recurrent matmuls; the two directions' MXU / VPU / EUP work
        # interleaves on the serial h_t -> h_{t+1} critical path.
        gates_f = gx_f[tf].astype(jnp.float32) + jnp.dot(
            h_f[...].astype(compute_dtype), w_hh_f,
            preferred_element_type=jnp.float32)
        gates_b = gx_b[tb].astype(jnp.float32) + jnp.dot(
            h_b[...].astype(compute_dtype), w_hh_b,
            preferred_element_type=jnp.float32)
        hf, cf = gates_to_state(gates_f, c_f[...])
        hb, cb = gates_to_state(gates_b, c_b[...])
        if needs_mask:
            # Zero state/output on padded time steps.  Required for the backward
            # direction (padded steps precede the real sequence, and the bias
            # alone would otherwise drive the state); harmless for forward.
            vf = ((base_f + tf) < t_real).astype(jnp.float32)
            vb = ((base_b + tb) < t_real).astype(jnp.float32)
            hf, cf = hf * vf, cf * vf
            hb, cb = hb * vb, cb * vb
        h_f[...] = hf
        c_f[...] = cf
        h_b[...] = hb
        c_b[...] = cb
        out_f[tf] = hf.astype(out_f.dtype)
        out_b[tb] = hb.astype(out_b.dtype)
        return carry

    jax.lax.fori_loop(0, Tc, step, 0, unroll=unroll)


def bilstm_layer(x_parts, weights, *, Hp, t_real, nc, Tc, compute_dtype):
    """One fused bidirectional LSTM layer.

    x_parts: list of (Tp, Bp, Dp_i) time-major padded inputs (1 part for layer 0,
             2 parts [fwd_h, bwd_h] for deeper layers) -- no concat needed.
    Returns (h_fwd, h_bwd), each (Tp, Bp, Hp) in compute_dtype."""
    wih_f, wih_b, whh_f, whh_b, b_f, b_b = weights
    Tp, Bp, _ = x_parts[0].shape
    part_dims = tuple(int(p.shape[-1]) for p in x_parts)
    Dp_total = sum(part_dims)
    assert wih_f.shape == (Dp_total, 4 * Hp), (wih_f.shape, Dp_total, Hp)
    row_offsets, off = [], 0
    for d in part_dims:
        row_offsets.append(off)
        off += d
    n_in = len(x_parts)
    needs_mask = (Tp != t_real)
    unroll = max(1, min(Tc, 8))
    itemsize = jnp.dtype(compute_dtype).itemsize

    kernel = functools.partial(
        _bilstm_fused_kernel, n_in=n_in, Tc=Tc, nc=nc, Hp=Hp, t_real=t_real,
        unroll=unroll, needs_mask=needs_mask, row_offsets=tuple(row_offsets),
        row_sizes=part_dims, compute_dtype=compute_dtype)

    out_shape = (jax.ShapeDtypeStruct((Tp, Bp, Hp), compute_dtype),
                 jax.ShapeDtypeStruct((Tp, Bp, Hp), compute_dtype))

    def build_and_call(buffered):
        in_specs = []
        for d in part_dims:                                   # forward chunk c
            in_specs.append(pl.BlockSpec((Tc, Bp, d), lambda c: (c, 0, 0)))
        for d in part_dims:                                   # backward chunk
            in_specs.append(pl.BlockSpec((Tc, Bp, d),
                                         lambda c: (nc - 1 - c, 0, 0)))
        for w in (wih_f, wih_b, whh_f, whh_b, b_f, b_b):      # resident weights
            in_specs.append(_const_spec(w.shape, lambda c: (0, 0), buffered))

        out_specs = [pl.BlockSpec((Tc, Bp, Hp), lambda c: (c, 0, 0)),
                     pl.BlockSpec((Tc, Bp, Hp), lambda c: (nc - 1 - c, 0, 0))]

        scratch_shapes = [
            pltpu.VMEM((Bp, Hp), jnp.float32),                # h fwd (f32 state)
            pltpu.VMEM((Bp, Hp), jnp.float32),                # c fwd
            pltpu.VMEM((Bp, Hp), jnp.float32),                # h bwd
            pltpu.VMEM((Bp, Hp), jnp.float32),                # c bwd
            pltpu.VMEM((Tc, Bp, 4 * Hp), compute_dtype),      # hoisted gates_x fwd
            pltpu.VMEM((Tc, Bp, 4 * Hp), compute_dtype),      # hoisted gates_x bwd
        ]

        # Explicit scoped-VMEM budget from the real per-step footprint.
        x_blk = 2 * sum(Tc * Bp * d for d in part_dims) * itemsize
        w_bytes = ((2 * Dp_total * 4 * Hp + 2 * Hp * 4 * Hp) * itemsize
                   + 2 * 4 * Hp * 4)
        o_blk = 2 * Tc * Bp * Hp * itemsize
        sc_bytes = 4 * Bp * Hp * 4 + 2 * Tc * Bp * 4 * Hp * itemsize
        est = (2 * x_blk + (1 if buffered else 2) * w_bytes
               + 2 * o_blk + sc_bytes)

        return pl.pallas_call(
            kernel,
            out_shape=out_shape,
            grid_spec=pltpu.PrefetchScalarGridSpec(
                num_scalar_prefetch=0,
                grid=(nc,),
                in_specs=in_specs,
                out_specs=out_specs,
                scratch_shapes=scratch_shapes),
            compiler_params=pltpu.CompilerParams(
                dimension_semantics=("arbitrary",),    # time recurrence is serial
                vmem_limit_bytes=_vmem_limit(est)),
        )(*x_parts, *x_parts, wih_f, wih_b, whh_f, whh_b, b_f, b_b)

    h_f, h_b = _call_maybe_buffered(build_and_call)
    return h_f, h_b


# ------------------------------- Linear kernel --------------------------------
def _linear_kernel(xf_ref, xb_ref, wf_ref, wb_ref, b_ref, o_ref):
    acc = jnp.dot(xf_ref[...], wf_ref[...], preferred_element_type=jnp.float32)
    acc = acc + jnp.dot(xb_ref[...], wb_ref[...],
                        preferred_element_type=jnp.float32)
    o_ref[...] = (acc + b_ref[...]).astype(o_ref.dtype)


def linear_padded(h_f2, h_b2, w_top, w_bot, b_pad, *, max_tile_n=512):
    """h_f2, h_b2: (N, Hp) padded halves (no concat); returns (N, Cp) f32."""
    N, Hp = h_f2.shape
    Cp = w_top.shape[1]
    tn = _pick_row_tile(N, max_tile_n)
    itemsize = jnp.dtype(h_f2.dtype).itemsize

    def build_and_call(buffered):
        in_specs = [
            pl.BlockSpec((tn, Hp), lambda i: (i, 0)),
            pl.BlockSpec((tn, Hp), lambda i: (i, 0)),
            _const_spec((Hp, Cp), lambda i: (0, 0), buffered),
            _const_spec((Hp, Cp), lambda i: (0, 0), buffered),
            _const_spec((1, Cp), lambda i: (0, 0), buffered),
        ]
        est = (2 * 2 * tn * Hp * itemsize
               + (1 if buffered else 2) * (2 * Hp * Cp * itemsize + Cp * 4)
               + 2 * tn * Cp * 4)
        return pl.pallas_call(
            _linear_kernel,
            out_shape=jax.ShapeDtypeStruct((N, Cp), jnp.float32),
            grid_spec=pltpu.PrefetchScalarGridSpec(
                num_scalar_prefetch=0,
                grid=(N // tn,),
                in_specs=in_specs,
                out_specs=pl.BlockSpec((tn, Cp), lambda i: (i, 0))),
            compiler_params=pltpu.CompilerParams(
                dimension_semantics=("parallel",),
                vmem_limit_bytes=_vmem_limit(est)),
        )(h_f2, h_b2, w_top, w_bot, b_pad)

    return _call_maybe_buffered(build_and_call)


# ------------------------------- Parameters -----------------------------------
def init_lstm_ctc_params(key, input_size, hidden_size, num_classes, num_layers):
    k = 1.0 / float(hidden_size) ** 0.5
    params = {"lstm": []}
    for layer in range(num_layers):
        in_sz = input_size if layer == 0 else 2 * hidden_size
        layer_p = {}
        for direction in ("fwd", "bwd"):
            key, k1, k2, k3, k4 = jax.random.split(key, 5)
            layer_p[direction] = dict(
                w_ih=jax.random.uniform(k1, (4 * hidden_size, in_sz),
                                        jnp.float32, -k, k),
                w_hh=jax.random.uniform(k2, (4 * hidden_size, hidden_size),
                                        jnp.float32, -k, k),
                b_ih=jax.random.uniform(k3, (4 * hidden_size,), jnp.float32, -k, k),
                b_hh=jax.random.uniform(k4, (4 * hidden_size,), jnp.float32, -k, k),
            )
        params["lstm"].append(layer_p)
    key, k1, k2 = jax.random.split(key, 3)
    kf = 1.0 / float(2 * hidden_size) ** 0.5
    params["fc"] = dict(
        w=jax.random.uniform(k1, (num_classes, 2 * hidden_size), jnp.float32, -kf, kf),
        b=jax.random.uniform(k2, (num_classes,), jnp.float32, -kf, kf),
    )
    return params


# --------------------------- weight prep (padding) -----------------------------
def _prep_layer_weights(layer_p, in_size, H, Hp, Dp, layer_idx, compute_dtype):
    """Per-direction transposed, lane-padded weights in compute_dtype (bias f32)."""
    prepped = []
    for direction in ("fwd", "bwd"):
        p = layer_p[direction]
        wih_t = p["w_ih"].T.astype(jnp.float32)                 # (in, 4H)
        whh_t = p["w_hh"].T.astype(jnp.float32)                 # (H, 4H)
        bias = (p["b_ih"] + p["b_hh"]).astype(jnp.float32)      # (4H,)

        wih_gp = _pad_gate_cols(wih_t, H, Hp)                   # (in, 4Hp)
        whh_gp = _pad_gate_cols(whh_t, H, Hp)                   # (H, 4Hp)
        b_gp = _pad_gate_cols(bias.reshape(1, 4 * H), H, Hp)    # (1, 4Hp)

        wih_pad = jnp.zeros((Dp, 4 * Hp), jnp.float32)
        if layer_idx == 0:
            wih_pad = wih_pad.at[:in_size].set(wih_gp)
        else:
            # Input of layer > 0 is (fwd Hp | bwd Hp); real features at rows
            # [0:H] (fwd half) and [Hp:Hp+H] (bwd half).
            wih_pad = wih_pad.at[0:H].set(wih_gp[0:H])
            wih_pad = wih_pad.at[Hp:Hp + H].set(wih_gp[H:2 * H])
        whh_pad = jnp.zeros((Hp, 4 * Hp), jnp.float32).at[0:H].set(whh_gp)

        prepped.append((wih_pad.astype(compute_dtype),
                        whh_pad.astype(compute_dtype),
                        b_gp))
    (wih_f, whh_f, b_f), (wih_b, whh_b, b_b) = prepped
    return wih_f, wih_b, whh_f, whh_b, b_f, b_b


def _prep_fc_weights(fc_p, H, Hp, C, Cp, compute_dtype):
    w = fc_p["w"].astype(jnp.float32)        # (C, 2H)
    b = fc_p["b"].astype(jnp.float32)        # (C,)
    w_top = jnp.zeros((Hp, Cp), jnp.float32).at[0:H, 0:C].set(w[:, 0:H].T)
    w_bot = jnp.zeros((Hp, Cp), jnp.float32).at[0:H, 0:C].set(w[:, H:2 * H].T)
    b_pad = jnp.zeros((1, Cp), jnp.float32).at[0, 0:C].set(b)
    return w_top.astype(compute_dtype), w_bot.astype(compute_dtype), b_pad


# ------------------------------- Forward pass ----------------------------------
def lstm_ctc_forward(params, x, hidden_size, num_classes, *,
                     compute_dtype=jnp.bfloat16, max_chunk=64):
    """x: (B, T, input_size) batch_first.  Returns (B, T, num_classes) f32.
    Dropout (inter-layer LSTM dropout and self.dropout) is identity (eval)."""
    B, T, Din = x.shape
    H = hidden_size
    Hp = _round_up(H, 128)
    is_bf16 = jnp.dtype(compute_dtype) == jnp.dtype(jnp.bfloat16)
    Bp = _round_up(B, 16 if is_bf16 else 8)
    Cp = _round_up(num_classes, 128)
    Dp0 = _round_up(Din, 128)

    # Time chunking: nc chunks of Tc steps, T padded to Tp=nc*Tc (masked in-kernel).
    nc = _cdiv(T, max_chunk)
    Tc = _cdiv(T, nc)
    Tp = nc * Tc

    # time-major; zero-pad time (chunking), batch (sublanes), features (lanes).
    x_tm = jnp.transpose(x, (1, 0, 2)).astype(jnp.float32)
    x_tm = jnp.pad(x_tm, ((0, Tp - T), (0, Bp - B), (0, Dp0 - Din)))
    parts = [x_tm.astype(compute_dtype)]

    for li, layer_p in enumerate(params["lstm"]):
        in_size = Din if li == 0 else 2 * H
        Dp = Dp0 if li == 0 else 2 * Hp
        weights = _prep_layer_weights(layer_p, in_size, H, Hp, Dp, li, compute_dtype)
        h_f, h_b = bilstm_layer(parts, weights, Hp=Hp, t_real=T, nc=nc, Tc=Tc,
                                compute_dtype=compute_dtype)
        parts = [h_f, h_b]            # next consumer takes both halves: no concat
        # inter-layer LSTM dropout: identity in eval mode

    # self.dropout: identity in eval mode
    w_top, w_bot, b_pad = _prep_fc_weights(params["fc"], H, Hp, num_classes, Cp,
                                           compute_dtype)
    out = linear_padded(parts[0].reshape(Tp * Bp, Hp),
                        parts[1].reshape(Tp * Bp, Hp),
                        w_top, w_bot, b_pad)                    # (Tp*Bp, Cp) f32
    out = out.reshape(Tp, Bp, Cp)
    out = jnp.transpose(out, (1, 0, 2))[:B, :T, :num_classes]
    return out


# --------------------------- Pure-JAX reference (check) ------------------------
def _lstm_dir_ref(x_tm, w_ih, w_hh, b_ih, b_hh):
    H = w_hh.shape[1]
    wih_t, whh_t, b = w_ih.T, w_hh.T, b_ih + b_hh
    B = x_tm.shape[1]

    def step(carry, x_t):
        hh, cc = carry
        gates = x_t @ wih_t + hh @ whh_t + b
        i = jax.nn.sigmoid(gates[:, :H])
        f = jax.nn.sigmoid(gates[:, H:2 * H])
        g = jnp.tanh(gates[:, 2 * H:3 * H])
        o = jax.nn.sigmoid(gates[:, 3 * H:4 * H])
        cc = f * cc + i * g
        hh = o * jnp.tanh(cc)
        return (hh, cc), hh

    init = (jnp.zeros((B, H), jnp.float32), jnp.zeros((B, H), jnp.float32))
    _, hs = jax.lax.scan(step, init, x_tm)
    return hs


def lstm_ctc_forward_ref(params, x):
    B, T, _ = x.shape
    h = jnp.transpose(x, (1, 0, 2)).astype(jnp.float32)
    for layer_p in params["lstm"]:
        fwd = _lstm_dir_ref(h, **layer_p["fwd"])
        bwd = jnp.flip(_lstm_dir_ref(jnp.flip(h, axis=0), **layer_p["bwd"]), axis=0)
        h = jnp.concatenate([fwd, bwd], axis=-1)
    h = jnp.transpose(h, (1, 0, 2))
    out = h.reshape(B * T, -1) @ params["fc"]["w"].T + params["fc"]["b"]
    return out.reshape(B, T, -1)


# ------------------------------------ Main --------------------------------------
if __name__ == "__main__":
    input_size, hidden_size, num_classes, num_layers = 16, 32, 10, 2
    dropout_rate = 0.1  # unused at inference (dropout = identity)

    key = jax.random.PRNGKey(0)
    pkey, xkey, xkey2 = jax.random.split(key, 3)
    params = init_lstm_ctc_params(pkey, input_size, hidden_size,
                                  num_classes, num_layers)

    # --- primary path: bf16 MXU operands (loose tolerance vs f32 reference) ---
    B, T = 2, 8
    x = jax.random.normal(xkey, (B, T, input_size), jnp.float32)
    out = jax.block_until_ready(
        lstm_ctc_forward(params, x, hidden_size, num_classes,
                         compute_dtype=jnp.bfloat16))
    ref = jax.block_until_ready(lstm_ctc_forward_ref(params, x))
    assert out.shape == (B, T, num_classes), out.shape
    err = float(jnp.max(jnp.abs(out - ref)))
    assert jnp.allclose(out, ref, atol=5e-2, rtol=5e-2), f"bf16 path max err {err}"

    # --- structural check: exact f32 path with odd T (exercises time-padding
    #     + backward-direction boundary masking) ---
    B2, T2 = 3, 13
    x2 = jax.random.normal(xkey2, (B2, T2, input_size), jnp.float32)
    out2 = jax.block_until_ready(
        lstm_ctc_forward(params, x2, hidden_size, num_classes,
                         compute_dtype=jnp.float32, max_chunk=8))
    ref2 = jax.block_until_ready(lstm_ctc_forward_ref(params, x2))
    assert out2.shape == (B2, T2, num_classes), out2.shape
    err2 = float(jnp.max(jnp.abs(out2 - ref2)))
    assert jnp.allclose(out2, ref2, atol=2e-3, rtol=2e-3), f"f32 path max err {err2}"

    print("KERNEL_OK")
</pallas_src>

<mosaic_0001>
module attributes {stable_mosaic.version = 11 : i64} {
  func.func @_bilstm_fused_kernel(%arg0: i32, %arg1: memref<8x16x128xbf16, #tpu.memory_space<vmem>>, %arg2: memref<8x16x128xbf16, #tpu.memory_space<vmem>>, %arg3: memref<128x512xbf16, #tpu.memory_space<vmem>>, %arg4: memref<128x512xbf16, #tpu.memory_space<vmem>>, %arg5: memref<128x512xbf16, #tpu.memory_space<vmem>>, %arg6: memref<128x512xbf16, #tpu.memory_space<vmem>>, %arg7: memref<1x512xf32, #tpu.memory_space<vmem>>, %arg8: memref<1x512xf32, #tpu.memory_space<vmem>>, %arg9: memref<8x16x128xbf16, #tpu.memory_space<vmem>>, %arg10: memref<8x16x128xbf16, #tpu.memory_space<vmem>>, %arg11: memref<16x128xf32, #tpu.memory_space<vmem>>, %arg12: memref<16x128xf32, #tpu.memory_space<vmem>>, %arg13: memref<16x128xf32, #tpu.memory_space<vmem>>, %arg14: memref<16x128xf32, #tpu.memory_space<vmem>>, %arg15: memref<8x16x512xbf16, #tpu.memory_space<vmem>>, %arg16: memref<8x16x512xbf16, #tpu.memory_space<vmem>>) attributes {dimension_semantics = [#tpu.dimension_semantics<arbitrary>], iteration_bounds = array<i64: 1>, scalar_prefetch = 0 : i64, scratch_operands = 6 : i64, tpu.core_type = #tpu.core_type<tc>, window_params = [{transform_indices = @transform_0, window_bounds = array<i64: 8, 16, 128>}, {transform_indices = @transform_1, window_bounds = array<i64: 8, 16, 128>}, {pipeline_mode = #tpu.pipeline_mode<synchronous>, transform_indices = @transform_2, window_bounds = array<i64: 128, 512>}, {pipeline_mode = #tpu.pipeline_mode<synchronous>, transform_indices = @transform_3, window_bounds = array<i64: 128, 512>}, {pipeline_mode = #tpu.pipeline_mode<synchronous>, transform_indices = @transform_4, window_bounds = array<i64: 128, 512>}, {pipeline_mode = #tpu.pipeline_mode<synchronous>, transform_indices = @transform_5, window_bounds = array<i64: 128, 512>}, {pipeline_mode = #tpu.pipeline_mode<synchronous>, transform_indices = @transform_6, window_bounds = array<i64: 1, 512>}, {pipeline_mode = #tpu.pipeline_mode<synchronous>, transform_indices = @transform_7, window_bounds = array<i64: 1, 512>}, {transform_indices = @transform_8, window_bounds = array<i64: 8, 16, 128>}, {transform_indices = @transform_9, window_bounds = array<i64: 8, 16, 128>}]} {
    %c0_i32 = arith.constant 0 : i32
    %0 = arith.cmpi eq, %arg0, %c0_i32 : i32
    %1 = arith.extui %0 : i1 to i32
    %c0_i32_0 = arith.constant 0 : i32
    %2 = arith.cmpi ne, %1, %c0_i32_0 : i32
    scf.if %2 {
      %cst_386 = arith.constant 0.000000e+00 : f32
      %785 = vector.broadcast %cst_386 : f32 to vector<16x128xf32>
      %c0_387 = arith.constant 0 : index
      %c0_388 = arith.constant 0 : index
      %786 = vector.load %arg11[%c0_387, %c0_388] : memref<16x128xf32, #tpu.memory_space<vmem>>, vector<16x128xf32>
      tpu.vector_store %arg11[%c0_387, %c0_388], %785 {strides = array<i32>} : memref<16x128xf32, #tpu.memory_space<vmem>>, vector<16x128xf32>,
      %cst_389 = arith.constant 0.000000e+00 : f32
      %787 = vector.broadcast %cst_389 : f32 to vector<16x128xf32>
      %c0_390 = arith.constant 0 : index
      %c0_391 = arith.constant 0 : index
      %788 = vector.load %arg12[%c0_390, %c0_391] : memref<16x128xf32, #tpu.memory_space<vmem>>, vector<16x128xf32>
      tpu.vector_store %arg12[%c0_390, %c0_391], %787 {strides = array<i32>} : memref<16x128xf32, #tpu.memory_space<vmem>>, vector<16x128xf32>,
      %cst_392 = arith.constant 0.000000e+00 : f32
      %789 = vector.broadcast %cst_392 : f32 to vector<16x128xf32>
      %c0_393 = arith.constant 0 : index
      %c0_394 = arith.constant 0 : index
      %790 = vector.load %arg13[%c0_393, %c0_394] : memref<16x128xf32, #tpu.memory_space<vmem>>, vector<16x128xf32>
      tpu.vector_store %arg13[%c0_393, %c0_394], %789 {strides = array<i32>} : memref<16x128xf32, #tpu.memory_space<vmem>>, vector<16x128xf32>,
      %cst_395 = arith.constant 0.000000e+00 : f32
      %791 = vector.broadcast %cst_395 : f32 to vector<16x128xf32>
      %c0_396 = arith.constant 0 : index
      %c0_397 = arith.constant 0 : index
      %792 = vector.load %arg14[%c0_396, %c0_397] : memref<16x128xf32, #tpu.memory_space<vmem>>, vector<16x128xf32>
      tpu.vector_store %arg14[%c0_396, %c0_397], %791 {strides = array<i32>} : memref<16x128xf32, #tpu.memory_space<vmem>>, vector<16x128xf32>,
    } else {
    }
    %c0 = arith.constant 0 : index
    %c0_1 = arith.constant 0 : index
    %c0_2 = arith.constant 0 : index
    %3 = vector.load %arg1[%c0, %c0_1, %c0_2] : memref<8x16x128xbf16, #tpu.memory_space<vmem>>, vector<8x16x128xbf16>
    %4 = vector.shape_cast %3 : vector<8x16x128xbf16> to vector<128x128xbf16>
    %c0_3 = arith.constant 0 : index
    %c0_4 = arith.constant 0 : index
    %5 = vector.load %arg3[%c0_3, %c0_4] : memref<128x512xbf16, #tpu.memory_space<vmem>>, vector<128x512xbf16>
    %cst = arith.constant dense<0.000000e+00> : vector<128x512xf32>
    %6 = tpu.matmul %4, %5, %cst {dimension_numbers = #tpu.dot_dimension_numbers<[1], [0], [0], [1], [0, 0, 1, 1], [], []>} : vector<128x128xbf16>, vector<128x512xbf16>, vector<128x512xf32> -> vector<128x512xf32>
    %c0_5 = arith.constant 0 : index
    %c0_6 = arith.constant 0 : index
    %7 = vector.load %arg7[%c0_5, %c0_6] : memref<1x512xf32, #tpu.memory_space<vmem>>, vector<1x512xf32>
    %8 = vector.broadcast %7 : vector<1x512xf32> to vector<128x512xf32>
    %9 = arith.addf %6, %8 : vector<128x512xf32>
    %10 = vector.shape_cast %9 : vector<128x512xf32> to vector<8x16x512xf32>
    %11 = arith.truncf %10 : vector<8x16x512xf32> to vector<8x16x512xbf16>
    %c0_7 = arith.constant 0 : index
    %c0_8 = arith.constant 0 : index
    %c0_9 = arith.constant 0 : index
    %12 = vector.load %arg15[%c0_7, %c0_8, %c0_9] : memref<8x16x512xbf16, #tpu.memory_space<vmem>>, vector<8x16x512xbf16>
    tpu.vector_store %arg15[%c0_7, %c0_8, %c0_9], %11 {strides = array<i32>} : memref<8x16x512xbf16, #tpu.memory_space<vmem>>, vector<8x16x512xbf16>,
    %c0_10 = arith.constant 0 : index
    %c0_11 = arith.constant 0 : index
    %c0_12 = arith.constant 0 : index
    %13 = vector.load %arg2[%c0_10, %c0_11, %c0_12] : memref<8x16x128xbf16, #tpu.memory_space<vmem>>, vector<8x16x128xbf16>
    %14 = vector.shape_cast %13 : vector<8x16x128xbf16> to vector<128x128xbf16>
    %c0_13 = arith.constant 0 : index
    %c0_14 = arith.constant 0 : index
    %15 = vector.load %arg4[%c0_13, %c0_14] : memref<128x512xbf16, #tpu.memory_space<vmem>>, vector<128x512xbf16>
    %cst_15 = arith.constant dense<0.000000e+00> : vector<128x512xf32>
    %16 = tpu.matmul %14, %15, %cst_15 {dimension_numbers = #tpu.dot_dimension_numbers<[1], [0], [0], [1], [0, 0, 1, 1], [], []>} : vector<128x128xbf16>, vector<128x512xbf16>, vector<128x512xf32> -> vector<128x512xf32>
    %c0_16 = arith.constant 0 : index
    %c0_17 = arith.constant 0 : index
    %17 = vector.load %arg8[%c0_16, %c0_17] : memref<1x512xf32, #tpu.memory_space<vmem>>, vector<1x512xf32>
    %18 = vector.broadcast %17 : vector<1x512xf32> to vector<128x512xf32>
    %19 = arith.addf %16, %18 : vector<128x512xf32>
    %20 = vector.shape_cast %19 : vector<128x512xf32> to vector<8x16x512xf32>
    %21 = arith.truncf %20 : vector<8x16x512xf32> to vector<8x16x512xbf16>
    %c0_18 = arith.constant 0 : index
    %c0_19 = arith.constant 0 : index
    %c0_20 = arith.constant 0 : index
    %22 = vector.load %arg16[%c0_18, %c0_19, %c0_20] : memref<8x16x512xbf16, #tpu.memory_space<vmem>>, vector<8x16x512xbf16>
    tpu.vector_store %arg16[%c0_18, %c0_19, %c0_20], %21 {strides = array<i32>} : memref<8x16x512xbf16, #tpu.memory_space<vmem>>, vector<8x16x512xbf16>,
    %c0_21 = arith.constant 0 : index
    %c0_22 = arith.constant 0 : index
    %23 = vector.load %arg5[%c0_21, %c0_22] : memref<128x512xbf16, #tpu.memory_space<vmem>>, vector<128x512xbf16>
    %c0_23 = arith.constant 0 : index
    %c0_24 = arith.constant 0 : index
    %24 = vector.load %arg6[%c0_23, %c0_24] : memref<128x512xbf16, #tpu.memory_space<vmem>>, vector<128x512xbf16>
    %c0_i32_25 = arith.constant 0 : i32
    %c7_i32 = arith.constant 7 : i32
    %25 = arith.subi %c7_i32, %c0_i32_25 : i32
    %26 = arith.index_cast %c0_i32_25 : i32 to index
    %c0_26 = arith.constant 0 : index
    %c0_27 = arith.constant 0 : index
    %27 = vector.load %arg15[%26, %c0_26, %c0_27] : memref<8x16x512xbf16, #tpu.memory_space<vmem>>, vector<1x16x512xbf16>
    %28 = vector.shape_cast %27 : vector<1x16x512xbf16> to vector<16x512xbf16>
    %29 = arith.extf %28 : vector<16x512xbf16> to vector<16x512xf32>
    %c0_28 = arith.constant 0 : index
    %c0_29 = arith.constant 0 : index
    %30 = vector.load %arg11[%c0_28, %c0_29] : memref<16x128xf32, #tpu.memory_space<vmem>>, vector<16x128xf32>
    %31 = arith.truncf %30 : vector<16x128xf32> to vector<16x128xbf16>
    %cst_30 = arith.constant dense<0.000000e+00> : vector<16x512xf32>
    %32 = tpu.matmul %31, %23, %cst_30 {dimension_numbers = #tpu.dot_dimension_numbers<[1], [0], [0], [1], [0, 0, 1, 1], [], []>} : vector<16x128xbf16>, vector<128x512xbf16>, vector<16x512xf32> -> vector<16x512xf32>
    %33 = arith.addf %29, %32 : vector<16x512xf32>
    %34 = arith.index_cast %25 : i32 to index
    %c0_31 = arith.constant 0 : index
    %c0_32 = arith.constant 0 : index
    %35 = vector.load %arg16[%34, %c0_31, %c0_32] : memref<8x16x512xbf16, #tpu.memory_space<vmem>>, vector<1x16x512xbf16>
    %36 = vector.shape_cast %35 : vector<1x16x512xbf16> to vector<16x512xbf16>
    %37 = arith.extf %36 : vector<16x512xbf16> to vector<16x512xf32>
    %c0_33 = arith.constant 0 : index
    %c0_34 = arith.constant 0 : index
    %38 = vector.load %arg13[%c0_33, %c0_34] : memref<16x128xf32, #tpu.memory_space<vmem>>, vector<16x128xf32>
    %39 = arith.truncf %38 : vector<16x128xf32> to vector<16x128xbf16>
    %cst_35 = arith.constant dense<0.000000e+00> : vector<16x512xf32>
    %40 = tpu.matmul %39, %24, %cst_35 {dimension_numbers = #tpu.dot_dimension_numbers<[1], [0], [0], [1], [0, 0, 1, 1], [], []>} : vector<16x128xbf16>, vector<128x512xbf16>, vector<16x512xf32> -> vector<16x512xf32>
    %41 = arith.addf %37, %40 : vector<16x512xf32>
    %c0_36 = arith.constant 0 : index
    %c0_37 = arith.constant 0 : index
    %42 = vector.load %arg12[%c0_36, %c0_37] : memref<16x128xf32, #tpu.memory_space<vmem>>, vector<16x128xf32>
    %43 = vector.extract_strided_slice %33 {offsets = [0, 0], sizes = [16, 128], strides = [1, 1]} : vector<16x512xf32> to vector<16x128xf32>
    %cst_38 = arith.constant 5.000000e-01 : f32
    %44 = vector.broadcast %cst_38 : f32 to vector<16x128xf32>
    %45 = arith.mulf %44, %43 : vector<16x128xf32>
    %46 = math.tanh %45 : vector<16x128xf32>
    %cst_39 = arith.constant 5.000000e-01 : f32
    %47 = vector.broadcast %cst_39 : f32 to vector<16x128xf32>
    %48 = arith.mulf %47, %46 : vector<16x128xf32>
    %cst_40 = arith.constant 5.000000e-01 : f32
    %49 = vector.broadcast %cst_40 : f32 to vector<16x128xf32>
    %50 = arith.addf %48, %49 : vector<16x128xf32>
    %51 = vector.extract_strided_slice %33 {offsets = [0, 128], sizes = [16, 128], strides = [1, 1]} : vector<16x512xf32> to vector<16x128xf32>
    %cst_41 = arith.constant 5.000000e-01 : f32
    %52 = vector.broadcast %cst_41 : f32 to vector<16x128xf32>
    %53 = arith.mulf %52, %51 : vector<16x128xf32>
    %54 = math.tanh %53 : vector<16x128xf32>
    %cst_42 = arith.constant 5.000000e-01 : f32
    %55 = vector.broadcast %cst_42 : f32 to vector<16x128xf32>
    %56 = arith.mulf %55, %54 : vector<16x128xf32>
    %cst_43 = arith.constant 5.000000e-01 : f32
    %57 = vector.broadcast %cst_43 : f32 to vector<16x128xf32>
    %58 = arith.addf %56, %57 : vector<16x128xf32>
    %59 = vector.extract_strided_slice %33 {offsets = [0, 256], sizes = [16, 128], strides = [1, 1]} : vector<16x512xf32> to vector<16x128xf32>
    %60 = math.tanh %59 : vector<16x128xf32>
    %61 = vector.extract_strided_slice %33 {offsets = [0, 384], sizes = [16, 128], strides = [1, 1]} : vector<16x512xf32> to vector<16x128xf32>
    %cst_44 = arith.constant 5.000000e-01 : f32
    %62 = vector.broadcast %cst_44 : f32 to vector<16x128xf32>
    %63 = arith.mulf %62, %61 : vector<16x128xf32>
    %64 = math.tanh %63 : vector<16x128xf32>
    %cst_45 = arith.constant 5.000000e-01 : f32
    %65 = vector.broadcast %cst_45 : f32 to vector<16x128xf32>
    %66 = arith.mulf %65, %64 : vector<16x128xf32>
    %cst_46 = arith.constant 5.000000e-01 : f32
    %67 = vector.broadcast %cst_46 : f32 to vector<16x128xf32>
    %68 = arith.addf %66, %67 : vector<16x128xf32>
    %69 = arith.mulf %58, %42 : vector<16x128xf32>
    %70 = arith.mulf %50, %60 : vector<16x128xf32>
    %71 = arith.addf %69, %70 : vector<16x128xf32>
    %72 = math.tanh %71 : vector<16x128xf32>
    %73 = arith.mulf %68, %72 : vector<16x128xf32>
    %c0_47 = arith.constant 0 : index
    %c0_48 = arith.constant 0 : index
    %74 = vector.load %arg14[%c0_47, %c0_48] : memref<16x128xf32, #tpu.memory_space<vmem>>, vector<16x128xf32>
    %75 = vector.extract_strided_slice %41 {offsets = [0, 0], sizes = [16, 128], strides = [1, 1]} : vector<16x512xf32> to vector<16x128xf32>
    %cst_49 = arith.constant 5.000000e-01 : f32
    %76 = vector.broadcast %cst_49 : f32 to vector<16x128xf32>
    %77 = arith.mulf %76, %75 : vector<16x128xf32>
    %78 = math.tanh %77 : vector<16x128xf32>
    %cst_50 = arith.constant 5.000000e-01 : f32
    %79 = vector.broadcast %cst_50 : f32 to vector<16x128xf32>
    %80 = arith.mulf %79, %78 : vector<16x128xf32>
    %cst_51 = arith.constant 5.000000e-01 : f32
    %81 = vector.broadcast %cst_51 : f32 to vector<16x128xf32>
    %82 = arith.addf %80, %81 : vector<16x128xf32>
    %83 = vector.extract_strided_slice %41 {offsets = [0, 128], sizes = [16, 128], strides = [1, 1]} : vector<16x512xf32> to vector<16x128xf32>
    %cst_52 = arith.constant 5.000000e-01 : f32
    %84 = vector.broadcast %cst_52 : f32 to vector<16x128xf32>
    %85 = arith.mulf %84, %83 : vector<16x128xf32>
    %86 = math.tanh %85 : vector<16x128xf32>
    %cst_53 = arith.constant 5.000000e-01 : f32
    %87 = vector.broadcast %cst_53 : f32 to vector<16x128xf32>
    %88 = arith.mulf %87, %86 : vector<16x128xf32>
    %cst_54 = arith.constant 5.000000e-01 : f32
    %89 = vector.broadcast %cst_54 : f32 to vector<16x128xf32>
    %90 = arith.addf %88, %89 : vector<16x128xf32>
    %91 = vector.extract_strided_slice %41 {offsets = [0, 256], sizes = [16, 128], strides = [1, 1]} : vector<16x512xf32> to vector<16x128xf32>
    %92 = math.tanh %91 : vector<16x128xf32>
    %93 = vector.extract_strided_slice %41 {offsets = [0, 384], sizes = [16, 128], strides = [1, 1]} : vector<16x512xf32> to vector<16x128xf32>
    %cst_55 = arith.constant 5.000000e-01 : f32
    %94 = vector.broadcast %cst_55 : f32 to vector<16x128xf32>
    %95 = arith.mulf %94, %93 : vector<16x128xf32>
    %96 = math.tanh %95 : vector<16x128xf32>
    %cst_56 = arith.constant 5.000000e-01 : f32
    %97 = vector.broadcast %cst_56 : f32 to vector<16x128xf32>
    %98 = arith.mulf %97, %96 : vector<16x128xf32>
    %cst_57 = arith.constant 5.000000e-01 : f32
    %99 = vector.broadcast %cst_57 : f32 to vector<16x128xf32>
    %100 = arith.addf %98, %99 : vector<16x128xf32>
    %101 = arith.mulf %90, %74 : vector<16x128xf32>
    %102 = arith.mulf %82, %92 : vector<16x128xf32>
    %103 = arith.addf %101, %102 : vector<16x128xf32>
    %104 = math.tanh %103 : vector<16x128xf32>
    %105 = arith.mulf %100, %104 : vector<16x128xf32>
    %c0_58 = arith.constant 0 : index
    %c0_59 = arith.constant 0 : index
    %106 = vector.load %arg11[%c0_58, %c0_59] : memref<16x128xf32, #tpu.memory_space<vmem>>, vector<16x128xf32>
    tpu.vector_store %arg11[%c0_58, %c0_59], %73 {strides = array<i32>} : memref<16x128xf32, #tpu.memory_space<vmem>>, vector<16x128xf32>,
    %c0_60 = arith.constant 0 : index
    %c0_61 = arith.constant 0 : index
    %107 = vector.load %arg12[%c0_60, %c0_61] : memref<16x128xf32, #tpu.memory_space<vmem>>, vector<16x128xf32>
    tpu.vector_store %arg12[%c0_60, %c0_61], %71 {strides = array<i32>} : memref<16x128xf32, #tpu.memory_space<vmem>>, vector<16x128xf32>,
    %c0_62 = arith.constant 0 : index
    %c0_63 = arith.constant 0 : index
    %108 = vector.load %arg13[%c0_62, %c0_63] : memref<16x128xf32, #tpu.memory_space<vmem>>, vector<16x128xf32>
    tpu.vector_store %arg13[%c0_62, %c0_63], %105 {strides = array<i32>} : memref<16x128xf32, #tpu.memory_space<vmem>>, vector<16x128xf32>,
    %c0_64 = arith.constant 0 : index
    %c0_65 = arith.constant 0 : index
    %109 = vector.load %arg14[%c0_64, %c0_65] : memref<16x128xf32, #tpu.memory_space<vmem>>, vector<16x128xf32>
    tpu.vector_store %arg14[%c0_64, %c0_65], %103 {strides = array<i32>} : memref<16x128xf32, #tpu.memory_space<vmem>>, vector<16x128xf32>,
    %110 = arith.truncf %73 : vector<16x128xf32> to vector<16x128xbf16>
    %111 = arith.index_cast %c0_i32_25 : i32 to index
    %c0_66 = arith.constant 0 : index
    %c0_67 = arith.constant 0 : index
    %112 = vector.load %arg9[%111, %c0_66, %c0_67] : memref<8x16x128xbf16, #tpu.memory_space<vmem>>, vector<1x16x128xbf16>
    %113 = vector.shape_cast %112 : vector<1x16x128xbf16> to vector<16x128xbf16>
    %114 = vector.shape_cast %110 : vector<16x128xbf16> to vector<1x16x128xbf16>
    tpu.vector_store %arg9[%111, %c0_66, %c0_67], %114 {strides = array<i32>} : memref<8x16x128xbf16, #tpu.memory_space<vmem>>, vector<1x16x128xbf16>,
    %115 = arith.truncf %105 : vector<16x128xf32> to vector<16x128xbf16>
    %116 = arith.index_cast %25 : i32 to index
    %c0_68 = arith.constant 0 : index
    %c0_69 = arith.constant 0 : index
    %117 = vector.load %arg10[%116, %c0_68, %c0_69] : memref<8x16x128xbf16, #tpu.memory_space<vmem>>, vector<1x16x128xbf16>
    %118 = vector.shape_cast %117 : vector<1x16x128xbf16> to vector<16x128xbf16>
    %119 = vector.shape_cast %115 : vector<16x128xbf16> to vector<1x16x128xbf16>
    tpu.vector_store %arg10[%116, %c0_68, %c0_69], %119 {strides = array<i32>} : memref<8x16x128xbf16, #tpu.memory_space<vmem>>, vector<1x16x128xbf16>,
    %c1_i32 = arith.constant 1 : i32
    %c7_i32_70 = arith.constant 7 : i32
    %120 = arith.subi %c7_i32_70, %c1_i32 : i32
    %121 = arith.index_cast %c1_i32 : i32 to index
    %c0_71 = arith.constant 0 : index
    %c0_72 = arith.constant 0 : index
    %122 = vector.load %arg15[%121, %c0_71, %c0_72] : memref<8x16x512xbf16, #tpu.memory_space<vmem>>, vector<1x16x512xbf16>
    %123 = vector.shape_cast %122 : vector<1x16x512xbf16> to vector<16x512xbf16>
    %124 = arith.extf %123 : vector<16x512xbf16> to vector<16x512xf32>
    %c0_73 = arith.constant 0 : index
    %c0_74 = arith.constant 0 : index
    %125 = vector.load %arg11[%c0_73, %c0_74] : memref<16x128xf32, #tpu.memory_space<vmem>>, vector<16x128xf32>
    %126 = arith.truncf %125 : vector<16x128xf32> to vector<16x128xbf16>
    %cst_75 = arith.constant dense<0.000000e+00> : vector<16x512xf32>
    %127 = tpu.matmul %126, %23, %cst_75 {dimension_numbers = #tpu.dot_dimension_numbers<[1], [0], [0], [1], [0, 0, 1, 1], [], []>} : vector<16x128xbf16>, vector<128x512xbf16>, vector<16x512xf32> -> vector<16x512xf32>
    %128 = arith.addf %124, %127 : vector<16x512xf32>
    %129 = arith.index_cast %120 : i32 to index
    %c0_76 = arith.constant 0 : index
    %c0_77 = arith.constant 0 : index
    %130 = vector.load %arg16[%129, %c0_76, %c0_77] : memref<8x16x512xbf16, #tpu.memory_space<vmem>>, vector<1x16x512xbf16>
    %131 = vector.shape_cast %130 : vector<1x16x512xbf16> to vector<16x512xbf16>
    %132 = arith.extf %131 : vector<16x512xbf16> to vector<16x512xf32>
    %c0_78 = arith.constant 0 : index
    %c0_79 = arith.constant 0 : index
    %133 = vector.load %arg13[%c0_78, %c0_79] : memref<16x128xf32, #tpu.memory_space<vmem>>, vector<16x128xf32>
    %134 = arith.truncf %133 : vector<16x128xf32> to vector<16x128xbf16>
    %cst_80 = arith.constant dense<0.000000e+00> : vector<16x512xf32>
    %135 = tpu.matmul %134, %24, %cst_80 {dimension_numbers = #tpu.dot_dimension_numbers<[1], [0], [0], [1], [0, 0, 1, 1], [], []>} : vector<16x128xbf16>, vector<128x512xbf16>, vector<16x512xf32> -> vector<16x512xf32>
    %136 = arith.addf %132, %135 : vector<16x512xf32>
    %c0_81 = arith.constant 0 : index
    %c0_82 = arith.constant 0 : index
    %137 = vector.load %arg12[%c0_81, %c0_82] : memref<16x128xf32, #tpu.memory_space<vmem>>, vector<16x128xf32>
    %138 = vector.extract_strided_slice %128 {offsets = [0, 0], sizes = [16, 128], strides = [1, 1]} : vector<16x512xf32> to vector<16x128xf32>
    %cst_83 = arith.constant 5.000000e-01 : f32
    %139 = vector.broadcast %cst_83 : f32 to vector<16x128xf32>
    %140 = arith.mulf %139, %138 : vector<16x128xf32>
    %141 = math.tanh %140 : vector<16x128xf32>
    %cst_84 = arith.constant 5.000000e-01 : f32
    %142 = vector.broadcast %cst_84 : f32 to vector<16x128xf32>
    %143 = arith.mulf %142, %141 : vector<16x128xf32>
    %cst_85 = arith.constant 5.000000e-01 : f32
    %144 = vector.broadcast %cst_85 : f32 to vector<16x128xf32>
    %145 = arith.addf %143, %144 : vector<16x128xf32>
    %146 = vector.extract_strided_slice %128 {offsets = [0, 128], sizes = [16, 128], strides = [1, 1]} : vector<16x512xf32> to vector<16x128xf32>
    %cst_86 = arith.constant 5.000000e-01 : f32
    %147 = vector.broadcast %cst_86 : f32 to vector<16x128xf32>
    %148 = arith.mulf %147, %146 : vector<16x128xf32>
    %149 = math.tanh %148 : vector<16x128xf32>
    %cst_87 = arith.constant 5.000000e-01 : f32
    %150 = vector.broadcast %cst_87 : f32 to vector<16x128xf32>
    %151 = arith.mulf %150, %149 : vector<16x128xf32>
    %cst_88 = arith.constant 5.000000e-01 : f32
    %152 = vector.broadcast %cst_88 : f32 to vector<16x128xf32>
    %153 = arith.addf %151, %152 : vector<16x128xf32>
    %154 = vector.extract_strided_slice %128 {offsets = [0, 256], sizes = [16, 128], strides = [1, 1]} : vector<16x512xf32> to vector<16x128xf32>
    %155 = math.tanh %154 : vector<16x128xf32>
    %156 = vector.extract_strided_slice %128 {offsets = [0, 384], sizes = [16, 128], strides = [1, 1]} : vector<16x512xf32> to vector<16x128xf32>
    %cst_89 = arith.constant 5.000000e-01 : f32
    %157 = vector.broadcast %cst_89 : f32 to vector<16x128xf32>
    %158 = arith.mulf %157, %156 : vector<16x128xf32>
    %159 = math.tanh %158 : vector<16x128xf32>
    %cst_90 = arith.constant 5.000000e-01 : f32
    %160 = vector.broadcast %cst_90 : f32 to vector<16x128xf32>
    %161 = arith.mulf %160, %159 : vector<16x128xf32>
    %cst_91 = arith.constant 5.000000e-01 : f32
    %162 = vector.broadcast %cst_91 : f32 to vector<16x128xf32>
    %163 = arith.addf %161, %162 : vector<16x128xf32>
    %164 = arith.mulf %153, %137 : vector<16x128xf32>
    %165 = arith.mulf %145, %155 : vector<16x128xf32>
    %166 = arith.addf %164, %165 : vector<16x128xf32>
    %167 = math.tanh %166 : vector<16x128xf32>
    %168 = arith.mulf %163, %167 : vector<16x128xf32>
    %c0_92 = arith.constant 0 : index
    %c0_93 = arith.constant 0 : index
    %169 = vector.load %arg14[%c0_92, %c0_93] : memref<16x128xf32, #tpu.memory_space<vmem>>, vector<16x128xf32>
    %170 = vector.extract_strided_slice %136 {offsets = [0, 0], sizes = [16, 128], strides = [1, 1]} : vector<16x512xf32> to vector<16x128xf32>
    %cst_94 = arith.constant 5.000000e-01 : f32
    %171 = vector.broadcast %cst_94 : f32 to vector<16x128xf32>
    %172 = arith.mulf %171, %170 : vector<16x128xf32>
    %173 = math.tanh %172 : vector<16x128xf32>
    %cst_95 = arith.constant 5.000000e-01 : f32
    %174 = vector.broadcast %cst_95 : f32 to vector<16x128xf32>
    %175 = arith.mulf %174, %173 : vector<16x128xf32>
    %cst_96 = arith.constant 5.000000e-01 : f32
    %176 = vector.broadcast %cst_96 : f32 to vector<16x128xf32>
    %177 = arith.addf %175, %176 : vector<16x128xf32>
    %178 = vector.extract_strided_slice %136 {offsets = [0, 128], sizes = [16, 128], strides = [1, 1]} : vector<16x512xf32> to vector<16x128xf32>
    %cst_97 = arith.constant 5.000000e-01 : f32
    %179 = vector.broadcast %cst_97 : f32 to vector<16x128xf32>
    %180 = arith.mulf %179, %178 : vector<16x128xf32>
    %181 = math.tanh %180 : vector<16x128xf32>
    %cst_98 = arith.constant 5.000000e-01 : f32
    %182 = vector.broadcast %cst_98 : f32 to vector<16x128xf32>
    %183 = arith.mulf %182, %181 : vector<16x128xf32>
    %cst_99 = arith.constant 5.000000e-01 : f32
    %184 = vector.broadcast %cst_99 : f32 to vector<16x128xf32>
    %185 = arith.addf %183, %184 : vector<16x128xf32>
    %186 = vector.extract_strided_slice %136 {offsets = [0, 256], sizes = [16, 128], strides = [1, 1]} : vector<16x512xf32> to vector<16x128xf32>
    %187 = math.tanh %186 : vector<16x128xf32>
    %188 = vector.extract_strided_slice %136 {offsets = [0, 384], sizes = [16, 128], strides = [1, 1]} : vector<16x512xf32> to vector<16x128xf32>
    %cst_100 = arith.constant 5.000000e-01 : f32
    %189 = vector.broadcast %cst_100 : f32 to vector<16x128xf32>
    %190 = arith.mulf %189, %188 : vector<16x128xf32>
    %191 = math.tanh %190 : vector<16x128xf32>
    %cst_101 = arith.constant 5.000000e-01 : f32
    %192 = vector.broadcast %cst_101 : f32 to vector<16x128xf32>
    %193 = arith.mulf %192, %191 : vector<16x128xf32>
    %cst_102 = arith.constant 5.000000e-01 : f32
    %194 = vector.broadcast %cst_102 : f32 to vector<16x128xf32>
    %195 = arith.addf %193, %194 : vector<16x128xf32>
    %196 = arith.mulf %185, %169 : vector<16x128xf32>
    %197 = arith.mulf %177, %187 : vector<16x128xf32>
    %198 = arith.addf %196, %197 : vector<16x128xf32>
    %199 = math.tanh %198 : vector<16x128xf32>
    %200 = arith.mulf %195, %199 : vector<16x128xf32>
    %c0_103 = arith.constant 0 : index
    %c0_104 = arith.constant 0 : index
    %201 = vector.load %arg11[%c0_103, %c0_104] : memref<16x128xf32, #tpu.memory_space<vmem>>, vector<16x128xf32>
    tpu.vector_store %arg11[%c0_103, %c0_104], %168 {strides = array<i32>} : memref<16x128xf32, #tpu.memory_space<vmem>>, vector<16x128xf32>,
    %c0_105 = arith.constant 0 : index
    %c0_106 = arith.constant 0 : index
    %202 = vector.load %arg12[%c0_105, %c0_106] : memref<16x128xf32, #tpu.memory_space<vmem>>, vector<16x128xf32>
    tpu.vector_store %arg12[%c0_105, %c0_106], %166 {strides = array<i32>} : memref<16x128xf32, #tpu.memory_space<vmem>>, vector<16x128xf32>,
    %c0_107 = arith.constant 0 : index
    %c0_108 = arith.constant 0 : index
    %203 = vector.load %arg13[%c0_107, %c0_108] : memref<16x128xf32, #tpu.memory_space<vmem>>, vector<16x128xf32>
    tpu.vector_store %arg13[%c0_107, %c0_108], %200 {strides = array<i32>} : memref<16x128xf32, #tpu.memory_space<vmem>>, vector<16x128xf32>,
    %c0_109 = arith.constant 0 : index
    %c0_110 = arith.constant 0 : index
    %204 = vector.load %arg14[%c0_109, %c0_110] : memref<16x128xf32, #tpu.memory_space<vmem>>, vector<16x128xf32>
    tpu.vector_store %arg14[%c0_109, %c0_110], %198 {strides = array<i32>} : memref<16x128xf32, #tpu.memory_space<vmem>>, vector<16x128xf32>,
    %205 = arith.truncf %168 : vector<16x128xf32> to vector<16x128xbf16>
    %206 = arith.index_cast %c1_i32 : i32 to index
    %c0_111 = arith.constant 0 : index
    %c0_112 = arith.constant 0 : index
    %207 = vector.load %arg9[%206, %c0_111, %c0_112] : memref<8x16x128xbf16, #tpu.memory_space<vmem>>, vector<1x16x128xbf16>
    %208 = vector.shape_cast %207 : vector<1x16x128xbf16> to vector<16x128xbf16>
    %209 = vector.shape_cast %205 : vector<16x128xbf16> to vector<1x16x128xbf16>
    tpu.vector_store %arg9[%206, %c0_111, %c0_112], %209 {strides = array<i32>} : memref<8x16x128xbf16, #tpu.memory_space<vmem>>, vector<1x16x128xbf16>,
    %210 = arith.truncf %200 : vector<16x128xf32> to vector<16x128xbf16>
    %211 = arith.index_cast %120 : i32 to index
    %c0_113 = arith.constant 0 : index
    %c0_114 = arith.constant 0 : index
    %212 = vector.load %arg10[%211, %c0_113, %c0_114] : memref<8x16x128xbf16, #tpu.memory_space<vmem>>, vector<1x16x128xbf16>
    %213 = vector.shape_cast %212 : vector<1x16x128xbf16> to vector<16x128xbf16>
    %214 = vector.shape_cast %210 : vector<16x128xbf16> to vector<1x16x128xbf16>
    tpu.vector_store %arg10[%211, %c0_113, %c0_114], %214 {strides = array<i32>} : memref<8x16x128xbf16, #tpu.memory_space<vmem>>, vector<1x16x128xbf16>,
    %c2_i32 = arith.constant 2 : i32
    %c7_i32_115 = arith.constant 7 : i32
    %215 = arith.subi %c7_i32_115, %c2_i32 : i32
    %216 = arith.index_cast %c2_i32 : i32 to index
    %c0_116 = arith.constant 0 : index
    %c0_117 = arith.constant 0 : index
    %217 = vector.load %arg15[%216, %c0_116, %c0_117] : memref<8x16x512xbf16, #tpu.memory_space<vmem>>, vector<1x16x512xbf16>
    %218 = vector.shape_cast %217 : vector<1x16x512xbf16> to vector<16x512xbf16>
    %219 = arith.extf %218 : vector<16x512xbf16> to vector<16x512xf32>
    %c0_118 = arith.constant 0 : index
    %c0_119 = arith.constant 0 : index
    %220 = vector.load %arg11[%c0_118, %c0_119] : memref<16x128xf32, #tpu.memory_space<vmem>>, vector<16x128xf32>
    %221 = arith.truncf %220 : vector<16x128xf32> to vector<16x128xbf16>
    %cst_120 = arith.constant dense<0.000000e+00> : vector<16x512xf32>
    %222 = tpu.matmul %221, %23, %cst_120 {dimension_numbers = #tpu.dot_dimension_numbers<[1], [0], [0], [1], [0, 0, 1, 1], [], []>} : vector<16x128xbf16>, vector<128x512xbf16>, vector<16x512xf32> -> vector<16x512xf32>
    %223 = arith.addf %219, %222 : vector<16x512xf32>
    %224 = arith.index_cast %215 : i32 to index
    %c0_121 = arith.constant 0 : index
    %c0_122 = arith.constant 0 : index
    %225 = vector.load %arg16[%224, %c0_121, %c0_122] : memref<8x16x512xbf16, #tpu.memory_space<vmem>>, vector<1x16x512xbf16>
    %226 = vector.shape_cast %225 : vector<1x16x512xbf16> to vector<16x512xbf16>
    %227 = arith.extf %226 : vector<16x512xbf16> to vector<16x512xf32>
    %c0_123 = arith.constant 0 : index
    %c0_124 = arith.constant 0 : index
    %228 = vector.load %arg13[%c0_123, %c0_124] : memref<16x128xf32, #tpu.memory_space<vmem>>, vector<16x128xf32>
    %229 = arith.truncf %228 : vector<16x128xf32> to vector<16x128xbf16>
    %cst_125 = arith.constant dense<0.000000e+00> : vector<16x512xf32>
    %230 = tpu.matmul %229, %24, %cst_125 {dimension_numbers = #tpu.dot_dimension_numbers<[1], [0], [0], [1], [0, 0, 1, 1], [], []>} : vector<16x128xbf16>, vector<128x512xbf16>, vector<16x512xf32> -> vector<16x512xf32>
    %231 = arith.addf %227, %230 : vector<16x512xf32>
    %c0_126 = arith.constant 0 : index
    %c0_127 = arith.constant 0 : index
    %232 = vector.load %arg12[%c0_126, %c0_127] : memref<16x128xf32, #tpu.memory_space<vmem>>, vector<16x128xf32>
    %233 = vector.extract_strided_slice %223 {offsets = [0, 0], sizes = [16, 128], strides = [1, 1]} : vector<16x512xf32> to vector<16x128xf32>
    %cst_128 = arith.constant 5.000000e-01 : f32
    %234 = vector.broadcast %cst_128 : f32 to vector<16x128xf32>
    %235 = arith.mulf %234, %233 : vector<16x128xf32>
    %236 = math.tanh %235 : vector<16x128xf32>
    %cst_129 = arith.constant 5.000000e-01 : f32
    %237 = vector.broadcast %cst_129 : f32 to vector<16x128xf32>
    %238 = arith.mulf %237, %236 : vector<16x128xf32>
    %cst_130 = arith.constant 5.000000e-01 : f32
    %239 = vector.broadcast %cst_130 : f32 to vector<16x128xf32>
    %240 = arith.addf %238, %239 : vector<16x128xf32>
    %241 = vector.extract_strided_slice %223 {offsets = [0, 128], sizes = [16, 128], strides = [1, 1]} : vector<16x512xf32> to vector<16x128xf32>
    %cst_131 = arith.constant 5.000000e-01 : f32
    %242 = vector.broadcast %cst_131 : f32 to vector<16x128xf32>
    %243 = arith.mulf %242, %241 : vector<16x128xf32>
    %244 = math.tanh %243 : vector<16x128xf32>
    %cst_132 = arith.constant 5.000000e-01 : f32
    %245 = vector.broadcast %cst_132 : f32 to vector<16x128xf32>
    %246 = arith.mulf %245, %244 : vector<16x128xf32>
    %cst_133 = arith.constant 5.000000e-01 : f32
    %247 = vector.broadcast %cst_133 : f32 to vector<16x128xf32>
    %248 = arith.addf %246, %247 : vector<16x128xf32>
    %249 = vector.extract_strided_slice %223 {offsets = [0, 256], sizes = [16, 128], strides = [1, 1]} : vector<16x512xf32> to vector<16x128xf32>
    %250 = math.tanh %249 : vector<16x128xf32>
    %251 = vector.extract_strided_slice %223 {offsets = [0, 384], sizes = [16, 128], strides = [1, 1]} : vector<16x512xf32> to vector<16x128xf32>
    %cst_134 = arith.constant 5.000000e-01 : f32
    %252 = vector.broadcast %cst_134 : f32 to vector<16x128xf32>
    %253 = arith.mulf %252, %251 : vector<16x128xf32>
    %254 = math.tanh %253 : vector<16x128xf32>
    %cst_135 = arith.constant 5.000000e-01 : f32
    %255 = vector.broadcast %cst_135 : f32 to vector<16x128xf32>
    %256 = arith.mulf %255, %254 : vector<16x128xf32>
    %cst_136 = arith.constant 5.000000e-01 : f32
    %257 = vector.broadcast %cst_136 : f32 to vector<16x128xf32>
    %258 = arith.addf %256, %257 : vector<16x128xf32>
    %259 = arith.mulf %248, %232 : vector<16x128xf32>
    %260 = arith.mulf %240, %250 : vector<16x128xf32>
    %261 = arith.addf %259, %260 : vector<16x128xf32>
    %262 = math.tanh %261 : vector<16x128xf32>
    %263 = arith.mulf %258, %262 : vector<16x128xf32>
    %c0_137 = arith.constant 0 : index
    %c0_138 = arith.constant 0 : index
    %264 = vector.load %arg14[%c0_137, %c0_138] : memref<16x128xf32, #tpu.memory_space<vmem>>, vector<16x128xf32>
    %265 = vector.extract_strided_slice %231 {offsets = [0, 0], sizes = [16, 128], strides = [1, 1]} : vector<16x512xf32> to vector<16x128xf32>
    %cst_139 = arith.constant 5.000000e-01 : f32
    %266 = vector.broadcast %cst_139 : f32 to vector<16x128xf32>
    %267 = arith.mulf %266, %265 : vector<16x128xf32>
    %268 = math.tanh %267 : vector<16x128xf32>
    %cst_140 = arith.constant 5.000000e-01 : f32
    %269 = vector.broadcast %cst_140 : f32 to vector<16x128xf32>
    %270 = arith.mulf %269, %268 : vector<16x128xf32>
    %cst_141 = arith.constant 5.000000e-01 : f32
    %271 = vector.broadcast %cst_141 : f32 to vector<16x128xf32>
    %272 = arith.addf %270, %271 : vector<16x128xf32>
    %273 = vector.extract_strided_slice %231 {offsets = [0, 128], sizes = [16, 128], strides = [1, 1]} : vector<16x512xf32> to vector<16x128xf32>
    %cst_142 = arith.constant 5.000000e-01 : f32
    %274 = vector.broadcast %cst_142 : f32 to vector<16x128xf32>
    %275 = arith.mulf %274, %273 : vector<16x128xf32>
    %276 = math.tanh %275 : vector<16x128xf32>
    %cst_143 = arith.constant 5.000000e-01 : f32
    %277 = vector.broadcast %cst_143 : f32 to vector<16x128xf32>
    %278 = arith.mulf %277, %276 : vector<16x128xf32>
    %cst_144 = arith.constant 5.000000e-01 : f32
    %279 = vector.broadcast %cst_144 : f32 to vector<16x128xf32>
    %280 = arith.addf %278, %279 : vector<16x128xf32>
    %281 = vector.extract_strided_slice %231 {offsets = [0, 256], sizes = [16, 128], strides = [1, 1]} : vector<16x512xf32> to vector<16x128xf32>
    %282 = math.tanh %281 : vector<16x128xf32>
    %283 = vector.extract_strided_slice %231 {offsets = [0, 384], sizes = [16, 128], strides = [1, 1]} : vector<16x512xf32> to vector<16x128xf32>
    %cst_145 = arith.constant 5.000000e-01 : f32
    %284 = vector.broadcast %cst_145 : f32 to vector<16x128xf32>
    %285 = arith.mulf %284, %283 : vector<16x128xf32>
    %286 = math.tanh %285 : vector<16x128xf32>
    %cst_146 = arith.constant 5.000000e-01 : f32
    %287 = vector.broadcast %cst_146 : f32 to vector<16x128xf32>
    %288 = arith.mulf %287, %286 : vector<16x128xf32>
    %cst_147 = arith.constant 5.000000e-01 : f32
    %289 = vector.broadcast %cst_147 : f32 to vector<16x128xf32>
    %290 = arith.addf %288, %289 : vector<16x128xf32>
    %291 = arith.mulf %280, %264 : vector<16x128xf32>
    %292 = arith.mulf %272, %282 : vector<16x128xf32>
    %293 = arith.addf %291, %292 : vector<16x128xf32>
    %294 = math.tanh %293 : vector<16x128xf32>
    %295 = arith.mulf %290, %294 : vector<16x128xf32>
    %c0_148 = arith.constant 0 : index
    %c0_149 = arith.constant 0 : index
    %296 = vector.load %arg11[%c0_148, %c0_149] : memref<16x128xf32, #tpu.memory_space<vmem>>, vector<16x128xf32>
    tpu.vector_store %arg11[%c0_148, %c0_149], %263 {strides = array<i32>} : memref<16x128xf32, #tpu.memory_space<vmem>>, vector<16x128xf32>,
    %c0_150 = arith.constant 0 : index
    %c0_151 = arith.constant 0 : index
    %297 = vector.load %arg12[%c0_150, %c0_151] : memref<16x128xf32, #tpu.memory_space<vmem>>, vector<16x128xf32>
    tpu.vector_store %arg12[%c0_150, %c0_151], %261 {strides = array<i32>} : memref<16x128xf32, #tpu.memory_space<vmem>>, vector<16x128xf32>,
    %c0_152 = arith.constant 0 : index
    %c0_153 = arith.constant 0 : index
    %298 = vector.load %arg13[%c0_152, %c0_153] : memref<16x128xf32, #tpu.memory_space<vmem>>, vector<16x128xf32>
    tpu.vector_store %arg13[%c0_152, %c0_153], %295 {strides = array<i32>} : memref<16x128xf32, #tpu.memory_space<vmem>>, vector<16x128xf32>,
    %c0_154 = arith.constant 0 : index
    %c0_155 = arith.constant 0 : index
    %299 = vector.load %arg14[%c0_154, %c0_155] : memref<16x128xf32, #tpu.memory_space<vmem>>, vector<16x128xf32>
    tpu.vector_store %arg14[%c0_154, %c0_155], %293 {strides = array<i32>} : memref<16x128xf32, #tpu.memory_space<vmem>>, vector<16x128xf32>,
    %300 = arith.truncf %263 : vector<16x128xf32> to vector<16x128xbf16>
    %301 = arith.index_cast %c2_i32 : i32 to index
    %c0_156 = arith.constant 0 : index
    %c0_157 = arith.constant 0 : index
    %302 = vector.load %arg9[%301, %c0_156, %c0_157] : memref<8x16x128xbf16, #tpu.memory_space<vmem>>, vector<1x16x128xbf16>
    %303 = vector.shape_cast %302 : vector<1x16x128xbf16> to vector<16x128xbf16>
    %304 = vector.shape_cast %300 : vector<16x128xbf16> to vector<1x16x128xbf16>
    tpu.vector_store %arg9[%301, %c0_156, %c0_157], %304 {strides = array<i32>} : memref<8x16x128xbf16, #tpu.memory_space<vmem>>, vector<1x16x128xbf16>,
    %305 = arith.truncf %295 : vector<16x128xf32> to vector<16x128xbf16>
    %306 = arith.index_cast %215 : i32 to index
    %c0_158 = arith.constant 0 : index
    %c0_159 = arith.constant 0 : index
    %307 = vector.load %arg10[%306, %c0_158, %c0_159] : memref<8x16x128xbf16, #tpu.memory_space<vmem>>, vector<1x16x128xbf16>
    %308 = vector.shape_cast %307 : vector<1x16x128xbf16> to vector<16x128xbf16>
    %309 = vector.shape_cast %305 : vector<16x128xbf16> to vector<1x16x128xbf16>
    tpu.vector_store %arg10[%306, %c0_158, %c0_159], %309 {strides = array<i32>} : memref<8x16x128xbf16, #tpu.memory_space<vmem>>, vector<1x16x128xbf16>,
    %c3_i32 = arith.constant 3 : i32
    %c7_i32_160 = arith.constant 7 : i32
    %310 = arith.subi %c7_i32_160, %c3_i32 : i32
    %311 = arith.index_cast %c3_i32 : i32 to index
    %c0_161 = arith.constant 0 : index
    %c0_162 = arith.constant 0 : index
    %312 = vector.load %arg15[%311, %c0_161, %c0_162] : memref<8x16x512xbf16, #tpu.memory_space<vmem>>, vector<1x16x512xbf16>
    %313 = vector.shape_cast %312 : vector<1x16x512xbf16> to vector<16x512xbf16>
    %314 = arith.extf %313 : vector<16x512xbf16> to vector<16x512xf32>
    %c0_163 = arith.constant 0 : index
    %c0_164 = arith.constant 0 : index
    %315 = vector.load %arg11[%c0_163, %c0_164] : memref<16x128xf32, #tpu.memory_space<vmem>>, vector<16x128xf32>
    %316 = arith.truncf %315 : vector<16x128xf32> to vector<16x128xbf16>
    %cst_165 = arith.constant dense<0.000000e+00> : vector<16x512xf32>
    %317 = tpu.matmul %316, %23, %cst_165 {dimension_numbers = #tpu.dot_dimension_numbers<[1], [0], [0], [1], [0, 0, 1, 1], [], []>} : vector<16x128xbf16>, vector<128x512xbf16>, vector<16x512xf32> -> vector<16x512xf32>
    %318 = arith.addf %314, %317 : vector<16x512xf32>
    %319 = arith.index_cast %310 : i32 to index
    %c0_166 = arith.constant 0 : index
    %c0_167 = arith.constant 0 : index
    %320 = vector.load %arg16[%319, %c0_166, %c0_167] : memref<8x16x512xbf16, #tpu.memory_space<vmem>>, vector<1x16x512xbf16>
    %321 = vector.shape_cast %320 : vector<1x16x512xbf16> to vector<16x512xbf16>
    %322 = arith.extf %321 : vector<16x512xbf16> to vector<16x512xf32>
    %c0_168 = arith.constant 0 : index
    %c0_169 = arith.constant 0 : index
    %323 = vector.load %arg13[%c0_168, %c0_169] : memref<16x128xf32, #tpu.memory_space<vmem>>, vector<16x128xf32>
    %324 = arith.truncf %323 : vector<16x128xf32> to vector<16x128xbf16>
    %cst_170 = arith.constant dense<0.000000e+00> : vector<16x512xf32>
    %325 = tpu.matmul %324, %24, %cst_170 {dimension_numbers = #tpu.dot_dimension_numbers<[1], [0], [0], [1], [0, 0, 1, 1], [], []>} : vector<16x128xbf16>, vector<128x512xbf16>, vector<16x512xf32> -> vector<16x512xf32>
    %326 = arith.addf %322, %325 : vector<16x512xf32>
    %c0_171 = arith.constant 0 : index
    %c0_172 = arith.constant 0 : index
    %327 = vector.load %arg12[%c0_171, %c0_172] : memref<16x128xf32, #tpu.memory_space<vmem>>, vector<16x128xf32>
    %328 = vector.extract_strided_slice %318 {offsets = [0, 0], sizes = [16, 128], strides = [1, 1]} : vector<16x512xf32> to vector<16x128xf32>
    %cst_173 = arith.constant 5.000000e-01 : f32
    %329 = vector.broadcast %cst_173 : f32 to vector<16x128xf32>
    %330 = arith.mulf %329, %328 : vector<16x128xf32>
    %331 = math.tanh %330 : vector<16x128xf32>
    %cst_174 = arith.constant 5.000000e-01 : f32
    %332 = vector.broadcast %cst_174 : f32 to vector<16x128xf32>
    %333 = arith.mulf %332, %331 : vector<16x128xf32>
    %cst_175 = arith.constant 5.000000e-01 : f32
    %334 = vector.broadcast %cst_175 : f32 to vector<16x128xf32>
    %335 = arith.addf %333, %334 : vector<16x128xf32>
    %336 = vector.extract_strided_slice %318 {offsets = [0, 128], sizes = [16, 128], strides = [1, 1]} : vector<16x512xf32> to vector<16x128xf32>
    %cst_176 = arith.constant 5.000000e-01 : f32
    %337 = vector.broadcast %cst_176 : f32 to vector<16x128xf32>
    %338 = arith.mulf %337, %336 : vector<16x128xf32>
    %339 = math.tanh %338 : vector<16x128xf32>
    %cst_177 = arith.constant 5.000000e-01 : f32
    %340 = vector.broadcast %cst_177 : f32 to vector<16x128xf32>
    %341 = arith.mulf %340, %339 : vector<16x128xf32>
    %cst_178 = arith.constant 5.000000e-01 : f32
    %342 = vector.broadcast %cst_178 : f32 to vector<16x128xf32>
    %343 = arith.addf %341, %342 : vector<16x128xf32>
    %344 = vector.extract_strided_slice %318 {offsets = [0, 256], sizes = [16, 128], strides = [1, 1]} : vector<16x512xf32> to vector<16x128xf32>
    %345 = math.tanh %344 : vector<16x128xf32>
    %346 = vector.extract_strided_slice %318 {offsets = [0, 384], sizes = [16, 128], strides = [1, 1]} : vector<16x512xf32> to vector<16x128xf32>
    %cst_179 = arith.constant 5.000000e-01 : f32
    %347 = vector.broadcast %cst_179 : f32 to vector<16x128xf32>
    %348 = arith.mulf %347, %346 : vector<16x128xf32>
    %349 = math.tanh %348 : vector<16x128xf32>
    %cst_180 = arith.constant 5.000000e-01 : f32
    %350 = vector.broadcast %cst_180 : f32 to vector<16x128xf32>
    %351 = arith.mulf %350, %349 : vector<16x128xf32>
    %cst_181 = arith.constant 5.000000e-01 : f32
    %352 = vector.broadcast %cst_181 : f32 to vector<16x128xf32>
    %353 = arith.addf %351, %352 : vector<16x128xf32>
    %354 = arith.mulf %343, %327 : vector<16x128xf32>
    %355 = arith.mulf %335, %345 : vector<16x128xf32>
    %356 = arith.addf %354, %355 : vector<16x128xf32>
    %357 = math.tanh %356 : vector<16x128xf32>
    %358 = arith.mulf %353, %357 : vector<16x128xf32>
    %c0_182 = arith.constant 0 : index
    %c0_183 = arith.constant 0 : index
    %359 = vector.load %arg14[%c0_182, %c0_183] : memref<16x128xf32, #tpu.memory_space<vmem>>, vector<16x128xf32>
    %360 = vector.extract_strided_slice %326 {offsets = [0, 0], sizes = [16, 128], strides = [1, 1]} : vector<16x512xf32> to vector<16x128xf32>
    %cst_184 = arith.constant 5.000000e-01 : f32
    %361 = vector.broadcast %cst_184 : f32 to vector<16x128xf32>
    %362 = arith.mulf %361, %360 : vector<16x128xf32>
    %363 = math.tanh %362 : vector<16x128xf32>
    %cst_185 = arith.constant 5.000000e-01 : f32
    %364 = vector.broadcast %cst_185 : f32 to vector<16x128xf32>
    %365 = arith.mulf %364, %363 : vector<16x128xf32>
    %cst_186 = arith.constant 5.000000e-01 : f32
    %366 = vector.broadcast %cst_186 : f32 to vector<16x128xf32>
    %367 = arith.addf %365, %366 : vector<16x128xf32>
    %368 = vector.extract_strided_slice %326 {offsets = [0, 128], sizes = [16, 128], strides = [1, 1]} : vector<16x512xf32> to vector<16x128xf32>
    %cst_187 = arith.constant 5.000000e-01 : f32
    %369 = vector.broadcast %cst_187 : f32 to vector<16x128xf32>
    %370 = arith.mulf %369, %368 : vector<16x128xf32>
    %371 = math.tanh %370 : vector<16x128xf32>
    %cst_188 = arith.constant 5.000000e-01 : f32
    %372 = vector.broadcast %cst_188 : f32 to vector<16x128xf32>
    %373 = arith.mulf %372, %371 : vector<16x128xf32>
    %cst_189 = arith.constant 5.000000e-01 : f32
    %374 = vector.broadcast %cst_189 : f32 to vector<16x128xf32>
    %375 = arith.addf %373, %374 : vector<16x128xf32>
    %376 = vector.extract_strided_slice %326 {offsets = [0, 256], sizes = [16, 128], strides = [1, 1]} : vector<16x512xf32> to vector<16x128xf32>
    %377 = math.tanh %376 : vector<16x128xf32>
    %378 = vector.extract_strided_slice %326 {offsets = [0, 384], sizes = [16, 128], strides = [1, 1]} : vector<16x512xf32> to vector<16x128xf32>
    %cst_190 = arith.constant 5.000000e-01 : f32
    %379 = vector.broadcast %cst_190 : f32 to vector<16x128xf32>
    %380 = arith.mulf %379, %378 : vector<16x128xf32>
    %381 = math.tanh %380 : vector<16x128xf32>
    %cst_191 = arith.constant 5.000000e-01 : f32
    %382 = vector.broadcast %cst_191 : f32 to vector<16x128xf32>
    %383 = arith.mulf %382, %381 : vector<16x128xf32>
    %cst_192 = arith.constant 5.000000e-01 : f32
    %384 = vector.broadcast %cst_192 : f32 to vector<16x128xf32>
    %385 = arith.addf %383, %384 : vector<16x128xf32>
    %386 = arith.mulf %375, %359 : vector<16x128xf32>
    %387 = arith.mulf %367, %377 : vector<16x128xf32>
    %388 = arith.addf %386, %387 : vector<16x128xf32>
    %389 = math.tanh %388 : vector<16x128xf32>
    %390 = arith.mulf %385, %389 : vector<16x128xf32>
    %c0_193 = arith.constant 0 : index
    %c0_194 = arith.constant 0 : index
    %391 = vector.load %arg11[%c0_193, %c0_194] : memref<16x128xf32, #tpu.memory_space<vmem>>, vector<16x128xf32>
    tpu.vector_store %arg11[%c0_193, %c0_194], %358 {strides = array<i32>} : memref<16x128xf32, #tpu.memory_space<vmem>>, vector<16x128xf32>,
    %c0_195 = arith.constant 0 : index
    %c0_196 = arith.constant 0 : index
    %392 = vector.load %arg12[%c0_195, %c0_196] : memref<16x128xf32, #tpu.memory_space<vmem>>, vector<16x128xf32>
    tpu.vector_store %arg12[%c0_195, %c0_196], %356 {strides = array<i32>} : memref<16x128xf32, #tpu.memory_space<vmem>>, vector<16x128xf32>,
    %c0_197 = arith.constant 0 : index
    %c0_198 = arith.constant 0 : index
    %393 = vector.load %arg13[%c0_197, %c0_198] : memref<16x128xf32, #tpu.memory_space<vmem>>, vector<16x128xf32>
    tpu.vector_store %arg13[%c0_197, %c0_198], %390 {strides = array<i32>} : memref<16x128xf32, #tpu.memory_space<vmem>>, vector<16x128xf32>,
    %c0_199 = arith.constant 0 : index
    %c0_200 = arith.constant 0 : index
    %394 = vector.load %arg14[%c0_199, %c0_200] : memref<16x128xf32, #tpu.memory_space<vmem>>, vector<16x128xf32>
    tpu.vector_store %arg14[%c0_199, %c0_200], %388 {strides = array<i32>} : memref<16x128xf32, #tpu.memory_space<vmem>>, vector<16x128xf32>,
    %395 = arith.truncf %358 : vector<16x128xf32> to vector<16x128xbf16>
    %396 = arith.index_cast %c3_i32 : i32 to index
    %c0_201 = arith.constant 0 : index
    %c0_202 = arith.constant 0 : index
    %397 = vector.load %arg9[%396, %c0_201, %c0_202] : memref<8x16x128xbf16, #tpu.memory_space<vmem>>, vector<1x16x128xbf16>
    %398 = vector.shape_cast %397 : vector<1x16x128xbf16> to vector<16x128xbf16>
    %399 = vector.shape_cast %395 : vector<16x128xbf16> to vector<1x16x128xbf16>
    tpu.vector_store %arg9[%396, %c0_201, %c0_202], %399 {strides = array<i32>} : memref<8x16x128xbf16, #tpu.memory_space<vmem>>, vector<1x16x128xbf16>,
    %400 = arith.truncf %390 : vector<16x128xf32> to vector<16x128xbf16>
    %401 = arith.index_cast %310 : i32 to index
    %c0_203 = arith.constant 0 : index
    %c0_204 = arith.constant 0 : index
    %402 = vector.load %arg10[%401, %c0_203, %c0_204] : memref<8x16x128xbf16, #tpu.memory_space<vmem>>, vector<1x16x128xbf16>
    %403 = vector.shape_cast %402 : vector<1x16x128xbf16> to vector<16x128xbf16>
    %404 = vector.shape_cast %400 : vector<16x128xbf16> to vector<1x16x128xbf16>
    tpu.vector_store %arg10[%401, %c0_203, %c0_204], %404 {strides = array<i32>} : memref<8x16x128xbf16, #tpu.memory_space<vmem>>, vector<1x16x128xbf16>,
    %c4_i32 = arith.constant 4 : i32
    %c7_i32_205 = arith.constant 7 : i32
    %405 = arith.subi %c7_i32_205, %c4_i32 : i32
    %406 = arith.index_cast %c4_i32 : i32 to index
    %c0_206 = arith.constant 0 : index
    %c0_207 = arith.constant 0 : index
    %407 = vector.load %arg15[%406, %c0_206, %c0_207] : memref<8x16x512xbf16, #tpu.memory_space<vmem>>, vector<1x16x512xbf16>
    %408 = vector.shape_cast %407 : vector<1x16x512xbf16> to vector<16x512xbf16>
    %409 = arith.extf %408 : vector<16x512xbf16> to vector<16x512xf32>
    %c0_208 = arith.constant 0 : index
    %c0_209 = arith.constant 0 : index
    %410 = vector.load %arg11[%c0_208, %c0_209] : memref<16x128xf32, #tpu.memory_space<vmem>>, vector<16x128xf32>
    %411 = arith.truncf %410 : vector<16x128xf32> to vector<16x128xbf16>
    %cst_210 = arith.constant dense<0.000000e+00> : vector<16x512xf32>
    %412 = tpu.matmul %411, %23, %cst_210 {dimension_numbers = #tpu.dot_dimension_numbers<[1], [0], [0], [1], [0, 0, 1, 1], [], []>} : vector<16x128xbf16>, vector<128x512xbf16>, vector<16x512xf32> -> vector<16x512xf32>
    %413 = arith.addf %409, %412 : vector<16x512xf32>
    %414 = arith.index_cast %405 : i32 to index
    %c0_211 = arith.constant 0 : index
    %c0_212 = arith.constant 0 : index
    %415 = vector.load %arg16[%414, %c0_211, %c0_212] : memref<8x16x512xbf16, #tpu.memory_space<vmem>>, vector<1x16x512xbf16>
    %416 = vector.shape_cast %415 : vector<1x16x512xbf16> to vector<16x512xbf16>
    %417 = arith.extf %416 : vector<16x512xbf16> to vector<16x512xf32>
    %c0_213 = arith.constant 0 : index
    %c0_214 = arith.constant 0 : index
    %418 = vector.load %arg13[%c0_213, %c0_214] : memref<16x128xf32, #tpu.memory_space<vmem>>, vector<16x128xf32>
    %419 = arith.truncf %418 : vector<16x128xf32> to vector<16x128xbf16>
    %cst_215 = arith.constant dense<0.000000e+00> : vector<16x512xf32>
    %420 = tpu.matmul %419, %24, %cst_215 {dimension_numbers = #tpu.dot_dimension_numbers<[1], [0], [0], [1], [0, 0, 1, 1], [], []>} : vector<16x128xbf16>, vector<128x512xbf16>, vector<16x512xf32> -> vector<16x512xf32>
    %421 = arith.addf %417, %420 : vector<16x512xf32>
    %c0_216 = arith.constant 0 : index
    %c0_217 = arith.constant 0 : index
    %422 = vector.load %arg12[%c0_216, %c0_217] : memref<16x128xf32, #tpu.memory_space<vmem>>, vector<16x128xf32>
    %423 = vector.extract_strided_slice %413 {offsets = [0, 0], sizes = [16, 128], strides = [1, 1]} : vector<16x512xf32> to vector<16x128xf32>
    %cst_218 = arith.constant 5.000000e-01 : f32
    %424 = vector.broadcast %cst_218 : f32 to vector<16x128xf32>
    %425 = arith.mulf %424, %423 : vector<16x128xf32>
    %426 = math.tanh %425 : vector<16x128xf32>
    %cst_219 = arith.constant 5.000000e-01 : f32
    %427 = vector.broadcast %cst_219 : f32 to vector<16x128xf32>
    %428 = arith.mulf %427, %426 : vector<16x128xf32>
    %cst_220 = arith.constant 5.000000e-01 : f32
    %429 = vector.broadcast %cst_220 : f32 to vector<16x128xf32>
    %430 = arith.addf %428, %429 : vector<16x128xf32>
    %431 = vector.extract_strided_slice %413 {offsets = [0, 128], sizes = [16, 128], strides = [1, 1]} : vector<16x512xf32> to vector<16x128xf32>
    %cst_221 = arith.constant 5.000000e-01 : f32
    %432 = vector.broadcast %cst_221 : f32 to vector<16x128xf32>
    %433 = arith.mulf %432, %431 : vector<16x128xf32>
    %434 = math.tanh %433 : vector<16x128xf32>
    %cst_222 = arith.constant 5.000000e-01 : f32
    %435 = vector.broadcast %cst_222 : f32 to vector<16x128xf32>
    %436 = arith.mulf %435, %434 : vector<16x128xf32>
    %cst_223 = arith.constant 5.000000e-01 : f32
    %437 = vector.broadcast %cst_223 : f32 to vector<16x128xf32>
    %438 = arith.addf %436, %437 : vector<16x128xf32>
    %439 = vector.extract_strided_slice %413 {offsets = [0, 256], sizes = [16, 128], strides = [1, 1]} : vector<16x512xf32> to vector<16x128xf32>
    %440 = math.tanh %439 : vector<16x128xf32>
    %441 = vector.extract_strided_slice %413 {offsets = [0, 384], sizes = [16, 128], strides = [1, 1]} : vector<16x512xf32> to vector<16x128xf32>
    %cst_224 = arith.constant 5.000000e-01 : f32
    %442 = vector.broadcast %cst_224 : f32 to vector<16x128xf32>
    %443 = arith.mulf %442, %441 : vector<16x128xf32>
    %444 = math.tanh %443 : vector<16x128xf32>
    %cst_225 = arith.constant 5.000000e-01 : f32
    %445 = vector.broadcast %cst_225 : f32 to vector<16x128xf32>
    %446 = arith.mulf %445, %444 : vector<16x128xf32>
    %cst_226 = arith.constant 5.000000e-01 : f32
    %447 = vector.broadcast %cst_226 : f32 to vector<16x128xf32>
    %448 = arith.addf %446, %447 : vector<16x128xf32>
    %449 = arith.mulf %438, %422 : vector<16x128xf32>
    %450 = arith.mulf %430, %440 : vector<16x128xf32>
    %451 = arith.addf %449, %450 : vector<16x128xf32>
    %452 = math.tanh %451 : vector<16x128xf32>
    %453 = arith.mulf %448, %452 : vector<16x128xf32>
    %c0_227 = arith.constant 0 : index
    %c0_228 = arith.constant 0 : index
    %454 = vector.load %arg14[%c0_227, %c0_228] : memref<16x128xf32, #tpu.memory_space<vmem>>, vector<16x128xf32>
    %455 = vector.extract_strided_slice %421 {offsets = [0, 0], sizes = [16, 128], strides = [1, 1]} : vector<16x512xf32> to vector<16x128xf32>
    %cst_229 = arith.constant 5.000000e-01 : f32
    %456 = vector.broadcast %cst_229 : f32 to vector<16x128xf32>
    %457 = arith.mulf %456, %455 : vector<16x128xf32>
    %458 = math.tanh %457 : vector<16x128xf32>
    %cst_230 = arith.constant 5.000000e-01 : f32
    %459 = vector.broadcast %cst_230 : f32 to vector<16x128xf32>
    %460 = arith.mulf %459, %458 : vector<16x128xf32>
    %cst_231 = arith.constant 5.000000e-01 : f32
    %461 = vector.broadcast %cst_231 : f32 to vector<16x128xf32>
    %462 = arith.addf %460, %461 : vector<16x128xf32>
    %463 = vector.extract_strided_slice %421 {offsets = [0, 128], sizes = [16, 128], strides = [1, 1]} : vector<16x512xf32> to vector<16x128xf32>
    %cst_232 = arith.constant 5.000000e-01 : f32
    %464 = vector.broadcast %cst_232 : f32 to vector<16x128xf32>
    %465 = arith.mulf %464, %463 : vector<16x128xf32>
    %466 = math.tanh %465 : vector<16x128xf32>
    %cst_233 = arith.constant 5.000000e-01 : f32
    %467 = vector.broadcast %cst_233 : f32 to vector<16x128xf32>
    %468 = arith.mulf %467, %466 : vector<16x128xf32>
    %cst_234 = arith.constant 5.000000e-01 : f32
    %469 = vector.broadcast %cst_234 : f32 to vector<16x128xf32>
    %470 = arith.addf %468, %469 : vector<16x128xf32>
    %471 = vector.extract_strided_slice %421 {offsets = [0, 256], sizes = [16, 128], strides = [1, 1]} : vector<16x512xf32> to vector<16x128xf32>
    %472 = math.tanh %471 : vector<16x128xf32>
    %473 = vector.extract_strided_slice %421 {offsets = [0, 384], sizes = [16, 128], strides = [1, 1]} : vector<16x512xf32> to vector<16x128xf32>
    %cst_235 = arith.constant 5.000000e-01 : f32
    %474 = vector.broadcast %cst_235 : f32 to vector<16x128xf32>
    %475 = arith.mulf %474, %473 : vector<16x128xf32>
    %476 = math.tanh %475 : vector<16x128xf32>
    %cst_236 = arith.constant 5.000000e-01 : f32
    %477 = vector.broadcast %cst_236 : f32 to vector<16x128xf32>
    %478 = arith.mulf %477, %476 : vector<16x128xf32>
    %cst_237 = arith.constant 5.000000e-01 : f32
    %479 = vector.broadcast %cst_237 : f32 to vector<16x128xf32>
    %480 = arith.addf %478, %479 : vector<16x128xf32>
    %481 = arith.mulf %470, %454 : vector<16x128xf32>
    %482 = arith.mulf %462, %472 : vector<16x128xf32>
    %483 = arith.addf %481, %482 : vector<16x128xf32>
    %484 = math.tanh %483 : vector<16x128xf32>
    %485 = arith.mulf %480, %484 : vector<16x128xf32>
    %c0_238 = arith.constant 0 : index
    %c0_239 = arith.constant 0 : index
    %486 = vector.load %arg11[%c0_238, %c0_239] : memref<16x128xf32, #tpu.memory_space<vmem>>, vector<16x128xf32>
    tpu.vector_store %arg11[%c0_238, %c0_239], %453 {strides = array<i32>} : memref<16x128xf32, #tpu.memory_space<vmem>>, vector<16x128xf32>,
    %c0_240 = arith.constant 0 : index
    %c0_241 = arith.constant 0 : index
    %487 = vector.load %arg12[%c0_240, %c0_241] : memref<16x128xf32, #tpu.memory_space<vmem>>, vector<16x128xf32>
    tpu.vector_store %arg12[%c0_240, %c0_241], %451 {strides = array<i32>} : memref<16x128xf32, #tpu.memory_space<vmem>>, vector<16x128xf32>,
    %c0_242 = arith.constant 0 : index
    %c0_243 = arith.constant 0 : index
    %488 = vector.load %arg13[%c0_242, %c0_243] : memref<16x128xf32, #tpu.memory_space<vmem>>, vector<16x128xf32>
    tpu.vector_store %arg13[%c0_242, %c0_243], %485 {strides = array<i32>} : memref<16x128xf32, #tpu.memory_space<vmem>>, vector<16x128xf32>,
    %c0_244 = arith.constant 0 : index
    %c0_245 = arith.constant 0 : index
    %489 = vector.load %arg14[%c0_244, %c0_245] : memref<16x128xf32, #tpu.memory_space<vmem>>, vector<16x128xf32>
    tpu.vector_store %arg14[%c0_244, %c0_245], %483 {strides = array<i32>} : memref<16x128xf32, #tpu.memory_space<vmem>>, vector<16x128xf32>,
    %490 = arith.truncf %453 : vector<16x128xf32> to vector<16x128xbf16>
    %491 = arith.index_cast %c4_i32 : i32 to index
    %c0_246 = arith.constant 0 : index
    %c0_247 = arith.constant 0 : index
    %492 = vector.load %arg9[%491, %c0_246, %c0_247] : memref<8x16x128xbf16, #tpu.memory_space<vmem>>, vector<1x16x128xbf16>
    %493 = vector.shape_cast %492 : vector<1x16x128xbf16> to vector<16x128xbf16>
    %494 = vector.shape_cast %490 : vector<16x128xbf16> to vector<1x16x128xbf16>
    tpu.vector_store %arg9[%491, %c0_246, %c0_247], %494 {strides = array<i32>} : memref<8x16x128xbf16, #tpu.memory_space<vmem>>, vector<1x16x128xbf16>,
    %495 = arith.truncf %485 : vector<16x128xf32> to vector<16x128xbf16>
    %496 = arith.index_cast %405 : i32 to index
    %c0_248 = arith.constant 0 : index
    %c0_249 = arith.constant 0 : index
    %497 = vector.load %arg10[%496, %c0_248, %c0_249] : memref<8x16x128xbf16, #tpu.memory_space<vmem>>, vector<1x16x128xbf16>
    %498 = vector.shape_cast %497 : vector<1x16x128xbf16> to vector<16x128xbf16>
    %499 = vector.shape_cast %495 : vector<16x128xbf16> to vector<1x16x128xbf16>
    tpu.vector_store %arg10[%496, %c0_248, %c0_249], %499 {strides = array<i32>} : memref<8x16x128xbf16, #tpu.memory_space<vmem>>, vector<1x16x128xbf16>,
    %c5_i32 = arith.constant 5 : i32
    %c7_i32_250 = arith.constant 7 : i32
    %500 = arith.subi %c7_i32_250, %c5_i32 : i32
    %501 = arith.index_cast %c5_i32 : i32 to index
    %c0_251 = arith.constant 0 : index
    %c0_252 = arith.constant 0 : index
    %502 = vector.load %arg15[%501, %c0_251, %c0_252] : memref<8x16x512xbf16, #tpu.memory_space<vmem>>, vector<1x16x512xbf16>
    %503 = vector.shape_cast %502 : vector<1x16x512xbf16> to vector<16x512xbf16>
    %504 = arith.extf %503 : vector<16x512xbf16> to vector<16x512xf32>
    %c0_253 = arith.constant 0 : index
    %c0_254 = arith.constant 0 : index
    %505 = vector.load %arg11[%c0_253, %c0_254] : memref<16x128xf32, #tpu.memory_space<vmem>>, vector<16x128xf32>
    %506 = arith.truncf %505 : vector<16x128xf32> to vector<16x128xbf16>
    %cst_255 = arith.constant dense<0.000000e+00> : vector<16x512xf32>
    %507 = tpu.matmul %506, %23, %cst_255 {dimension_numbers = #tpu.dot_dimension_numbers<[1], [0], [0], [1], [0, 0, 1, 1], [], []>} : vector<16x128xbf16>, vector<128x512xbf16>, vector<16x512xf32> -> vector<16x512xf32>
    %508 = arith.addf %504, %507 : vector<16x512xf32>
    %509 = arith.index_cast %500 : i32 to index
    %c0_256 = arith.constant 0 : index
    %c0_257 = arith.constant 0 : index
    %510 = vector.load %arg16[%509, %c0_256, %c0_257] : memref<8x16x512xbf16, #tpu.memory_space<vmem>>, vector<1x16x512xbf16>
    %511 = vector.shape_cast %510 : vector<1x16x512xbf16> to vector<16x512xbf16>
    %512 = arith.extf %511 : vector<16x512xbf16> to vector<16x512xf32>
    %c0_258 = arith.constant 0 : index
    %c0_259 = arith.constant 0 : index
    %513 = vector.load %arg13[%c0_258, %c0_259] : memref<16x128xf32, #tpu.memory_space<vmem>>, vector<16x128xf32>
    %514 = arith.truncf %513 : vector<16x128xf32> to vector<16x128xbf16>
    %cst_260 = arith.constant dense<0.000000e+00> : vector<16x512xf32>
    %515 = tpu.matmul %514, %24, %cst_260 {dimension_numbers = #tpu.dot_dimension_numbers<[1], [0], [0], [1], [0, 0, 1, 1], [], []>} : vector<16x128xbf16>, vector<128x512xbf16>, vector<16x512xf32> -> vector<16x512xf32>
    %516 = arith.addf %512, %515 : vector<16x512xf32>
    %c0_261 = arith.constant 0 : index
    %c0_262 = arith.constant 0 : index
    %517 = vector.load %arg12[%c0_261, %c0_262] : memref<16x128xf32, #tpu.memory_space<vmem>>, vector<16x128xf32>
    %518 = vector.extract_strided_slice %508 {offsets = [0, 0], sizes = [16, 128], strides = [1, 1]} : vector<16x512xf32> to vector<16x128xf32>
    %cst_263 = arith.constant 5.000000e-01 : f32
    %519 = vector.broadcast %cst_263 : f32 to vector<16x128xf32>
    %520 = arith.mulf %519, %518 : vector<16x128xf32>
    %521 = math.tanh %520 : vector<16x128xf32>
    %cst_264 = arith.constant 5.000000e-01 : f32
    %522 = vector.broadcast %cst_264 : f32 to vector<16x128xf32>
    %523 = arith.mulf %522, %521 : vector<16x128xf32>
    %cst_265 = arith.constant 5.000000e-01 : f32
    %524 = vector.broadcast %cst_265 : f32 to vector<16x128xf32>
    %525 = arith.addf %523, %524 : vector<16x128xf32>
    %526 = vector.extract_strided_slice %508 {offsets = [0, 128], sizes = [16, 128], strides = [1, 1]} : vector<16x512xf32> to vector<16x128xf32>
    %cst_266 = arith.constant 5.000000e-01 : f32
    %527 = vector.broadcast %cst_266 : f32 to vector<16x128xf32>
    %528 = arith.mulf %527, %526 : vector<16x128xf32>
    %529 = math.tanh %528 : vector<16x128xf32>
    %cst_267 = arith.constant 5.000000e-01 : f32
    %530 = vector.broadcast %cst_267 : f32 to vector<16x128xf32>
    %531 = arith.mulf %530, %529 : vector<16x128xf32>
    %cst_268 = arith.constant 5.000000e-01 : f32
    %532 = vector.broadcast %cst_268 : f32 to vector<16x128xf32>
    %533 = arith.addf %531, %532 : vector<16x128xf32>
    %534 = vector.extract_strided_slice %508 {offsets = [0, 256], sizes = [16, 128], strides = [1, 1]} : vector<16x512xf32> to vector<16x128xf32>
    %535 = math.tanh %534 : vector<16x128xf32>
    %536 = vector.extract_strided_slice %508 {offsets = [0, 384], sizes = [16, 128], strides = [1, 1]} : vector<16x512xf32> to vector<16x128xf32>
    %cst_269 = arith.constant 5.000000e-01 : f32
    %537 = vector.broadcast %cst_269 : f32 to vector<16x128xf32>
    %538 = arith.mulf %537, %536 : vector<16x128xf32>
    %539 = math.tanh %538 : vector<16x128xf32>
    %cst_270 = arith.constant 5.000000e-01 : f32
    %540 = vector.broadcast %cst_270 : f32 to vector<16x128xf32>
    %541 = arith.mulf %540, %539 : vector<16x128xf32>
    %cst_271 = arith.constant 5.000000e-01 : f32
    %542 = vector.broadcast %cst_271 : f32 to vector<16x128xf32>
    %543 = arith.addf %541, %542 : vector<16x128xf32>
    %544 = arith.mulf %533, %517 : vector<16x128xf32>
    %545 = arith.mulf %525, %535 : vector<16x128xf32>
    %546 = arith.addf %544, %545 : vector<16x128xf32>
    %547 = math.tanh %546 : vector<16x128xf32>
    %548 = arith.mulf %543, %547 : vector<16x128xf32>
    %c0_272 = arith.constant 0 : index
    %c0_273 = arith.constant 0 : index
    %549 = vector.load %arg14[%c0_272, %c0_273] : memref<16x128xf32, #tpu.memory_space<vmem>>, vector<16x128xf32>
    %550 = vector.extract_strided_slice %516 {offsets = [0, 0], sizes = [16, 128], strides = [1, 1]} : vector<16x512xf32> to vector<16x128xf32>
    %cst_274 = arith.constant 5.000000e-01 : f32
    %551 = vector.broadcast %cst_274 : f32 to vector<16x128xf32>
    %552 = arith.mulf %551, %550 : vector<16x128xf32>
    %553 = math.tanh %552 : vector<16x128xf32>
    %cst_275 = arith.constant 5.000000e-01 : f32
    %554 = vector.broadcast %cst_275 : f32 to vector<16x128xf32>
    %555 = arith.mulf %554, %553 : vector<16x128xf32>
    %cst_276 = arith.constant 5.000000e-01 : f32
    %556 = vector.broadcast %cst_276 : f32 to vector<16x128xf32>
    %557 = arith.addf %555, %556 : vector<16x128xf32>
    %558 = vector.extract_strided_slice %516 {offsets = [0, 128], sizes = [16, 128], strides = [1, 1]} : vector<16x512xf32> to vector<16x128xf32>
    %cst_277 = arith.constant 5.000000e-01 : f32
    %559 = vector.broadcast %cst_277 : f32 to vector<16x128xf32>
    %560 = arith.mulf %559, %558 : vector<16x128xf32>
    %561 = math.tanh %560 : vector<16x128xf32>
    %cst_278 = arith.constant 5.000000e-01 : f32
    %562 = vector.broadcast %cst_278 : f32 to vector<16x128xf32>
    %563 = arith.mulf %562, %561 : vector<16x128xf32>
    %cst_279 = arith.constant 5.000000e-01 : f32
    %564 = vector.broadcast %cst_279 : f32 to vector<16x128xf32>
    %565 = arith.addf %563, %564 : vector<16x128xf32>
    %566 = vector.extract_strided_slice %516 {offsets = [0, 256], sizes = [16, 128], strides = [1, 1]} : vector<16x512xf32> to vector<16x128xf32>
    %567 = math.tanh %566 : vector<16x128xf32>
    %568 = vector.extract_strided_slice %516 {offsets = [0, 384], sizes = [16, 128], strides = [1, 1]} : vector<16x512xf32> to vector<16x128xf32>
    %cst_280 = arith.constant 5.000000e-01 : f32
    %569 = vector.broadcast %cst_280 : f32 to vector<16x128xf32>
    %570 = arith.mulf %569, %568 : vector<16x128xf32>
    %571 = math.tanh %570 : vector<16x128xf32>
    %cst_281 = arith.constant 5.000000e-01 : f32
    %572 = vector.broadcast %cst_281 : f32 to vector<16x128xf32>
    %573 = arith.mulf %572, %571 : vector<16x128xf32>
    %cst_282 = arith.constant 5.000000e-01 : f32
    %574 = vector.broadcast %cst_282 : f32 to vector<16x128xf32>
    %575 = arith.addf %573, %574 : vector<16x128xf32>
    %576 = arith.mulf %565, %549 : vector<16x128xf32>
    %577 = arith.mulf %557, %567 : vector<16x128xf32>
    %578 = arith.addf %576, %577 : vector<16x128xf32>
    %579 = math.tanh %578 : vector<16x128xf32>
    %580 = arith.mulf %575, %579 : vector<16x128xf32>
    %c0_283 = arith.constant 0 : index
    %c0_284 = arith.constant 0 : index
    %581 = vector.load %arg11[%c0_283, %c0_284] : memref<16x128xf32, #tpu.memory_space<vmem>>, vector<16x128xf32>
    tpu.vector_store %arg11[%c0_283, %c0_284], %548 {strides = array<i32>} : memref<16x128xf32, #tpu.memory_space<vmem>>, vector<16x128xf32>,
    %c0_285 = arith.constant 0 : index
    %c0_286 = arith.constant 0 : index
    %582 = vector.load %arg12[%c0_285, %c0_286] : memref<16x128xf32, #tpu.memory_space<vmem>>, vector<16x128xf32>
    tpu.vector_store %arg12[%c0_285, %c0_286], %546 {strides = array<i32>} : memref<16x128xf32, #tpu.memory_space<vmem>>, vector<16x128xf32>,
    %c0_287 = arith.constant 0 : index
    %c0_288 = arith.constant 0 : index
    %583 = vector.load %arg13[%c0_287, %c0_288] : memref<16x128xf32, #tpu.memory_space<vmem>>, vector<16x128xf32>
    tpu.vector_store %arg13[%c0_287, %c0_288], %580 {strides = array<i32>} : memref<16x128xf32, #tpu.memory_space<vmem>>, vector<16x128xf32>,
    %c0_289 = arith.constant 0 : index
    %c0_290 = arith.constant 0 : index
    %584 = vector.load %arg14[%c0_289, %c0_290] : memref<16x128xf32, #tpu.memory_space<vmem>>, vector<16x128xf32>
    tpu.vector_store %arg14[%c0_289, %c0_290], %578 {strides = array<i32>} : memref<16x128xf32, #tpu.memory_space<vmem>>, vector<16x128xf32>,
    %585 = arith.truncf %548 : vector<16x128xf32> to vector<16x128xbf16>
    %586 = arith.index_cast %c5_i32 : i32 to index
    %c0_291 = arith.constant 0 : index
    %c0_292 = arith.constant 0 : index
    %587 = vector.load %arg9[%586, %c0_291, %c0_292] : memref<8x16x128xbf16, #tpu.memory_space<vmem>>, vector<1x16x128xbf16>
    %588 = vector.shape_cast %587 : vector<1x16x128xbf16> to vector<16x128xbf16>
    %589 = vector.shape_cast %585 : vector<16x128xbf16> to vector<1x16x128xbf16>
    tpu.vector_store %arg9[%586, %c0_291, %c0_292], %589 {strides = array<i32>} : memref<8x16x128xbf16, #tpu.memory_space<vmem>>, vector<1x16x128xbf16>,
    %590 = arith.truncf %580 : vector<16x128xf32> to vector<16x128xbf16>
    %591 = arith.index_cast %500 : i32 to index
    %c0_293 = arith.constant 0 : index
    %c0_294 = arith.constant 0 : index
    %592 = vector.load %arg10[%591, %c0_293, %c0_294] : memref<8x16x128xbf16, #tpu.memory_space<vmem>>, vector<1x16x128xbf16>
    %593 = vector.shape_cast %592 : vector<1x16x128xbf16> to vector<16x128xbf16>
    %594 = vector.shape_cast %590 : vector<16x128xbf16> to vector<1x16x128xbf16>
    tpu.vector_store %arg10[%591, %c0_293, %c0_294], %594 {strides = array<i32>} : memref<8x16x128xbf16, #tpu.memory_space<vmem>>, vector<1x16x128xbf16>,
    %c6_i32 = arith.constant 6 : i32
    %c7_i32_295 = arith.constant 7 : i32
    %595 = arith.subi %c7_i32_295, %c6_i32 : i32
    %596 = arith.index_cast %c6_i32 : i32 to index
    %c0_296 = arith.constant 0 : index
    %c0_297 = arith.constant 0 : index
    %597 = vector.load %arg15[%596, %c0_296, %c0_297] : memref<8x16x512xbf16, #tpu.memory_space<vmem>>, vector<1x16x512xbf16>
    %598 = vector.shape_cast %597 : vector<1x16x512xbf16> to vector<16x512xbf16>
    %599 = arith.extf %598 : vector<16x512xbf16> to vector<16x512xf32>
    %c0_298 = arith.constant 0 : index
    %c0_299 = arith.constant 0 : index
    %600 = vector.load %arg11[%c0_298, %c0_299] : memref<16x128xf32, #tpu.memory_space<vmem>>, vector<16x128xf32>
    %601 = arith.truncf %600 : vector<16x128xf32> to vector<16x128xbf16>
    %cst_300 = arith.constant dense<0.000000e+00> : vector<16x512xf32>
    %602 = tpu.matmul %601, %23, %cst_300 {dimension_numbers = #tpu.dot_dimension_numbers<[1], [0], [0], [1], [0, 0, 1, 1], [], []>} : vector<16x128xbf16>, vector<128x512xbf16>, vector<16x512xf32> -> vector<16x512xf32>
    %603 = arith.addf %599, %602 : vector<16x512xf32>
    %604 = arith.index_cast %595 : i32 to index
    %c0_301 = arith.constant 0 : index
    %c0_302 = arith.constant 0 : index
    %605 = vector.load %arg16[%604, %c0_301, %c0_302] : memref<8x16x512xbf16, #tpu.memory_space<vmem>>, vector<1x16x512xbf16>
    %606 = vector.shape_cast %605 : vector<1x16x512xbf16> to vector<16x512xbf16>
    %607 = arith.extf %606 : vector<16x512xbf16> to vector<16x512xf32>
    %c0_303 = arith.constant 0 : index
    %c0_304 = arith.constant 0 : index
    %608 = vector.load %arg13[%c0_303, %c0_304] : memref<16x128xf32, #tpu.memory_space<vmem>>, vector<16x128xf32>
    %609 = arith.truncf %608 : vector<16x128xf32> to vector<16x128xbf16>
    %cst_305 = arith.constant dense<0.000000e+00> : vector<16x512xf32>
    %610 = tpu.matmul %609, %24, %cst_305 {dimension_numbers = #tpu.dot_dimension_numbers<[1], [0], [0], [1], [0, 0, 1, 1], [], []>} : vector<16x128xbf16>, vector<128x512xbf16>, vector<16x512xf32> -> vector<16x512xf32>
    %611 = arith.addf %607, %610 : vector<16x512xf32>
    %c0_306 = arith.constant 0 : index
    %c0_307 = arith.constant 0 : index
    %612 = vector.load %arg12[%c0_306, %c0_307] : memref<16x128xf32, #tpu.memory_space<vmem>>, vector<16x128xf32>
    %613 = vector.extract_strided_slice %603 {offsets = [0, 0], sizes = [16, 128], strides = [1, 1]} : vector<16x512xf32> to vector<16x128xf32>
    %cst_308 = arith.constant 5.000000e-01 : f32
    %614 = vector.broadcast %cst_308 : f32 to vector<16x128xf32>
    %615 = arith.mulf %614, %613 : vector<16x128xf32>
    %616 = math.tanh %615 : vector<16x128xf32>
    %cst_309 = arith.constant 5.000000e-01 : f32
    %617 = vector.broadcast %cst_309 : f32 to vector<16x128xf32>
    %618 = arith.mulf %617, %616 : vector<16x128xf32>
    %cst_310 = arith.constant 5.000000e-01 : f32
    %619 = vector.broadcast %cst_310 : f32 to vector<16x128xf32>
    %620 = arith.addf %618, %619 : vector<16x128xf32>
    %621 = vector.extract_strided_slice %603 {offsets = [0, 128], sizes = [16, 128], strides = [1, 1]} : vector<16x512xf32> to vector<16x128xf32>
    %cst_311 = arith.constant 5.000000e-01 : f32
    %622 = vector.broadcast %cst_311 : f32 to vector<16x128xf32>
    %623 = arith.mulf %622, %621 : vector<16x128xf32>
    %624 = math.tanh %623 : vector<16x128xf32>
    %cst_312 = arith.constant 5.000000e-01 : f32
    %625 = vector.broadcast %cst_312 : f32 to vector<16x128xf32>
    %626 = arith.mulf %625, %624 : vector<16x128xf32>
    %cst_313 = arith.constant 5.000000e-01 : f32
    %627 = vector.broadcast %cst_313 : f32 to vector<16x128xf32>
    %628 = arith.addf %626, %627 : vector<16x128xf32>
    %629 = vector.extract_strided_slice %603 {offsets = [0, 256], sizes = [16, 128], strides = [1, 1]} : vector<16x512xf32> to vector<16x128xf32>
    %630 = math.tanh %629 : vector<16x128xf32>
    %631 = vector.extract_strided_slice %603 {offsets = [0, 384], sizes = [16, 128], strides = [1, 1]} : vector<16x512xf32> to vector<16x128xf32>
    %cst_314 = arith.constant 5.000000e-01 : f32
    %632 = vector.broadcast %cst_314 : f32 to vector<16x128xf32>
    %633 = arith.mulf %632, %631 : vector<16x128xf32>
    %634 = math.tanh %633 : vector<16x128xf32>
    %cst_315 = arith.constant 5.000000e-01 : f32
    %635 = vector.broadcast %cst_315 : f32 to vector<16x128xf32>
    %636 = arith.mulf %635, %634 : vector<16x128xf32>
    %cst_316 = arith.constant 5.000000e-01 : f32
    %637 = vector.broadcast %cst_316 : f32 to vector<16x128xf32>
    %638 = arith.addf %636, %637 : vector<16x128xf32>
    %639 = arith.mulf %628, %612 : vector<16x128xf32>
    %640 = arith.mulf %620, %630 : vector<16x128xf32>
    %641 = arith.addf %639, %640 : vector<16x128xf32>
    %642 = math.tanh %641 : vector<16x128xf32>
    %643 = arith.mulf %638, %642 : vector<16x128xf32>
    %c0_317 = arith.constant 0 : index
    %c0_318 = arith.constant 0 : index
    %644 = vector.load %arg14[%c0_317, %c0_318] : memref<16x128xf32, #tpu.memory_space<vmem>>, vector<16x128xf32>
    %645 = vector.extract_strided_slice %611 {offsets = [0, 0], sizes = [16, 128], strides = [1, 1]} : vector<16x512xf32> to vector<16x128xf32>
    %cst_319 = arith.constant 5.000000e-01 : f32
    %646 = vector.broadcast %cst_319 : f32 to vector<16x128xf32>
    %647 = arith.mulf %646, %645 : vector<16x128xf32>
    %648 = math.tanh %647 : vector<16x128xf32>
    %cst_320 = arith.constant 5.000000e-01 : f32
    %649 = vector.broadcast %cst_320 : f32 to vector<16x128xf32>
    %650 = arith.mulf %649, %648 : vector<16x128xf32>
    %cst_321 = arith.constant 5.000000e-01 : f32
    %651 = vector.broadcast %cst_321 : f32 to vector<16x128xf32>
    %652 = arith.addf %650, %651 : vector<16x128xf32>
    %653 = vector.extract_strided_slice %611 {offsets = [0, 128], sizes = [16, 128], strides = [1, 1]} : vector<16x512xf32> to vector<16x128xf32>
    %cst_322 = arith.constant 5.000000e-01 : f32
    %654 = vector.broadcast %cst_322 : f32 to vector<16x128xf32>
    %655 = arith.mulf %654, %653 : vector<16x128xf32>
    %656 = math.tanh %655 : vector<16x128xf32>
    %cst_323 = arith.constant 5.000000e-01 : f32
    %657 = vector.broadcast %cst_323 : f32 to vector<16x128xf32>
    %658 = arith.mulf %657, %656 : vector<16x128xf32>
    %cst_324 = arith.constant 5.000000e-01 : f32
    %659 = vector.broadcast %cst_324 : f32 to vector<16x128xf32>
    %660 = arith.addf %658, %659 : vector<16x128xf32>
    %661 = vector.extract_strided_slice %611 {offsets = [0, 256], sizes = [16, 128], strides = [1, 1]} : vector<16x512xf32> to vector<16x128xf32>
    %662 = math.tanh %661 : vector<16x128xf32>
    %663 = vector.extract_strided_slice %611 {offsets = [0, 384], sizes = [16, 128], strides = [1, 1]} : vector<16x512xf32> to vector<16x128xf32>
    %cst_325 = arith.constant 5.000000e-01 : f32
    %664 = vector.broadcast %cst_325 : f32 to vector<16x128xf32>
    %665 = arith.mulf %664, %663 : vector<16x128xf32>
    %666 = math.tanh %665 : vector<16x128xf32>
    %cst_326 = arith.constant 5.000000e-01 : f32
    %667 = vector.broadcast %cst_326 : f32 to vector<16x128xf32>
    %668 = arith.mulf %667, %666 : vector<16x128xf32>
    %cst_327 = arith.constant 5.000000e-01 : f32
    %669 = vector.broadcast %cst_327 : f32 to vector<16x128xf32>
    %670 = arith.addf %668, %669 : vector<16x128xf32>
    %671 = arith.mulf %660, %644 : vector<16x128xf32>
    %672 = arith.mulf %652, %662 : vector<16x128xf32>
    %673 = arith.addf %671, %672 : vector<16x128xf32>
    %674 = math.tanh %673 : vector<16x128xf32>
    %675 = arith.mulf %670, %674 : vector<16x128xf32>
    %c0_328 = arith.constant 0 : index
    %c0_329 = arith.constant 0 : index
    %676 = vector.load %arg11[%c0_328, %c0_329] : memref<16x128xf32, #tpu.memory_space<vmem>>, vector<16x128xf32>
    tpu.vector_store %arg11[%c0_328, %c0_329], %643 {strides = array<i32>} : memref<16x128xf32, #tpu.memory_space<vmem>>, vector<16x128xf32>,
    %c0_330 = arith.constant 0 : index
    %c0_331 = arith.constant 0 : index
    %677 = vector.load %arg12[%c0_330, %c0_331] : memref<16x128xf32, #tpu.memory_space<vmem>>, vector<16x128xf32>
    tpu.vector_store %arg12[%c0_330, %c0_331], %641 {strides = array<i32>} : memref<16x128xf32, #tpu.memory_space<vmem>>, vector<16x128xf32>,
    %c0_332 = arith.constant 0 : index
    %c0_333 = arith.constant 0 : index
    %678 = vector.load %arg13[%c0_332, %c0_333] : memref<16x128xf32, #tpu.memory_space<vmem>>, vector<16x128xf32>
    tpu.vector_store %arg13[%c0_332, %c0_333], %675 {strides = array<i32>} : memref<16x128xf32, #tpu.memory_space<vmem>>, vector<16x128xf32>,
    %c0_334 = arith.constant 0 : index
    %c0_335 = arith.constant 0 : index
    %679 = vector.load %arg14[%c0_334, %c0_335] : memref<16x128xf32, #tpu.memory_space<vmem>>, vector<16x128xf32>
    tpu.vector_store %arg14[%c0_334, %c0_335], %673 {strides = array<i32>} : memref<16x128xf32, #tpu.memory_space<vmem>>, vector<16x128xf32>,
    %680 = arith.truncf %643 : vector<16x128xf32> to vector<16x128xbf16>
    %681 = arith.index_cast %c6_i32 : i32 to index
    %c0_336 = arith.constant 0 : index
    %c0_337 = arith.constant 0 : index
    %682 = vector.load %arg9[%681, %c0_336, %c0_337] : memref<8x16x128xbf16, #tpu.memory_space<vmem>>, vector<1x16x128xbf16>
    %683 = vector.shape_cast %682 : vector<1x16x128xbf16> to vector<16x128xbf16>
    %684 = vector.shape_cast %680 : vector<16x128xbf16> to vector<1x16x128xbf16>
    tpu.vector_store %arg9[%681, %c0_336, %c0_337], %684 {strides = array<i32>} : memref<8x16x128xbf16, #tpu.memory_space<vmem>>, vector<1x16x128xbf16>,
    %685 = arith.truncf %675 : vector<16x128xf32> to vector<16x128xbf16>
    %686 = arith.index_cast %595 : i32 to index
    %c0_338 = arith.constant 0 : index
    %c0_339 = arith.constant 0 : index
    %687 = vector.load %arg10[%686, %c0_338, %c0_339] : memref<8x16x128xbf16, #tpu.memory_space<vmem>>, vector<1x16x128xbf16>
    %688 = vector.shape_cast %687 : vector<1x16x128xbf16> to vector<16x128xbf16>
    %689 = vector.shape_cast %685 : vector<16x128xbf16> to vector<1x16x128xbf16>
    tpu.vector_store %arg10[%686, %c0_338, %c0_339], %689 {strides = array<i32>} : memref<8x16x128xbf16, #tpu.memory_space<vmem>>, vector<1x16x128xbf16>,
    %c7_i32_340 = arith.constant 7 : i32
    %c7_i32_341 = arith.constant 7 : i32
    %690 = arith.subi %c7_i32_341, %c7_i32_340 : i32
    %691 = arith.index_cast %c7_i32_340 : i32 to index
    %c0_342 = arith.constant 0 : index
    %c0_343 = arith.constant 0 : index
    %692 = vector.load %arg15[%691, %c0_342, %c0_343] : memref<8x16x512xbf16, #tpu.memory_space<vmem>>, vector<1x16x512xbf16>
    %693 = vector.shape_cast %692 : vector<1x16x512xbf16> to vector<16x512xbf16>
    %694 = arith.extf %693 : vector<16x512xbf16> to vector<16x512xf32>
    %c0_344 = arith.constant 0 : index
    %c0_345 = arith.constant 0 : index
    %695 = vector.load %arg11[%c0_344, %c0_345] : memref<16x128xf32, #tpu.memory_space<vmem>>, vector<16x128xf32>
    %696 = arith.truncf %695 : vector<16x128xf32> to vector<16x128xbf16>
    %cst_346 = arith.constant dense<0.000000e+00> : vector<16x512xf32>
    %697 = tpu.matmul %696, %23, %cst_346 {dimension_numbers = #tpu.dot_dimension_numbers<[1], [0], [0], [1], [0, 0, 1, 1], [], []>} : vector<16x128xbf16>, vector<128x512xbf16>, vector<16x512xf32> -> vector<16x512xf32>
    %698 = arith.addf %694, %697 : vector<16x512xf32>
    %699 = arith.index_cast %690 : i32 to index
    %c0_347 = arith.constant 0 : index
    %c0_348 = arith.constant 0 : index
    %700 = vector.load %arg16[%699, %c0_347, %c0_348] : memref<8x16x512xbf16, #tpu.memory_space<vmem>>, vector<1x16x512xbf16>
    %701 = vector.shape_cast %700 : vector<1x16x512xbf16> to vector<16x512xbf16>
    %702 = arith.extf %701 : vector<16x512xbf16> to vector<16x512xf32>
    %c0_349 = arith.constant 0 : index
    %c0_350 = arith.constant 0 : index
    %703 = vector.load %arg13[%c0_349, %c0_350] : memref<16x128xf32, #tpu.memory_space<vmem>>, vector<16x128xf32>
    %704 = arith.truncf %703 : vector<16x128xf32> to vector<16x128xbf16>
    %cst_351 = arith.constant dense<0.000000e+00> : vector<16x512xf32>
    %705 = tpu.matmul %704, %24, %cst_351 {dimension_numbers = #tpu.dot_dimension_numbers<[1], [0], [0], [1], [0, 0, 1, 1], [], []>} : vector<16x128xbf16>, vector<128x512xbf16>, vector<16x512xf32> -> vector<16x512xf32>
    %706 = arith.addf %702, %705 : vector<16x512xf32>
    %c0_352 = arith.constant 0 : index
    %c0_353 = arith.constant 0 : index
    %707 = vector.load %arg12[%c0_352, %c0_353] : memref<16x128xf32, #tpu.memory_space<vmem>>, vector<16x128xf32>
    %708 = vector.extract_strided_slice %698 {offsets = [0, 0], sizes = [16, 128], strides = [1, 1]} : vector<16x512xf32> to vector<16x128xf32>
    %cst_354 = arith.constant 5.000000e-01 : f32
    %709 = vector.broadcast %cst_354 : f32 to vector<16x128xf32>
    %710 = arith.mulf %709, %708 : vector<16x128xf32>
    %711 = math.tanh %710 : vector<16x128xf32>
    %cst_355 = arith.constant 5.000000e-01 : f32
    %712 = vector.broadcast %cst_355 : f32 to vector<16x128xf32>
    %713 = arith.mulf %712, %711 : vector<16x128xf32>
    %cst_356 = arith.constant 5.000000e-01 : f32
    %714 = vector.broadcast %cst_356 : f32 to vector<16x128xf32>
    %715 = arith.addf %713, %714 : vector<16x128xf32>
    %716 = vector.extract_strided_slice %698 {offsets = [0, 128], sizes = [16, 128], strides = [1, 1]} : vector<16x512xf32> to vector<16x128xf32>
    %cst_357 = arith.constant 5.000000e-01 : f32
    %717 = vector.broadcast %cst_357 : f32 to vector<16x128xf32>
    %718 = arith.mulf %717, %716 : vector<16x128xf32>
    %719 = math.tanh %718 : vector<16x128xf32>
    %cst_358 = arith.constant 5.000000e-01 : f32
    %720 = vector.broadcast %cst_358 : f32 to vector<16x128xf32>
    %721 = arith.mulf %720, %719 : vector<16x128xf32>
    %cst_359 = arith.constant 5.000000e-01 : f32
    %722 = vector.broadcast %cst_359 : f32 to vector<16x128xf32>
    %723 = arith.addf %721, %722 : vector<16x128xf32>
    %724 = vector.extract_strided_slice %698 {offsets = [0, 256], sizes = [16, 128], strides = [1, 1]} : vector<16x512xf32> to vector<16x128xf32>
    %725 = math.tanh %724 : vector<16x128xf32>
    %726 = vector.extract_strided_slice %698 {offsets = [0, 384], sizes = [16, 128], strides = [1, 1]} : vector<16x512xf32> to vector<16x128xf32>
    %cst_360 = arith.constant 5.000000e-01 : f32
    %727 = vector.broadcast %cst_360 : f32 to vector<16x128xf32>
    %728 = arith.mulf %727, %726 : vector<16x128xf32>
    %729 = math.tanh %728 : vector<16x128xf32>
    %cst_361 = arith.constant 5.000000e-01 : f32
    %730 = vector.broadcast %cst_361 : f32 to vector<16x128xf32>
    %731 = arith.mulf %730, %729 : vector<16x128xf32>
    %cst_362 = arith.constant 5.000000e-01 : f32
    %732 = vector.broadcast %cst_362 : f32 to vector<16x128xf32>
    %733 = arith.addf %731, %732 : vector<16x128xf32>
    %734 = arith.mulf %723, %707 : vector<16x128xf32>
    %735 = arith.mulf %715, %725 : vector<16x128xf32>
    %736 = arith.addf %734, %735 : vector<16x128xf32>
    %737 = math.tanh %736 : vector<16x128xf32>
    %738 = arith.mulf %733, %737 : vector<16x128xf32>
    %c0_363 = arith.constant 0 : index
    %c0_364 = arith.constant 0 : index
    %739 = vector.load %arg14[%c0_363, %c0_364] : memref<16x128xf32, #tpu.memory_space<vmem>>, vector<16x128xf32>
    %740 = vector.extract_strided_slice %706 {offsets = [0, 0], sizes = [16, 128], strides = [1, 1]} : vector<16x512xf32> to vector<16x128xf32>
    %cst_365 = arith.constant 5.000000e-01 : f32
    %741 = vector.broadcast %cst_365 : f32 to vector<16x128xf32>
    %742 = arith.mulf %741, %740 : vector<16x128xf32>
    %743 = math.tanh %742 : vector<16x128xf32>
    %cst_366 = arith.constant 5.000000e-01 : f32
    %744 = vector.broadcast %cst_366 : f32 to vector<16x128xf32>
    %745 = arith.mulf %744, %743 : vector<16x128xf32>
    %cst_367 = arith.constant 5.000000e-01 : f32
    %746 = vector.broadcast %cst_367 : f32 to vector<16x128xf32>
    %747 = arith.addf %745, %746 : vector<16x128xf32>
    %748 = vector.extract_strided_slice %706 {offsets = [0, 128], sizes = [16, 128], strides = [1, 1]} : vector<16x512xf32> to vector<16x128xf32>
    %cst_368 = arith.constant 5.000000e-01 : f32
    %749 = vector.broadcast %cst_368 : f32 to vector<16x128xf32>
    %750 = arith.mulf %749, %748 : vector<16x128xf32>
    %751 = math.tanh %750 : vector<16x128xf32>
    %cst_369 = arith.constant 5.000000e-01 : f32
    %752 = vector.broadcast %cst_369 : f32 to vector<16x128xf32>
    %753 = arith.mulf %752, %751 : vector<16x128xf32>
    %cst_370 = arith.constant 5.000000e-01 : f32
    %754 = vector.broadcast %cst_370 : f32 to vector<16x128xf32>
    %755 = arith.addf %753, %754 : vector<16x128xf32>
    %756 = vector.extract_strided_slice %706 {offsets = [0, 256], sizes = [16, 128], strides = [1, 1]} : vector<16x512xf32> to vector<16x128xf32>
    %757 = math.tanh %756 : vector<16x128xf32>
    %758 = vector.extract_strided_slice %706 {offsets = [0, 384], sizes = [16, 128], strides = [1, 1]} : vector<16x512xf32> to vector<16x128xf32>
    %cst_371 = arith.constant 5.000000e-01 : f32
    %759 = vector.broadcast %cst_371 : f32 to vector<16x128xf32>
    %760 = arith.mulf %759, %758 : vector<16x128xf32>
    %761 = math.tanh %760 : vector<16x128xf32>
    %cst_372 = arith.constant 5.000000e-01 : f32
    %762 = vector.broadcast %cst_372 : f32 to vector<16x128xf32>
    %763 = arith.mulf %762, %761 : vector<16x128xf32>
    %cst_373 = arith.constant 5.000000e-01 : f32
    %764 = vector.broadcast %cst_373 : f32 to vector<16x128xf32>
    %765 = arith.addf %763, %764 : vector<16x128xf32>
    %766 = arith.mulf %755, %739 : vector<16x128xf32>
    %767 = arith.mulf %747, %757 : vector<16x128xf32>
    %768 = arith.addf %766, %767 : vector<16x128xf32>
    %769 = math.tanh %768 : vector<16x128xf32>
    %770 = arith.mulf %765, %769 : vector<16x128xf32>
    %c0_374 = arith.constant 0 : index
    %c0_375 = arith.constant 0 : index
    %771 = vector.load %arg11[%c0_374, %c0_375] : memref<16x128xf32, #tpu.memory_space<vmem>>, vector<16x128xf32>
    tpu.vector_store %arg11[%c0_374, %c0_375], %738 {strides = array<i32>} : memref<16x128xf32, #tpu.memory_space<vmem>>, vector<16x128xf32>,
    %c0_376 = arith.constant 0 : index
    %c0_377 = arith.constant 0 : index
    %772 = vector.load %arg12[%c0_376, %c0_377] : memref<16x128xf32, #tpu.memory_space<vmem>>, vector<16x128xf32>
    tpu.vector_store %arg12[%c0_376, %c0_377], %736 {strides = array<i32>} : memref<16x128xf32, #tpu.memory_space<vmem>>, vector<16x128xf32>,
    %c0_378 = arith.constant 0 : index
    %c0_379 = arith.constant 0 : index
    %773 = vector.load %arg13[%c0_378, %c0_379] : memref<16x128xf32, #tpu.memory_space<vmem>>, vector<16x128xf32>
    tpu.vector_store %arg13[%c0_378, %c0_379], %770 {strides = array<i32>} : memref<16x128xf32, #tpu.memory_space<vmem>>, vector<16x128xf32>,
    %c0_380 = arith.constant 0 : index
    %c0_381 = arith.constant 0 : index
    %774 = vector.load %arg14[%c0_380, %c0_381] : memref<16x128xf32, #tpu.memory_space<vmem>>, vector<16x128xf32>
    tpu.vector_store %arg14[%c0_380, %c0_381], %768 {strides = array<i32>} : memref<16x128xf32, #tpu.memory_space<vmem>>, vector<16x128xf32>,
    %775 = arith.truncf %738 : vector<16x128xf32> to vector<16x128xbf16>
    %776 = arith.index_cast %c7_i32_340 : i32 to index
    %c0_382 = arith.constant 0 : index
    %c0_383 = arith.constant 0 : index
    %777 = vector.load %arg9[%776, %c0_382, %c0_383] : memref<8x16x128xbf16, #tpu.memory_space<vmem>>, vector<1x16x128xbf16>
    %778 = vector.shape_cast %777 : vector<1x16x128xbf16> to vector<16x128xbf16>
    %779 = vector.shape_cast %775 : vector<16x128xbf16> to vector<1x16x128xbf16>
    tpu.vector_store %arg9[%776, %c0_382, %c0_383], %779 {strides = array<i32>} : memref<8x16x128xbf16, #tpu.memory_space<vmem>>, vector<1x16x128xbf16>,
    %780 = arith.truncf %770 : vector<16x128xf32> to vector<16x128xbf16>
    %781 = arith.index_cast %690 : i32 to index
    %c0_384 = arith.constant 0 : index
    %c0_385 = arith.constant 0 : index
    %782 = vector.load %arg10[%781, %c0_384, %c0_385] : memref<8x16x128xbf16, #tpu.memory_space<vmem>>, vector<1x16x128xbf16>
    %783 = vector.shape_cast %782 : vector<1x16x128xbf16> to vector<16x128xbf16>
    %784 = vector.shape_cast %780 : vector<16x128xbf16> to vector<1x16x128xbf16>
    tpu.vector_store %arg10[%781, %c0_384, %c0_385], %784 {strides = array<i32>} : memref<8x16x128xbf16, #tpu.memory_space<vmem>>, vector<1x16x128xbf16>,
    %c8_i32 = arith.constant 8 : i32
    return
  }
  func.func @transform_0(%arg0: i32) -> (i32, i32, i32) {
    %c0_i32 = arith.constant 0 : i32
    %c0_i32_0 = arith.constant 0 : i32
    %c0_i32_1 = arith.constant 0 : i32
    return %arg0, %c0_i32, %c0_i32_0 : i32, i32, i32
  }
  func.func @transform_1(%arg0: i32) -> (i32, i32, i32) {
    %c0_i32 = arith.constant 0 : i32
    %0 = arith.subi %c0_i32, %arg0 : i32
    %c0_i32_0 = arith.constant 0 : i32
    %c0_i32_1 = arith.constant 0 : i32
    %c0_i32_2 = arith.constant 0 : i32
    return %0, %c0_i32_0, %c0_i32_1 : i32, i32, i32
  }
  func.func @transform_2(%arg0: i32) -> (i32, i32) {
    %c0_i32 = arith.constant 0 : i32
    %c0_i32_0 = arith.constant 0 : i32
    %c0_i32_1 = arith.constant 0 : i32
    return %c0_i32, %c0_i32_0 : i32, i32
  }
  func.func @transform_3(%arg0: i32) -> (i32, i32) {
    %c0_i32 = arith.constant 0 : i32
    %c0_i32_0 = arith.constant 0 : i32
    %c0_i32_1 = arith.constant 0 : i32
    return %c0_i32, %c0_i32_0 : i32, i32
  }
  func.func @transform_4(%arg0: i32) -> (i32, i32) {
    %c0_i32 = arith.constant 0 : i32
    %c0_i32_0 = arith.constant 0 : i32
    %c0_i32_1 = arith.constant 0 : i32
    return %c0_i32, %c0_i32_0 : i32, i32
  }
  func.func @transform_5(%arg0: i32) -> (i32, i32) {
    %c0_i32 = arith.constant 0 : i32
    %c0_i32_0 = arith.constant 0 : i32
    %c0_i32_1 = arith.constant 0 : i32
    return %c0_i32, %c0_i32_0 : i32, i32
  }
  func.func @transform_6(%arg0: i32) -> (i32, i32) {
    %c0_i32 = arith.constant 0 : i32
    %c0_i32_0 = arith.constant 0 : i32
    %c0_i32_1 = arith.constant 0 : i32
    return %c0_i32, %c0_i32_0 : i32, i32
  }
  func.func @transform_7(%arg0: i32) -> (i32, i32) {
    %c0_i32 = arith.constant 0 : i32
    %c0_i32_0 = arith.constant 0 : i32
    %c0_i32_1 = arith.constant 0 : i32
    return %c0_i32, %c0_i32_0 : i32, i32
  }
  func.func @transform_8(%arg0: i32) -> (i32, i32, i32) {
    %c0_i32 = arith.constant 0 : i32
    %c0_i32_0 = arith.constant 0 : i32
    %c0_i32_1 = arith.constant 0 : i32
    return %arg0, %c0_i32, %c0_i32_0 : i32, i32, i32
  }
  func.func @transform_9(%arg0: i32) -> (i32, i32, i32) {
    %c0_i32 = arith.constant 0 : i32
    %0 = arith.subi %c0_i32, %arg0 : i32
    %c0_i32_0 = arith.constant 0 : i32
    %c0_i32_1 = arith.constant 0 : i32
    %c0_i32_2 = arith.constant 0 : i32
    return %0, %c0_i32_0, %c0_i32_1 : i32, i32, i32
  }
}

module attributes {stable_mosaic.version = 11 : i64} {
  func.func @_bilstm_fused_kernel(%arg0: i32, %arg1: memref<8x16x128xbf16, #tpu.memory_space<vmem>>, %arg2: memref<8x16x128xbf16, #tpu.memory_space<vmem>>, %arg3: memref<128x512xbf16, #tpu.memory_space<vmem>>, %arg4: memref<128x512xbf16, #tpu.memory_space<vmem>>, %arg5: memref<128x512xbf16, #tpu.memory_space<vmem>>, %arg6: memref<128x512xbf16, #tpu.memory_space<vmem>>, %arg7: memref<1x512xf32, #tpu.memory_space<vmem>>, %arg8: memref<1x512xf32, #tpu.memory_space<vmem>>, %arg9: memref<8x16x128xbf16, #tpu.memory_space<vmem>>, %arg10: memref<8x16x128xbf16, #tpu.memory_space<vmem>>, %arg11: memref<16x128xf32, #tpu.memory_space<vmem>>, %arg12: memref<16x128xf32, #tpu.memory_space<vmem>>, %arg13: memref<16x128xf32, #tpu.memory_space<vmem>>, %arg14: memref<16x128xf32, #tpu.memory_space<vmem>>, %arg15: memref<8x16x512xbf16, #tpu.memory_space<vmem>>, %arg16: memref<8x16x512xbf16, #tpu.memory_space<vmem>>) attributes {dimension_semantics = [#tpu.dimension_semantics<arbitrary>], iteration_bounds = array<i64: 1>, scalar_prefetch = 0 : i64, scratch_operands = 6 : i64, tpu.core_type = #tpu.core_type<tc>, window_params = [{transform_indices = @transform_0, window_bounds = array<i64: 8, 16, 128>}, {transform_indices = @transform_1, window_bounds = array<i64: 8, 16, 128>}, {pipeline_mode = #tpu.pipeline_mode<synchronous>, transform_indices = @transform_2, window_bounds = array<i64: 128, 512>}, {pipeline_mode = #tpu.pipeline_mode<synchronous>, transform_indices = @transform_3, window_bounds = array<i64: 128, 512>}, {pipeline_mode = #tpu.pipeline_mode<synchronous>, transform_indices = @transform_4, window_bounds = array<i64: 128, 512>}, {pipeline_mode = #tpu.pipeline_mode<synchronous>, transform_indices = @transform_5, window_bounds = array<i64: 128, 512>}, {pipeline_mode = #tpu.pipeline_mode<synchronous>, transform_indices = @transform_6, window_bounds = array<i64: 1, 512>}, {pipeline_mode = #tpu.pipeline_mode<synchronous>, transform_indices = @transform_7, window_bounds = array<i64: 1, 512>}, {transform_indices = @transform_8, window_bounds = array<i64: 8, 16, 128>}, {transform_indices = @transform_9, window_bounds = array<i64: 8, 16, 128>}]} {
    %c0_i32 = arith.constant 0 : i32
    %0 = arith.cmpi eq, %arg0, %c0_i32 : i32
    %1 = arith.extui %0 : i1 to i32
    %c0_i32_0 = arith.constant 0 : i32
    %2 = arith.cmpi ne, %1, %c0_i32_0 : i32
    scf.if %2 {
      %cst_386 = arith.constant 0.000000e+00 : f32
      %785 = vector.broadcast %cst_386 : f32 to vector<16x128xf32>
      %c0_387 = arith.constant 0 : index
      %c0_388 = arith.constant 0 : index
      %786 = vector.load %arg11[%c0_387, %c0_388] : memref<16x128xf32, #tpu.memory_space<vmem>>, vector<16x128xf32>
      tpu.vector_store %arg11[%c0_387, %c0_388], %785 {strides = array<i32>} : memref<16x128xf32, #tpu.memory_space<vmem>>, vector<16x128xf32>,
      %cst_389 = arith.constant 0.000000e+00 : f32
      %787 = vector.broadcast %cst_389 : f32 to vector<16x128xf32>
      %c0_390 = arith.constant 0 : index
      %c0_391 = arith.constant 0 : index
      %788 = vector.load %arg12[%c0_390, %c0_391] : memref<16x128xf32, #tpu.memory_space<vmem>>, vector<16x128xf32>
      tpu.vector_store %arg12[%c0_390, %c0_391], %787 {strides = array<i32>} : memref<16x128xf32, #tpu.memory_space<vmem>>, vector<16x128xf32>,
      %cst_392 = arith.constant 0.000000e+00 : f32
      %789 = vector.broadcast %cst_392 : f32 to vector<16x128xf32>
      %c0_393 = arith.constant 0 : index
      %c0_394 = arith.constant 0 : index
      %790 = vector.load %arg13[%c0_393, %c0_394] : memref<16x128xf32, #tpu.memory_space<vmem>>, vector<16x128xf32>
      tpu.vector_store %arg13[%c0_393, %c0_394], %789 {strides = array<i32>} : memref<16x128xf32, #tpu.memory_space<vmem>>, vector<16x128xf32>,
      %cst_395 = arith.constant 0.000000e+00 : f32
      %791 = vector.broadcast %cst_395 : f32 to vector<16x128xf32>
      %c0_396 = arith.constant 0 : index
      %c0_397 = arith.constant 0 : index
      %792 = vector.load %arg14[%c0_396, %c0_397] : memref<16x128xf32, #tpu.memory_space<vmem>>, vector<16x128xf32>
      tpu.vector_store %arg14[%c0_396, %c0_397], %791 {strides = array<i32>} : memref<16x128xf32, #tpu.memory_space<vmem>>, vector<16x128xf32>,
    } else {
    }
    %c0 = arith.constant 0 : index
    %c0_1 = arith.constant 0 : index
    %c0_2 = arith.constant 0 : index
    %3 = vector.load %arg1[%c0, %c0_1, %c0_2] : memref<8x16x128xbf16, #tpu.memory_space<vmem>>, vector<8x16x128xbf16>
    %4 = vector.shape_cast %3 : vector<8x16x128xbf16> to vector<128x128xbf16>
    %c0_3 = arith.constant 0 : index
    %c0_4 = arith.constant 0 : index
    %5 = vector.load %arg3[%c0_3, %c0_4] : memref<128x512xbf16, #tpu.memory_space<vmem>>, vector<128x512xbf16>
    %cst = arith.constant dense<0.000000e+00> : vector<128x512xf32>
    %6 = tpu.matmul %4, %5, %cst {dimension_numbers = #tpu.dot_dimension_numbers<[1], [0], [0], [1], [0, 0, 1, 1], [], []>} : vector<128x128xbf16>, vector<128x512xbf16>, vector<128x512xf32> -> vector<128x512xf32>
    %c0_5 = arith.constant 0 : index
    %c0_6 = arith.constant 0 : index
    %7 = vector.load %arg7[%c0_5, %c0_6] : memref<1x512xf32, #tpu.memory_space<vmem>>, vector<1x512xf32>
    %8 = vector.broadcast %7 : vector<1x512xf32> to vector<128x512xf32>
    %9 = arith.addf %6, %8 : vector<128x512xf32>
    %10 = vector.shape_cast %9 : vector<128x512xf32> to vector<8x16x512xf32>
    %11 = arith.truncf %10 : vector<8x16x512xf32> to vector<8x16x512xbf16>
    %c0_7 = arith.constant 0 : index
    %c0_8 = arith.constant 0 : index
    %c0_9 = arith.constant 0 : index
    %12 = vector.load %arg15[%c0_7, %c0_8, %c0_9] : memref<8x16x512xbf16, #tpu.memory_space<vmem>>, vector<8x16x512xbf16>
    tpu.vector_store %arg15[%c0_7, %c0_8, %c0_9], %11 {strides = array<i32>} : memref<8x16x512xbf16, #tpu.memory_space<vmem>>, vector<8x16x512xbf16>,
    %c0_10 = arith.constant 0 : index
    %c0_11 = arith.constant 0 : index
    %c0_12 = arith.constant 0 : index
    %13 = vector.load %arg2[%c0_10, %c0_11, %c0_12] : memref<8x16x128xbf16, #tpu.memory_space<vmem>>, vector<8x16x128xbf16>
    %14 = vector.shape_cast %13 : vector<8x16x128xbf16> to vector<128x128xbf16>
    %c0_13 = arith.constant 0 : index
    %c0_14 = arith.constant 0 : index
    %15 = vector.load %arg4[%c0_13, %c0_14] : memref<128x512xbf16, #tpu.memory_space<vmem>>, vector<128x512xbf16>
    %cst_15 = arith.constant dense<0.000000e+00> : vector<128x512xf32>
    %16 = tpu.matmul %14, %15, %cst_15 {dimension_numbers = #tpu.dot_dimension_numbers<[1], [0], [0], [1], [0, 0, 1, 1], [], []>} : vector<128x128xbf16>, vector<128x512xbf16>, vector<128x512xf32> -> vector<128x512xf32>
    %c0_16 = arith.constant 0 : index
    %c0_17 = arith.constant 0 : index
    %17 = vector.load %arg8[%c0_16, %c0_17] : memref<1x512xf32, #tpu.memory_space<vmem>>, vector<1x512xf32>
    %18 = vector.broadcast %17 : vector<1x512xf32> to vector<128x512xf32>
    %19 = arith.addf %16, %18 : vector<128x512xf32>
    %20 = vector.shape_cast %19 : vector<128x512xf32> to vector<8x16x512xf32>
    %21 = arith.truncf %20 : vector<8x16x512xf32> to vector<8x16x512xbf16>
    %c0_18 = arith.constant 0 : index
    %c0_19 = arith.constant 0 : index
    %c0_20 = arith.constant 0 : index
    %22 = vector.load %arg16[%c0_18, %c0_19, %c0_20] : memref<8x16x512xbf16, #tpu.memory_space<vmem>>, vector<8x16x512xbf16>
    tpu.vector_store %arg16[%c0_18, %c0_19, %c0_20], %21 {strides = array<i32>} : memref<8x16x512xbf16, #tpu.memory_space<vmem>>, vector<8x16x512xbf16>,
    %c0_21 = arith.constant 0 : index
    %c0_22 = arith.constant 0 : index
    %23 = vector.load %arg5[%c0_21, %c0_22] : memref<128x512xbf16, #tpu.memory_space<vmem>>, vector<128x512xbf16>
    %c0_23 = arith.constant 0 : index
    %c0_24 = arith.constant 0 : index
    %24 = vector.load %arg6[%c0_23, %c0_24] : memref<128x512xbf16, #tpu.memory_space<vmem>>, vector<128x512xbf16>
    %c0_i32_25 = arith.constant 0 : i32
    %c7_i32 = arith.constant 7 : i32
    %25 = arith.subi %c7_i32, %c0_i32_25 : i32
    %26 = arith.index_cast %c0_i32_25 : i32 to index
    %c0_26 = arith.constant 0 : index
    %c0_27 = arith.constant 0 : index
    %27 = vector.load %arg15[%26, %c0_26, %c0_27] : memref<8x16x512xbf16, #tpu.memory_space<vmem>>, vector<1x16x512xbf16>
    %28 = vector.shape_cast %27 : vector<1x16x512xbf16> to vector<16x512xbf16>
    %29 = arith.extf %28 : vector<16x512xbf16> to vector<16x512xf32>
    %c0_28 = arith.constant 0 : index
    %c0_29 = arith.constant 0 : index
    %30 = vector.load %arg11[%c0_28, %c0_29] : memref<16x128xf32, #tpu.memory_space<vmem>>, vector<16x128xf32>
    %31 = arith.truncf %30 : vector<16x128xf32> to vector<16x128xbf16>
    %cst_30 = arith.constant dense<0.000000e+00> : vector<16x512xf32>
    %32 = tpu.matmul %31, %23, %cst_30 {dimension_numbers = #tpu.dot_dimension_numbers<[1], [0], [0], [1], [0, 0, 1, 1], [], []>} : vector<16x128xbf16>, vector<128x512xbf16>, vector<16x512xf32> -> vector<16x512xf32>
    %33 = arith.addf %29, %32 : vector<16x512xf32>
    %34 = arith.index_cast %25 : i32 to index
    %c0_31 = arith.constant 0 : index
    %c0_32 = arith.constant 0 : index
    %35 = vector.load %arg16[%34, %c0_31, %c0_32] : memref<8x16x512xbf16, #tpu.memory_space<vmem>>, vector<1x16x512xbf16>
    %36 = vector.shape_cast %35 : vector<1x16x512xbf16> to vector<16x512xbf16>
    %37 = arith.extf %36 : vector<16x512xbf16> to vector<16x512xf32>
    %c0_33 = arith.constant 0 : index
    %c0_34 = arith.constant 0 : index
    %38 = vector.load %arg13[%c0_33, %c0_34] : memref<16x128xf32, #tpu.memory_space<vmem>>, vector<16x128xf32>
    %39 = arith.truncf %38 : vector<16x128xf32> to vector<16x128xbf16>
    %cst_35 = arith.constant dense<0.000000e+00> : vector<16x512xf32>
    %40 = tpu.matmul %39, %24, %cst_35 {dimension_numbers = #tpu.dot_dimension_numbers<[1], [0], [0], [1], [0, 0, 1, 1], [], []>} : vector<16x128xbf16>, vector<128x512xbf16>, vector<16x512xf32> -> vector<16x512xf32>
    %41 = arith.addf %37, %40 : vector<16x512xf32>
    %c0_36 = arith.constant 0 : index
    %c0_37 = arith.constant 0 : index
    %42 = vector.load %arg12[%c0_36, %c0_37] : memref<16x128xf32, #tpu.memory_space<vmem>>, vector<16x128xf32>
    %43 = vector.extract_strided_slice %33 {offsets = [0, 0], sizes = [16, 128], strides = [1, 1]} : vector<16x512xf32> to vector<16x128xf32>
    %cst_38 = arith.constant 5.000000e-01 : f32
    %44 = vector.broadcast %cst_38 : f32 to vector<16x128xf32>
    %45 = arith.mulf %44, %43 : vector<16x128xf32>
    %46 = math.tanh %45 : vector<16x128xf32>
    %cst_39 = arith.constant 5.000000e-01 : f32
    %47 = vector.broadcast %cst_39 : f32 to vector<16x128xf32>
    %48 = arith.mulf %47, %46 : vector<16x128xf32>
    %cst_40 = arith.constant 5.000000e-01 : f32
    %49 = vector.broadcast %cst_40 : f32 to vector<16x128xf32>
    %50 = arith.addf %48, %49 : vector<16x128xf32>
    %51 = vector.extract_strided_slice %33 {offsets = [0, 128], sizes = [16, 128], strides = [1, 1]} : vector<16x512xf32> to vector<16x128xf32>
    %cst_41 = arith.constant 5.000000e-01 : f32
    %52 = vector.broadcast %cst_41 : f32 to vector<16x128xf32>
    %53 = arith.mulf %52, %51 : vector<16x128xf32>
    %54 = math.tanh %53 : vector<16x128xf32>
    %cst_42 = arith.constant 5.000000e-01 : f32
    %55 = vector.broadcast %cst_42 : f32 to vector<16x128xf32>
    %56 = arith.mulf %55, %54 : vector<16x128xf32>
    %cst_43 = arith.constant 5.000000e-01 : f32
    %57 = vector.broadcast %cst_43 : f32 to vector<16x128xf32>
    %58 = arith.addf %56, %57 : vector<16x128xf32>
    %59 = vector.extract_strided_slice %33 {offsets = [0, 256], sizes = [16, 128], strides = [1, 1]} : vector<16x512xf32> to vector<16x128xf32>
    %60 = math.tanh %59 : vector<16x128xf32>
    %61 = vector.extract_strided_slice %33 {offsets = [0, 384], sizes = [16, 128], strides = [1, 1]} : vector<16x512xf32> to vector<16x128xf32>
    %cst_44 = arith.constant 5.000000e-01 : f32
    %62 = vector.broadcast %cst_44 : f32 to vector<16x128xf32>
    %63 = arith.mulf %62, %61 : vector<16x128xf32>
    %64 = math.tanh %63 : vector<16x128xf32>
    %cst_45 = arith.constant 5.000000e-01 : f32
    %65 = vector.broadcast %cst_45 : f32 to vector<16x128xf32>
    %66 = arith.mulf %65, %64 : vector<16x128xf32>
    %cst_46 = arith.constant 5.000000e-01 : f32
    %67 = vector.broadcast %cst_46 : f32 to vector<16x128xf32>
    %68 = arith.addf %66, %67 : vector<16x128xf32>
    %69 = arith.mulf %58, %42 : vector<16x128xf32>
    %70 = arith.mulf %50, %60 : vector<16x128xf32>
    %71 = arith.addf %69, %70 : vector<16x128xf32>
    %72 = math.tanh %71 : vector<16x128xf32>
    %73 = arith.mulf %68, %72 : vector<16x128xf32>
    %c0_47 = arith.constant 0 : index
    %c0_48 = arith.constant 0 : index
    %74 = vector.load %arg14[%c0_47, %c0_48] : memref<16x128xf32, #tpu.memory_space<vmem>>, vector<16x128xf32>
    %75 = vector.extract_strided_slice %41 {offsets = [0, 0], sizes = [16, 128], strides = [1, 1]} : vector<16x512xf32> to vector<16x128xf32>
    %cst_49 = arith.constant 5.000000e-01 : f32
    %76 = vector.broadcast %cst_49 : f32 to vector<16x128xf32>
    %77 = arith.mulf %76, %75 : vector<16x128xf32>
    %78 = math.tanh %77 : vector<16x128xf32>
    %cst_50 = arith.constant 5.000000e-01 : f32
    %79 = vector.broadcast %cst_50 : f32 to vector<16x128xf32>
    %80 = arith.mulf %79, %78 : vector<16x128xf32>
    %cst_51 = arith.constant 5.000000e-01 : f32
    %81 = vector.broadcast %cst_51 : f32 to vector<16x128xf32>
    %82 = arith.addf %80, %81 : vector<16x128xf32>
    %83 = vector.extract_strided_slice %41 {offsets = [0, 128], sizes = [16, 128], strides = [1, 1]} : vector<16x512xf32> to vector<16x128xf32>
    %cst_52 = arith.constant 5.000000e-01 : f32
    %84 = vector.broadcast %cst_52 : f32 to vector<16x128xf32>
    %85 = arith.mulf %84, %83 : vector<16x128xf32>
    %86 = math.tanh %85 : vector<16x128xf32>
    %cst_53 = arith.constant 5.000000e-01 : f32
    %87 = vector.broadcast %cst_53 : f32 to vector<16x128xf32>
    %88 = arith.mulf %87, %86 : vector<16x128xf32>
    %cst_54 = arith.constant 5.000000e-01 : f32
    %89 = vector.broadcast %cst_54 : f32 to vector<16x128xf32>
    %90 = arith.addf %88, %89 : vector<16x128xf32>
    %91 = vector.extract_strided_slice %41 {offsets = [0, 256], sizes = [16, 128], strides = [1, 1]} : vector<16x512xf32> to vector<16x128xf32>
    %92 = math.tanh %91 : vector<16x128xf32>
    %93 = vector.extract_strided_slice %41 {offsets = [0, 384], sizes = [16, 128], strides = [1, 1]} : vector<16x512xf32> to vector<16x128xf32>
    %cst_55 = arith.constant 5.000000e-01 : f32
    %94 = vector.broadcast %cst_55 : f32 to vector<16x128xf32>
    %95 = arith.mulf %94, %93 : vector<16x128xf32>
    %96 = math.tanh %95 : vector<16x128xf32>
    %cst_56 = arith.constant 5.000000e-01 : f32
    %97 = vector.broadcast %cst_56 : f32 to vector<16x128xf32>
    %98 = arith.mulf %97, %96 : vector<16x128xf32>
    %cst_57 = arith.constant 5.000000e-01 : f32
    %99 = vector.broadcast %cst_57 : f32 to vector<16x128xf32>
    %100 = arith.addf %98, %99 : vector<16x128xf32>
    %101 = arith.mulf %90, %74 : vector<16x128xf32>
    %102 = arith.mulf %82, %92 : vector<16x128xf32>
    %103 = arith.addf %101, %102 : vector<16x128xf32>
    %104 = math.tanh %103 : vector<16x128xf32>
    %105 = arith.mulf %100, %104 : vector<16x128xf32>
    %c0_58 = arith.constant 0 : index
    %c0_59 = arith.constant 0 : index
    %106 = vector.load %arg11[%c0_58, %c0_59] : memref<16x128xf32, #tpu.memory_space<vmem>>, vector<16x128xf32>
    tpu.vector_store %arg11[%c0_58, %c0_59], %73 {strides = array<i32>} : memref<16x128xf32, #tpu.memory_space<vmem>>, vector<16x128xf32>,
    %c0_60 = arith.constant 0 : index
    %c0_61 = arith.constant 0 : index
    %107 = vector.load %arg12[%c0_60, %c0_61] : memref<16x128xf32, #tpu.memory_space<vmem>>, vector<16x128xf32>
    tpu.vector_store %arg12[%c0_60, %c0_61], %71 {strides = array<i32>} : memref<16x128xf32, #tpu.memory_space<vmem>>, vector<16x128xf32>,
    %c0_62 = arith.constant 0 : index
    %c0_63 = arith.constant 0 : index
    %108 = vector.load %arg13[%c0_62, %c0_63] : memref<16x128xf32, #tpu.memory_space<vmem>>, vector<16x128xf32>
    tpu.vector_store %arg13[%c0_62, %c0_63], %105 {strides = array<i32>} : memref<16x128xf32, #tpu.memory_space<vmem>>, vector<16x128xf32>,
    %c0_64 = arith.constant 0 : index
    %c0_65 = arith.constant 0 : index
    %109 = vector.load %arg14[%c0_64, %c0_65] : memref<16x128xf32, #tpu.memory_space<vmem>>, vector<16x128xf32>
    tpu.vector_store %arg14[%c0_64, %c0_65], %103 {strides = array<i32>} : memref<16x128xf32, #tpu.memory_space<vmem>>, vector<16x128xf32>,
    %110 = arith.truncf %73 : vector<16x128xf32> to vector<16x128xbf16>
    %111 = arith.index_cast %c0_i32_25 : i32 to index
    %c0_66 = arith.constant 0 : index
    %c0_67 = arith.constant 0 : index
    %112 = vector.load %arg9[%111, %c0_66, %c0_67] : memref<8x16x128xbf16, #tpu.memory_space<vmem>>, vector<1x16x128xbf16>
    %113 = vector.shape_cast %112 : vector<1x16x128xbf16> to vector<16x128xbf16>
    %114 = vector.shape_cast %110 : vector<16x128xbf16> to vector<1x16x128xbf16>
    tpu.vector_store %arg9[%111, %c0_66, %c0_67], %114 {strides = array<i32>} : memref<8x16x128xbf16, #tpu.memory_space<vmem>>, vector<1x16x128xbf16>,
    %115 = arith.truncf %105 : vector<16x128xf32> to vector<16x128xbf16>
    %116 = arith.index_cast %25 : i32 to index
    %c0_68 = arith.constant 0 : index
    %c0_69 = arith.constant 0 : index
    %117 = vector.load %arg10[%116, %c0_68, %c0_69] : memref<8x16x128xbf16, #tpu.memory_space<vmem>>, vector<1x16x128xbf16>
    %118 = vector.shape_cast %117 : vector<1x16x128xbf16> to vector<16x128xbf16>
    %119 = vector.shape_cast %115 : vector<16x128xbf16> to vector<1x16x128xbf16>
    tpu.vector_store %arg10[%116, %c0_68, %c0_69], %119 {strides = array<i32>} : memref<8x16x128xbf16, #tpu.memory_space<vmem>>, vector<1x16x128xbf16>,
    %c1_i32 = arith.constant 1 : i32
    %c7_i32_70 = arith.constant 7 : i32
    %120 = arith.subi %c7_i32_70, %c1_i32 : i32
    %121 = arith.index_cast %c1_i32 : i32 to index
    %c0_71 = arith.constant 0 : index
    %c0_72 = arith.constant 0 : index
    %122 = vector.load %arg15[%121, %c0_71, %c0_72] : memref<8x16x512xbf16, #tpu.memory_space<vmem>>, vector<1x16x512xbf16>
    %123 = vector.shape_cast %122 : vector<1x16x512xbf16> to vector<16x512xbf16>
    %124 = arith.extf %123 : vector<16x512xbf16> to vector<16x512xf32>
    %c0_73 = arith.constant 0 : index
    %c0_74 = arith.constant 0 : index
    %125 = vector.load %arg11[%c0_73, %c0_74] : memref<16x128xf32, #tpu.memory_space<vmem>>, vector<16x128xf32>
    %126 = arith.truncf %125 : vector<16x128xf32> to vector<16x128xbf16>
    %cst_75 = arith.constant dense<0.000000e+00> : vector<16x512xf32>
    %127 = tpu.matmul %126, %23, %cst_75 {dimension_numbers = #tpu.dot_dimension_numbers<[1], [0], [0], [1], [0, 0, 1, 1], [], []>} : vector<16x128xbf16>, vector<128x512xbf16>, vector<16x512xf32> -> vector<16x512xf32>
    %128 = arith.addf %124, %127 : vector<16x512xf32>
    %129 = arith.index_cast %120 : i32 to index
    %c0_76 = arith.constant 0 : index
    %c0_77 = arith.constant 0 : index
    %130 = vector.load %arg16[%129, %c0_76, %c0_77] : memref<8x16x512xbf16, #tpu.memory_space<vmem>>, vector<1x16x512xbf16>
    %131 = vector.shape_cast %130 : vector<1x16x512xbf16> to vector<16x512xbf16>
    %132 = arith.extf %131 : vector<16x512xbf16> to vector<16x512xf32>
    %c0_78 = arith.constant 0 : index
    %c0_79 = arith.constant 0 : index
    %133 = vector.load %arg13[%c0_78, %c0_79] : memref<16x128xf32, #tpu.memory_space<vmem>>, vector<16x128xf32>
    %134 = arith.truncf %133 : vector<16x128xf32> to vector<16x128xbf16>
    %cst_80 = arith.constant dense<0.000000e+00> : vector<16x512xf32>
    %135 = tpu.matmul %134, %24, %cst_80 {dimension_numbers = #tpu.dot_dimension_numbers<[1], [0], [0], [1], [0, 0, 1, 1], [], []>} : vector<16x128xbf16>, vector<128x512xbf16>, vector<16x512xf32> -> vector<16x512xf32>
    %136 = arith.addf %132, %135 : vector<16x512xf32>
    %c0_81 = arith.constant 0 : index
    %c0_82 = arith.constant 0 : index
    %137 = vector.load %arg12[%c0_81, %c0_82] : memref<16x128xf32, #tpu.memory_space<vmem>>, vector<16x128xf32>
    %138 = vector.extract_strided_slice %128 {offsets = [0, 0], sizes = [16, 128], strides = [1, 1]} : vector<16x512xf32> to vector<16x128xf32>
    %cst_83 = arith.constant 5.000000e-01 : f32
    %139 = vector.broadcast %cst_83 : f32 to vector<16x128xf32>
    %140 = arith.mulf %139, %138 : vector<16x128xf32>
    %141 = math.tanh %140 : vector<16x128xf32>
    %cst_84 = arith.constant 5.000000e-01 : f32
    %142 = vector.broadcast %cst_84 : f32 to vector<16x128xf32>
    %143 = arith.mulf %142, %141 : vector<16x128xf32>
    %cst_85 = arith.constant 5.000000e-01 : f32
    %144 = vector.broadcast %cst_85 : f32 to vector<16x128xf32>
    %145 = arith.addf %143, %144 : vector<16x128xf32>
    %146 = vector.extract_strided_slice %128 {offsets = [0, 128], sizes = [16, 128], strides = [1, 1]} : vector<16x512xf32> to vector<16x128xf32>
    %cst_86 = arith.constant 5.000000e-01 : f32
    %147 = vector.broadcast %cst_86 : f32 to vector<16x128xf32>
    %148 = arith.mulf %147, %146 : vector<16x128xf32>
    %149 = math.tanh %148 : vector<16x128xf32>
    %cst_87 = arith.constant 5.000000e-01 : f32
    %150 = vector.broadcast %cst_87 : f32 to vector<16x128xf32>
    %151 = arith.mulf %150, %149 : vector<16x128xf32>
    %cst_88 = arith.constant 5.000000e-01 : f32
    %152 = vector.broadcast %cst_88 : f32 to vector<16x128xf32>
    %153 = arith.addf %151, %152 : vector<16x128xf32>
    %154 = vector.extract_strided_slice %128 {offsets = [0, 256], sizes = [16, 128], strides = [1, 1]} : vector<16x512xf32> to vector<16x128xf32>
    %155 = math.tanh %154 : vector<16x128xf32>
    %156 = vector.extract_strided_slice %128 {offsets = [0, 384], sizes = [16, 128], strides = [1, 1]} : vector<16x512xf32> to vector<16x128xf32>
    %cst_89 = arith.constant 5.000000e-01 : f32
    %157 = vector.broadcast %cst_89 : f32 to vector<16x128xf32>
    %158 = arith.mulf %157, %156 : vector<16x128xf32>
    %159 = math.tanh %158 : vector<16x128xf32>
    %cst_90 = arith.constant 5.000000e-01 : f32
    %160 = vector.broadcast %cst_90 : f32 to vector<16x128xf32>
    %161 = arith.mulf %160, %159 : vector<16x128xf32>
    %cst_91 = arith.constant 5.000000e-01 : f32
    %162 = vector.broadcast %cst_91 : f32 to vector<16x128xf32>
    %163 = arith.addf %161, %162 : vector<16x128xf32>
    %164 = arith.mulf %153, %137 : vector<16x128xf32>
    %165 = arith.mulf %145, %155 : vector<16x128xf32>
    %166 = arith.addf %164, %165 : vector<16x128xf32>
    %167 = math.tanh %166 : vector<16x128xf32>
    %168 = arith.mulf %163, %167 : vector<16x128xf32>
    %c0_92 = arith.constant 0 : index
    %c0_93 = arith.constant 0 : index
    %169 = vector.load %arg14[%c0_92, %c0_93] : memref<16x128xf32, #tpu.memory_space<vmem>>, vector<16x128xf32>
    %170 = vector.extract_strided_slice %136 {offsets = [0, 0], sizes = [16, 128], strides = [1, 1]} : vector<16x512xf32> to vector<16x128xf32>
    %cst_94 = arith.constant 5.000000e-01 : f32
    %171 = vector.broadcast %cst_94 : f32 to vector<16x128xf32>
    %172 = arith.mulf %171, %170 : vector<16x128xf32>
    %173 = math.tanh %172 : vector<16x128xf32>
    %cst_95 = arith.constant 5.000000e-01 : f32
    %174 = vector.broadcast %cst_95 : f32 to vector<16x128xf32>
    %175 = arith.mulf %174, %173 : vector<16x128xf32>
    %cst_96 = arith.constant 5.000000e-01 : f32
    %176 = vector.broadcast %cst_96 : f32 to vector<16x128xf32>
    %177 = arith.addf %175, %176 : vector<16x128xf32>
    %178 = vector.extract_strided_slice %136 {offsets = [0, 128], sizes = [16, 128], strides = [1, 1]} : vector<16x512xf32> to vector<16x128xf32>
    %cst_97 = arith.constant 5.000000e-01 : f32
    %179 = vector.broadcast %cst_97 : f32 to vector<16x128xf32>
    %180 = arith.mulf %179, %178 : vector<16x128xf32>
    %181 = math.tanh %180 : vector<16x128xf32>
    %cst_98 = arith.constant 5.000000e-01 : f32
    %182 = vector.broadcast %cst_98 : f32 to vector<16x128xf32>
    %183 = arith.mulf %182, %181 : vector<16x128xf32>
    %cst_99 = arith.constant 5.000000e-01 : f32
    %184 = vector.broadcast %cst_99 : f32 to vector<16x128xf32>
    %185 = arith.addf %183, %184 : vector<16x128xf32>
    %186 = vector.extract_strided_slice %136 {offsets = [0, 256], sizes = [16, 128], strides = [1, 1]} : vector<16x512xf32> to vector<16x128xf32>
    %187 = math.tanh %186 : vector<16x128xf32>
    %188 = vector.extract_strided_slice %136 {offsets = [0, 384], sizes = [16, 128], strides = [1, 1]} : vector<16x512xf32> to vector<16x128xf32>
    %cst_100 = arith.constant 5.000000e-01 : f32
    %189 = vector.broadcast %cst_100 : f32 to vector<16x128xf32>
    %190 = arith.mulf %189, %188 : vector<16x128xf32>
    %191 = math.tanh %190 : vector<16x128xf32>
    %cst_101 = arith.constant 5.000000e-01 : f32
    %192 = vector.broadcast %cst_101 : f32 to vector<16x128xf32>
    %193 = arith.mulf %192, %191 : vector<16x128xf32>
    %cst_102 = arith.constant 5.000000e-01 : f32
    %194 = vector.broadcast %cst_102 : f32 to vector<16x128xf32>
    %195 = arith.addf %193, %194 : vector<16x128xf32>
    %196 = arith.mulf %185, %169 : vector<16x128xf32>
    %197 = arith.mulf %177, %187 : vector<16x128xf32>
    %198 = arith.addf %196, %197 : vector<16x128xf32>
    %199 = math.tanh %198 : vector<16x128xf32>
    %200 = arith.mulf %195, %199 : vector<16x128xf32>
    %c0_103 = arith.constant 0 : index
    %c0_104 = arith.constant 0 : index
    %201 = vector.load %arg11[%c0_103, %c0_104] : memref<16x128xf32, #tpu.memory_space<vmem>>, vector<16x128xf32>
    tpu.vector_store %arg11[%c0_103, %c0_104], %168 {strides = array<i32>} : memref<16x128xf32, #tpu.memory_space<vmem>>, vector<16x128xf32>,
    %c0_105 = arith.constant 0 : index
    %c0_106 = arith.constant 0 : index
    %202 = vector.load %arg12[%c0_105, %c0_106] : memref<16x128xf32, #tpu.memory_space<vmem>>, vector<16x128xf32>
    tpu.vector_store %arg12[%c0_105, %c0_106], %166 {strides = array<i32>} : memref<16x128xf32, #tpu.memory_space<vmem>>, vector<16x128xf32>,
    %c0_107 = arith.constant 0 : index
    %c0_108 = arith.constant 0 : index
    %203 = vector.load %arg13[%c0_107, %c0_108] : memref<16x128xf32, #tpu.memory_space<vmem>>, vector<16x128xf32>
    tpu.vector_store %arg13[%c0_107, %c0_108], %200 {strides = array<i32>} : memref<16x128xf32, #tpu.memory_space<vmem>>, vector<16x128xf32>,
    %c0_109 = arith.constant 0 : index
    %c0_110 = arith.constant 0 : index
    %204 = vector.load %arg14[%c0_109, %c0_110] : memref<16x128xf32, #tpu.memory_space<vmem>>, vector<16x128xf32>
    tpu.vector_store %arg14[%c0_109, %c0_110], %198 {strides = array<i32>} : memref<16x128xf32, #tpu.memory_space<vmem>>, vector<16x128xf32>,
    %205 = arith.truncf %168 : vector<16x128xf32> to vector<16x128xbf16>
    %206 = arith.index_cast %c1_i32 : i32 to index
    %c0_111 = arith.constant 0 : index
    %c0_112 = arith.constant 0 : index
    %207 = vector.load %arg9[%206, %c0_111, %c0_112] : memref<8x16x128xbf16, #tpu.memory_space<vmem>>, vector<1x16x128xbf16>
    %208 = vector.shape_cast %207 : vector<1x16x128xbf16> to vector<16x128xbf16>
    %209 = vector.shape_cast %205 : vector<16x128xbf16> to vector<1x16x128xbf16>
    tpu.vector_store %arg9[%206, %c0_111, %c0_112], %209 {strides = array<i32>} : memref<8x16x128xbf16, #tpu.memory_space<vmem>>, vector<1x16x128xbf16>,
    %210 = arith.truncf %200 : vector<16x128xf32> to vector<16x128xbf16>
    %211 = arith.index_cast %120 : i32 to index
    %c0_113 = arith.constant 0 : index
    %c0_114 = arith.constant 0 : index
    %212 = vector.load %arg10[%211, %c0_113, %c0_114] : memref<8x16x128xbf16, #tpu.memory_space<vmem>>, vector<1x16x128xbf16>
    %213 = vector.shape_cast %212 : vector<1x16x128xbf16> to vector<16x128xbf16>
    %214 = vector.shape_cast %210 : vector<16x128xbf16> to vector<1x16x128xbf16>
    tpu.vector_store %arg10[%211, %c0_113, %c0_114], %214 {strides = array<i32>} : memref<8x16x128xbf16, #tpu.memory_space<vmem>>, vector<1x16x128xbf16>,
    %c2_i32 = arith.constant 2 : i32
    %c7_i32_115 = arith.constant 7 : i32
    %215 = arith.subi %c7_i32_115, %c2_i32 : i32
    %216 = arith.index_cast %c2_i32 : i32 to index
    %c0_116 = arith.constant 0 : index
    %c0_117 = arith.constant 0 : index
    %217 = vector.load %arg15[%216, %c0_116, %c0_117] : memref<8x16x512xbf16, #tpu.memory_space<vmem>>, vector<1x16x512xbf16>
    %218 = vector.shape_cast %217 : vector<1x16x512xbf16> to vector<16x512xbf16>
    %219 = arith.extf %218 : vector<16x512xbf16> to vector<16x512xf32>
    %c0_118 = arith.constant 0 : index
    %c0_119 = arith.constant 0 : index
    %220 = vector.load %arg11[%c0_118, %c0_119] : memref<16x128xf32, #tpu.memory_space<vmem>>, vector<16x128xf32>
    %221 = arith.truncf %220 : vector<16x128xf32> to vector<16x128xbf16>
    %cst_120 = arith.constant dense<0.000000e+00> : vector<16x512xf32>
    %222 = tpu.matmul %221, %23, %cst_120 {dimension_numbers = #tpu.dot_dimension_numbers<[1], [0], [0], [1], [0, 0, 1, 1], [], []>} : vector<16x128xbf16>, vector<128x512xbf16>, vector<16x512xf32> -> vector<16x512xf32>
    %223 = arith.addf %219, %222 : vector<16x512xf32>
    %224 = arith.index_cast %215 : i32 to index
    %c0_121 = arith.constant 0 : index
    %c0_122 = arith.constant 0 : index
    %225 = vector.load %arg16[%224, %c0_121, %c0_122] : memref<8x16x512xbf16, #tpu.memory_space<vmem>>, vector<1x16x512xbf16>
    %226 = vector.shape_cast %225 : vector<1x16x512xbf16> to vector<16x512xbf16>
    %227 = arith.extf %226 : vector<16x512xbf16> to vector<16x512xf32>
    %c0_123 = arith.constant 0 : index
    %c0_124 = arith.constant 0 : index
    %228 = vector.load %arg13[%c0_123, %c0_124] : memref<16x128xf32, #tpu.memory_space<vmem>>, vector<16x128xf32>
    %229 = arith.truncf %228 : vector<16x128xf32> to vector<16x128xbf16>
    %cst_125 = arith.constant dense<0.000000e+00> : vector<16x512xf32>
    %230 = tpu.matmul %229, %24, %cst_125 {dimension_numbers = #tpu.dot_dimension_numbers<[1], [0], [0], [1], [0, 0, 1, 1], [], []>} : vector<16x128xbf16>, vector<128x512xbf16>, vector<16x512xf32> -> vector<16x512xf32>
    %231 = arith.addf %227, %230 : vector<16x512xf32>
    %c0_126 = arith.constant 0 : index
    %c0_127 = arith.constant 0 : index
    %232 = vector.load %arg12[%c0_126, %c0_127] : memref<16x128xf32, #tpu.memory_space<vmem>>, vector<16x128xf32>
    %233 = vector.extract_strided_slice %223 {offsets = [0, 0], sizes = [16, 128], strides = [1, 1]} : vector<16x512xf32> to vector<16x128xf32>
    %cst_128 = arith.constant 5.000000e-01 : f32
    %234 = vector.broadcast %cst_128 : f32 to vector<16x128xf32>
    %235 = arith.mulf %234, %233 : vector<16x128xf32>
    %236 = math.tanh %235 : vector<16x128xf32>
    %cst_129 = arith.constant 5.000000e-01 : f32
    %237 = vector.broadcast %cst_129 : f32 to vector<16x128xf32>
    %238 = arith.mulf %237, %236 : vector<16x128xf32>
    %cst_130 = arith.constant 5.000000e-01 : f32
    %239 = vector.broadcast %cst_130 : f32 to vector<16x128xf32>
    %240 = arith.addf %238, %239 : vector<16x128xf32>
    %241 = vector.extract_strided_slice %223 {offsets = [0, 128], sizes = [16, 128], strides = [1, 1]} : vector<16x512xf32> to vector<16x128xf32>
    %cst_131 = arith.constant 5.000000e-01 : f32
    %242 = vector.broadcast %cst_131 : f32 to vector<16x128xf32>
    %243 = arith.mulf %242, %241 : vector<16x128xf32>
    %244 = math.tanh %243 : vector<16x128xf32>
    %cst_132 = arith.constant 5.000000e-01 : f32
    %245 = vector.broadcast %cst_132 : f32 to vector<16x128xf32>
    %246 = arith.mulf %245, %244 : vector<16x128xf32>
    %cst_133 = arith.constant 5.000000e-01 : f32
    %247 = vector.broadcast %cst_133 : f32 to vector<16x128xf32>
    %248 = arith.addf %246, %247 : vector<16x128xf32>
    %249 = vector.extract_strided_slice %223 {offsets = [0, 256], sizes = [16, 128], strides = [1, 1]} : vector<16x512xf32> to vector<16x128xf32>
    %250 = math.tanh %249 : vector<16x128xf32>
    %251 = vector.extract_strided_slice %223 {offsets = [0, 384], sizes = [16, 128], strides = [1, 1]} : vector<16x512xf32> to vector<16x128xf32>
    %cst_134 = arith.constant 5.000000e-01 : f32
    %252 = vector.broadcast %cst_134 : f32 to vector<16x128xf32>
    %253 = arith.mulf %252, %251 : vector<16x128xf32>
    %254 = math.tanh %253 : vector<16x128xf32>
    %cst_135 = arith.constant 5.000000e-01 : f32
    %255 = vector.broadcast %cst_135 : f32 to vector<16x128xf32>
    %256 = arith.mulf %255, %254 : vector<16x128xf32>
    %cst_136 = arith.constant 5.000000e-01 : f32
    %257 = vector.broadcast %cst_136 : f32 to vector<16x128xf32>
    %258 = arith.addf %256, %257 : vector<16x128xf32>
    %259 = arith.mulf %248, %232 : vector<16x128xf32>
    %260 = arith.mulf %240, %250 : vector<16x128xf32>
    %261 = arith.addf %259, %260 : vector<16x128xf32>
    %262 = math.tanh %261 : vector<16x128xf32>
    %263 = arith.mulf %258, %262 : vector<16x128xf32>
    %c0_137 = arith.constant 0 : index
    %c0_138 = arith.constant 0 : index
    %264 = vector.load %arg14[%c0_137, %c0_138] : memref<16x128xf32, #tpu.memory_space<vmem>>, vector<16x128xf32>
    %265 = vector.extract_strided_slice %231 {offsets = [0, 0], sizes = [16, 128], strides = [1, 1]} : vector<16x512xf32> to vector<16x128xf32>
    %cst_139 = arith.constant 5.000000e-01 : f32
    %266 = vector.broadcast %cst_139 : f32 to vector<16x128xf32>
    %267 = arith.mulf %266, %265 : vector<16x128xf32>
    %268 = math.tanh %267 : vector<16x128xf32>
    %cst_140 = arith.constant 5.000000e-01 : f32
    %269 = vector.broadcast %cst_140 : f32 to vector<16x128xf32>
    %270 = arith.mulf %269, %268 : vector<16x128xf32>
    %cst_141 = arith.constant 5.000000e-01 : f32
    %271 = vector.broadcast %cst_141 : f32 to vector<16x128xf32>
    %272 = arith.addf %270, %271 : vector<16x128xf32>
    %273 = vector.extract_strided_slice %231 {offsets = [0, 128], sizes = [16, 128], strides = [1, 1]} : vector<16x512xf32> to vector<16x128xf32>
    %cst_142 = arith.constant 5.000000e-01 : f32
    %274 = vector.broadcast %cst_142 : f32 to vector<16x128xf32>
    %275 = arith.mulf %274, %273 : vector<16x128xf32>
    %276 = math.tanh %275 : vector<16x128xf32>
    %cst_143 = arith.constant 5.000000e-01 : f32
    %277 = vector.broadcast %cst_143 : f32 to vector<16x128xf32>
    %278 = arith.mulf %277, %276 : vector<16x128xf32>
    %cst_144 = arith.constant 5.000000e-01 : f32
    %279 = vector.broadcast %cst_144 : f32 to vector<16x128xf32>
    %280 = arith.addf %278, %279 : vector<16x128xf32>
    %281 = vector.extract_strided_slice %231 {offsets = [0, 256], sizes = [16, 128], strides = [1, 1]} : vector<16x512xf32> to vector<16x128xf32>
    %282 = math.tanh %281 : vector<16x128xf32>
    %283 = vector.extract_strided_slice %231 {offsets = [0, 384], sizes = [16, 128], strides = [1, 1]} : vector<16x512xf32> to vector<16x128xf32>
    %cst_145 = arith.constant 5.000000e-01 : f32
    %284 = vector.broadcast %cst_145 : f32 to vector<16x128xf32>
    %285 = arith.mulf %284, %283 : vector<16x128xf32>
    %286 = math.tanh %285 : vector<16x128xf32>
    %cst_146 = arith.constant 5.000000e-01 : f32
    %287 = vector.broadcast %cst_146 : f32 to vector<16x128xf32>
    %288 = arith.mulf %287, %286 : vector<16x128xf32>
    %cst_147 = arith.constant 5.000000e-01 : f32
    %289 = vector.broadcast %cst_147 : f32 to vector<16x128xf32>
    %290 = arith.addf %288, %289 : vector<16x128xf32>
    %291 = arith.mulf %280, %264 : vector<16x128xf32>
    %292 = arith.mulf %272, %282 : vector<16x128xf32>
    %293 = arith.addf %291, %292 : vector<16x128xf32>
    %294 = math.tanh %293 : vector<16x128xf32>
    %295 = arith.mulf %290, %294 : vector<16x128xf32>
    %c0_148 = arith.constant 0 : index
    %c0_149 = arith.constant 0 : index
    %296 = vector.load %arg11[%c0_148, %c0_149] : memref<16x128xf32, #tpu.memory_space<vmem>>, vector<16x128xf32>
    tpu.vector_store %arg11[%c0_148, %c0_149], %263 {strides = array<i32>} : memref<16x128xf32, #tpu.memory_space<vmem>>, vector<16x128xf32>,
    %c0_150 = arith.constant 0 : index
    %c0_151 = arith.constant 0 : index
    %297 = vector.load %arg12[%c0_150, %c0_151] : memref<16x128xf32, #tpu.memory_space<vmem>>, vector<16x128xf32>
    tpu.vector_store %arg12[%c0_150, %c0_151], %261 {strides = array<i32>} : memref<16x128xf32, #tpu.memory_space<vmem>>, vector<16x128xf32>,
    %c0_152 = arith.constant 0 : index
    %c0_153 = arith.constant 0 : index
    %298 = vector.load %arg13[%c0_152, %c0_153] : memref<16x128xf32, #tpu.memory_space<vmem>>, vector<16x128xf32>
    tpu.vector_store %arg13[%c0_152, %c0_153], %295 {strides = array<i32>} : memref<16x128xf32, #tpu.memory_space<vmem>>, vector<16x128xf32>,
    %c0_154 = arith.constant 0 : index
    %c0_155 = arith.constant 0 : index
    %299 = vector.load %arg14[%c0_154, %c0_155] : memref<16x128xf32, #tpu.memory_space<vmem>>, vector<16x128xf32>
    tpu.vector_store %arg14[%c0_154, %c0_155], %293 {strides = array<i32>} : memref<16x128xf32, #tpu.memory_space<vmem>>, vector<16x128xf32>,
    %300 = arith.truncf %263 : vector<16x128xf32> to vector<16x128xbf16>
    %301 = arith.index_cast %c2_i32 : i32 to index
    %c0_156 = arith.constant 0 : index
    %c0_157 = arith.constant 0 : index
    %302 = vector.load %arg9[%301, %c0_156, %c0_157] : memref<8x16x128xbf16, #tpu.memory_space<vmem>>, vector<1x16x128xbf16>
    %303 = vector.shape_cast %302 : vector<1x16x128xbf16> to vector<16x128xbf16>
    %304 = vector.shape_cast %300 : vector<16x128xbf16> to vector<1x16x128xbf16>
    tpu.vector_store %arg9[%301, %c0_156, %c0_157], %304 {strides = array<i32>} : memref<8x16x128xbf16, #tpu.memory_space<vmem>>, vector<1x16x128xbf16>,
    %305 = arith.truncf %295 : vector<16x128xf32> to vector<16x128xbf16>
    %306 = arith.index_cast %215 : i32 to index
    %c0_158 = arith.constant 0 : index
    %c0_159 = arith.constant 0 : index
    %307 = vector.load %arg10[%306, %c0_158, %c0_159] : memref<8x16x128xbf16, #tpu.memory_space<vmem>>, vector<1x16x128xbf16>
    %308 = vector.shape_cast %307 : vector<1x16x128xbf16> to vector<16x128xbf16>
    %309 = vector.shape_cast %305 : vector<16x128xbf16> to vector<1x16x128xbf16>
    tpu.vector_store %arg10[%306, %c0_158, %c0_159], %309 {strides = array<i32>} : memref<8x16x128xbf16, #tpu.memory_space<vmem>>, vector<1x16x128xbf16>,
    %c3_i32 = arith.constant 3 : i32
    %c7_i32_160 = arith.constant 7 : i32
    %310 = arith.subi %c7_i32_160, %c3_i32 : i32
    %311 = arith.index_cast %c3_i32 : i32 to index
    %c0_161 = arith.constant 0 : index
    %c0_162 = arith.constant 0 : index
    %312 = vector.load %arg15[%311, %c0_161, %c0_162] : memref<8x16x512xbf16, #tpu.memory_space<vmem>>, vector<1x16x512xbf16>
    %313 = vector.shape_cast %312 : vector<1x16x512xbf16> to vector<16x512xbf16>
    %314 = arith.extf %313 : vector<16x512xbf16> to vector<16x512xf32>
    %c0_163 = arith.constant 0 : index
    %c0_164 = arith.constant 0 : index
    %315 = vector.load %arg11[%c0_163, %c0_164] : memref<16x128xf32, #tpu.memory_space<vmem>>, vector<16x128xf32>
    %316 = arith.truncf %315 : vector<16x128xf32> to vector<16x128xbf16>
    %cst_165 = arith.constant dense<0.000000e+00> : vector<16x512xf32>
    %317 = tpu.matmul %316, %23, %cst_165 {dimension_numbers = #tpu.dot_dimension_numbers<[1], [0], [0], [1], [0, 0, 1, 1], [], []>} : vector<16x128xbf16>, vector<128x512xbf16>, vector<16x512xf32> -> vector<16x512xf32>
    %318 = arith.addf %314, %317 : vector<16x512xf32>
    %319 = arith.index_cast %310 : i32 to index
    %c0_166 = arith.constant 0 : index
    %c0_167 = arith.constant 0 : index
    %320 = vector.load %arg16[%319, %c0_166, %c0_167] : memref<8x16x512xbf16, #tpu.memory_space<vmem>>, vector<1x16x512xbf16>
    %321 = vector.shape_cast %320 : vector<1x16x512xbf16> to vector<16x512xbf16>
    %322 = arith.extf %321 : vector<16x512xbf16> to vector<16x512xf32>
    %c0_168 = arith.constant 0 : index
    %c0_169 = arith.constant 0 : index
    %323 = vector.load %arg13[%c0_168, %c0_169] : memref<16x128xf32, #tpu.memory_space<vmem>>, vector<16x128xf32>
    %324 = arith.truncf %323 : vector<16x128xf32> to vector<16x128xbf16>
    %cst_170 = arith.constant dense<0.000000e+00> : vector<16x512xf32>
    %325 = tpu.matmul %324, %24, %cst_170 {dimension_numbers = #tpu.dot_dimension_numbers<[1], [0], [0], [1], [0, 0, 1, 1], [], []>} : vector<16x128xbf16>, vector<128x512xbf16>, vector<16x512xf32> -> vector<16x512xf32>
    %326 = arith.addf %322, %325 : vector<16x512xf32>
    %c0_171 = arith.constant 0 : index
    %c0_172 = arith.constant 0 : index
    %327 = vector.load %arg12[%c0_171, %c0_172] : memref<16x128xf32, #tpu.memory_space<vmem>>, vector<16x128xf32>
    %328 = vector.extract_strided_slice %318 {offsets = [0, 0], sizes = [16, 128], strides = [1, 1]} : vector<16x512xf32> to vector<16x128xf32>
    %cst_173 = arith.constant 5.000000e-01 : f32
    %329 = vector.broadcast %cst_173 : f32 to vector<16x128xf32>
    %330 = arith.mulf %329, %328 : vector<16x128xf32>
    %331 = math.tanh %330 : vector<16x128xf32>
    %cst_174 = arith.constant 5.000000e-01 : f32
    %332 = vector.broadcast %cst_174 : f32 to vector<16x128xf32>
    %333 = arith.mulf %332, %331 : vector<16x128xf32>
    %cst_175 = arith.constant 5.000000e-01 : f32
    %334 = vector.broadcast %cst_175 : f32 to vector<16x128xf32>
    %335 = arith.addf %333, %334 : vector<16x128xf32>
    %336 = vector.extract_strided_slice %318 {offsets = [0, 128], sizes = [16, 128], strides = [1, 1]} : vector<16x512xf32> to vector<16x128xf32>
    %cst_176 = arith.constant 5.000000e-01 : f32
    %337 = vector.broadcast %cst_176 : f32 to vector<16x128xf32>
    %338 = arith.mulf %337, %336 : vector<16x128xf32>
    %339 = math.tanh %338 : vector<16x128xf32>
    %cst_177 = arith.constant 5.000000e-01 : f32
    %340 = vector.broadcast %cst_177 : f32 to vector<16x128xf32>
    %341 = arith.mulf %340, %339 : vector<16x128xf32>
    %cst_178 = arith.constant 5.000000e-01 : f32
    %342 = vector.broadcast %cst_178 : f32 to vector<16x128xf32>
    %343 = arith.addf %341, %342 : vector<16x128xf32>
    %344 = vector.extract_strided_slice %318 {offsets = [0, 256], sizes = [16, 128], strides = [1, 1]} : vector<16x512xf32> to vector<16x128xf32>
    %345 = math.tanh %344 : vector<16x128xf32>
    %346 = vector.extract_strided_slice %318 {offsets = [0, 384], sizes = [16, 128], strides = [1, 1]} : vector<16x512xf32> to vector<16x128xf32>
    %cst_179 = arith.constant 5.000000e-01 : f32
    %347 = vector.broadcast %cst_179 : f32 to vector<16x128xf32>
    %348 = arith.mulf %347, %346 : vector<16x128xf32>
    %349 = math.tanh %348 : vector<16x128xf32>
    %cst_180 = arith.constant 5.000000e-01 : f32
    %350 = vector.broadcast %cst_180 : f32 to vector<16x128xf32>
    %351 = arith.mulf %350, %349 : vector<16x128xf32>
    %cst_181 = arith.constant 5.000000e-01 : f32
    %352 = vector.broadcast %cst_181 : f32 to vector<16x128xf32>
    %353 = arith.addf %351, %352 : vector<16x128xf32>
    %354 = arith.mulf %343, %327 : vector<16x128xf32>
    %355 = arith.mulf %335, %345 : vector<16x128xf32>
    %356 = arith.addf %354, %355 : vector<16x128xf32>
    %357 = math.tanh %356 : vector<16x128xf32>
    %358 = arith.mulf %353, %357 : vector<16x128xf32>
    %c0_182 = arith.constant 0 : index
    %c0_183 = arith.constant 0 : index
    %359 = vector.load %arg14[%c0_182, %c0_183] : memref<16x128xf32, #tpu.memory_space<vmem>>, vector<16x128xf32>
    %360 = vector.extract_strided_slice %326 {offsets = [0, 0], sizes = [16, 128], strides = [1, 1]} : vector<16x512xf32> to vector<16x128xf32>
    %cst_184 = arith.constant 5.000000e-01 : f32
    %361 = vector.broadcast %cst_184 : f32 to vector<16x128xf32>
    %362 = arith.mulf %361, %360 : vector<16x128xf32>
    %363 = math.tanh %362 : vector<16x128xf32>
    %cst_185 = arith.constant 5.000000e-01 : f32
    %364 = vector.broadcast %cst_185 : f32 to vector<16x128xf32>
    %365 = arith.mulf %364, %363 : vector<16x128xf32>
    %cst_186 = arith.constant 5.000000e-01 : f32
    %366 = vector.broadcast %cst_186 : f32 to vector<16x128xf32>
    %367 = arith.addf %365, %366 : vector<16x128xf32>
    %368 = vector.extract_strided_slice %326 {offsets = [0, 128], sizes = [16, 128], strides = [1, 1]} : vector<16x512xf32> to vector<16x128xf32>
    %cst_187 = arith.constant 5.000000e-01 : f32
    %369 = vector.broadcast %cst_187 : f32 to vector<16x128xf32>
    %370 = arith.mulf %369, %368 : vector<16x128xf32>
    %371 = math.tanh %370 : vector<16x128xf32>
    %cst_188 = arith.constant 5.000000e-01 : f32
    %372 = vector.broadcast %cst_188 : f32 to vector<16x128xf32>
    %373 = arith.mulf %372, %371 : vector<16x128xf32>
    %cst_189 = arith.constant 5.000000e-01 : f32
    %374 = vector.broadcast %cst_189 : f32 to vector<16x128xf32>
    %375 = arith.addf %373, %374 : vector<16x128xf32>
    %376 = vector.extract_strided_slice %326 {offsets = [0, 256], sizes = [16, 128], strides = [1, 1]} : vector<16x512xf32> to vector<16x128xf32>
    %377 = math.tanh %376 : vector<16x128xf32>
    %378 = vector.extract_strided_slice %326 {offsets = [0, 384], sizes = [16, 128], strides = [1, 1]} : vector<16x512xf32> to vector<16x128xf32>
    %cst_190 = arith.constant 5.000000e-01 : f32
    %379 = vector.broadcast %cst_190 : f32 to vector<16x128xf32>
    %380 = arith.mulf %379, %378 : vector<16x128xf32>
    %381 = math.tanh %380 : vector<16x128xf32>
    %cst_191 = arith.constant 5.000000e-01 : f32
    %382 = vector.broadcast %cst_191 : f32 to vector<16x128xf32>
    %383 = arith.mulf %382, %381 : vector<16x128xf32>
    %cst_192 = arith.constant 5.000000e-01 : f32
    %384 = vector.broadcast %cst_192 : f32 to vector<16x128xf32>
    %385 = arith.addf %383, %384 : vector<16x128xf32>
    %386 = arith.mulf %375, %359 : vector<16x128xf32>
    %387 = arith.mulf %367, %377 : vector<16x128xf32>
    %388 = arith.addf %386, %387 : vector<16x128xf32>
    %389 = math.tanh %388 : vector<16x128xf32>
    %390 = arith.mulf %385, %389 : vector<16x128xf32>
    %c0_193 = arith.constant 0 : index
    %c0_194 = arith.constant 0 : index
    %391 = vector.load %arg11[%c0_193, %c0_194] : memref<16x128xf32, #tpu.memory_space<vmem>>, vector<16x128xf32>
    tpu.vector_store %arg11[%c0_193, %c0_194], %358 {strides = array<i32>} : memref<16x128xf32, #tpu.memory_space<vmem>>, vector<16x128xf32>,
    %c0_195 = arith.constant 0 : index
    %c0_196 = arith.constant 0 : index
    %392 = vector.load %arg12[%c0_195, %c0_196] : memref<16x128xf32, #tpu.memory_space<vmem>>, vector<16x128xf32>
    tpu.vector_store %arg12[%c0_195, %c0_196], %356 {strides = array<i32>} : memref<16x128xf32, #tpu.memory_space<vmem>>, vector<16x128xf32>,
    %c0_197 = arith.constant 0 : index
    %c0_198 = arith.constant 0 : index
    %393 = vector.load %arg13[%c0_197, %c0_198] : memref<16x128xf32, #tpu.memory_space<vmem>>, vector<16x128xf32>
    tpu.vector_store %arg13[%c0_197, %c0_198], %390 {strides = array<i32>} : memref<16x128xf32, #tpu.memory_space<vmem>>, vector<16x128xf32>,
    %c0_199 = arith.constant 0 : index
    %c0_200 = arith.constant 0 : index
    %394 = vector.load %arg14[%c0_199, %c0_200] : memref<16x128xf32, #tpu.memory_space<vmem>>, vector<16x128xf32>
    tpu.vector_store %arg14[%c0_199, %c0_200], %388 {strides = array<i32>} : memref<16x128xf32, #tpu.memory_space<vmem>>, vector<16x128xf32>,
    %395 = arith.truncf %358 : vector<16x128xf32> to vector<16x128xbf16>
    %396 = arith.index_cast %c3_i32 : i32 to index
    %c0_201 = arith.constant 0 : index
    %c0_202 = arith.constant 0 : index
    %397 = vector.load %arg9[%396, %c0_201, %c0_202] : memref<8x16x128xbf16, #tpu.memory_space<vmem>>, vector<1x16x128xbf16>
    %398 = vector.shape_cast %397 : vector<1x16x128xbf16> to vector<16x128xbf16>
    %399 = vector.shape_cast %395 : vector<16x128xbf16> to vector<1x16x128xbf16>
    tpu.vector_store %arg9[%396, %c0_201, %c0_202], %399 {strides = array<i32>} : memref<8x16x128xbf16, #tpu.memory_space<vmem>>, vector<1x16x128xbf16>,
    %400 = arith.truncf %390 : vector<16x128xf32> to vector<16x128xbf16>
    %401 = arith.index_cast %310 : i32 to index
    %c0_203 = arith.constant 0 : index
    %c0_204 = arith.constant 0 : index
    %402 = vector.load %arg10[%401, %c0_203, %c0_204] : memref<8x16x128xbf16, #tpu.memory_space<vmem>>, vector<1x16x128xbf16>
    %403 = vector.shape_cast %402 : vector<1x16x128xbf16> to vector<16x128xbf16>
    %404 = vector.shape_cast %400 : vector<16x128xbf16> to vector<1x16x128xbf16>
    tpu.vector_store %arg10[%401, %c0_203, %c0_204], %404 {strides = array<i32>} : memref<8x16x128xbf16, #tpu.memory_space<vmem>>, vector<1x16x128xbf16>,
    %c4_i32 = arith.constant 4 : i32
    %c7_i32_205 = arith.constant 7 : i32
    %405 = arith.subi %c7_i32_205, %c4_i32 : i32
    %406 = arith.index_cast %c4_i32 : i32 to index
    %c0_206 = arith.constant 0 : index
    %c0_207 = arith.constant 0 : index
    %407 = vector.load %arg15[%406, %c0_206, %c0_207] : memref<8x16x512xbf16, #tpu.memory_space<vmem>>, vector<1x16x512xbf16>
    %408 = vector.shape_cast %407 : vector<1x16x512xbf16> to vector<16x512xbf16>
    %409 = arith.extf %408 : vector<16x512xbf16> to vector<16x512xf32>
    %c0_208 = arith.constant 0 : index
    %c0_209 = arith.constant 0 : index
    %410 = vector.load %arg11[%c0_208, %c0_209] : memref<16x128xf32, #tpu.memory_space<vmem>>, vector<16x128xf32>
    %411 = arith.truncf %410 : vector<16x128xf32> to vector<16x128xbf16>
    %cst_210 = arith.constant dense<0.000000e+00> : vector<16x512xf32>
    %412 = tpu.matmul %411, %23, %cst_210 {dimension_numbers = #tpu.dot_dimension_numbers<[1], [0], [0], [1], [0, 0, 1, 1], [], []>} : vector<16x128xbf16>, vector<128x512xbf16>, vector<16x512xf32> -> vector<16x512xf32>
    %413 = arith.addf %409, %412 : vector<16x512xf32>
    %414 = arith.index_cast %405 : i32 to index
    %c0_211 = arith.constant 0 : index
    %c0_212 = arith.constant 0 : index
    %415 = vector.load %arg16[%414, %c0_211, %c0_212] : memref<8x16x512xbf16, #tpu.memory_space<vmem>>, vector<1x16x512xbf16>
    %416 = vector.shape_cast %415 : vector<1x16x512xbf16> to vector<16x512xbf16>
    %417 = arith.extf %416 : vector<16x512xbf16> to vector<16x512xf32>
    %c0_213 = arith.constant 0 : index
    %c0_214 = arith.constant 0 : index
    %418 = vector.load %arg13[%c0_213, %c0_214] : memref<16x128xf32, #tpu.memory_space<vmem>>, vector<16x128xf32>
    %419 = arith.truncf %418 : vector<16x128xf32> to vector<16x128xbf16>
    %cst_215 = arith.constant dense<0.000000e+00> : vector<16x512xf32>
    %420 = tpu.matmul %419, %24, %cst_215 {dimension_numbers = #tpu.dot_dimension_numbers<[1], [0], [0], [1], [0, 0, 1, 1], [], []>} : vector<16x128xbf16>, vector<128x512xbf16>, vector<16x512xf32> -> vector<16x512xf32>
    %421 = arith.addf %417, %420 : vector<16x512xf32>
    %c0_216 = arith.constant 0 : index
    %c0_217 = arith.constant 0 : index
    %422 = vector.load %arg12[%c0_216, %c0_217] : memref<16x128xf32, #tpu.memory_space<vmem>>, vector<16x128xf32>
    %423 = vector.extract_strided_slice %413 {offsets = [0, 0], sizes = [16, 128], strides = [1, 1]} : vector<16x512xf32> to vector<16x128xf32>
    %cst_218 = arith.constant 5.000000e-01 : f32
    %424 = vector.broadcast %cst_218 : f32 to vector<16x128xf32>
    %425 = arith.mulf %424, %423 : vector<16x128xf32>
    %426 = math.tanh %425 : vector<16x128xf32>
    %cst_219 = arith.constant 5.000000e-01 : f32
    %427 = vector.broadcast %cst_219 : f32 to vector<16x128xf32>
    %428 = arith.mulf %427, %426 : vector<16x128xf32>
    %cst_220 = arith.constant 5.000000e-01 : f32
    %429 = vector.broadcast %cst_220 : f32 to vector<16x128xf32>
    %430 = arith.addf %428, %429 : vector<16x128xf32>
    %431 = vector.extract_strided_slice %413 {offsets = [0, 128], sizes = [16, 128], strides = [1, 1]} : vector<16x512xf32> to vector<16x128xf32>
    %cst_221 = arith.constant 5.000000e-01 : f32
    %432 = vector.broadcast %cst_221 : f32 to vector<16x128xf32>
    %433 = arith.mulf %432, %431 : vector<16x128xf32>
    %434 = math.tanh %433 : vector<16x128xf32>
    %cst_222 = arith.constant 5.000000e-01 : f32
    %435 = vector.broadcast %cst_222 : f32 to vector<16x128xf32>
    %436 = arith.mulf %435, %434 : vector<16x128xf32>
    %cst_223 = arith.constant 5.000000e-01 : f32
    %437 = vector.broadcast %cst_223 : f32 to vector<16x128xf32>
    %438 = arith.addf %436, %437 : vector<16x128xf32>
    %439 = vector.extract_strided_slice %413 {offsets = [0, 256], sizes = [16, 128], strides = [1, 1]} : vector<16x512xf32> to vector<16x128xf32>
    %440 = math.tanh %439 : vector<16x128xf32>
    %441 = vector.extract_strided_slice %413 {offsets = [0, 384], sizes = [16, 128], strides = [1, 1]} : vector<16x512xf32> to vector<16x128xf32>
    %cst_224 = arith.constant 5.000000e-01 : f32
    %442 = vector.broadcast %cst_224 : f32 to vector<16x128xf32>
    %443 = arith.mulf %442, %441 : vector<16x128xf32>
    %444 = math.tanh %443 : vector<16x128xf32>
    %cst_225 = arith.constant 5.000000e-01 : f32
    %445 = vector.broadcast %cst_225 : f32 to vector<16x128xf32>
    %446 = arith.mulf %445, %444 : vector<16x128xf32>
    %cst_226 = arith.constant 5.000000e-01 : f32
    %447 = vector.broadcast %cst_226 : f32 to vector<16x128xf32>
    %448 = arith.addf %446, %447 : vector<16x128xf32>
    %449 = arith.mulf %438, %422 : vector<16x128xf32>
    %450 = arith.mulf %430, %440 : vector<16x128xf32>
    %451 = arith.addf %449, %450 : vector<16x128xf32>
    %452 = math.tanh %451 : vector<16x128xf32>
    %453 = arith.mulf %448, %452 : vector<16x128xf32>
    %c0_227 = arith.constant 0 : index
    %c0_228 = arith.constant 0 : index
    %454 = vector.load %arg14[%c0_227, %c0_228] : memref<16x128xf32, #tpu.memory_space<vmem>>, vector<16x128xf32>
    %455 = vector.extract_strided_slice %421 {offsets = [0, 0], sizes = [16, 128], strides = [1, 1]} : vector<16x512xf32> to vector<16x128xf32>
    %cst_229 = arith.constant 5.000000e-01 : f32
    %456 = vector.broadcast %cst_229 : f32 to vector<16x128xf32>
    %457 = arith.mulf %456, %455 : vector<16x128xf32>
    %458 = math.tanh %457 : vector<16x128xf32>
    %cst_230 = arith.constant 5.000000e-01 : f32
    %459 = vector.broadcast %cst_230 : f32 to vector<16x128xf32>
    %460 = arith.mulf %459, %458 : vector<16x128xf32>
    %cst_231 = arith.constant 5.000000e-01 : f32
    %461 = vector.broadcast %cst_231 : f32 to vector<16x128xf32>
    %462 = arith.addf %460, %461 : vector<16x128xf32>
    %463 = vector.extract_strided_slice %421 {offsets = [0, 128], sizes = [16, 128], strides = [1, 1]} : vector<16x512xf32> to vector<16x128xf32>
    %cst_232 = arith.constant 5.000000e-01 : f32
    %464 = vector.broadcast %cst_232 : f32 to vector<16x128xf32>
    %465 = arith.mulf %464, %463 : vector<16x128xf32>
    %466 = math.tanh %465 : vector<16x128xf32>
    %cst_233 = arith.constant 5.000000e-01 : f32
    %467 = vector.broadcast %cst_233 : f32 to vector<16x128xf32>
    %468 = arith.mulf %467, %466 : vector<16x128xf32>
    %cst_234 = arith.constant 5.000000e-01 : f32
    %469 = vector.broadcast %cst_234 : f32 to vector<16x128xf32>
    %470 = arith.addf %468, %469 : vector<16x128xf32>
    %471 = vector.extract_strided_slice %421 {offsets = [0, 256], sizes = [16, 128], strides = [1, 1]} : vector<16x512xf32> to vector<16x128xf32>
    %472 = math.tanh %471 : vector<16x128xf32>
    %473 = vector.extract_strided_slice %421 {offsets = [0, 384], sizes = [16, 128], strides = [1, 1]} : vector<16x512xf32> to vector<16x128xf32>
    %cst_235 = arith.constant 5.000000e-01 : f32
    %474 = vector.broadcast %cst_235 : f32 to vector<16x128xf32>
    %475 = arith.mulf %474, %473 : vector<16x128xf32>
    %476 = math.tanh %475 : vector<16x128xf32>
    %cst_236 = arith.constant 5.000000e-01 : f32
    %477 = vector.broadcast %cst_236 : f32 to vector<16x128xf32>
    %478 = arith.mulf %477, %476 : vector<16x128xf32>
    %cst_237 = arith.constant 5.000000e-01 : f32
    %479 = vector.broadcast %cst_237 : f32 to vector<16x128xf32>
    %480 = arith.addf %478, %479 : vector<16x128xf32>
    %481 = arith.mulf %470, %454 : vector<16x128xf32>
    %482 = arith.mulf %462, %472 : vector<16x128xf32>
    %483 = arith.addf %481, %482 : vector<16x128xf32>
    %484 = math.tanh %483 : vector<16x128xf32>
    %485 = arith.mulf %480, %484 : vector<16x128xf32>
    %c0_238 = arith.constant 0 : index
    %c0_239 = arith.constant 0 : index
    %486 = vector.load %arg11[%c0_238, %c0_239] : memref<16x128xf32, #tpu.memory_space<vmem>>, vector<16x128xf32>
    tpu.vector_store %arg11[%c0_238, %c0_239], %453 {strides = array<i32>} : memref<16x128xf32, #tpu.memory_space<vmem>>, vector<16x128xf32>,
    %c0_240 = arith.constant 0 : index
    %c0_241 = arith.constant 0 : index
    %487 = vector.load %arg12[%c0_240, %c0_241] : memref<16x128xf32, #tpu.memory_space<vmem>>, vector<16x128xf32>
    tpu.vector_store %arg12[%c0_240, %c0_241], %451 {strides = array<i32>} : memref<16x128xf32, #tpu.memory_space<vmem>>, vector<16x128xf32>,
    %c0_242 = arith.constant 0 : index
    %c0_243 = arith.constant 0 : index
    %488 = vector.load %arg13[%c0_242, %c0_243] : memref<16x128xf32, #tpu.memory_space<vmem>>, vector<16x128xf32>
    tpu.vector_store %arg13[%c0_242, %c0_243], %485 {strides = array<i32>} : memref<16x128xf32, #tpu.memory_space<vmem>>, vector<16x128xf32>,
    %c0_244 = arith.constant 0 : index
    %c0_245 = arith.constant 0 : index
    %489 = vector.load %arg14[%c0_244, %c0_245] : memref<16x128xf32, #tpu.memory_space<vmem>>, vector<16x128xf32>
    tpu.vector_store %arg14[%c0_244, %c0_245], %483 {strides = array<i32>} : memref<16x128xf32, #tpu.memory_space<vmem>>, vector<16x128xf32>,
    %490 = arith.truncf %453 : vector<16x128xf32> to vector<16x128xbf16>
    %491 = arith.index_cast %c4_i32 : i32 to index
    %c0_246 = arith.constant 0 : index
    %c0_247 = arith.constant 0 : index
    %492 = vector.load %arg9[%491, %c0_246, %c0_247] : memref<8x16x128xbf16, #tpu.memory_space<vmem>>, vector<1x16x128xbf16>
    %493 = vector.shape_cast %492 : vector<1x16x128xbf16> to vector<16x128xbf16>
    %494 = vector.shape_cast %490 : vector<16x128xbf16> to vector<1x16x128xbf16>
    tpu.vector_store %arg9[%491, %c0_246, %c0_247], %494 {strides = array<i32>} : memref<8x16x128xbf16, #tpu.memory_space<vmem>>, vector<1x16x128xbf16>,
    %495 = arith.truncf %485 : vector<16x128xf32> to vector<16x128xbf16>
    %496 = arith.index_cast %405 : i32 to index
    %c0_248 = arith.constant 0 : index
    %c0_249 = arith.constant 0 : index
    %497 = vector.load %arg10[%496, %c0_248, %c0_249] : memref<8x16x128xbf16, #tpu.memory_space<vmem>>, vector<1x16x128xbf16>
    %498 = vector.shape_cast %497 : vector<1x16x128xbf16> to vector<16x128xbf16>
    %499 = vector.shape_cast %495 : vector<16x128xbf16> to vector<1x16x128xbf16>
    tpu.vector_store %arg10[%496, %c0_248, %c0_249], %499 {strides = array<i32>} : memref<8x16x128xbf16, #tpu.memory_space<vmem>>, vector<1x16x128xbf16>,
    %c5_i32 = arith.constant 5 : i32
    %c7_i32_250 = arith.constant 7 : i32
    %500 = arith.subi %c7_i32_250, %c5_i32 : i32
    %501 = arith.index_cast %c5_i32 : i32 to index
    %c0_251 = arith.constant 0 : index
    %c0_252 = arith.constant 0 : index
    %502 = vector.load %arg15[%501, %c0_251, %c0_252] : memref<8x16x512xbf16, #tpu.memory_space<vmem>>, vector<1x16x512xbf16>
    %503 = vector.shape_cast %502 : vector<1x16x512xbf16> to vector<16x512xbf16>
    %504 = arith.extf %503 : vector<16x512xbf16> to vector<16x512xf32>
    %c0_253 = arith.constant 0 : index
    %c0_254 = arith.constant 0 : index
    %505 = vector.load %arg11[%c0_253, %c0_254] : memref<16x128xf32, #tpu.memory_space<vmem>>, vector<16x128xf32>
    %506 = arith.truncf %505 : vector<16x128xf32> to vector<16x128xbf16>
    %cst_255 = arith.constant dense<0.000000e+00> : vector<16x512xf32>
    %507 = tpu.matmul %506, %23, %cst_255 {dimension_numbers = #tpu.dot_dimension_numbers<[1], [0], [0], [1], [0, 0, 1, 1], [], []>} : vector<16x128xbf16>, vector<128x512xbf16>, vector<16x512xf32> -> vector<16x512xf32>
    %508 = arith.addf %504, %507 : vector<16x512xf32>
    %509 = arith.index_cast %500 : i32 to index
    %c0_256 = arith.constant 0 : index
    %c0_257 = arith.constant 0 : index
    %510 = vector.load %arg16[%509, %c0_256, %c0_257] : memref<8x16x512xbf16, #tpu.memory_space<vmem>>, vector<1x16x512xbf16>
    %511 = vector.shape_cast %510 : vector<1x16x512xbf16> to vector<16x512xbf16>
    %512 = arith.extf %511 : vector<16x512xbf16> to vector<16x512xf32>
    %c0_258 = arith.constant 0 : index
    %c0_259 = arith.constant 0 : index
    %513 = vector.load %arg13[%c0_258, %c0_259] : memref<16x128xf32, #tpu.memory_space<vmem>>, vector<16x128xf32>
    %514 = arith.truncf %513 : vector<16x128xf32> to vector<16x128xbf16>
    %cst_260 = arith.constant dense<0.000000e+00> : vector<16x512xf32>
    %515 = tpu.matmul %514, %24, %cst_260 {dimension_numbers = #tpu.dot_dimension_numbers<[1], [0], [0], [1], [0, 0, 1, 1], [], []>} : vector<16x128xbf16>, vector<128x512xbf16>, vector<16x512xf32> -> vector<16x512xf32>
    %516 = arith.addf %512, %515 : vector<16x512xf32>
    %c0_261 = arith.constant 0 : index
    %c0_262 = arith.constant 0 : index
    %517 = vector.load %arg12[%c0_261, %c0_262] : memref<16x128xf32, #tpu.memory_space<vmem>>, vector<16x128xf32>
    %518 = vector.extract_strided_slice %508 {offsets = [0, 0], sizes = [16, 128], strides = [1, 1]} : vector<16x512xf32> to vector<16x128xf32>
    %cst_263 = arith.constant 5.000000e-01 : f32
    %519 = vector.broadcast %cst_263 : f32 to vector<16x128xf32>
    %520 = arith.mulf %519, %518 : vector<16x128xf32>
    %521 = math.tanh %520 : vector<16x128xf32>
    %cst_264 = arith.constant 5.000000e-01 : f32
    %522 = vector.broadcast %cst_264 : f32 to vector<16x128xf32>
    %523 = arith.mulf %522, %521 : vector<16x128xf32>
    %cst_265 = arith.constant 5.000000e-01 : f32
    %524 = vector.broadcast %cst_265 : f32 to vector<16x128xf32>
    %525 = arith.addf %523, %524 : vector<16x128xf32>
    %526 = vector.extract_strided_slice %508 {offsets = [0, 128], sizes = [16, 128], strides = [1, 1]} : vector<16x512xf32> to vector<16x128xf32>
    %cst_266 = arith.constant 5.000000e-01 : f32
    %527 = vector.broadcast %cst_266 : f32 to vector<16x128xf32>
    %528 = arith.mulf %527, %526 : vector<16x128xf32>
    %529 = math.tanh %528 : vector<16x128xf32>
    %cst_267 = arith.constant 5.000000e-01 : f32
    %530 = vector.broadcast %cst_267 : f32 to vector<16x128xf32>
    %531 = arith.mulf %530, %529 : vector<16x128xf32>
    %cst_268 = arith.constant 5.000000e-01 : f32
    %532 = vector.broadcast %cst_268 : f32 to vector<16x128xf32>
    %533 = arith.addf %531, %532 : vector<16x128xf32>
    %534 = vector.extract_strided_slice %508 {offsets = [0, 256], sizes = [16, 128], strides = [1, 1]} : vector<16x512xf32> to vector<16x128xf32>
    %535 = math.tanh %534 : vector<16x128xf32>
    %536 = vector.extract_strided_slice %508 {offsets = [0, 384], sizes = [16, 128], strides = [1, 1]} : vector<16x512xf32> to vector<16x128xf32>
    %cst_269 = arith.constant 5.000000e-01 : f32
    %537 = vector.broadcast %cst_269 : f32 to vector<16x128xf32>
    %538 = arith.mulf %537, %536 : vector<16x128xf32>
    %539 = math.tanh %538 : vector<16x128xf32>
    %cst_270 = arith.constant 5.000000e-01 : f32
    %540 = vector.broadcast %cst_270 : f32 to vector<16x128xf32>
    %541 = arith.mulf %540, %539 : vector<16x128xf32>
    %cst_271 = arith.constant 5.000000e-01 : f32
    %542 = vector.broadcast %cst_271 : f32 to vector<16x128xf32>
    %543 = arith.addf %541, %542 : vector<16x128xf32>
    %544 = arith.mulf %533, %517 : vector<16x128xf32>
    %545 = arith.mulf %525, %535 : vector<16x128xf32>
    %546 = arith.addf %544, %545 : vector<16x128xf32>
    %547 = math.tanh %546 : vector<16x128xf32>
    %548 = arith.mulf %543, %547 : vector<16x128xf32>
    %c0_272 = arith.constant 0 : index
    %c0_273 = arith.constant 0 : index
    %549 = vector.load %arg14[%c0_272, %c0_273] : memref<16x128xf32, #tpu.memory_space<vmem>>, vector<16x128xf32>
    %550 = vector.extract_strided_slice %516 {offsets = [0, 0], sizes = [16, 128], strides = [1, 1]} : vector<16x512xf32> to vector<16x128xf32>
    %cst_274 = arith.constant 5.000000e-01 : f32
    %551 = vector.broadcast %cst_274 : f32 to vector<16x128xf32>
    %552 = arith.mulf %551, %550 : vector<16x128xf32>
    %553 = math.tanh %552 : vector<16x128xf32>
    %cst_275 = arith.constant 5.000000e-01 : f32
    %554 = vector.broadcast %cst_275 : f32 to vector<16x128xf32>
    %555 = arith.mulf %554, %553 : vector<16x128xf32>
    %cst_276 = arith.constant 5.000000e-01 : f32
    %556 = vector.broadcast %cst_276 : f32 to vector<16x128xf32>
    %557 = arith.addf %555, %556 : vector<16x128xf32>
    %558 = vector.extract_strided_slice %516 {offsets = [0, 128], sizes = [16, 128], strides = [1, 1]} : vector<16x512xf32> to vector<16x128xf32>
    %cst_277 = arith.constant 5.000000e-01 : f32
    %559 = vector.broadcast %cst_277 : f32 to vector<16x128xf32>
    %560 = arith.mulf %559, %558 : vector<16x128xf32>
    %561 = math.tanh %560 : vector<16x128xf32>
    %cst_278 = arith.constant 5.000000e-01 : f32
    %562 = vector.broadcast %cst_278 : f32 to vector<16x128xf32>
    %563 = arith.mulf %562, %561 : vector<16x128xf32>
    %cst_279 = arith.constant 5.000000e-01 : f32
    %564 = vector.broadcast %cst_279 : f32 to vector<16x128xf32>
    %565 = arith.addf %563, %564 : vector<16x128xf32>
    %566 = vector.extract_strided_slice %516 {offsets = [0, 256], sizes = [16, 128], strides = [1, 1]} : vector<16x512xf32> to vector<16x128xf32>
    %567 = math.tanh %566 : vector<16x128xf32>
    %568 = vector.extract_strided_slice %516 {offsets = [0, 384], sizes = [16, 128], strides = [1, 1]} : vector<16x512xf32> to vector<16x128xf32>
    %cst_280 = arith.constant 5.000000e-01 : f32
    %569 = vector.broadcast %cst_280 : f32 to vector<16x128xf32>
    %570 = arith.mulf %569, %568 : vector<16x128xf32>
    %571 = math.tanh %570 : vector<16x128xf32>
    %cst_281 = arith.constant 5.000000e-01 : f32
    %572 = vector.broadcast %cst_281 : f32 to vector<16x128xf32>
    %573 = arith.mulf %572, %571 : vector<16x128xf32>
    %cst_282 = arith.constant 5.000000e-01 : f32
    %574 = vector.broadcast %cst_282 : f32 to vector<16x128xf32>
    %575 = arith.addf %573, %574 : vector<16x128xf32>
    %576 = arith.mulf %565, %549 : vector<16x128xf32>
    %577 = arith.mulf %557, %567 : vector<16x128xf32>
    %578 = arith.addf %576, %577 : vector<16x128xf32>
    %579 = math.tanh %578 : vector<16x128xf32>
    %580 = arith.mulf %575, %579 : vector<16x128xf32>
    %c0_283 = arith.constant 0 : index
    %c0_284 = arith.constant 0 : index
    %581 = vector.load %arg11[%c0_283, %c0_284] : memref<16x128xf32, #tpu.memory_space<vmem>>, vector<16x128xf32>
    tpu.vector_store %arg11[%c0_283, %c0_284], %548 {strides = array<i32>} : memref<16x128xf32, #tpu.memory_space<vmem>>, vector<16x128xf32>,
    %c0_285 = arith.constant 0 : index
    %c0_286 = arith.constant 0 : index
    %582 = vector.load %arg12[%c0_285, %c0_286] : memref<16x128xf32, #tpu.memory_space<vmem>>, vector<16x128xf32>
    tpu.vector_store %arg12[%c0_285, %c0_286], %546 {strides = array<i32>} : memref<16x128xf32, #tpu.memory_space<vmem>>, vector<16x128xf32>,
    %c0_287 = arith.constant 0 : index
    %c0_288 = arith.constant 0 : index
    %583 = vector.load %arg13[%c0_287, %c0_288] : memref<16x128xf32, #tpu.memory_space<vmem>>, vector<16x128xf32>
    tpu.vector_store %arg13[%c0_287, %c0_288], %580 {strides = array<i32>} : memref<16x128xf32, #tpu.memory_space<vmem>>, vector<16x128xf32>,
    %c0_289 = arith.constant 0 : index
    %c0_290 = arith.constant 0 : index
    %584 = vector.load %arg14[%c0_289, %c0_290] : memref<16x128xf32, #tpu.memory_space<vmem>>, vector<16x128xf32>
    tpu.vector_store %arg14[%c0_289, %c0_290], %578 {strides = array<i32>} : memref<16x128xf32, #tpu.memory_space<vmem>>, vector<16x128xf32>,
    %585 = arith.truncf %548 : vector<16x128xf32> to vector<16x128xbf16>
    %586 = arith.index_cast %c5_i32 : i32 to index
    %c0_291 = arith.constant 0 : index
    %c0_292 = arith.constant 0 : index
    %587 = vector.load %arg9[%586, %c0_291, %c0_292] : memref<8x16x128xbf16, #tpu.memory_space<vmem>>, vector<1x16x128xbf16>
    %588 = vector.shape_cast %587 : vector<1x16x128xbf16> to vector<16x128xbf16>
    %589 = vector.shape_cast %585 : vector<16x128xbf16> to vector<1x16x128xbf16>
    tpu.vector_store %arg9[%586, %c0_291, %c0_292], %589 {strides = array<i32>} : memref<8x16x128xbf16, #tpu.memory_space<vmem>>, vector<1x16x128xbf16>,
    %590 = arith.truncf %580 : vector<16x128xf32> to vector<16x128xbf16>
    %591 = arith.index_cast %500 : i32 to index
    %c0_293 = arith.constant 0 : index
    %c0_294 = arith.constant 0 : index
    %592 = vector.load %arg10[%591, %c0_293, %c0_294] : memref<8x16x128xbf16, #tpu.memory_space<vmem>>, vector<1x16x128xbf16>
    %593 = vector.shape_cast %592 : vector<1x16x128xbf16> to vector<16x128xbf16>
    %594 = vector.shape_cast %590 : vector<16x128xbf16> to vector<1x16x128xbf16>
    tpu.vector_store %arg10[%591, %c0_293, %c0_294], %594 {strides = array<i32>} : memref<8x16x128xbf16, #tpu.memory_space<vmem>>, vector<1x16x128xbf16>,
    %c6_i32 = arith.constant 6 : i32
    %c7_i32_295 = arith.constant 7 : i32
    %595 = arith.subi %c7_i32_295, %c6_i32 : i32
    %596 = arith.index_cast %c6_i32 : i32 to index
    %c0_296 = arith.constant 0 : index
    %c0_297 = arith.constant 0 : index
    %597 = vector.load %arg15[%596, %c0_296, %c0_297] : memref<8x16x512xbf16, #tpu.memory_space<vmem>>, vector<1x16x512xbf16>
    %598 = vector.shape_cast %597 : vector<1x16x512xbf16> to vector<16x512xbf16>
    %599 = arith.extf %598 : vector<16x512xbf16> to vector<16x512xf32>
    %c0_298 = arith.constant 0 : index
    %c0_299 = arith.constant 0 : index
    %600 = vector.load %arg11[%c0_298, %c0_299] : memref<16x128xf32, #tpu.memory_space<vmem>>, vector<16x128xf32>
    %601 = arith.truncf %600 : vector<16x128xf32> to vector<16x128xbf16>
    %cst_300 = arith.constant dense<0.000000e+00> : vector<16x512xf32>
    %602 = tpu.matmul %601, %23, %cst_300 {dimension_numbers = #tpu.dot_dimension_numbers<[1], [0], [0], [1], [0, 0, 1, 1], [], []>} : vector<16x128xbf16>, vector<128x512xbf16>, vector<16x512xf32> -> vector<16x512xf32>
    %603 = arith.addf %599, %602 : vector<16x512xf32>
    %604 = arith.index_cast %595 : i32 to index
    %c0_301 = arith.constant 0 : index
    %c0_302 = arith.constant 0 : index
    %605 = vector.load %arg16[%604, %c0_301, %c0_302] : memref<8x16x512xbf16, #tpu.memory_space<vmem>>, vector<1x16x512xbf16>
    %606 = vector.shape_cast %605 : vector<1x16x512xbf16> to vector<16x512xbf16>
    %607 = arith.extf %606 : vector<16x512xbf16> to vector<16x512xf32>
    %c0_303 = arith.constant 0 : index
    %c0_304 = arith.constant 0 : index
    %608 = vector.load %arg13[%c0_303, %c0_304] : memref<16x128xf32, #tpu.memory_space<vmem>>, vector<16x128xf32>
    %609 = arith.truncf %608 : vector<16x128xf32> to vector<16x128xbf16>
    %cst_305 = arith.constant dense<0.000000e+00> : vector<16x512xf32>
    %610 = tpu.matmul %609, %24, %cst_305 {dimension_numbers = #tpu.dot_dimension_numbers<[1], [0], [0], [1], [0, 0, 1, 1], [], []>} : vector<16x128xbf16>, vector<128x512xbf16>, vector<16x512xf32> -> vector<16x512xf32>
    %611 = arith.addf %607, %610 : vector<16x512xf32>
    %c0_306 = arith.constant 0 : index
    %c0_307 = arith.constant 0 : index
    %612 = vector.load %arg12[%c0_306, %c0_307] : memref<16x128xf32, #tpu.memory_space<vmem>>, vector<16x128xf32>
    %613 = vector.extract_strided_slice %603 {offsets = [0, 0], sizes = [16, 128], strides = [1, 1]} : vector<16x512xf32> to vector<16x128xf32>
    %cst_308 = arith.constant 5.000000e-01 : f32
    %614 = vector.broadcast %cst_308 : f32 to vector<16x128xf32>
    %615 = arith.mulf %614, %613 : vector<16x128xf32>
    %616 = math.tanh %615 : vector<16x128xf32>
    %cst_309 = arith.constant 5.000000e-01 : f32
    %617 = vector.broadcast %cst_309 : f32 to vector<16x128xf32>
    %618 = arith.mulf %617, %616 : vector<16x128xf32>
    %cst_310 = arith.constant 5.000000e-01 : f32
    %619 = vector.broadcast %cst_310 : f32 to vector<16x128xf32>
    %620 = arith.addf %618, %619 : vector<16x128xf32>
    %621 = vector.extract_strided_slice %603 {offsets = [0, 128], sizes = [16, 128], strides = [1, 1]} : vector<16x512xf32> to vector<16x128xf32>
    %cst_311 = arith.constant 5.000000e-01 : f32
    %622 = vector.broadcast %cst_311 : f32 to vector<16x128xf32>
    %623 = arith.mulf %622, %621 : vector<16x128xf32>
    %624 = math.tanh %623 : vector<16x128xf32>
    %cst_312 = arith.constant 5.000000e-01 : f32
    %625 = vector.broadcast %cst_312 : f32 to vector<16x128xf32>
    %626 = arith.mulf %625, %624 : vector<16x128xf32>
    %cst_313 = arith.constant 5.000000e-01 : f32
    %627 = vector.broadcast %cst_313 : f32 to vector<16x128xf32>
    %628 = arith.addf %626, %627 : vector<16x128xf32>
    %629 = vector.extract_strided_slice %603 {offsets = [0, 256], sizes = [16, 128], strides = [1, 1]} : vector<16x512xf32> to vector<16x128xf32>
    %630 = math.tanh %629 : vector<16x128xf32>
    %631 = vector.extract_strided_slice %603 {offsets = [0, 384], sizes = [16, 128], strides = [1, 1]} : vector<16x512xf32> to vector<16x128xf32>
    %cst_314 = arith.constant 5.000000e-01 : f32
    %632 = vector.broadcast %cst_314 : f32 to vector<16x128xf32>
    %633 = arith.mulf %632, %631 : vector<16x128xf32>
    %634 = math.tanh %633 : vector<16x128xf32>
    %cst_315 = arith.constant 5.000000e-01 : f32
    %635 = vector.broadcast %cst_315 : f32 to vector<16x128xf32>
    %636 = arith.mulf %635, %634 : vector<16x128xf32>
    %cst_316 = arith.constant 5.000000e-01 : f32
    %637 = vector.broadcast %cst_316 : f32 to vector<16x128xf32>
    %638 = arith.addf %636, %637 : vector<16x128xf32>
    %639 = arith.mulf %628, %612 : vector<16x128xf32>
    %640 = arith.mulf %620, %630 : vector<16x128xf32>
    %641 = arith.addf %639, %640 : vector<16x128xf32>
    %642 = math.tanh %641 : vector<16x128xf32>
    %643 = arith.mulf %638, %642 : vector<16x128xf32>
    %c0_317 = arith.constant 0 : index
    %c0_318 = arith.constant 0 : index
    %644 = vector.load %arg14[%c0_317, %c0_318] : memref<16x128xf32, #tpu.memory_space<vmem>>, vector<16x128xf32>
    %645 = vector.extract_strided_slice %611 {offsets = [0, 0], sizes = [16, 128], strides = [1, 1]} : vector<16x512xf32> to vector<16x128xf32>
    %cst_319 = arith.constant 5.000000e-01 : f32
    %646 = vector.broadcast %cst_319 : f32 to vector<16x128xf32>
    %647 = arith.mulf %646, %645 : vector<16x128xf32>
    %648 = math.tanh %647 : vector<16x128xf32>
    %cst_320 = arith.constant 5.000000e-01 : f32
    %649 = vector.broadcast %cst_320 : f32 to vector<16x128xf32>
    %650 = arith.mulf %649, %648 : vector<16x128xf32>
    %cst_321 = arith.constant 5.000000e-01 : f32
    %651 = vector.broadcast %cst_321 : f32 to vector<16x128xf32>
    %652 = arith.addf %650, %651 : vector<16x128xf32>
    %653 = vector.extract_strided_slice %611 {offsets = [0, 128], sizes = [16, 128], strides = [1, 1]} : vector<16x512xf32> to vector<16x128xf32>
    %cst_322 = arith.constant 5.000000e-01 : f32
    %654 = vector.broadcast %cst_322 : f32 to vector<16x128xf32>
    %655 = arith.mulf %654, %653 : vector<16x128xf32>
    %656 = math.tanh %655 : vector<16x128xf32>
    %cst_323 = arith.constant 5.000000e-01 : f32
    %657 = vector.broadcast %cst_323 : f32 to vector<16x128xf32>
    %658 = arith.mulf %657, %656 : vector<16x128xf32>
    %cst_324 = arith.constant 5.000000e-01 : f32
    %659 = vector.broadcast %cst_324 : f32 to vector<16x128xf32>
    %660 = arith.addf %658, %659 : vector<16x128xf32>
    %661 = vector.extract_strided_slice %611 {offsets = [0, 256], sizes = [16, 128], strides = [1, 1]} : vector<16x512xf32> to vector<16x128xf32>
    %662 = math.tanh %661 : vector<16x128xf32>
    %663 = vector.extract_strided_slice %611 {offsets = [0, 384], sizes = [16, 128], strides = [1, 1]} : vector<16x512xf32> to vector<16x128xf32>
    %cst_325 = arith.constant 5.000000e-01 : f32
    %664 = vector.broadcast %cst_325 : f32 to vector<16x128xf32>
    %665 = arith.mulf %664, %663 : vector<16x128xf32>
    %666 = math.tanh %665 : vector<16x128xf32>
    %cst_326 = arith.constant 5.000000e-01 : f32
    %667 = vector.broadcast %cst_326 : f32 to vector<16x128xf32>
    %668 = arith.mulf %667, %666 : vector<16x128xf32>
    %cst_327 = arith.constant 5.000000e-01 : f32
    %669 = vector.broadcast %cst_327 : f32 to vector<16x128xf32>
    %670 = arith.addf %668, %669 : vector<16x128xf32>
    %671 = arith.mulf %660, %644 : vector<16x128xf32>
    %672 = arith.mulf %652, %662 : vector<16x128xf32>
    %673 = arith.addf %671, %672 : vector<16x128xf32>
    %674 = math.tanh %673 : vector<16x128xf32>
    %675 = arith.mulf %670, %674 : vector<16x128xf32>
    %c0_328 = arith.constant 0 : index
    %c0_329 = arith.constant 0 : index
    %676 = vector.load %arg11[%c0_328, %c0_329] : memref<16x128xf32, #tpu.memory_space<vmem>>, vector<16x128xf32>
    tpu.vector_store %arg11[%c0_328, %c0_329], %643 {strides = array<i32>} : memref<16x128xf32, #tpu.memory_space<vmem>>, vector<16x128xf32>,
    %c0_330 = arith.constant 0 : index
    %c0_331 = arith.constant 0 : index
    %677 = vector.load %arg12[%c0_330, %c0_331] : memref<16x128xf32, #tpu.memory_space<vmem>>, vector<16x128xf32>
    tpu.vector_store %arg12[%c0_330, %c0_331], %641 {strides = array<i32>} : memref<16x128xf32, #tpu.memory_space<vmem>>, vector<16x128xf32>,
    %c0_332 = arith.constant 0 : index
    %c0_333 = arith.constant 0 : index
    %678 = vector.load %arg13[%c0_332, %c0_333] : memref<16x128xf32, #tpu.memory_space<vmem>>, vector<16x128xf32>
    tpu.vector_store %arg13[%c0_332, %c0_333], %675 {strides = array<i32>} : memref<16x128xf32, #tpu.memory_space<vmem>>, vector<16x128xf32>,
    %c0_334 = arith.constant 0 : index
    %c0_335 = arith.constant 0 : index
    %679 = vector.load %arg14[%c0_334, %c0_335] : memref<16x128xf32, #tpu.memory_space<vmem>>, vector<16x128xf32>
    tpu.vector_store %arg14[%c0_334, %c0_335], %673 {strides = array<i32>} : memref<16x128xf32, #tpu.memory_space<vmem>>, vector<16x128xf32>,
    %680 = arith.truncf %643 : vector<16x128xf32> to vector<16x128xbf16>
    %681 = arith.index_cast %c6_i32 : i32 to index
    %c0_336 = arith.constant 0 : index
    %c0_337 = arith.constant 0 : index
    %682 = vector.load %arg9[%681, %c0_336, %c0_337] : memref<8x16x128xbf16, #tpu.memory_space<vmem>>, vector<1x16x128xbf16>
    %683 = vector.shape_cast %682 : vector<1x16x128xbf16> to vector<16x128xbf16>
    %684 = vector.shape_cast %680 : vector<16x128xbf16> to vector<1x16x128xbf16>
    tpu.vector_store %arg9[%681, %c0_336, %c0_337], %684 {strides = array<i32>} : memref<8x16x128xbf16, #tpu.memory_space<vmem>>, vector<1x16x128xbf16>,
    %685 = arith.truncf %675 : vector<16x128xf32> to vector<16x128xbf16>
    %686 = arith.index_cast %595 : i32 to index
    %c0_338 = arith.constant 0 : index
    %c0_339 = arith.constant 0 : index
    %687 = vector.load %arg10[%686, %c0_338, %c0_339] : memref<8x16x128xbf16, #tpu.memory_space<vmem>>, vector<1x16x128xbf16>
    %688 = vector.shape_cast %687 : vector<1x16x128xbf16> to vector<16x128xbf16>
    %689 = vector.shape_cast %685 : vector<16x128xbf16> to vector<1x16x128xbf16>
    tpu.vector_store %arg10[%686, %c0_338, %c0_339], %689 {strides = array<i32>} : memref<8x16x128xbf16, #tpu.memory_space<vmem>>, vector<1x16x128xbf16>,
    %c7_i32_340 = arith.constant 7 : i32
    %c7_i32_341 = arith.constant 7 : i32
    %690 = arith.subi %c7_i32_341, %c7_i32_340 : i32
    %691 = arith.index_cast %c7_i32_340 : i32 to index
    %c0_342 = arith.constant 0 : index
    %c0_343 = arith.constant 0 : index
    %692 = vector.load %arg15[%691, %c0_342, %c0_343] : memref<8x16x512xbf16, #tpu.memory_space<vmem>>, vector<1x16x512xbf16>
    %693 = vector.shape_cast %692 : vector<1x16x512xbf16> to vector<16x512xbf16>
    %694 = arith.extf %693 : vector<16x512xbf16> to vector<16x512xf32>
    %c0_344 = arith.constant 0 : index
    %c0_345 = arith.constant 0 : index
    %695 = vector.load %arg11[%c0_344, %c0_345] : memref<16x128xf32, #tpu.memory_space<vmem>>, vector<16x128xf32>
    %696 = arith.truncf %695 : vector<16x128xf32> to vector<16x128xbf16>
    %cst_346 = arith.constant dense<0.000000e+00> : vector<16x512xf32>
    %697 = tpu.matmul %696, %23, %cst_346 {dimension_numbers = #tpu.dot_dimension_numbers<[1], [0], [0], [1], [0, 0, 1, 1], [], []>} : vector<16x128xbf16>, vector<128x512xbf16>, vector<16x512xf32> -> vector<16x512xf32>
    %698 = arith.addf %694, %697 : vector<16x512xf32>
    %699 = arith.index_cast %690 : i32 to index
    %c0_347 = arith.constant 0 : index
    %c0_348 = arith.constant 0 : index
    %700 = vector.load %arg16[%699, %c0_347, %c0_348] : memref<8x16x512xbf16, #tpu.memory_space<vmem>>, vector<1x16x512xbf16>
    %701 = vector.shape_cast %700 : vector<1x16x512xbf16> to vector<16x512xbf16>
    %702 = arith.extf %701 : vector<16x512xbf16> to vector<16x512xf32>
    %c0_349 = arith.constant 0 : index
    %c0_350 = arith.constant 0 : index
    %703 = vector.load %arg13[%c0_349, %c0_350] : memref<16x128xf32, #tpu.memory_space<vmem>>, vector<16x128xf32>
    %704 = arith.truncf %703 : vector<16x128xf32> to vector<16x128xbf16>
    %cst_351 = arith.constant dense<0.000000e+00> : vector<16x512xf32>
    %705 = tpu.matmul %704, %24, %cst_351 {dimension_numbers = #tpu.dot_dimension_numbers<[1], [0], [0], [1], [0, 0, 1, 1], [], []>} : vector<16x128xbf16>, vector<128x512xbf16>, vector<16x512xf32> -> vector<16x512xf32>
    %706 = arith.addf %702, %705 : vector<16x512xf32>
    %c0_352 = arith.constant 0 : index
    %c0_353 = arith.constant 0 : index
    %707 = vector.load %arg12[%c0_352, %c0_353] : memref<16x128xf32, #tpu.memory_space<vmem>>, vector<16x128xf32>
    %708 = vector.extract_strided_slice %698 {offsets = [0, 0], sizes = [16, 128], strides = [1, 1]} : vector<16x512xf32> to vector<16x128xf32>
    %cst_354 = arith.constant 5.000000e-01 : f32
    %709 = vector.broadcast %cst_354 : f32 to vector<16x128xf32>
    %710 = arith.mulf %709, %708 : vector<16x128xf32>
    %711 = math.tanh %710 : vector<16x128xf32>
    %cst_355 = arith.constant 5.000000e-01 : f32
    %712 = vector.broadcast %cst_355 : f32 to vector<16x128xf32>
    %713 = arith.mulf %712, %711 : vector<16x128xf32>
    %cst_356 = arith.constant 5.000000e-01 : f32
    %714 = vector.broadcast %cst_356 : f32 to vector<16x128xf32>
    %715 = arith.addf %713, %714 : vector<16x128xf32>
    %716 = vector.extract_strided_slice %698 {offsets = [0, 128], sizes = [16, 128], strides = [1, 1]} : vector<16x512xf32> to vector<16x128xf32>
    %cst_357 = arith.constant 5.000000e-01 : f32
    %717 = vector.broadcast %cst_357 : f32 to vector<16x128xf32>
    %718 = arith.mulf %717, %716 : vector<16x128xf32>
    %719 = math.tanh %718 : vector<16x128xf32>
    %cst_358 = arith.constant 5.000000e-01 : f32
    %720 = vector.broadcast %cst_358 : f32 to vector<16x128xf32>
    %721 = arith.mulf %720, %719 : vector<16x128xf32>
    %cst_359 = arith.constant 5.000000e-01 : f32
    %722 = vector.broadcast %cst_359 : f32 to vector<16x128xf32>
    %723 = arith.addf %721, %722 : vector<16x128xf32>
    %724 = vector.extract_strided_slice %698 {offsets = [0, 256], sizes = [16, 128], strides = [1, 1]} : vector<16x512xf32> to vector<16x128xf32>
    %725 = math.tanh %724 : vector<16x128xf32>
    %726 = vector.extract_strided_slice %698 {offsets = [0, 384], sizes = [16, 128], strides = [1, 1]} : vector<16x512xf32> to vector<16x128xf32>
    %cst_360 = arith.constant 5.000000e-01 : f32
    %727 = vector.broadcast %cst_360 : f32 to vector<16x128xf32>
    %728 = arith.mulf %727, %726 : vector<16x128xf32>
    %729 = math.tanh %728 : vector<16x128xf32>
    %cst_361 = arith.constant 5.000000e-01 : f32
    %730 = vector.broadcast %cst_361 : f32 to vector<16x128xf32>
    %731 = arith.mulf %730, %729 : vector<16x128xf32>
    %cst_362 = arith.constant 5.000000e-01 : f32
    %732 = vector.broadcast %cst_362 : f32 to vector<16x128xf32>
    %733 = arith.addf %731, %732 : vector<16x128xf32>
    %734 = arith.mulf %723, %707 : vector<16x128xf32>
    %735 = arith.mulf %715, %725 : vector<16x128xf32>
    %736 = arith.addf %734, %735 : vector<16x128xf32>
    %737 = math.tanh %736 : vector<16x128xf32>
    %738 = arith.mulf %733, %737 : vector<16x128xf32>
    %c0_363 = arith.constant 0 : index
    %c0_364 = arith.constant 0 : index
    %739 = vector.load %arg14[%c0_363, %c0_364] : memref<16x128xf32, #tpu.memory_space<vmem>>, vector<16x128xf32>
    %740 = vector.extract_strided_slice %706 {offsets = [0, 0], sizes = [16, 128], strides = [1, 1]} : vector<16x512xf32> to vector<16x128xf32>
    %cst_365 = arith.constant 5.000000e-01 : f32
    %741 = vector.broadcast %cst_365 : f32 to vector<16x128xf32>
    %742 = arith.mulf %741, %740 : vector<16x128xf32>
    %743 = math.tanh %742 : vector<16x128xf32>
    %cst_366 = arith.constant 5.000000e-01 : f32
    %744 = vector.broadcast %cst_366 : f32 to vector<16x128xf32>
    %745 = arith.mulf %744, %743 : vector<16x128xf32>
    %cst_367 = arith.constant 5.000000e-01 : f32
    %746 = vector.broadcast %cst_367 : f32 to vector<16x128xf32>
    %747 = arith.addf %745, %746 : vector<16x128xf32>
    %748 = vector.extract_strided_slice %706 {offsets = [0, 128], sizes = [16, 128], strides = [1, 1]} : vector<16x512xf32> to vector<16x128xf32>
    %cst_368 = arith.constant 5.000000e-01 : f32
    %749 = vector.broadcast %cst_368 : f32 to vector<16x128xf32>
    %750 = arith.mulf %749, %748 : vector<16x128xf32>
    %751 = math.tanh %750 : vector<16x128xf32>
    %cst_369 = arith.constant 5.000000e-01 : f32
    %752 = vector.broadcast %cst_369 : f32 to vector<16x128xf32>
    %753 = arith.mulf %752, %751 : vector<16x128xf32>
    %cst_370 = arith.constant 5.000000e-01 : f32
    %754 = vector.broadcast %cst_370 : f32 to vector<16x128xf32>
    %755 = arith.addf %753, %754 : vector<16x128xf32>
    %756 = vector.extract_strided_slice %706 {offsets = [0, 256], sizes = [16, 128], strides = [1, 1]} : vector<16x512xf32> to vector<16x128xf32>
    %757 = math.tanh %756 : vector<16x128xf32>
    %758 = vector.extract_strided_slice %706 {offsets = [0, 384], sizes = [16, 128], strides = [1, 1]} : vector<16x512xf32> to vector<16x128xf32>
    %cst_371 = arith.constant 5.000000e-01 : f32
    %759 = vector.broadcast %cst_371 : f32 to vector<16x128xf32>
    %760 = arith.mulf %759, %758 : vector<16x128xf32>
    %761 = math.tanh %760 : vector<16x128xf32>
    %cst_372 = arith.constant 5.000000e-01 : f32
    %762 = vector.broadcast %cst_372 : f32 to vector<16x128xf32>
    %763 = arith.mulf %762, %761 : vector<16x128xf32>
    %cst_373 = arith.constant 5.000000e-01 : f32
    %764 = vector.broadcast %cst_373 : f32 to vector<16x128xf32>
    %765 = arith.addf %763, %764 : vector<16x128xf32>
    %766 = arith.mulf %755, %739 : vector<16x128xf32>
    %767 = arith.mulf %747, %757 : vector<16x128xf32>
    %768 = arith.addf %766, %767 : vector<16x128xf32>
    %769 = math.tanh %768 : vector<16x128xf32>
    %770 = arith.mulf %765, %769 : vector<16x128xf32>
    %c0_374 = arith.constant 0 : index
    %c0_375 = arith.constant 0 : index
    %771 = vector.load %arg11[%c0_374, %c0_375] : memref<16x128xf32, #tpu.memory_space<vmem>>, vector<16x128xf32>
    tpu.vector_store %arg11[%c0_374, %c0_375], %738 {strides = array<i32>} : memref<16x128xf32, #tpu.memory_space<vmem>>, vector<16x128xf32>,
    %c0_376 = arith.constant 0 : index
    %c0_377 = arith.constant 0 : index
    %772 = vector.load %arg12[%c0_376, %c0_377] : memref<16x128xf32, #tpu.memory_space<vmem>>, vector<16x128xf32>
    tpu.vector_store %arg12[%c0_376, %c0_377], %736 {strides = array<i32>} : memref<16x128xf32, #tpu.memory_space<vmem>>, vector<16x128xf32>,
    %c0_378 = arith.constant 0 : index
    %c0_379 = arith.constant 0 : index
    %773 = vector.load %arg13[%c0_378, %c0_379] : memref<16x128xf32, #tpu.memory_space<vmem>>, vector<16x128xf32>
    tpu.vector_store %arg13[%c0_378, %c0_379], %770 {strides = array<i32>} : memref<16x128xf32, #tpu.memory_space<vmem>>, vector<16x128xf32>,
    %c0_380 = arith.constant 0 : index
    %c0_381 = arith.constant 0 : index
    %774 = vector.load %arg14[%c0_380, %c0_381] : memref<16x128xf32, #tpu.memory_space<vmem>>, vector<16x128xf32>
    tpu.vector_store %arg14[%c0_380, %c0_381], %768 {strides = array<i32>} : memref<16x128xf32, #tpu.memory_space<vmem>>, vector<16x128xf32>,
    %775 = arith.truncf %738 : vector<16x128xf32> to vector<16x128xbf16>
    %776 = arith.index_cast %c7_i32_340 : i32 to index
    %c0_382 = arith.constant 0 : index
    %c0_383 = arith.constant 0 : index
    %777 = vector.load %arg9[%776, %c0_382, %c0_383] : memref<8x16x128xbf16, #tpu.memory_space<vmem>>, vector<1x16x128xbf16>
    %778 = vector.shape_cast %777 : vector<1x16x128xbf16> to vector<16x128xbf16>
    %779 = vector.shape_cast %775 : vector<16x128xbf16> to vector<1x16x128xbf16>
    tpu.vector_store %arg9[%776, %c0_382, %c0_383], %779 {strides = array<i32>} : memref<8x16x128xbf16, #tpu.memory_space<vmem>>, vector<1x16x128xbf16>,
    %780 = arith.truncf %770 : vector<16x128xf32> to vector<16x128xbf16>
    %781 = arith.index_cast %690 : i32 to index
    %c0_384 = arith.constant 0 : index
    %c0_385 = arith.constant 0 : index
    %782 = vector.load %arg10[%781, %c0_384, %c0_385] : memref<8x16x128xbf16, #tpu.memory_space<vmem>>, vector<1x16x128xbf16>
    %783 = vector.shape_cast %782 : vector<1x16x128xbf16> to vector<16x128xbf16>
    %784 = vector.shape_cast %780 : vector<16x128xbf16> to vector<1x16x128xbf16>
    tpu.vector_store %arg10[%781, %c0_384, %c0_385], %784 {strides = array<i32>} : memref<8x16x128xbf16, #tpu.memory_space<vmem>>, vector<1x16x128xbf16>,
    %c8_i32 = arith.constant 8 : i32
    return
  }
  func.func @transform_0(%arg0: i32) -> (i32, i32, i32) {
    %c0_i32 = arith.constant 0 : i32
    %c0_i32_0 = arith.constant 0 : i32
    %c0_i32_1 = arith.constant 0 : i32
    return %arg0, %c0_i32, %c0_i32_0 : i32, i32, i32
  }
  func.func @transform_1(%arg0: i32) -> (i32, i32, i32) {
    %c0_i32 = arith.constant 0 : i32
    %0 = arith.subi %c0_i32, %arg0 : i32
    %c0_i32_0 = arith.constant 0 : i32
    %c0_i32_1 = arith.constant 0 : i32
    %c0_i32_2 = arith.constant 0 : i32
    return %0, %c0_i32_0, %c0_i32_1 : i32, i32, i32
  }
  func.func @transform_2(%arg0: i32) -> (i32, i32) {
    %c0_i32 = arith.constant 0 : i32
    %c0_i32_0 = arith.constant 0 : i32
    %c0_i32_1 = arith.constant 0 : i32
    return %c0_i32, %c0_i32_0 : i32, i32
  }
  func.func @transform_3(%arg0: i32) -> (i32, i32) {
    %c0_i32 = arith.constant 0 : i32
    %c0_i32_0 = arith.constant 0 : i32
    %c0_i32_1 = arith.constant 0 : i32
    return %c0_i32, %c0_i32_0 : i32, i32
  }
  func.func @transform_4(%arg0: i32) -> (i32, i32) {
    %c0_i32 = arith.constant 0 : i32
    %c0_i32_0 = arith.constant 0 : i32
    %c0_i32_1 = arith.constant 0 : i32
    return %c0_i32, %c0_i32_0 : i32, i32
  }
  func.func @transform_5(%arg0: i32) -> (i32, i32) {
    %c0_i32 = arith.constant 0 : i32
    %c0_i32_0 = arith.constant 0 : i32
    %c0_i32_1 = arith.constant 0 : i32
    return %c0_i32, %c0_i32_0 : i32, i32
  }
  func.func @transform_6(%arg0: i32) -> (i32, i32) {
    %c0_i32 = arith.constant 0 : i32
    %c0_i32_0 = arith.constant 0 : i32
    %c0_i32_1 = arith.constant 0 : i32
    return %c0_i32, %c0_i32_0 : i32, i32
  }
  func.func @transform_7(%arg0: i32) -> (i32, i32) {
    %c0_i32 = arith.constant 0 : i32
    %c0_i32_0 = arith.constant 0 : i32
    %c0_i32_1 = arith.constant 0 : i32
    return %c0_i32, %c0_i32_0 : i32, i32
  }
  func.func @transform_8(%arg0: i32) -> (i32, i32, i32) {
    %c0_i32 = arith.constant 0 : i32
    %c0_i32_0 = arith.constant 0 : i32
    %c0_i32_1 = arith.constant 0 : i32
    return %arg0, %c0_i32, %c0_i32_0 : i32, i32, i32
  }
  func.func @transform_9(%arg0: i32) -> (i32, i32, i32) {
    %c0_i32 = arith.constant 0 : i32
    %0 = arith.subi %c0_i32, %arg0 : i32
    %c0_i32_0 = arith.constant 0 : i32
    %c0_i32_1 = arith.constant 0 : i32
    %c0_i32_2 = arith.constant 0 : i32
    return %0, %c0_i32_0, %c0_i32_1 : i32, i32, i32
  }
}

</mosaic_0001>

<llo_original>
// kernel: tpu_custom_call.1
$region0: #{tpu_custom_call.1}
  #allocation0 [shape = 'u32[]', space=smem, size = 0x4, offset = 0x4, fixed_abs, tag = 'smem constant byte address 0x4 - core index']
  #allocation1 [shape = 'u32[72,128]{1,0:T(1,128)}', space=vmem, size = 0x9000, scoped, tag = 'internal scratch']
  #allocation2 [shape = 'f32[16,128]{1,0:T(8,128)}', space=vmem, size = 0x2000, scoped, tag = 'scratch operand']
  #allocation3 [shape = 'f32[16,128]{1,0:T(8,128)}', space=vmem, size = 0x2000, scoped, tag = 'scratch operand']
  #allocation4 [shape = 'f32[16,128]{1,0:T(8,128)}', space=vmem, size = 0x2000, scoped, tag = 'scratch operand']
  #allocation5 [shape = 'f32[16,128]{1,0:T(8,128)}', space=vmem, size = 0x2000, scoped, tag = 'scratch operand']
  #allocation6 [shape = 'bf16[8,16,512]{2,1,0:T(8,128)(2,1)}', space=vmem, size = 0x20000, scoped, tag = 'scratch operand']
  #allocation7 [shape = 'bf16[8,16,512]{2,1,0:T(8,128)(2,1)}', space=vmem, size = 0x20000, scoped, tag = 'scratch operand']
  %s0 = inlined_call_operand.hbm [shape: bf16[8,16,128], index: 0, kind: input, shape index: {}]
  %s1 = inlined_call_operand.hbm [shape: bf16[8,16,128], index: 1, kind: input, shape index: {}]
  %s2 = inlined_call_operand.hbm [shape: bf16[128,512], index: 2, kind: input, shape index: {}]
  %s3 = inlined_call_operand.hbm [shape: bf16[128,512], index: 3, kind: input, shape index: {}]
  %s4 = inlined_call_operand.hbm [shape: bf16[128,512], index: 4, kind: input, shape index: {}]
  %s5 = inlined_call_operand.hbm [shape: bf16[128,512], index: 5, kind: input, shape index: {}]
  %s6 = inlined_call_operand.vmem [shape: f32[1,512], index: 6, kind: input, shape index: {}]
  %s7 = inlined_call_operand.hbm [shape: f32[1,512], index: 7, kind: input, shape index: {}]
  %s8 = inlined_call_operand.hbm [shape: bf16[8,16,128], index: 8, kind: output, shape index: {0}]
  %s9 = inlined_call_operand.hbm [shape: bf16[8,16,128], index: 9, kind: output, shape index: {1}]
  %10 = xla_tuple %s8, %s9
  %s11 = sld [smem:[#allocation0]]
  $region82: #{tpu_custom_call.1} parent=0
    _
  %s13 = ssub.s32 1, %s11
  %s14 = scalar_select 0, %s13, %s11
  $region1: #{tpu_custom_call.1} parent=0
    #allocation8 [shape = 'u8[32768]{0}', space=vmem, size = 0x8000, scoped, tag = 'input window, operand 0, single buffered']
    #allocation9 [shape = 's32[1]{0}', space=sflag, size = 0x4, scoped, tag = 'scoped memory for tpu_custom_call.1']
    #allocation10 [shape = 's32[1]{0}', space=sflag, size = 0x4, scoped, tag = 'scoped memory for tpu_custom_call.1']
    #allocation11 [shape = 'u8[32768]{0}', space=vmem, size = 0x8000, scoped, tag = 'input window, operand 1, single buffered']
    #allocation12 [shape = 's32[1]{0}', space=sflag, size = 0x4, scoped, tag = 'scoped memory for tpu_custom_call.1']
    #allocation13 [shape = 'u8[131072]{0}', space=vmem, size = 0x20000, scoped, tag = 'input window, operand 2, single buffered']
    #allocation14 [shape = 'u8[131072]{0}', space=vmem, size = 0x20000, scoped, tag = 'input window, operand 3, single buffered']
    #allocation15 [shape = 's32[1]{0}', space=sflag, size = 0x4, scoped, tag = 'scoped memory for tpu_custom_call.1']
    #allocation16 [shape = 'u8[131072]{0}', space=vmem, size = 0x20000, scoped, tag = 'input window, operand 4, single buffered']
    #allocation17 [shape = 'u8[131072]{0}', space=vmem, size = 0x20000, scoped, tag = 'input window, operand 5, single buffered']
    #allocation18 [shape = 's32[1]{0}', space=sflag, size = 0x4, scoped, tag = 'scoped memory for tpu_custom_call.1']
    #allocation19 [shape = 'u8[2048]{0}', space=vmem, size = 0x800, scoped, tag = 'input window, operand 7, single buffered']
    #allocation20 [shape = 'u8[32768]{0}', space=vmem, size = 0x8000, scoped, tag = 'output window, operand 0, single buffered']
    #allocation21 [shape = 'u8[32768]{0}', space=vmem, size = 0x8000, scoped, tag = 'output window, operand 1, single buffered']
    #allocation22 [shape = 's32[1]{0}', space=sflag, size = 0x4, scoped, tag = 'scoped memory for tpu_custom_call.1']
    %15 = vsyncpa [#allocation9], 0
    %16 = vsyncpa [#allocation12], 0
    %17 = vsyncpa [#allocation15], 0
    %18 = vsyncpa [#allocation18], 0
    %19 = vsyncpa [#allocation10], 0
    %20 = vsyncpa [#allocation22], 0
    // Predicated region
    $region2: #{tpu_custom_call.1} parent=1 // pred_check
      _
    $region3: #{tpu_custom_call.1} parent=1 // pred_check_branch
      %22 = sbr.rel (0) target = $region5
    $region4: #{tpu_custom_call.1} parent=1 // pred_region
      %24 = vsyncadd [#allocation9], 0
      %s25 = sshll.u32 %s0, 4
      %s26 = int_to_ptr.hbm [resolvable:$true] %s25
      %s27 = sshll.u32 [#allocation8], 4
      %s28 = int_to_ptr.vmem [resolvable:$true] %s27
      %33 = dma.hbm_to_vmem [thread:$0]  %s26, 1024, %s28, [#allocation9], 64, 64, 4
    $region5: #{tpu_custom_call.1} parent=1 // pred_fallthru
      _
    // Predicated region
    $region6: #{tpu_custom_call.1} parent=1 // pred_check
      _
    $region7: #{tpu_custom_call.1} parent=1 // pred_check_branch
      %35 = sbr.rel (0) target = $region9
    $region8: #{tpu_custom_call.1} parent=1 // pred_region
      %s36 = ssub.s32 0, 0
      %s37 = smul.u32 8, %s36
      %39 = vsyncadd [#allocation12], 0
      %s40 = smul.addr %s37, 2
      %s41 = smul.addr %s40, 4
      %s42 = scalar_lea.hbm %s1, %s41
      %s43 = sshll.u32 %s42, 4
      %s44 = int_to_ptr.hbm [resolvable:$true] %s43
      %s45 = sshll.u32 [#allocation11], 4
      %s46 = int_to_ptr.vmem [resolvable:$true] %s45
      %51 = dma.hbm_to_vmem [thread:$0]  %s44, 1024, %s46, [#allocation12], 64, 64, 4
    $region9: #{tpu_custom_call.1} parent=1 // pred_fallthru
      _
    // Predicated region
    $region10: #{tpu_custom_call.1} parent=1 // pred_check
      _
    $region11: #{tpu_custom_call.1} parent=1 // pred_check_branch
      %53 = sbr.rel (0) target = $region13
    $region12: #{tpu_custom_call.1} parent=1 // pred_region
      %55 = vsyncadd [#allocation12], 0
      %s56 = sshll.u32 %s2, 4
      %s57 = int_to_ptr.hbm [resolvable:$true] %s56
      %s58 = sshll.u32 [#allocation13], 4
      %s59 = int_to_ptr.vmem [resolvable:$true] %s58
      %64 = dma.hbm_to_vmem [thread:$0]  %s57, 4096, %s59, [#allocation12], 256, 256, 16
    $region13: #{tpu_custom_call.1} parent=1 // pred_fallthru
      _
    // Predicated region
    $region14: #{tpu_custom_call.1} parent=1 // pred_check
      _
    $region15: #{tpu_custom_call.1} parent=1 // pred_check_branch
      %66 = sbr.rel (0) target = $region17
    $region16: #{tpu_custom_call.1} parent=1 // pred_region
      %68 = vsyncadd [#allocation15], 0
      %s69 = sshll.u32 %s3, 4
      %s70 = int_to_ptr.hbm [resolvable:$true] %s69
      %s71 = sshll.u32 [#allocation14], 4
      %s72 = int_to_ptr.vmem [resolvable:$true] %s71
      %77 = dma.hbm_to_vmem [thread:$0]  %s70, 4096, %s72, [#allocation15], 256, 256, 16
    $region17: #{tpu_custom_call.1} parent=1 // pred_fallthru
      _
    // Predicated region
    $region18: #{tpu_custom_call.1} parent=1 // pred_check
      _
    $region19: #{tpu_custom_call.1} parent=1 // pred_check_branch
      %79 = sbr.rel (0) target = $region21
    $region20: #{tpu_custom_call.1} parent=1 // pred_region
      %81 = vsyncadd [#allocation15], 0
      %s82 = sshll.u32 %s4, 4
      %s83 = int_to_ptr.hbm [resolvable:$true] %s82
      %s84 = sshll.u32 [#allocation16], 4
      %s85 = int_to_ptr.vmem [resolvable:$true] %s84
      %90 = dma.hbm_to_vmem [thread:$0]  %s83, 4096, %s85, [#allocation15], 256, 256, 16
    $region21: #{tpu_custom_call.1} parent=1 // pred_fallthru
      _
    // Predicated region
    $region22: #{tpu_custom_call.1} parent=1 // pred_check
      _
    $region23: #{tpu_custom_call.1} parent=1 // pred_check_branch
      %92 = sbr.rel (0) target = $region25
    $region24: #{tpu_custom_call.1} parent=1 // pred_region
      %94 = vsyncadd [#allocation18], 0
      %s95 = sshll.u32 %s5, 4
      %s96 = int_to_ptr.hbm [resolvable:$true] %s95
      %s97 = sshll.u32 [#allocation17], 4
      %s98 = int_to_ptr.vmem [resolvable:$true] %s97
      %103 = dma.hbm_to_vmem [thread:$0]  %s96, 4096, %s98, [#allocation18], 256, 256, 16
    $region25: #{tpu_custom_call.1} parent=1 // pred_fallthru
      _
    // Predicated region
    $region26: #{tpu_custom_call.1} parent=1 // pred_check
      _
    $region27: #{tpu_custom_call.1} parent=1 // pred_check_branch
      %105 = sbr.rel (0) target = $region29
    $region28: #{tpu_custom_call.1} parent=1 // pred_region
      _
    $region29: #{tpu_custom_call.1} parent=1 // pred_fallthru
      _
    // Predicated region
    $region30: #{tpu_custom_call.1} parent=1 // pred_check
      _
    $region31: #{tpu_custom_call.1} parent=1 // pred_check_branch
      %107 = sbr.rel (0) target = $region33
    $region32: #{tpu_custom_call.1} parent=1 // pred_region
      %109 = vsyncadd [#allocation18], 0
      %s111 = sshll.u32 %s7, 4
      %s112 = int_to_ptr.hbm [resolvable:$true] %s111
      %s113 = sshll.u32 [#allocation19], 4
      %s114 = int_to_ptr.vmem [resolvable:$true] %s113
      %116 = dma.hbm_to_vmem [thread:$0]  %s112, 64, %s114, [#allocation18]
    $region33: #{tpu_custom_call.1} parent=1 // pred_fallthru
      _
    // Predicated region
    $region34: #{tpu_custom_call.1} parent=1 // pred_check
      _
    $region35: #{tpu_custom_call.1} parent=1 // pred_check_branch
      %118 = sbr.rel (0) target = $region37
    $region36: #{tpu_custom_call.1} parent=1 // pred_region
      %120 = dma.done [#allocation9], 1024
    $region37: #{tpu_custom_call.1} parent=1 // pred_fallthru
      _
    // Predicated region
    $region38: #{tpu_custom_call.1} parent=1 // pred_check
      _
    $region39: #{tpu_custom_call.1} parent=1 // pred_check_branch
      %122 = sbr.rel (0) target = $region41
    $region40: #{tpu_custom_call.1} parent=1 // pred_region
      %124 = dma.done [#allocation12], 1024
    $region41: #{tpu_custom_call.1} parent=1 // pred_fallthru
      _
    // Predicated region
    $region42: #{tpu_custom_call.1} parent=1 // pred_check
      _
    $region43: #{tpu_custom_call.1} parent=1 // pred_check_branch
      %126 = sbr.rel (0) target = $region45
    $region44: #{tpu_custom_call.1} parent=1 // pred_region
      %128 = dma.done [#allocation12], 4096
    $region45: #{tpu_custom_call.1} parent=1 // pred_fallthru
      _
    // Predicated region
    $region46: #{tpu_custom_call.1} parent=1 // pred_check
      _
    $region47: #{tpu_custom_call.1} parent=1 // pred_check_branch
      %130 = sbr.rel (0) target = $region49
    $region48: #{tpu_custom_call.1} parent=1 // pred_region
      %132 = dma.done [#allocation15], 4096
    $region49: #{tpu_custom_call.1} parent=1 // pred_fallthru
      _
    // Predicated region
    $region50: #{tpu_custom_call.1} parent=1 // pred_check
      _
    $region51: #{tpu_custom_call.1} parent=1 // pred_check_branch
      %134 = sbr.rel (0) target = $region53
    $region52: #{tpu_custom_call.1} parent=1 // pred_region
      %136 = dma.done [#allocation15], 4096
    $region53: #{tpu_custom_call.1} parent=1 // pred_fallthru
      _
    // Predicated region
    $region54: #{tpu_custom_call.1} parent=1 // pred_check
      _
    $region55: #{tpu_custom_call.1} parent=1 // pred_check_branch
      %138 = sbr.rel (0) target = $region57
    $region56: #{tpu_custom_call.1} parent=1 // pred_region
      %140 = dma.done [#allocation18], 4096
    $region57: #{tpu_custom_call.1} parent=1 // pred_fallthru
      _
    // Predicated region
    $region58: #{tpu_custom_call.1} parent=1 // pred_check
      _
    $region59: #{tpu_custom_call.1} parent=1 // pred_check_branch
      %142 = sbr.rel (0) target = $region61
    $region60: #{tpu_custom_call.1} parent=1 // pred_region
      %144 = dma.done [#allocation18], 64
    $region61: #{tpu_custom_call.1} parent=1 // pred_fallthru
      _
    %s145 = ssub.s32 0, 0
    %s146 = smul.u32 8, %s145
    %s147 = ssub.s32 0, 0
    %s148 = smul.u32 8, %s147
    %p149 = scmp.eq.s32.totalorder 0, 0
    // Predicated region
    $region62: #{tpu_custom_call.1} parent=1 // pred_check
      %p150 = pneg %p149
    $region63: #{tpu_custom_call.1} parent=1 // pred_check_branch
      %152 = sbr.rel (%p150) target = $region65
    $region64: #{tpu_custom_call.1} parent=1 // pred_region
      %153 = vst [vmem:[#allocation2] sm:$0xff] 0.0
      %154 = vst [vmem:[#allocation2 + $0x8] sm:$0xff] 0.0
      %155 = vst [vmem:[#allocation3] sm:$0xff] 0.0
      %156 = vst [vmem:[#allocation3 + $0x8] sm:$0xff] 0.0
      %157 = vst [vmem:[#allocation4] sm:$0xff] 0.0
      %158 = vst [vmem:[#allocation4 + $0x8] sm:$0xff] 0.0
      %159 = vst [vmem:[#allocation5] sm:$0xff] 0.0
      %160 = vst [vmem:[#allocation5 + $0x8] sm:$0xff] 0.0
    $region65: #{tpu_custom_call.1} parent=1 // pred_fallthru
      _
    %v161 = vld [vmem:[#allocation8] sm:$0xf]
    %v162 = vld [vmem:[#allocation8 + $0x4] sm:$0xf]
    %v163 = vld [vmem:[#allocation8 + $0x8] sm:$0xf]
    %v164 = vld [vmem:[#allocation8 + $0xc] sm:$0xf]
    %v165 = vld [vmem:[#allocation8 + $0x10] sm:$0xf]
    %v166 = vld [vmem:[#allocation8 + $0x14] sm:$0xf]
    %v167 = vld [vmem:[#allocation8 + $0x18] sm:$0xf]
    %v168 = vld [vmem:[#allocation8 + $0x1c] sm:$0xf]
    %v169 = vld [vmem:[#allocation8 + $0x20] sm:$0xf]
    %v170 = vld [vmem:[#allocation8 + $0x24] sm:$0xf]
    %v171 = vld [vmem:[#allocation8 + $0x28] sm:$0xf]
    %v172 = vld [vmem:[#allocation8 + $0x2c] sm:$0xf]
    %v173 = vld [vmem:[#allocation8 + $0x30] sm:$0xf]
    %v174 = vld [vmem:[#allocation8 + $0x34] sm:$0xf]
    %v175 = vld [vmem:[#allocation8 + $0x38] sm:$0xf]
    %v176 = vld [vmem:[#allocation8 + $0x3c] sm:$0xf]
    %v177 = vld [vmem:[#allocation13] sm:$0xff]
    %v178 = vld [vmem:[#allocation13 + $0x8] sm:$0xff]
    %v179 = vld [vmem:[#allocation13 + $0x10] sm:$0xff]
    %v180 = vld [vmem:[#allocation13 + $0x18] sm:$0xff]
    %v181 = vld [vmem:[#allocation13 + $0x20] sm:$0xff]
    %v182 = vld [vmem:[#allocation13 + $0x28] sm:$0xff]
    %v183 = vld [vmem:[#allocation13 + $0x30] sm:$0xff]
    %v184 = vld [vmem:[#allocation13 + $0x38] sm:$0xff]
    %v185 = vld [vmem:[#allocation13 + $0x40] sm:$0xff]
    %v186 = vld [vmem:[#allocation13 + $0x48] sm:$0xff]
    %v187 = vld [vmem:[#allocation13 + $0x50] sm:$0xff]
    %v188 = vld [vmem:[#allocation13 + $0x58] sm:$0xff]
    %v189 = vld [vmem:[#allocation13 + $0x60] sm:$0xff]
    %v190 = vld [vmem:[#allocation13 + $0x68] sm:$0xff]
    %v191 = vld [vmem:[#allocation13 + $0x70] sm:$0xff]
    %v192 = vld [vmem:[#allocation13 + $0x78] sm:$0xff]
    %v193 = vld [vmem:[#allocation13 + $0x80] sm:$0xff]
    %v194 = vld [vmem:[#allocation13 + $0x88] sm:$0xff]
    %v195 = vld [vmem:[#allocation13 + $0x90] sm:$0xff]
    %v196 = vld [vmem:[#allocation13 + $0x98] sm:$0xff]
    %v197 = vld [vmem:[#allocation13 + $0xa0] sm:$0xff]
    %v198 = vld [vmem:[#allocation13 + $0xa8] sm:$0xff]
    %v199 = vld [vmem:[#allocation13 + $0xb0] sm:$0xff]
    %v200 = vld [vmem:[#allocation13 + $0xb8] sm:$0xff]
    %v201 = vld [vmem:[#allocation13 + $0xc0] sm:$0xff]
    %v202 = vld [vmem:[#allocation13 + $0xc8] sm:$0xff]
    %v203 = vld [vmem:[#allocation13 + $0xd0] sm:$0xff]
    %v204 = vld [vmem:[#allocation13 + $0xd8] sm:$0xff]
    %v205 = vld [vmem:[#allocation13 + $0xe0] sm:$0xff]
    %v206 = vld [vmem:[#allocation13 + $0xe8] sm:$0xff]
    %v207 = vld [vmem:[#allocation13 + $0xf0] sm:$0xff]
    %v208 = vld [vmem:[#allocation13 + $0xf8] sm:$0xff]
    %v209 = vld [vmem:[%s6] sm:$0xf]
    %v211 = vperm.slane %v209, 0
    %v212 = vperm.slane %v209, 1
    %v213 = vperm.slane %v209, 2
    %v214 = vperm.slane %v209, 3
    %v235 = vunpack.c.l.b16 %v161
    %v236 = vunpack.c.l.b16 %v162
    %v237 = vunpack.c.l.b16 %v163
    %v238 = vunpack.c.l.b16 %v164
    %v239 = vunpack.c.l.b16 %v165
    %v240 = vunpack.c.l.b16 %v166
    %v241 = vunpack.c.l.b16 %v167
    %v242 = vunpack.c.l.b16 %v168
    %v243 = vunpack.c.l.b16 %v169
    %v244 = vunpack.c.l.b16 %v170
    %v245 = vunpack.c.l.b16 %v171
    %v246 = vunpack.c.l.b16 %v172
    %v247 = vunpack.c.l.b16 %v173
    %v248 = vunpack.c.l.b16 %v174
    %v249 = vunpack.c.l.b16 %v175
    %v250 = vunpack.c.l.b16 %v176
    %v251 = vpack.c.b16 %v236, %v235
    %v252 = vpack.c.b16 %v238, %v237
    %v253 = vpack.c.b16 %v240, %v239
    %v254 = vpack.c.b16 %v242, %v241
    %v255 = vpack.c.b16 %v244, %v243
    %v256 = vpack.c.b16 %v246, %v245
    %v257 = vpack.c.b16 %v248, %v247
    %v258 = vpack.c.b16 %v250, %v249
    %v299 = vunpack.c.l.b16 %v177
    %v300 = vunpack.c.h.b16 %v177
    %v301 = vunpack.c.l.b16 %v178
    %v302 = vunpack.c.h.b16 %v178
    %v303 = vunpack.c.l.b16 %v179
    %v304 = vunpack.c.h.b16 %v179
    %v305 = vunpack.c.l.b16 %v180
    %v306 = vunpack.c.h.b16 %v180
    %v307 = vunpack.c.l.b16 %v181
    %v308 = vunpack.c.h.b16 %v181
    %v309 = vunpack.c.l.b16 %v182
    %v310 = vunpack.c.h.b16 %v182
    %v311 = vunpack.c.l.b16 %v183
    %v312 = vunpack.c.h.b16 %v183
    %v313 = vunpack.c.l.b16 %v184
    %v314 = vunpack.c.h.b16 %v184
    %v315 = vunpack.c.l.b16 %v185
    %v316 = vunpack.c.h.b16 %v185
    %v317 = vunpack.c.l.b16 %v186
    %v318 = vunpack.c.h.b16 %v186
    %v319 = vunpack.c.l.b16 %v187
    %v320 = vunpack.c.h.b16 %v187
    %v321 = vunpack.c.l.b16 %v188
    %v322 = vunpack.c.h.b16 %v188
    %v323 = vunpack.c.l.b16 %v189
    %v324 = vunpack.c.h.b16 %v189
    %v325 = vunpack.c.l.b16 %v190
    %v326 = vunpack.c.h.b16 %v190
    %v327 = vunpack.c.l.b16 %v191
    %v328 = vunpack.c.h.b16 %v191
    %v329 = vunpack.c.l.b16 %v192
    %v330 = vunpack.c.h.b16 %v192
    %v331 = vunpack.c.l.b16 %v193
    %v332 = vunpack.c.h.b16 %v193
    %v333 = vunpack.c.l.b16 %v194
    %v334 = vunpack.c.h.b16 %v194
    %v335 = vunpack.c.l.b16 %v195
    %v336 = vunpack.c.h.b16 %v195
    %v337 = vunpack.c.l.b16 %v196
    %v338 = vunpack.c.h.b16 %v196
    %v339 = vunpack.c.l.b16 %v197
    %v340 = vunpack.c.h.b16 %v197
    %v341 = vunpack.c.l.b16 %v198
    %v342 = vunpack.c.h.b16 %v198
    %v343 = vunpack.c.l.b16 %v199
    %v344 = vunpack.c.h.b16 %v199
    %v345 = vunpack.c.l.b16 %v200
    %v346 = vunpack.c.h.b16 %v200
    %v347 = vunpack.c.l.b16 %v201
    %v348 = vunpack.c.h.b16 %v201
    %v349 = vunpack.c.l.b16 %v202
    %v350 = vunpack.c.h.b16 %v202
    %v351 = vunpack.c.l.b16 %v203
    %v352 = vunpack.c.h.b16 %v203
    %v353 = vunpack.c.l.b16 %v204
    %v354 = vunpack.c.h.b16 %v204
    %v355 = vunpack.c.l.b16 %v205
    %v356 = vunpack.c.h.b16 %v205
    %v357 = vunpack.c.l.b16 %v206
    %v358 = vunpack.c.h.b16 %v206
    %v359 = vunpack.c.l.b16 %v207
    %v360 = vunpack.c.h.b16 %v207
    %v361 = vunpack.c.l.b16 %v208
    %v362 = vunpack.c.h.b16 %v208
    %v363 = vpack.c.b16 %v303, %v299
    %v364 = vpack.c.b16 %v304, %v300
    %v365 = vpack.c.b16 %v305, %v301
    %v366 = vpack.c.b16 %v306, %v302
    %v367 = vpack.c.b16 %v311, %v307
    %v368 = vpack.c.b16 %v312, %v308
    %v369 = vpack.c.b16 %v313, %v309
    %v370 = vpack.c.b16 %v314, %v310
    %v371 = vpack.c.b16 %v319, %v315
    %v372 = vpack.c.b16 %v320, %v316
    %v373 = vpack.c.b16 %v321, %v317
    %v374 = vpack.c.b16 %v322, %v318
    %v375 = vpack.c.b16 %v327, %v323
    %v376 = vpack.c.b16 %v328, %v324
    %v377 = vpack.c.b16 %v329, %v325
    %v378 = vpack.c.b16 %v330, %v326
    %v379 = vpack.c.b16 %v335, %v331
    %v380 = vpack.c.b16 %v336, %v332
    %v381 = vpack.c.b16 %v337, %v333
    %v382 = vpack.c.b16 %v338, %v334
    %v383 = vpack.c.b16 %v343, %v339
    %v384 = vpack.c.b16 %v344, %v340
    %v385 = vpack.c.b16 %v345, %v341
    %v386 = vpack.c.b16 %v346, %v342
    %v387 = vpack.c.b16 %v351, %v347
    %v388 = vpack.c.b16 %v352, %v348
    %v389 = vpack.c.b16 %v353, %v349
    %v390 = vpack.c.b16 %v354, %v350
    %v391 = vpack.c.b16 %v359, %v355
    %v392 = vpack.c.b16 %v360, %v356
    %v393 = vpack.c.b16 %v361, %v357
    %v394 = vpack.c.b16 %v362, %v358
    %427 = vmatpush.bf16.msra.mxu0 %v391
    %428 = vmatpush.bf16.msra.mxu0 %v387
    %429 = vmatpush.bf16.msra.mxu0 %v383
    %430 = vmatpush.bf16.msra.mxu0 %v379
    %431 = vmatpush.bf16.msra.mxu0 %v375
    %432 = vmatpush.bf16.msra.mxu0 %v371
    %433 = vmatpush.bf16.msra.mxu0 %v367
    %434 = vmatpush.bf16.msra.mxu0 %v363
    %435 = vmatmul.bf16.gmra.mxu0 %v251
    %v436 = vpop.f32.mrf.mxu0
    %v437 = vadd.f32 %v211, %v436
    %v438 = vpop.f32.mrf.mxu0
    %v439 = vadd.f32 %v211, %v438
    %440 = vmatmul.bf16.gmra.mxu0 %v252
    %v441 = vpop.f32.mrf.mxu0
    %v442 = vadd.f32 %v211, %v441
    %v443 = vpop.f32.mrf.mxu0
    %v444 = vadd.f32 %v211, %v443
    %445 = vmatmul.bf16.gmra.mxu0 %v253
    %v446 = vpop.f32.mrf.mxu0
    %v447 = vadd.f32 %v211, %v446
    %v448 = vpop.f32.mrf.mxu0
    %v449 = vadd.f32 %v211, %v448
    %450 = vmatmul.bf16.gmra.mxu0 %v254
    %v451 = vpop.f32.mrf.mxu0
    %v452 = vadd.f32 %v211, %v451
    %v453 = vpop.f32.mrf.mxu0
    %v454 = vadd.f32 %v211, %v453
    %455 = vmatmul.bf16.gmra.mxu0 %v255
    %v456 = vpop.f32.mrf.mxu0
    %v457 = vadd.f32 %v211, %v456
    %v458 = vpop.f32.mrf.mxu0
    %v459 = vadd.f32 %v211, %v458
    %460 = vmatmul.bf16.gmra.mxu0 %v256
    %v461 = vpop.f32.mrf.mxu0
    %v462 = vadd.f32 %v211, %v461
    %v463 = vpop.f32.mrf.mxu0
    %v464 = vadd.f32 %v211, %v463
    %465 = vmatmul.bf16.gmra.mxu0 %v257
    %v466 = vpop.f32.mrf.mxu0
    %v467 = vadd.f32 %v211, %v466
    %v468 = vpop.f32.mrf.mxu0
    %v469 = vadd.f32 %v211, %v468
    %470 = vmatmul.bf16.gmra.mxu0 %v258
    %v471 = vpop.f32.mrf.mxu0
    %v472 = vadd.f32 %v211, %v471
    %v473 = vpop.f32.mrf.mxu0
    %v474 = vadd.f32 %v211, %v473
    %475 = vdwg.mxu0
    %476 = vmatpush.bf16.msra.mxu0 %v392
    %477 = vmatpush.bf16.msra.mxu0 %v388
    %478 = vmatpush.bf16.msra.mxu0 %v384
    %479 = vmatpush.bf16.msra.mxu0 %v380
    %480 = vmatpush.bf16.msra.mxu0 %v376
    %481 = vmatpush.bf16.msra.mxu0 %v372
    %482 = vmatpush.bf16.msra.mxu0 %v368
    %483 = vmatpush.bf16.msra.mxu0 %v364
    %484 = vmatmul.bf16.gmra.mxu0 %v251
    %v485 = vpop.f32.mrf.mxu0
    %v486 = vadd.f32 %v212, %v485
    %v487 = vpop.f32.mrf.mxu0
    %v488 = vadd.f32 %v212, %v487
    %489 = vmatmul.bf16.gmra.mxu0 %v252
    %v490 = vpop.f32.mrf.mxu0
    %v491 = vadd.f32 %v212, %v490
    %v492 = vpop.f32.mrf.mxu0
    %v493 = vadd.f32 %v212, %v492
    %494 = vmatmul.bf16.gmra.mxu0 %v253
    %v495 = vpop.f32.mrf.mxu0
    %v496 = vadd.f32 %v212, %v495
    %v497 = vpop.f32.mrf.mxu0
    %v498 = vadd.f32 %v212, %v497
    %499 = vmatmul.bf16.gmra.mxu0 %v254
    %v500 = vpop.f32.mrf.mxu0
    %v501 = vadd.f32 %v212, %v500
    %v502 = vpop.f32.mrf.mxu0
    %v503 = vadd.f32 %v212, %v502
    %504 = vmatmul.bf16.gmra.mxu0 %v255
    %v505 = vpop.f32.mrf.mxu0
    %v506 = vadd.f32 %v212, %v505
    %v507 = vpop.f32.mrf.mxu0
    %v508 = vadd.f32 %v212, %v507
    %509 = vmatmul.bf16.gmra.mxu0 %v256
    %v510 = vpop.f32.mrf.mxu0
    %v511 = vadd.f32 %v212, %v510
    %v512 = vpop.f32.mrf.mxu0
    %v513 = vadd.f32 %v212, %v512
    %514 = vmatmul.bf16.gmra.mxu0 %v257
    %v515 = vpop.f32.mrf.mxu0
    %v516 = vadd.f32 %v212, %v515
    %v517 = vpop.f32.mrf.mxu0
    %v518 = vadd.f32 %v212, %v517
    %519 = vmatmul.bf16.gmra.mxu0 %v258
    %v520 = vpop.f32.mrf.mxu0
    %v521 = vadd.f32 %v212, %v520
    %v522 = vpop.f32.mrf.mxu0
    %v523 = vadd.f32 %v212, %v522
    %524 = vdwg.mxu0
    %525 = vmatpush.bf16.msra.mxu0 %v393
    %526 = vmatpush.bf16.msra.mxu0 %v389
    %527 = vmatpush.bf16.msra.mxu0 %v385
    %528 = vmatpush.bf16.msra.mxu0 %v381
    %529 = vmatpush.bf16.msra.mxu0 %v377
    %530 = vmatpush.bf16.msra.mxu0 %v373
    %531 = vmatpush.bf16.msra.mxu0 %v369
    %532 = vmatpush.bf16.msra.mxu0 %v365
    %533 = vmatmul.bf16.gmra.mxu0 %v251
    %v534 = vpop.f32.mrf.mxu0
    %v535 = vadd.f32 %v213, %v534
    %v536 = vpop.f32.mrf.mxu0
    %v537 = vadd.f32 %v213, %v536
    %538 = vmatmul.bf16.gmra.mxu0 %v252
    %v539 = vpop.f32.mrf.mxu0
    %v540 = vadd.f32 %v213, %v539
    %v541 = vpop.f32.mrf.mxu0
    %v542 = vadd.f32 %v213, %v541
    %543 = vmatmul.bf16.gmra.mxu0 %v253
    %v544 = vpop.f32.mrf.mxu0
    %v545 = vadd.f32 %v213, %v544
    %v546 = vpop.f32.mrf.mxu0
    %v547 = vadd.f32 %v213, %v546
    %548 = vmatmul.bf16.gmra.mxu0 %v254
    %v549 = vpop.f32.mrf.mxu0
    %v550 = vadd.f32 %v213, %v549
    %v551 = vpop.f32.mrf.mxu0
    %v552 = vadd.f32 %v213, %v551
    %553 = vmatmul.bf16.gmra.mxu0 %v255
    %v554 = vpop.f32.mrf.mxu0
    %v555 = vadd.f32 %v213, %v554
    %v556 = vpop.f32.mrf.mxu0
    %v557 = vadd.f32 %v213, %v556
    %558 = vmatmul.bf16.gmra.mxu0 %v256
    %v559 = vpop.f32.mrf.mxu0
    %v560 = vadd.f32 %v213, %v559
    %v561 = vpop.f32.mrf.mxu0
    %v562 = vadd.f32 %v213, %v561
    %563 = vmatmul.bf16.gmra.mxu0 %v257
    %v564 = vpop.f32.mrf.mxu0
    %v565 = vadd.f32 %v213, %v564
    %v566 = vpop.f32.mrf.mxu0
    %v567 = vadd.f32 %v213, %v566
    %568 = vmatmul.bf16.gmra.mxu0 %v258
    %v569 = vpop.f32.mrf.mxu0
    %v570 = vadd.f32 %v213, %v569
    %v571 = vpop.f32.mrf.mxu0
    %v572 = vadd.f32 %v213, %v571
    %573 = vdwg.mxu0
    %574 = vmatpush.bf16.msra.mxu0 %v394
    %575 = vmatpush.bf16.msra.mxu0 %v390
    %576 = vmatpush.bf16.msra.mxu0 %v386
    %577 = vmatpush.bf16.msra.mxu0 %v382
    %578 = vmatpush.bf16.msra.mxu0 %v378
    %579 = vmatpush.bf16.msra.mxu0 %v374
    %580 = vmatpush.bf16.msra.mxu0 %v370
    %581 = vmatpush.bf16.msra.mxu0 %v366
    %582 = vmatmul.bf16.gmra.mxu0 %v251
    %v583 = vpop.f32.mrf.mxu0
    %v584 = vadd.f32 %v214, %v583
    %v585 = vpop.f32.mrf.mxu0
    %v586 = vadd.f32 %v214, %v585
    %587 = vmatmul.bf16.gmra.mxu0 %v252
    %v588 = vpop.f32.mrf.mxu0
    %v589 = vadd.f32 %v214, %v588
    %v590 = vpop.f32.mrf.mxu0
    %v591 = vadd.f32 %v214, %v590
    %592 = vmatmul.bf16.gmra.mxu0 %v253
    %v593 = vpop.f32.mrf.mxu0
    %v594 = vadd.f32 %v214, %v593
    %v595 = vpop.f32.mrf.mxu0
    %v596 = vadd.f32 %v214, %v595
    %597 = vmatmul.bf16.gmra.mxu0 %v254
    %v598 = vpop.f32.mrf.mxu0
    %v599 = vadd.f32 %v214, %v598
    %v600 = vpop.f32.mrf.mxu0
    %v601 = vadd.f32 %v214, %v600
    %602 = vmatmul.bf16.gmra.mxu0 %v255
    %v603 = vpop.f32.mrf.mxu0
    %v604 = vadd.f32 %v214, %v603
    %v605 = vpop.f32.mrf.mxu0
    %v606 = vadd.f32 %v214, %v605
    %607 = vmatmul.bf16.gmra.mxu0 %v256
    %v608 = vpop.f32.mrf.mxu0
    %v609 = vadd.f32 %v214, %v608
    %v610 = vpop.f32.mrf.mxu0
    %v611 = vadd.f32 %v214, %v610
    %612 = vmatmul.bf16.gmra.mxu0 %v257
    %v613 = vpop.f32.mrf.mxu0
    %v614 = vadd.f32 %v214, %v613
    %v615 = vpop.f32.mrf.mxu0
    %v616 = vadd.f32 %v214, %v615
    %617 = vmatmul.bf16.gmra.mxu0 %v258
    %v618 = vpop.f32.mrf.mxu0
    %v619 = vadd.f32 %v214, %v618
    %v620 = vpop.f32.mrf.mxu0
    %v621 = vadd.f32 %v214, %v620
    %622 = vdwg.mxu0
    %v623 = vpack.c.bf16 %v486, %v437
    %v624 = vpack.c.bf16 %v584, %v535
    %v625 = vpack.c.bf16 %v488, %v439
    %v626 = vpack.c.bf16 %v586, %v537
    %v627 = vpack.c.bf16 %v491, %v442
    %v628 = vpack.c.bf16 %v589, %v540
    %v629 = vpack.c.bf16 %v493, %v444
    %v630 = vpack.c.bf16 %v591, %v542
    %v631 = vpack.c.bf16 %v496, %v447
    %v632 = vpack.c.bf16 %v594, %v545
    %v633 = vpack.c.bf16 %v498, %v449
    %v634 = vpack.c.bf16 %v596, %v547
    %v635 = vpack.c.bf16 %v501, %v452
    %v636 = vpack.c.bf16 %v599, %v550
    %v637 = vpack.c.bf16 %v503, %v454
    %v638 = vpack.c.bf16 %v601, %v552
    %v639 = vpack.c.bf16 %v506, %v457
    %v640 = vpack.c.bf16 %v604, %v555
    %v641 = vpack.c.bf16 %v508, %v459
    %v642 = vpack.c.bf16 %v606, %v557
    %v643 = vpack.c.bf16 %v511, %v462
    %v644 = vpack.c.bf16 %v609, %v560
    %v645 = vpack.c.bf16 %v513, %v464
    %v646 = vpack.c.bf16 %v611, %v562
    %v647 = vpack.c.bf16 %v516, %v467
    %v648 = vpack.c.bf16 %v614, %v565
    %v649 = vpack.c.bf16 %v518, %v469
    %v650 = vpack.c.bf16 %v616, %v567
    %v651 = vpack.c.bf16 %v521, %v472
    %v652 = vpack.c.bf16 %v619, %v570
    %v653 = vpack.c.bf16 %v523, %v474
    %v654 = vpack.c.bf16 %v621, %v572
    %655 = vst [vmem:[#allocation6] sm:$0xff] %v623
    %656 = vst [vmem:[#allocation6 + $0x8] sm:$0xff] %v624
    %657 = vst [vmem:[#allocation6 + $0x10] sm:$0xff] %v625
    %658 = vst [vmem:[#allocation6 + $0x18] sm:$0xff] %v626
    %659 = vst [vmem:[#allocation6 + $0x20] sm:$0xff] %v627
    %660 = vst [vmem:[#allocation6 + $0x28] sm:$0xff] %v628
    %661 = vst [vmem:[#allocation6 + $0x30] sm:$0xff] %v629
    %662 = vst [vmem:[#allocation6 + $0x38] sm:$0xff] %v630
    %663 = vst [vmem:[#allocation6 + $0x40] sm:$0xff] %v631
    %664 = vst [vmem:[#allocation6 + $0x48] sm:$0xff] %v632
    %665 = vst [vmem:[#allocation6 + $0x50] sm:$0xff] %v633
    %666 = vst [vmem:[#allocation6 + $0x58] sm:$0xff] %v634
    %667 = vst [vmem:[#allocation6 + $0x60] sm:$0xff] %v635
    %668 = vst [vmem:[#allocation6 + $0x68] sm:$0xff] %v636
    %669 = vst [vmem:[#allocation6 + $0x70] sm:$0xff] %v637
    %670 = vst [vmem:[#allocation6 + $0x78] sm:$0xff] %v638
    %671 = vst [vmem:[#allocation6 + $0x80] sm:$0xff] %v639
    %672 = vst [vmem:[#allocation6 + $0x88] sm:$0xff] %v640
    %673 = vst [vmem:[#allocation6 + $0x90] sm:$0xff] %v641
    %674 = vst [vmem:[#allocation6 + $0x98] sm:$0xff] %v642
    %675 = vst [vmem:[#allocation6 + $0xa0] sm:$0xff] %v643
    %676 = vst [vmem:[#allocation6 + $0xa8] sm:$0xff] %v644
    %677 = vst [vmem:[#allocation6 + $0xb0] sm:$0xff] %v645
    %678 = vst [vmem:[#allocation6 + $0xb8] sm:$0xff] %v646
    %679 = vst [vmem:[#allocation6 + $0xc0] sm:$0xff] %v647
    %680 = vst [vmem:[#allocation6 + $0xc8] sm:$0xff] %v648
    %681 = vst [vmem:[#allocation6 + $0xd0] sm:$0xff] %v649
    %682 = vst [vmem:[#allocation6 + $0xd8] sm:$0xff] %v650
    %683 = vst [vmem:[#allocation6 + $0xe0] sm:$0xff] %v651
    %684 = vst [vmem:[#allocation6 + $0xe8] sm:$0xff] %v652
    %685 = vst [vmem:[#allocation6 + $0xf0] sm:$0xff] %v653
    %686 = vst [vmem:[#allocation6 + $0xf8] sm:$0xff] %v654
    %v687 = vld [vmem:[#allocation11] sm:$0xf]
    %v688 = vld [vmem:[#allocation11 + $0x4] sm:$0xf]
    %v689 = vld [vmem:[#allocation11 + $0x8] sm:$0xf]
    %v690 = vld [vmem:[#allocation11 + $0xc] sm:$0xf]
    %v691 = vld [vmem:[#allocation11 + $0x10] sm:$0xf]
    %v692 = vld [vmem:[#allocation11 + $0x14] sm:$0xf]
    %v693 = vld [vmem:[#allocation11 + $0x18] sm:$0xf]
    %v694 = vld [vmem:[#allocation11 + $0x1c] sm:$0xf]
    %v695 = vld [vmem:[#allocation11 + $0x20] sm:$0xf]
    %v696 = vld [vmem:[#allocation11 + $0x24] sm:$0xf]
    %v697 = vld [vmem:[#allocation11 + $0x28] sm:$0xf]
    %v698 = vld [vmem:[#allocation11 + $0x2c] sm:$0xf]
    %v699 = vld [vmem:[#allocation11 + $0x30] sm:$0xf]
    %v700 = vld [vmem:[#allocation11 + $0x34] sm:$0xf]
    %v701 = vld [vmem:[#allocation11 + $0x38] sm:$0xf]
    %v702 = vld [vmem:[#allocation11 + $0x3c] sm:$0xf]
    %v703 = vld [vmem:[#allocation14] sm:$0xff]
    %v704 = vld [vmem:[#allocation14 + $0x8] sm:$0xff]
    %v705 = vld [vmem:[#allocation14 + $0x10] sm:$0xff]
    %v706 = vld [vmem:[#allocation14 + $0x18] sm:$0xff]
    %v707 = vld [vmem:[#allocation14 + $0x20] sm:$0xff]
    %v708 = vld [vmem:[#allocation14 + $0x28] sm:$0xff]
    %v709 = vld [vmem:[#allocation14 + $0x30] sm:$0xff]
    %v710 = vld [vmem:[#allocation14 + $0x38] sm:$0xff]
    %v711 = vld [vmem:[#allocation14 + $0x40] sm:$0xff]
    %v712 = vld [vmem:[#allocation14 + $0x48] sm:$0xff]
    %v713 = vld [vmem:[#allocation14 + $0x50] sm:$0xff]
    %v714 = vld [vmem:[#allocation14 + $0x58] sm:$0xff]
    %v715 = vld [vmem:[#allocation14 + $0x60] sm:$0xff]
    %v716 = vld [vmem:[#allocation14 + $0x68] sm:$0xff]
    %v717 = vld [vmem:[#allocation14 + $0x70] sm:$0xff]
    %v718 = vld [vmem:[#allocation14 + $0x78] sm:$0xff]
    %v719 = vld [vmem:[#allocation14 + $0x80] sm:$0xff]
    %v720 = vld [vmem:[#allocation14 + $0x88] sm:$0xff]
    %v721 = vld [vmem:[#allocation14 + $0x90] sm:$0xff]
    %v722 = vld [vmem:[#allocation14 + $0x98] sm:$0xff]
    %v723 = vld [vmem:[#allocation14 + $0xa0] sm:$0xff]
    %v724 = vld [vmem:[#allocation14 + $0xa8] sm:$0xff]
    %v725 = vld [vmem:[#allocation14 + $0xb0] sm:$0xff]
    %v726 = vld [vmem:[#allocation14 + $0xb8] sm:$0xff]
    %v727 = vld [vmem:[#allocation14 + $0xc0] sm:$0xff]
    %v728 = vld [vmem:[#allocation14 + $0xc8] sm:$0xff]
    %v729 = vld [vmem:[#allocation14 + $0xd0] sm:$0xff]
    %v730 = vld [vmem:[#allocation14 + $0xd8] sm:$0xff]
    %v731 = vld [vmem:[#allocation14 + $0xe0] sm:$0xff]
    %v732 = vld [vmem:[#allocation14 + $0xe8] sm:$0xff]
    %v733 = vld [vmem:[#allocation14 + $0xf0] sm:$0xff]
    %v734 = vld [vmem:[#allocation14 + $0xf8] sm:$0xff]
    %v735 = vld [vmem:[#allocation19] sm:$0xf]
    %v737 = vperm.slane %v735, 0
    %v738 = vperm.slane %v735, 1
    %v739 = vperm.slane %v735, 2
    %v740 = vperm.slane %v735, 3
    %v761 = vunpack.c.l.b16 %v687
    %v762 = vunpack.c.l.b16 %v688
    %v763 = vunpack.c.l.b16 %v689
    %v764 = vunpack.c.l.b16 %v690
    %v765 = vunpack.c.l.b16 %v691
    %v766 = vunpack.c.l.b16 %v692
    %v767 = vunpack.c.l.b16 %v693
    %v768 = vunpack.c.l.b16 %v694
    %v769 = vunpack.c.l.b16 %v695
    %v770 = vunpack.c.l.b16 %v696
    %v771 = vunpack.c.l.b16 %v697
    %v772 = vunpack.c.l.b16 %v698
    %v773 = vunpack.c.l.b16 %v699
    %v774 = vunpack.c.l.b16 %v700
    %v775 = vunpack.c.l.b16 %v701
    %v776 = vunpack.c.l.b16 %v702
    %v777 = vpack.c.b16 %v762, %v761
    %v778 = vpack.c.b16 %v764, %v763
    %v779 = vpack.c.b16 %v766, %v765
    %v780 = vpack.c.b16 %v768, %v767
    %v781 = vpack.c.b16 %v770, %v769
    %v782 = vpack.c.b16 %v772, %v771
    %v783 = vpack.c.b16 %v774, %v773
    %v784 = vpack.c.b16 %v776, %v775
    %v825 = vunpack.c.l.b16 %v703
    %v826 = vunpack.c.h.b16 %v703
    %v827 = vunpack.c.l.b16 %v704
    %v828 = vunpack.c.h.b16 %v704
    %v829 = vunpack.c.l.b16 %v705
    %v830 = vunpack.c.h.b16 %v705
    %v831 = vunpack.c.l.b16 %v706
    %v832 = vunpack.c.h.b16 %v706
    %v833 = vunpack.c.l.b16 %v707
    %v834 = vunpack.c.h.b16 %v707
    %v835 = vunpack.c.l.b16 %v708
    %v836 = vunpack.c.h.b16 %v708
    %v837 = vunpack.c.l.b16 %v709
    %v838 = vunpack.c.h.b16 %v709
    %v839 = vunpack.c.l.b16 %v710
    %v840 = vunpack.c.h.b16 %v710
    %v841 = vunpack.c.l.b16 %v711
    %v842 = vunpack.c.h.b16 %v711
    %v843 = vunpack.c.l.b16 %v712
    %v844 = vunpack.c.h.b16 %v712
    %v845 = vunpack.c.l.b16 %v713
    %v846 = vunpack.c.h.b16 %v713
    %v847 = vunpack.c.l.b16 %v714
    %v848 = vunpack.c.h.b16 %v714
    %v849 = vunpack.c.l.b16 %v715
    %v850 = vunpack.c.h.b16 %v715
    %v851 = vunpack.c.l.b16 %v716
    %v852 = vunpack.c.h.b16 %v716
    %v853 = vunpack.c.l.b16 %v717
    %v854 = vunpack.c.h.b16 %v717
    %v855 = vunpack.c.l.b16 %v718
    %v856 = vunpack.c.h.b16 %v718
    %v857 = vunpack.c.l.b16 %v719
    %v858 = vunpack.c.h.b16 %v719
    %v859 = vunpack.c.l.b16 %v720
    %v860 = vunpack.c.h.b16 %v720
    %v861 = vunpack.c.l.b16 %v721
    %v862 = vunpack.c.h.b16 %v721
    %v863 = vunpack.c.l.b16 %v722
    %v864 = vunpack.c.h.b16 %v722
    %v865 = vunpack.c.l.b16 %v723
    %v866 = vunpack.c.h.b16 %v723
    %v867 = vunpack.c.l.b16 %v724
    %v868 = vunpack.c.h.b16 %v724
    %v869 = vunpack.c.l.b16 %v725
    %v870 = vunpack.c.h.b16 %v725
    %v871 = vunpack.c.l.b16 %v726
    %v872 = vunpack.c.h.b16 %v726
    %v873 = vunpack.c.l.b16 %v727
    %v874 = vunpack.c.h.b16 %v727
    %v875 = vunpack.c.l.b16 %v728
    %v876 = vunpack.c.h.b16 %v728
    %v877 = vunpack.c.l.b16 %v729
    %v878 = vunpack.c.h.b16 %v729
    %v879 = vunpack.c.l.b16 %v730
    %v880 = vunpack.c.h.b16 %v730
    %v881 = vunpack.c.l.b16 %v731
    %v882 = vunpack.c.h.b16 %v731
    %v883 = vunpack.c.l.b16 %v732
    %v884 = vunpack.c.h.b16 %v732
    %v885 = vunpack.c.l.b16 %v733
    %v886 = vunpack.c.h.b16 %v733
    %v887 = vunpack.c.l.b16 %v734
    %v888 = vunpack.c.h.b16 %v734
    %v889 = vpack.c.b16 %v829, %v825
    %v890 = vpack.c.b16 %v830, %v826
    %v891 = vpack.c.b16 %v831, %v827
    %v892 = vpack.c.b16 %v832, %v828
    %v893 = vpack.c.b16 %v837, %v833
    %v894 = vpack.c.b16 %v838, %v834
    %v895 = vpack.c.b16 %v839, %v835
    %v896 = vpack.c.b16 %v840, %v836
    %v897 = vpack.c.b16 %v845, %v841
    %v898 = vpack.c.b16 %v846, %v842
    %v899 = vpack.c.b16 %v847, %v843
    %v900 = vpack.c.b16 %v848, %v844
    %v901 = vpack.c.b16 %v853, %v849
    %v902 = vpack.c.b16 %v854, %v850
    %v903 = vpack.c.b16 %v855, %v851
    %v904 = vpack.c.b16 %v856, %v852
    %v905 = vpack.c.b16 %v861, %v857
    %v906 = vpack.c.b16 %v862, %v858
    %v907 = vpack.c.b16 %v863, %v859
    %v908 = vpack.c.b16 %v864, %v860
    %v909 = vpack.c.b16 %v869, %v865
    %v910 = vpack.c.b16 %v870, %v866
    %v911 = vpack.c.b16 %v871, %v867
    %v912 = vpack.c.b16 %v872, %v868
    %v913 = vpack.c.b16 %v877, %v873
    %v914 = vpack.c.b16 %v878, %v874
    %v915 = vpack.c.b16 %v879, %v875
    %v916 = vpack.c.b16 %v880, %v876
    %v917 = vpack.c.b16 %v885, %v881
    %v918 = vpack.c.b16 %v886, %v882
    %v919 = vpack.c.b16 %v887, %v883
    %v920 = vpack.c.b16 %v888, %v884
    %953 = vmatpush.bf16.msra.mxu0 %v917
    %954 = vmatpush.bf16.msra.mxu0 %v913
    %955 = vmatpush.bf16.msra.mxu0 %v909
    %956 = vmatpush.bf16.msra.mxu0 %v905
    %957 = vmatpush.bf16.msra.mxu0 %v901
    %958 = vmatpush.bf16.msra.mxu0 %v897
    %959 = vmatpush.bf16.msra.mxu0 %v893
    %960 = vmatpush.bf16.msra.mxu0 %v889
    %961 = vmatmul.bf16.gmra.mxu0 %v777
    %v962 = vpop.f32.mrf.mxu0
    %v963 = vadd.f32 %v737, %v962
    %v964 = vpop.f32.mrf.mxu0
    %v965 = vadd.f32 %v737, %v964
    %966 = vmatmul.bf16.gmra.mxu0 %v778
    %v967 = vpop.f32.mrf.mxu0
    %v968 = vadd.f32 %v737, %v967
    %v969 = vpop.f32.mrf.mxu0
    %v970 = vadd.f32 %v737, %v969
    %971 = vmatmul.bf16.gmra.mxu0 %v779
    %v972 = vpop.f32.mrf.mxu0
    %v973 = vadd.f32 %v737, %v972
    %v974 = vpop.f32.mrf.mxu0
    %v975 = vadd.f32 %v737, %v974
    %976 = vmatmul.bf16.gmra.mxu0 %v780
    %v977 = vpop.f32.mrf.mxu0
    %v978 = vadd.f32 %v737, %v977
    %v979 = vpop.f32.mrf.mxu0
    %v980 = vadd.f32 %v737, %v979
    %981 = vmatmul.bf16.gmra.mxu0 %v781
    %v982 = vpop.f32.mrf.mxu0
    %v983 = vadd.f32 %v737, %v982
    %v984 = vpop.f32.mrf.mxu0
    %v985 = vadd.f32 %v737, %v984
    %986 = vmatmul.bf16.gmra.mxu0 %v782
    %v987 = vpop.f32.mrf.mxu0
    %v988 = vadd.f32 %v737, %v987
    %v989 = vpop.f32.mrf.mxu0
    %v990 = vadd.f32 %v737, %v989
    %991 = vmatmul.bf16.gmra.mxu0 %v783
    %v992 = vpop.f32.mrf.mxu0
    %v993 = vadd.f32 %v737, %v992
    %v994 = vpop.f32.mrf.mxu0
    %v995 = vadd.f32 %v737, %v994
    %996 = vmatmul.bf16.gmra.mxu0 %v784
    %v997 = vpop.f32.mrf.mxu0
    %v998 = vadd.f32 %v737, %v997
    %v999 = vpop.f32.mrf.mxu0
    %v1000 = vadd.f32 %v737, %v999
    %1001 = vdwg.mxu0
    %1002 = vmatpush.bf16.msra.mxu0 %v918
    %1003 = vmatpush.bf16.msra.mxu0 %v914
    %1004 = vmatpush.bf16.msra.mxu0 %v910
    %1005 = vmatpush.bf16.msra.mxu0 %v906
    %1006 = vmatpush.bf16.msra.mxu0 %v902
    %1007 = vmatpush.bf16.msra.mxu0 %v898
    %1008 = vmatpush.bf16.msra.mxu0 %v894
    %1009 = vmatpush.bf16.msra.mxu0 %v890
    %1010 = vmatmul.bf16.gmra.mxu0 %v777
    %v1011 = vpop.f32.mrf.mxu0
    %v1012 = vadd.f32 %v738, %v1011
    %v1013 = vpop.f32.mrf.mxu0
    %v1014 = vadd.f32 %v738, %v1013
    %1015 = vmatmul.bf16.gmra.mxu0 %v778
    %v1016 = vpop.f32.mrf.mxu0
    %v1017 = vadd.f32 %v738, %v1016
    %v1018 = vpop.f32.mrf.mxu0
    %v1019 = vadd.f32 %v738, %v1018
    %1020 = vmatmul.bf16.gmra.mxu0 %v779
    %v1021 = vpop.f32.mrf.mxu0
    %v1022 = vadd.f32 %v738, %v1021
    %v1023 = vpop.f32.mrf.mxu0
    %v1024 = vadd.f32 %v738, %v1023
    %1025 = vmatmul.bf16.gmra.mxu0 %v780
    %v1026 = vpop.f32.mrf.mxu0
    %v1027 = vadd.f32 %v738, %v1026
    %v1028 = vpop.f32.mrf.mxu0
    %v1029 = vadd.f32 %v738, %v1028
    %1030 = vmatmul.bf16.gmra.mxu0 %v781
    %v1031 = vpop.f32.mrf.mxu0
    %v1032 = vadd.f32 %v738, %v1031
    %v1033 = vpop.f32.mrf.mxu0
    %v1034 = vadd.f32 %v738, %v1033
    %1035 = vmatmul.bf16.gmra.mxu0 %v782
    %v1036 = vpop.f32.mrf.mxu0
    %v1037 = vadd.f32 %v738, %v1036
    %v1038 = vpop.f32.mrf.mxu0
    %v1039 = vadd.f32 %v738, %v1038
    %1040 = vmatmul.bf16.gmra.mxu0 %v783
    %v1041 = vpop.f32.mrf.mxu0
    %v1042 = vadd.f32 %v738, %v1041
    %v1043 = vpop.f32.mrf.mxu0
    %v1044 = vadd.f32 %v738, %v1043
    %1045 = vmatmul.bf16.gmra.mxu0 %v784
    %v1046 = vpop.f32.mrf.mxu0
    %v1047 = vadd.f32 %v738, %v1046
    %v1048 = vpop.f32.mrf.mxu0
    %v1049 = vadd.f32 %v738, %v1048
    %1050 = vdwg.mxu0
    %1051 = vmatpush.bf16.msra.mxu0 %v919
    %1052 = vmatpush.bf16.msra.mxu0 %v915
    %1053 = vmatpush.bf16.msra.mxu0 %v911
    %1054 = vmatpush.bf16.msra.mxu0 %v907
    %1055 = vmatpush.bf16.msra.mxu0 %v903
    %1056 = vmatpush.bf16.msra.mxu0 %v899
    %1057 = vmatpush.bf16.msra.mxu0 %v895
    %1058 = vmatpush.bf16.msra.mxu0 %v891
    %1059 = vmatmul.bf16.gmra.mxu0 %v777
    %v1060 = vpop.f32.mrf.mxu0
    %v1061 = vadd.f32 %v739, %v1060
    %v1062 = vpop.f32.mrf.mxu0
    %v1063 = vadd.f32 %v739, %v1062
    %1064 = vmatmul.bf16.gmra.mxu0 %v778
    %v1065 = vpop.f32.mrf.mxu0
    %v1066 = vadd.f32 %v739, %v1065
    %v1067 = vpop.f32.mrf.mxu0
    %v1068 = vadd.f32 %v739, %v1067
    %1069 = vmatmul.bf16.gmra.mxu0 %v779
    %v1070 = vpop.f32.mrf.mxu0
    %v1071 = vadd.f32 %v739, %v1070
    %v1072 = vpop.f32.mrf.mxu0
    %v1073 = vadd.f32 %v739, %v1072
    %1074 = vmatmul.bf16.gmra.mxu0 %v780
    %v1075 = vpop.f32.mrf.mxu0
    %v1076 = vadd.f32 %v739, %v1075
    %v1077 = vpop.f32.mrf.mxu0
    %v1078 = vadd.f32 %v739, %v1077
    %1079 = vmatmul.bf16.gmra.mxu0 %v781
    %v1080 = vpop.f32.mrf.mxu0
    %v1081 = vadd.f32 %v739, %v1080
    %v1082 = vpop.f32.mrf.mxu0
    %v1083 = vadd.f32 %v739, %v1082
    %1084 = vmatmul.bf16.gmra.mxu0 %v782
    %v1085 = vpop.f32.mrf.mxu0
    %v1086 = vadd.f32 %v739, %v1085
    %v1087 = vpop.f32.mrf.mxu0
    %v1088 = vadd.f32 %v739, %v1087
    %1089 = vmatmul.bf16.gmra.mxu0 %v783
    %v1090 = vpop.f32.mrf.mxu0
    %v1091 = vadd.f32 %v739, %v1090
    %v1092 = vpop.f32.mrf.mxu0
    %v1093 = vadd.f32 %v739, %v1092
    %1094 = vmatmul.bf16.gmra.mxu0 %v784
    %v1095 = vpop.f32.mrf.mxu0
    %v1096 = vadd.f32 %v739, %v1095
    %v1097 = vpop.f32.mrf.mxu0
    %v1098 = vadd.f32 %v739, %v1097
    %1099 = vdwg.mxu0
    %1100 = vmatpush.bf16.msra.mxu0 %v920
    %1101 = vmatpush.bf16.msra.mxu0 %v916
    %1102 = vmatpush.bf16.msra.mxu0 %v912
    %1103 = vmatpush.bf16.msra.mxu0 %v908
    %1104 = vmatpush.bf16.msra.mxu0 %v904
    %1105 = vmatpush.bf16.msra.mxu0 %v900
    %1106 = vmatpush.bf16.msra.mxu0 %v896
    %1107 = vmatpush.bf16.msra.mxu0 %v892
    %1108 = vmatmul.bf16.gmra.mxu0 %v777
    %v1109 = vpop.f32.mrf.mxu0
    %v1110 = vadd.f32 %v740, %v1109
    %v1111 = vpop.f32.mrf.mxu0
    %v1112 = vadd.f32 %v740, %v1111
    %1113 = vmatmul.bf16.gmra.mxu0 %v778
    %v1114 = vpop.f32.mrf.mxu0
    %v1115 = vadd.f32 %v740, %v1114
    %v1116 = vpop.f32.mrf.mxu0
    %v1117 = vadd.f32 %v740, %v1116
    %1118 = vmatmul.bf16.gmra.mxu0 %v779
    %v1119 = vpop.f32.mrf.mxu0
    %v1120 = vadd.f32 %v740, %v1119
    %v1121 = vpop.f32.mrf.mxu0
    %v1122 = vadd.f32 %v740, %v1121
    %1123 = vmatmul.bf16.gmra.mxu0 %v780
    %v1124 = vpop.f32.mrf.mxu0
    %v1125 = vadd.f32 %v740, %v1124
    %v1126 = vpop.f32.mrf.mxu0
    %v1127 = vadd.f32 %v740, %v1126
    %1128 = vmatmul.bf16.gmra.mxu0 %v781
    %v1129 = vpop.f32.mrf.mxu0
    %v1130 = vadd.f32 %v740, %v1129
    %v1131 = vpop.f32.mrf.mxu0
    %v1132 = vadd.f32 %v740, %v1131
    %1133 = vmatmul.bf16.gmra.mxu0 %v782
    %v1134 = vpop.f32.mrf.mxu0
    %v1135 = vadd.f32 %v740, %v1134
    %v1136 = vpop.f32.mrf.mxu0
    %v1137 = vadd.f32 %v740, %v1136
    %1138 = vmatmul.bf16.gmra.mxu0 %v783
    %v1139 = vpop.f32.mrf.mxu0
    %v1140 = vadd.f32 %v740, %v1139
    %v1141 = vpop.f32.mrf.mxu0
    %v1142 = vadd.f32 %v740, %v1141
    %1143 = vmatmul.bf16.gmra.mxu0 %v784
    %v1144 = vpop.f32.mrf.mxu0
    %v1145 = vadd.f32 %v740, %v1144
    %v1146 = vpop.f32.mrf.mxu0
    %v1147 = vadd.f32 %v740, %v1146
    %1148 = vdwg.mxu0
    %v1149 = vpack.c.bf16 %v1012, %v963
    %v1150 = vpack.c.bf16 %v1110, %v1061
    %v1151 = vpack.c.bf16 %v1014, %v965
    %v1152 = vpack.c.bf16 %v1112, %v1063
    %v1153 = vpack.c.bf16 %v1017, %v968
    %v1154 = vpack.c.bf16 %v1115, %v1066
    %v1155 = vpack.c.bf16 %v1019, %v970
    %v1156 = vpack.c.bf16 %v1117, %v1068
    %v1157 = vpack.c.bf16 %v1022, %v973
    %v1158 = vpack.c.bf16 %v1120, %v1071
    %v1159 = vpack.c.bf16 %v1024, %v975
    %v1160 = vpack.c.bf16 %v1122, %v1073
    %v1161 = vpack.c.bf16 %v1027, %v978
    %v1162 = vpack.c.bf16 %v1125, %v1076
    %v1163 = vpack.c.bf16 %v1029, %v980
    %v1164 = vpack.c.bf16 %v1127, %v1078
    %v1165 = vpack.c.bf16 %v1032, %v983
    %v1166 = vpack.c.bf16 %v1130, %v1081
    %v1167 = vpack.c.bf16 %v1034, %v985
    %v1168 = vpack.c.bf16 %v1132, %v1083
    %v1169 = vpack.c.bf16 %v1037, %v988
    %v1170 = vpack.c.bf16 %v1135, %v1086
    %v1171 = vpack.c.bf16 %v1039, %v990
    %v1172 = vpack.c.bf16 %v1137, %v1088
    %v1173 = vpack.c.bf16 %v1042, %v993
    %v1174 = vpack.c.bf16 %v1140, %v1091
    %v1175 = vpack.c.bf16 %v1044, %v995
    %v1176 = vpack.c.bf16 %v1142, %v1093
    %v1177 = vpack.c.bf16 %v1047, %v998
    %v1178 = vpack.c.bf16 %v1145, %v1096
    %v1179 = vpack.c.bf16 %v1049, %v1000
    %v1180 = vpack.c.bf16 %v1147, %v1098
    %1181 = vst [vmem:[#allocation7] sm:$0xff] %v1149
    %1182 = vst [vmem:[#allocation7 + $0x8] sm:$0xff] %v1150
    %1183 = vst [vmem:[#allocation7 + $0x10] sm:$0xff] %v1151
    %1184 = vst [vmem:[#allocation7 + $0x18] sm:$0xff] %v1152
    %1185 = vst [vmem:[#allocation7 + $0x20] sm:$0xff] %v1153
    %1186 = vst [vmem:[#allocation7 + $0x28] sm:$0xff] %v1154
    %1187 = vst [vmem:[#allocation7 + $0x30] sm:$0xff] %v1155
    %1188 = vst [vmem:[#allocation7 + $0x38] sm:$0xff] %v1156
    %1189 = vst [vmem:[#allocation7 + $0x40] sm:$0xff] %v1157
    %1190 = vst [vmem:[#allocation7 + $0x48] sm:$0xff] %v1158
    %1191 = vst [vmem:[#allocation7 + $0x50] sm:$0xff] %v1159
    %1192 = vst [vmem:[#allocation7 + $0x58] sm:$0xff] %v1160
    %1193 = vst [vmem:[#allocation7 + $0x60] sm:$0xff] %v1161
    %1194 = vst [vmem:[#allocation7 + $0x68] sm:$0xff] %v1162
    %1195 = vst [vmem:[#allocation7 + $0x70] sm:$0xff] %v1163
    %1196 = vst [vmem:[#allocation7 + $0x78] sm:$0xff] %v1164
    %1197 = vst [vmem:[#allocation7 + $0x80] sm:$0xff] %v1165
    %1198 = vst [vmem:[#allocation7 + $0x88] sm:$0xff] %v1166
    %1199 = vst [vmem:[#allocation7 + $0x90] sm:$0xff] %v1167
    %1200 = vst [vmem:[#allocation7 + $0x98] sm:$0xff] %v1168
    %1201 = vst [vmem:[#allocation7 + $0xa0] sm:$0xff] %v1169
    %1202 = vst [vmem:[#allocation7 + $0xa8] sm:$0xff] %v1170
    %1203 = vst [vmem:[#allocation7 + $0xb0] sm:$0xff] %v1171
    %1204 = vst [vmem:[#allocation7 + $0xb8] sm:$0xff] %v1172
    %1205 = vst [vmem:[#allocation7 + $0xc0] sm:$0xff] %v1173
    %1206 = vst [vmem:[#allocation7 + $0xc8] sm:$0xff] %v1174
    %1207 = vst [vmem:[#allocation7 + $0xd0] sm:$0xff] %v1175
    %1208 = vst [vmem:[#allocation7 + $0xd8] sm:$0xff] %v1176
    %1209 = vst [vmem:[#allocation7 + $0xe0] sm:$0xff] %v1177
    %1210 = vst [vmem:[#allocation7 + $0xe8] sm:$0xff] %v1178
    %1211 = vst [vmem:[#allocation7 + $0xf0] sm:$0xff] %v1179
    %1212 = vst [vmem:[#allocation7 + $0xf8] sm:$0xff] %v1180
    %v1213 = vld [vmem:[#allocation16] sm:$0xff]
    %v1214 = vld [vmem:[#allocation16 + $0x8] sm:$0xff]
    %v1215 = vld [vmem:[#allocation16 + $0x10] sm:$0xff]
    %v1216 = vld [vmem:[#allocation16 + $0x18] sm:$0xff]
    %v1217 = vld [vmem:[#allocation16 + $0x20] sm:$0xff]
    %v1218 = vld [vmem:[#allocation16 + $0x28] sm:$0xff]
    %v1219 = vld [vmem:[#allocation16 + $0x30] sm:$0xff]
    %v1220 = vld [vmem:[#allocation16 + $0x38] sm:$0xff]
    %v1221 = vld [vmem:[#allocation16 + $0x40] sm:$0xff]
    %v1222 = vld [vmem:[#allocation16 + $0x48] sm:$0xff]
    %v1223 = vld [vmem:[#allocation16 + $0x50] sm:$0xff]
    %v1224 = vld [vmem:[#allocation16 + $0x58] sm:$0xff]
    %v1225 = vld [vmem:[#allocation16 + $0x60] sm:$0xff]
    %v1226 = vld [vmem:[#allocation16 + $0x68] sm:$0xff]
    %v1227 = vld [vmem:[#allocation16 + $0x70] sm:$0xff]
    %v1228 = vld [vmem:[#allocation16 + $0x78] sm:$0xff]
    %v1229 = vld [vmem:[#allocation16 + $0x80] sm:$0xff]
    %v1230 = vld [vmem:[#allocation16 + $0x88] sm:$0xff]
    %v1231 = vld [vmem:[#allocation16 + $0x90] sm:$0xff]
    %v1232 = vld [vmem:[#allocation16 + $0x98] sm:$0xff]
    %v1233 = vld [vmem:[#allocation16 + $0xa0] sm:$0xff]
    %v1234 = vld [vmem:[#allocation16 + $0xa8] sm:$0xff]
    %v1235 = vld [vmem:[#allocation16 + $0xb0] sm:$0xff]
    %v1236 = vld [vmem:[#allocation16 + $0xb8] sm:$0xff]
    %v1237 = vld [vmem:[#allocation16 + $0xc0] sm:$0xff]
    %v1238 = vld [vmem:[#allocation16 + $0xc8] sm:$0xff]
    %v1239 = vld [vmem:[#allocation16 + $0xd0] sm:$0xff]
    %v1240 = vld [vmem:[#allocation16 + $0xd8] sm:$0xff]
    %v1241 = vld [vmem:[#allocation16 + $0xe0] sm:$0xff]
    %v1242 = vld [vmem:[#allocation16 + $0xe8] sm:$0xff]
    %v1243 = vld [vmem:[#allocation16 + $0xf0] sm:$0xff]
    %v1244 = vld [vmem:[#allocation16 + $0xf8] sm:$0xff]
    %v1245 = vld [vmem:[#allocation17] sm:$0xff]
    %v1246 = vld [vmem:[#allocation17 + $0x8] sm:$0xff]
    %v1247 = vld [vmem:[#allocation17 + $0x10] sm:$0xff]
    %v1248 = vld [vmem:[#allocation17 + $0x18] sm:$0xff]
    %v1249 = vld [vmem:[#allocation17 + $0x20] sm:$0xff]
    %v1250 = vld [vmem:[#allocation17 + $0x28] sm:$0xff]
    %v1251 = vld [vmem:[#allocation17 + $0x30] sm:$0xff]
    %v1252 = vld [vmem:[#allocation17 + $0x38] sm:$0xff]
    %v1253 = vld [vmem:[#allocation17 + $0x40] sm:$0xff]
    %v1254 = vld [vmem:[#allocation17 + $0x48] sm:$0xff]
    %v1255 = vld [vmem:[#allocation17 + $0x50] sm:$0xff]
    %v1256 = vld [vmem:[#allocation17 + $0x58] sm:$0xff]
    %v1257 = vld [vmem:[#allocation17 + $0x60] sm:$0xff]
    %v1258 = vld [vmem:[#allocation17 + $0x68] sm:$0xff]
    %v1259 = vld [vmem:[#allocation17 + $0x70] sm:$0xff]
    %v1260 = vld [vmem:[#allocation17 + $0x78] sm:$0xff]
    %v1261 = vld [vmem:[#allocation17 + $0x80] sm:$0xff]
    %v1262 = vld [vmem:[#allocation17 + $0x88] sm:$0xff]
    %v1263 = vld [vmem:[#allocation17 + $0x90] sm:$0xff]
    %v1264 = vld [vmem:[#allocation17 + $0x98] sm:$0xff]
    %v1265 = vld [vmem:[#allocation17 + $0xa0] sm:$0xff]
    %v1266 = vld [vmem:[#allocation17 + $0xa8] sm:$0xff]
    %v1267 = vld [vmem:[#allocation17 + $0xb0] sm:$0xff]
    %v1268 = vld [vmem:[#allocation17 + $0xb8] sm:$0xff]
    %v1269 = vld [vmem:[#allocation17 + $0xc0] sm:$0xff]
    %v1270 = vld [vmem:[#allocation17 + $0xc8] sm:$0xff]
    %v1271 = vld [vmem:[#allocation17 + $0xd0] sm:$0xff]
    %v1272 = vld [vmem:[#allocation17 + $0xd8] sm:$0xff]
    %v1273 = vld [vmem:[#allocation17 + $0xe0] sm:$0xff]
    %v1274 = vld [vmem:[#allocation17 + $0xe8] sm:$0xff]
    %v1275 = vld [vmem:[#allocation17 + $0xf0] sm:$0xff]
    %v1276 = vld [vmem:[#allocation17 + $0xf8] sm:$0xff]
    %v1277 = vld [vmem:[#allocation6] sm:$0xff]
    %v1278 = vld [vmem:[#allocation6 + $0x8] sm:$0xff]
    %v1279 = vld [vmem:[#allocation6 + $0x10] sm:$0xff]
    %v1280 = vld [vmem:[#allocation6 + $0x18] sm:$0xff]
    %v1281 = vunpack.c.l.bf16 %v1277
    %v1282 = vunpack.c.h.bf16 %v1277
    %v1283 = vunpack.c.l.bf16 %v1278
    %v1284 = vunpack.c.h.bf16 %v1278
    %v1285 = vunpack.c.l.bf16 %v1279
    %v1286 = vunpack.c.h.bf16 %v1279
    %v1287 = vunpack.c.l.bf16 %v1280
    %v1288 = vunpack.c.h.bf16 %v1280
    %v1289 = vld [vmem:[#allocation2] sm:$0xff]
    %v1290 = vld [vmem:[#allocation2 + $0x8] sm:$0xff]
    %v1291 = vpack.c.bf16 %v1290, %v1289
    %v1324 = vunpack.c.l.b16 %v1213
    %v1325 = vunpack.c.h.b16 %v1213
    %v1326 = vunpack.c.l.b16 %v1214
    %v1327 = vunpack.c.h.b16 %v1214
    %v1328 = vunpack.c.l.b16 %v1215
    %v1329 = vunpack.c.h.b16 %v1215
    %v1330 = vunpack.c.l.b16 %v1216
    %v1331 = vunpack.c.h.b16 %v1216
    %v1332 = vunpack.c.l.b16 %v1217
    %v1333 = vunpack.c.h.b16 %v1217
    %v1334 = vunpack.c.l.b16 %v1218
    %v1335 = vunpack.c.h.b16 %v1218
    %v1336 = vunpack.c.l.b16 %v1219
    %v1337 = vunpack.c.h.b16 %v1219
    %v1338 = vunpack.c.l.b16 %v1220
    %v1339 = vunpack.c.h.b16 %v1220
    %v1340 = vunpack.c.l.b16 %v1221
    %v1341 = vunpack.c.h.b16 %v1221
    %v1342 = vunpack.c.l.b16 %v1222
    %v1343 = vunpack.c.h.b16 %v1222
    %v1344 = vunpack.c.l.b16 %v1223
    %v1345 = vunpack.c.h.b16 %v1223
    %v1346 = vunpack.c.l.b16 %v1224
    %v1347 = vunpack.c.h.b16 %v1224
    %v1348 = vunpack.c.l.b16 %v1225
    %v1349 = vunpack.c.h.b16 %v1225
    %v1350 = vunpack.c.l.b16 %v1226
    %v1351 = vunpack.c.h.b16 %v1226
    %v1352 = vunpack.c.l.b16 %v1227
    %v1353 = vunpack.c.h.b16 %v1227
    %v1354 = vunpack.c.l.b16 %v1228
    %v1355 = vunpack.c.h.b16 %v1228
    %v1356 = vunpack.c.l.b16 %v1229
    %v1357 = vunpack.c.h.b16 %v1229
    %v1358 = vunpack.c.l.b16 %v1230
    %v1359 = vunpack.c.h.b16 %v1230
    %v1360 = vunpack.c.l.b16 %v1231
    %v1361 = vunpack.c.h.b16 %v1231
    %v1362 = vunpack.c.l.b16 %v1232
    %v1363 = vunpack.c.h.b16 %v1232
    %v1364 = vunpack.c.l.b16 %v1233
    %v1365 = vunpack.c.h.b16 %v1233
    %v1366 = vunpack.c.l.b16 %v1234
    %v1367 = vunpack.c.h.b16 %v1234
    %v1368 = vunpack.c.l.b16 %v1235
    %v1369 = vunpack.c.h.b16 %v1235
    %v1370 = vunpack.c.l.b16 %v1236
    %v1371 = vunpack.c.h.b16 %v1236
    %v1372 = vunpack.c.l.b16 %v1237
    %v1373 = vunpack.c.h.b16 %v1237
    %v1374 = vunpack.c.l.b16 %v1238
    %v1375 = vunpack.c.h.b16 %v1238
    %v1376 = vunpack.c.l.b16 %v1239
    %v1377 = vunpack.c.h.b16 %v1239
    %v1378 = vunpack.c.l.b16 %v1240
    %v1379 = vunpack.c.h.b16 %v1240
    %v1380 = vunpack.c.l.b16 %v1241
    %v1381 = vunpack.c.h.b16 %v1241
    %v1382 = vunpack.c.l.b16 %v1242
    %v1383 = vunpack.c.h.b16 %v1242
    %v1384 = vunpack.c.l.b16 %v1243
    %v1385 = vunpack.c.h.b16 %v1243
    %v1386 = vunpack.c.l.b16 %v1244
    %v1387 = vunpack.c.h.b16 %v1244
    %v1388 = vpack.c.b16 %v1328, %v1324
    %v1389 = vpack.c.b16 %v1329, %v1325
    %v1390 = vpack.c.b16 %v1330, %v1326
    %v1391 = vpack.c.b16 %v1331, %v1327
    %v1392 = vpack.c.b16 %v1336, %v1332
    %v1393 = vpack.c.b16 %v1337, %v1333
    %v1394 = vpack.c.b16 %v1338, %v1334
    %v1395 = vpack.c.b16 %v1339, %v1335
    %v1396 = vpack.c.b16 %v1344, %v1340
    %v1397 = vpack.c.b16 %v1345, %v1341
    %v1398 = vpack.c.b16 %v1346, %v1342
    %v1399 = vpack.c.b16 %v1347, %v1343
    %v1400 = vpack.c.b16 %v1352, %v1348
    %v1401 = vpack.c.b16 %v1353, %v1349
    %v1402 = vpack.c.b16 %v1354, %v1350
    %v1403 = vpack.c.b16 %v1355, %v1351
    %v1404 = vpack.c.b16 %v1360, %v1356
    %v1405 = vpack.c.b16 %v1361, %v1357
    %v1406 = vpack.c.b16 %v1362, %v1358
    %v1407 = vpack.c.b16 %v1363, %v1359
    %v1408 = vpack.c.b16 %v1368, %v1364
    %v1409 = vpack.c.b16 %v1369, %v1365
    %v1410 = vpack.c.b16 %v1370, %v1366
    %v1411 = vpack.c.b16 %v1371, %v1367
    %v1412 = vpack.c.b16 %v1376, %v1372
    %v1413 = vpack.c.b16 %v1377, %v1373
    %v1414 = vpack.c.b16 %v1378, %v1374
    %v1415 = vpack.c.b16 %v1379, %v1375
    %v1416 = vpack.c.b16 %v1384, %v1380
    %v1417 = vpack.c.b16 %v1385, %v1381
    %v1418 = vpack.c.b16 %v1386, %v1382
    %v1419 = vpack.c.b16 %v1387, %v1383
    %1452 = vmatpush.bf16.msra.mxu0 %v1416
    %1453 = vmatpush.bf16.msra.mxu0 %v1412
    %1454 = vmatpush.bf16.msra.mxu0 %v1408
    %1455 = vmatpush.bf16.msra.mxu0 %v1404
    %1456 = vmatpush.bf16.msra.mxu0 %v1400
    %1457 = vmatpush.bf16.msra.mxu0 %v1396
    %1458 = vmatpush.bf16.msra.mxu0 %v1392
    %1459 = vmatpush.bf16.msra.mxu0 %v1388
    %1460 = vmatmul.bf16.gmra.mxu0 %v1291
    %v1461 = vpop.f32.mrf.mxu0
    %v1462 = vadd.f32 0.0, %v1461
    %v1463 = vpop.f32.mrf.mxu0
    %v1464 = vadd.f32 0.0, %v1463
    %1465 = vdwg.mxu0
    %1466 = vmatpush.bf16.msra.mxu0 %v1417
    %1467 = vmatpush.bf16.msra.mxu0 %v1413
    %1468 = vmatpush.bf16.msra.mxu0 %v1409
    %1469 = vmatpush.bf16.msra.mxu0 %v1405
    %1470 = vmatpush.bf16.msra.mxu0 %v1401
    %1471 = vmatpush.bf16.msra.mxu0 %v1397
    %1472 = vmatpush.bf16.msra.mxu0 %v1393
    %1473 = vmatpush.bf16.msra.mxu0 %v1389
    %1474 = vmatmul.bf16.gmra.mxu0 %v1291
    %v1475 = vpop.f32.mrf.mxu0
    %v1476 = vadd.f32 0.0, %v1475
    %v1477 = vpop.f32.mrf.mxu0
    %v1478 = vadd.f32 0.0, %v1477
    %1479 = vdwg.mxu0
    %1480 = vmatpush.bf16.msra.mxu0 %v1418
    %1481 = vmatpush.bf16.msra.mxu0 %v1414
    %1482 = vmatpush.bf16.msra.mxu0 %v1410
    %1483 = vmatpush.bf16.msra.mxu0 %v1406
    %1484 = vmatpush.bf16.msra.mxu0 %v1402
    %1485 = vmatpush.bf16.msra.mxu0 %v1398
    %1486 = vmatpush.bf16.msra.mxu0 %v1394
    %1487 = vmatpush.bf16.msra.mxu0 %v1390
    %1488 = vmatmul.bf16.gmra.mxu0 %v1291
    %v1489 = vpop.f32.mrf.mxu0
    %v1490 = vadd.f32 0.0, %v1489
    %v1491 = vpop.f32.mrf.mxu0
    %v1492 = vadd.f32 0.0, %v1491
    %1493 = vdwg.mxu0
    %1494 = vmatpush.bf16.msra.mxu0 %v1419
    %1495 = vmatpush.bf16.msra.mxu0 %v1415
    %1496 = vmatpush.bf16.msra.mxu0 %v1411
    %1497 = vmatpush.bf16.msra.mxu0 %v1407
    %1498 = vmatpush.bf16.msra.mxu0 %v1403
    %1499 = vmatpush.bf16.msra.mxu0 %v1399
    %1500 = vmatpush.bf16.msra.mxu0 %v1395
    %1501 = vmatpush.bf16.msra.mxu0 %v1391
    %1502 = vmatmul.bf16.gmra.mxu0 %v1291
    %v1503 = vpop.f32.mrf.mxu0
    %v1504 = vadd.f32 0.0, %v1503
    %v1505 = vpop.f32.mrf.mxu0
    %v1506 = vadd.f32 0.0, %v1505
    %1507 = vdwg.mxu0
    %v1508 = vadd.f32 %v1281, %v1462
    %v1509 = vadd.f32 %v1282, %v1476
    %v1510 = vadd.f32 %v1283, %v1490
    %v1511 = vadd.f32 %v1284, %v1504
    %v1512 = vadd.f32 %v1285, %v1464
    %v1513 = vadd.f32 %v1286, %v1478
    %v1514 = vadd.f32 %v1287, %v1492
    %v1515 = vadd.f32 %v1288, %v1506
    %s1516 = scalar_lea.vmem [#allocation7], 224
    %v1517 = vld [vmem:[%s1516] sm:$0xff]
    %v1518 = vld [vmem:[%s1516 + $0x8] sm:$0xff]
    %v1519 = vld [vmem:[%s1516 + $0x10] sm:$0xff]
    %v1520 = vld [vmem:[%s1516 + $0x18] sm:$0xff]
    %v1521 = vunpack.c.l.bf16 %v1517
    %v1522 = vunpack.c.h.bf16 %v1517
    %v1523 = vunpack.c.l.bf16 %v1518
    %v1524 = vunpack.c.h.bf16 %v1518
    %v1525 = vunpack.c.l.bf16 %v1519
    %v1526 = vunpack.c.h.bf16 %v1519
    %v1527 = vunpack.c.l.bf16 %v1520
    %v1528 = vunpack.c.h.bf16 %v1520
    %v1529 = vld [vmem:[#allocation4] sm:$0xff]
    %v1530 = vld [vmem:[#allocation4 + $0x8] sm:$0xff]
    %v1531 = vpack.c.bf16 %v1530, %v1529
    %v1564 = vunpack.c.l.b16 %v1245
    %v1565 = vunpack.c.h.b16 %v1245
    %v1566 = vunpack.c.l.b16 %v1246
    %v1567 = vunpack.c.h.b16 %v1246
    %v1568 = vunpack.c.l.b16 %v1247
    %v1569 = vunpack.c.h.b16 %v1247
    %v1570 = vunpack.c.l.b16 %v1248
    %v1571 = vunpack.c.h.b16 %v1248
    %v1572 = vunpack.c.l.b16 %v1249
    %v1573 = vunpack.c.h.b16 %v1249
    %v1574 = vunpack.c.l.b16 %v1250
    %v1575 = vunpack.c.h.b16 %v1250
    %v1576 = vunpack.c.l.b16 %v1251
    %v1577 = vunpack.c.h.b16 %v1251
    %v1578 = vunpack.c.l.b16 %v1252
    %v1579 = vunpack.c.h.b16 %v1252
    %v1580 = vunpack.c.l.b16 %v1253
    %v1581 = vunpack.c.h.b16 %v1253
    %v1582 = vunpack.c.l.b16 %v1254
    %v1583 = vunpack.c.h.b16 %v1254
    %v1584 = vunpack.c.l.b16 %v1255
    %v1585 = vunpack.c.h.b16 %v1255
    %v1586 = vunpack.c.l.b16 %v1256
    %v1587 = vunpack.c.h.b16 %v1256
    %v1588 = vunpack.c.l.b16 %v1257
    %v1589 = vunpack.c.h.b16 %v1257
    %v1590 = vunpack.c.l.b16 %v1258
    %v1591 = vunpack.c.h.b16 %v1258
    %v1592 = vunpack.c.l.b16 %v1259
    %v1593 = vunpack.c.h.b16 %v1259
    %v1594 = vunpack.c.l.b16 %v1260
    %v1595 = vunpack.c.h.b16 %v1260
    %v1596 = vunpack.c.l.b16 %v1261
    %v1597 = vunpack.c.h.b16 %v1261
    %v1598 = vunpack.c.l.b16 %v1262
    %v1599 = vunpack.c.h.b16 %v1262
    %v1600 = vunpack.c.l.b16 %v1263
    %v1601 = vunpack.c.h.b16 %v1263
    %v1602 = vunpack.c.l.b16 %v1264
    %v1603 = vunpack.c.h.b16 %v1264
    %v1604 = vunpack.c.l.b16 %v1265
    %v1605 = vunpack.c.h.b16 %v1265
    %v1606 = vunpack.c.l.b16 %v1266
    %v1607 = vunpack.c.h.b16 %v1266
    %v1608 = vunpack.c.l.b16 %v1267
    %v1609 = vunpack.c.h.b16 %v1267
    %v1610 = vunpack.c.l.b16 %v1268
    %v1611 = vunpack.c.h.b16 %v1268
    %v1612 = vunpack.c.l.b16 %v1269
    %v1613 = vunpack.c.h.b16 %v1269
    %v1614 = vunpack.c.l.b16 %v1270
    %v1615 = vunpack.c.h.b16 %v1270
    %v1616 = vunpack.c.l.b16 %v1271
    %v1617 = vunpack.c.h.b16 %v1271
    %v1618 = vunpack.c.l.b16 %v1272
    %v1619 = vunpack.c.h.b16 %v1272
    %v1620 = vunpack.c.l.b16 %v1273
    %v1621 = vunpack.c.h.b16 %v1273
    %v1622 = vunpack.c.l.b16 %v1274
    %v1623 = vunpack.c.h.b16 %v1274
    %v1624 = vunpack.c.l.b16 %v1275
    %v1625 = vunpack.c.h.b16 %v1275
    %v1626 = vunpack.c.l.b16 %v1276
    %v1627 = vunpack.c.h.b16 %v1276
    %v1628 = vpack.c.b16 %v1568, %v1564
    %v1629 = vpack.c.b16 %v1569, %v1565
    %v1630 = vpack.c.b16 %v1570, %v1566
    %v1631 = vpack.c.b16 %v1571, %v1567
    %v1632 = vpack.c.b16 %v1576, %v1572
    %v1633 = vpack.c.b16 %v1577, %v1573
    %v1634 = vpack.c.b16 %v1578, %v1574
    %v1635 = vpack.c.b16 %v1579, %v1575
    %v1636 = vpack.c.b16 %v1584, %v1580
    %v1637 = vpack.c.b16 %v1585, %v1581
    %v1638 = vpack.c.b16 %v1586, %v1582
    %v1639 = vpack.c.b16 %v1587, %v1583
    %v1640 = vpack.c.b16 %v1592, %v1588
    %v1641 = vpack.c.b16 %v1593, %v1589
    %v1642 = vpack.c.b16 %v1594, %v1590
    %v1643 = vpack.c.b16 %v1595, %v1591
    %v1644 = vpack.c.b16 %v1600, %v1596
    %v1645 = vpack.c.b16 %v1601, %v1597
    %v1646 = vpack.c.b16 %v1602, %v1598
    %v1647 = vpack.c.b16 %v1603, %v1599
    %v1648 = vpack.c.b16 %v1608, %v1604
    %v1649 = vpack.c.b16 %v1609, %v1605
    %v1650 = vpack.c.b16 %v1610, %v1606
    %v1651 = vpack.c.b16 %v1611, %v1607
    %v1652 = vpack.c.b16 %v1616, %v1612
    %v1653 = vpack.c.b16 %v1617, %v1613
    %v1654 = vpack.c.b16 %v1618, %v1614
    %v1655 = vpack.c.b16 %v1619, %v1615
    %v1656 = vpack.c.b16 %v1624, %v1620
    %v1657 = vpack.c.b16 %v1625, %v1621
    %v1658 = vpack.c.b16 %v1626, %v1622
    %v1659 = vpack.c.b16 %v1627, %v1623
    %1692 = vmatpush.bf16.msra.mxu0 %v1656
    %1693 = vmatpush.bf16.msra.mxu0 %v1652
    %1694 = vmatpush.bf16.msra.mxu0 %v1648
    %1695 = vmatpush.bf16.msra.mxu0 %v1644
    %1696 = vmatpush.bf16.msra.mxu0 %v1640
    %1697 = vmatpush.bf16.msra.mxu0 %v1636
    %1698 = vmatpush.bf16.msra.mxu0 %v1632
    %1699 = vmatpush.bf16.msra.mxu0 %v1628
    %1700 = vmatmul.bf16.gmra.mxu0 %v1531
    %v1701 = vpop.f32.mrf.mxu0
    %v1702 = vadd.f32 0.0, %v1701
    %v1703 = vpop.f32.mrf.mxu0
    %v1704 = vadd.f32 0.0, %v1703
    %1705 = vdwg.mxu0
    %1706 = vmatpush.bf16.msra.mxu0 %v1657
    %1707 = vmatpush.bf16.msra.mxu0 %v1653
    %1708 = vmatpush.bf16.msra.mxu0 %v1649
    %1709 = vmatpush.bf16.msra.mxu0 %v1645
    %1710 = vmatpush.bf16.msra.mxu0 %v1641
    %1711 = vmatpush.bf16.msra.mxu0 %v1637
    %1712 = vmatpush.bf16.msra.mxu0 %v1633
    %1713 = vmatpush.bf16.msra.mxu0 %v1629
    %1714 = vmatmul.bf16.gmra.mxu0 %v1531
    %v1715 = vpop.f32.mrf.mxu0
    %v1716 = vadd.f32 0.0, %v1715
    %v1717 = vpop.f32.mrf.mxu0
    %v1718 = vadd.f32 0.0, %v1717
    %1719 = vdwg.mxu0
    %1720 = vmatpush.bf16.msra.mxu0 %v1658
    %1721 = vmatpush.bf16.msra.mxu0 %v1654
    %1722 = vmatpush.bf16.msra.mxu0 %v1650
    %1723 = vmatpush.bf16.msra.mxu0 %v1646
    %1724 = vmatpush.bf16.msra.mxu0 %v1642
    %1725 = vmatpush.bf16.msra.mxu0 %v1638
    %1726 = vmatpush.bf16.msra.mxu0 %v1634
    %1727 = vmatpush.bf16.msra.mxu0 %v1630
    %1728 = vmatmul.bf16.gmra.mxu0 %v1531
    %v1729 = vpop.f32.mrf.mxu0
    %v1730 = vadd.f32 0.0, %v1729
    %v1731 = vpop.f32.mrf.mxu0
    %v1732 = vadd.f32 0.0, %v1731
    %1733 = vdwg.mxu0
    %1734 = vmatpush.bf16.msra.mxu0 %v1659
    %1735 = vmatpush.bf16.msra.mxu0 %v1655
    %1736 = vmatpush.bf16.msra.mxu0 %v1651
    %1737 = vmatpush.bf16.msra.mxu0 %v1647
    %1738 = vmatpush.bf16.msra.mxu0 %v1643
    %1739 = vmatpush.bf16.msra.mxu0 %v1639
    %1740 = vmatpush.bf16.msra.mxu0 %v1635
    %1741 = vmatpush.bf16.msra.mxu0 %v1631
    %1742 = vmatmul.bf16.gmra.mxu0 %v1531
    %v1743 = vpop.f32.mrf.mxu0
    %v1744 = vadd.f32 0.0, %v1743
    %v1745 = vpop.f32.mrf.mxu0
    %v1746 = vadd.f32 0.0, %v1745
    %1747 = vdwg.mxu0
    %v1748 = vadd.f32 %v1521, %v1702
    %v1749 = vadd.f32 %v1522, %v1716
    %v1750 = vadd.f32 %v1523, %v1730
    %v1751 = vadd.f32 %v1524, %v1744
    %v1752 = vadd.f32 %v1525, %v1704
    %v1753 = vadd.f32 %v1526, %v1718
    %v1754 = vadd.f32 %v1527, %v1732
    %v1755 = vadd.f32 %v1528, %v1746
    %v1756 = vld [vmem:[#allocation3] sm:$0xff]
    %v1757 = vld [vmem:[#allocation3 + $0x8] sm:$0xff]
    %v1758 = vmul.f32 %v1508, 0.5
    %v1759 = vmul.f32 %v1512, 0.5
    %v1760 = vtanh.pop %v1758
    %v1761 = vtanh.pop %v1759
    %v1762 = vmul.f32 %v1760, 0.5
    %v1763 = vmul.f32 %v1761, 0.5
    %v1764 = vadd.f32 %v1762, 0.5
    %v1765 = vadd.f32 %v1763, 0.5
    %v1766 = vmul.f32 %v1509, 0.5
    %v1767 = vmul.f32 %v1513, 0.5
    %v1768 = vtanh.pop %v1766
    %v1769 = vtanh.pop %v1767
    %v1770 = vmul.f32 %v1768, 0.5
    %v1771 = vmul.f32 %v1769, 0.5
    %v1772 = vadd.f32 %v1770, 0.5
    %v1773 = vadd.f32 %v1771, 0.5
    %v1774 = vtanh.pop %v1510
    %v1775 = vtanh.pop %v1514
    %v1776 = vmul.f32 %v1511, 0.5
    %v1777 = vmul.f32 %v1515, 0.5
    %v1778 = vtanh.pop %v1776
    %v1779 = vtanh.pop %v1777
    %v1780 = vmul.f32 %v1778, 0.5
    %v1781 = vmul.f32 %v1779, 0.5
    %v1782 = vadd.f32 %v1780, 0.5
    %v1783 = vadd.f32 %v1781, 0.5
    %v1784 = vmul.f32 %v1772, %v1756
    %v1785 = vmul.f32 %v1773, %v1757
    %v1786 = vmul.f32 %v1764, %v1774
    %v1787 = vmul.f32 %v1765, %v1775
    %v1788 = vadd.f32 %v1784, %v1786
    %v1789 = vadd.f32 %v1785, %v1787
    %v1790 = vtanh.pop %v1788
    %v1791 = vtanh.pop %v1789
    %v1792 = vmul.f32 %v1782, %v1790
    %v1793 = vmul.f32 %v1783, %v1791
    %v1794 = vld [vmem:[#allocation5] sm:$0xff]
    %v1795 = vld [vmem:[#allocation5 + $0x8] sm:$0xff]
    %v1796 = vmul.f32 %v1748, 0.5
    %v1797 = vmul.f32 %v1752, 0.5
    %v1798 = vtanh.pop %v1796
    %v1799 = vtanh.pop %v1797
    %v1800 = vmul.f32 %v1798, 0.5
    %v1801 = vmul.f32 %v1799, 0.5
    %v1802 = vadd.f32 %v1800, 0.5
    %v1803 = vadd.f32 %v1801, 0.5
    %v1804 = vmul.f32 %v1749, 0.5
    %v1805 = vmul.f32 %v1753, 0.5
    %v1806 = vtanh.pop %v1804
    %v1807 = vtanh.pop %v1805
    %v1808 = vmul.f32 %v1806, 0.5
    %v1809 = vmul.f32 %v1807, 0.5
    %v1810 = vadd.f32 %v1808, 0.5
    %v1811 = vadd.f32 %v1809, 0.5
    %v1812 = vtanh.pop %v1750
    %v1813 = vtanh.pop %v1754
    %v1814 = vmul.f32 %v1751, 0.5
    %v1815 = vmul.f32 %v1755, 0.5
    %v1816 = vtanh.pop %v1814
    %v1817 = vtanh.pop %v1815
    %v1818 = vmul.f32 %v1816, 0.5
    %v1819 = vmul.f32 %v1817, 0.5
    %v1820 = vadd.f32 %v1818, 0.5
    %v1821 = vadd.f32 %v1819, 0.5
    %v1822 = vmul.f32 %v1810, %v1794
    %v1823 = vmul.f32 %v1811, %v1795
    %v1824 = vmul.f32 %v1802, %v1812
    %v1825 = vmul.f32 %v1803, %v1813
    %v1826 = vadd.f32 %v1822, %v1824
    %v1827 = vadd.f32 %v1823, %v1825
    %v1828 = vtanh.pop %v1826
    %v1829 = vtanh.pop %v1827
    %v1830 = vmul.f32 %v1820, %v1828
    %v1831 = vmul.f32 %v1821, %v1829
    %1832 = vst [vmem:[#allocation2] sm:$0xff] %v1792
    %1833 = vst [vmem:[#allocation2 + $0x8] sm:$0xff] %v1793
    %1834 = vst [vmem:[#allocation3] sm:$0xff] %v1788
    %1835 = vst [vmem:[#allocation3 + $0x8] sm:$0xff] %v1789
    %1836 = vst [vmem:[#allocation4] sm:$0xff] %v1830
    %1837 = vst [vmem:[#allocation4 + $0x8] sm:$0xff] %v1831
    %1838 = vst [vmem:[#allocation5] sm:$0xff] %v1826
    %1839 = vst [vmem:[#allocation5 + $0x8] sm:$0xff] %v1827
    %v1840 = vpack.c.bf16 %v1792, %v1792
    %v1841 = vpack.c.bf16 %v1793, %v1793
    %1842 = vst [vmem:[#allocation20] sm:$0xf] %v1840
    %1843 = vst [vmem:[#allocation20 + $0x4] sm:$0xf] %v1841
    %v1844 = vpack.c.bf16 %v1830, %v1830
    %v1845 = vpack.c.bf16 %v1831, %v1831
    %s1846 = scalar_lea.vmem [#allocation21], 56
    %1847 = vst [vmem:[%s1846] sm:$0xf] %v1844
    %1848 = vst [vmem:[%s1846 + $0x4] sm:$0xf] %v1845
    %s1849 = scalar_lea.vmem [#allocation6], 32
    %v1850 = vld [vmem:[%s1849] sm:$0xff]
    %v1851 = vld [vmem:[%s1849 + $0x8] sm:$0xff]
    %v1852 = vld [vmem:[%s1849 + $0x10] sm:$0xff]
    %v1853 = vld [vmem:[%s1849 + $0x18] sm:$0xff]
    %v1854 = vunpack.c.l.bf16 %v1850
    %v1855 = vunpack.c.h.bf16 %v1850
    %v1856 = vunpack.c.l.bf16 %v1851
    %v1857 = vunpack.c.h.bf16 %v1851
    %v1858 = vunpack.c.l.bf16 %v1852
    %v1859 = vunpack.c.h.bf16 %v1852
    %v1860 = vunpack.c.l.bf16 %v1853
    %v1861 = vunpack.c.h.bf16 %v1853
    %v1862 = vld [vmem:[#allocation2] sm:$0xff]
    %v1863 = vld [vmem:[#allocation2 + $0x8] sm:$0xff]
    %v1864 = vpack.c.bf16 %v1863, %v1862
    %1865 = vmatpush.bf16.msra.mxu0 %v1416
    %1866 = vmatpush.bf16.msra.mxu0 %v1412
    %1867 = vmatpush.bf16.msra.mxu0 %v1408
    %1868 = vmatpush.bf16.msra.mxu0 %v1404
    %1869 = vmatpush.bf16.msra.mxu0 %v1400
    %1870 = vmatpush.bf16.msra.mxu0 %v1396
    %1871 = vmatpush.bf16.msra.mxu0 %v1392
    %1872 = vmatpush.bf16.msra.mxu0 %v1388
    %1873 = vmatmul.bf16.gmra.mxu0 %v1864
    %v1874 = vpop.f32.mrf.mxu0
    %v1875 = vadd.f32 0.0, %v1874
    %v1876 = vpop.f32.mrf.mxu0
    %v1877 = vadd.f32 0.0, %v1876
    %1878 = vdwg.mxu0
    %1879 = vmatpush.bf16.msra.mxu0 %v1417
    %1880 = vmatpush.bf16.msra.mxu0 %v1413
    %1881 = vmatpush.bf16.msra.mxu0 %v1409
    %1882 = vmatpush.bf16.msra.mxu0 %v1405
    %1883 = vmatpush.bf16.msra.mxu0 %v1401
    %1884 = vmatpush.bf16.msra.mxu0 %v1397
    %1885 = vmatpush.bf16.msra.mxu0 %v1393
    %1886 = vmatpush.bf16.msra.mxu0 %v1389
    %1887 = vmatmul.bf16.gmra.mxu0 %v1864
    %v1888 = vpop.f32.mrf.mxu0
    %v1889 = vadd.f32 0.0, %v1888
    %v1890 = vpop.f32.mrf.mxu0
    %v1891 = vadd.f32 0.0, %v1890
    %1892 = vdwg.mxu0
    %1893 = vmatpush.bf16.msra.mxu0 %v1418
    %1894 = vmatpush.bf16.msra.mxu0 %v1414
    %1895 = vmatpush.bf16.msra.mxu0 %v1410
    %1896 = vmatpush.bf16.msra.mxu0 %v1406
    %1897 = vmatpush.bf16.msra.mxu0 %v1402
    %1898 = vmatpush.bf16.msra.mxu0 %v1398
    %1899 = vmatpush.bf16.msra.mxu0 %v1394
    %1900 = vmatpush.bf16.msra.mxu0 %v1390
    %1901 = vmatmul.bf16.gmra.mxu0 %v1864
    %v1902 = vpop.f32.mrf.mxu0
    %v1903 = vadd.f32 0.0, %v1902
    %v1904 = vpop.f32.mrf.mxu0
    %v1905 = vadd.f32 0.0, %v1904
    %1906 = vdwg.mxu0
    %1907 = vmatpush.bf16.msra.mxu0 %v1419
    %1908 = vmatpush.bf16.msra.mxu0 %v1415
    %1909 = vmatpush.bf16.msra.mxu0 %v1411
    %1910 = vmatpush.bf16.msra.mxu0 %v1407
    %1911 = vmatpush.bf16.msra.mxu0 %v1403
    %1912 = vmatpush.bf16.msra.mxu0 %v1399
    %1913 = vmatpush.bf16.msra.mxu0 %v1395
    %1914 = vmatpush.bf16.msra.mxu0 %v1391
    %1915 = vmatmul.bf16.gmra.mxu0 %v1864
    %v1916 = vpop.f32.mrf.mxu0
    %v1917 = vadd.f32 0.0, %v1916
    %v1918 = vpop.f32.mrf.mxu0
    %v1919 = vadd.f32 0.0, %v1918
    %1920 = vdwg.mxu0
    %v1921 = vadd.f32 %v1854, %v1875
    %v1922 = vadd.f32 %v1855, %v1889
    %v1923 = vadd.f32 %v1856, %v1903
    %v1924 = vadd.f32 %v1857, %v1917
    %v1925 = vadd.f32 %v1858, %v1877
    %v1926 = vadd.f32 %v1859, %v1891
    %v1927 = vadd.f32 %v1860, %v1905
    %v1928 = vadd.f32 %v1861, %v1919
    %s1929 = scalar_lea.vmem [#allocation7], 192
    %v1930 = vld [vmem:[%s1929] sm:$0xff]
    %v1931 = vld [vmem:[%s1929 + $0x8] sm:$0xff]
    %v1932 = vld [vmem:[%s1929 + $0x10] sm:$0xff]
    %v1933 = vld [vmem:[%s1929 + $0x18] sm:$0xff]
    %v1934 = vunpack.c.l.bf16 %v1930
    %v1935 = vunpack.c.h.bf16 %v1930
    %v1936 = vunpack.c.l.bf16 %v1931
    %v1937 = vunpack.c.h.bf16 %v1931
    %v1938 = vunpack.c.l.bf16 %v1932
    %v1939 = vunpack.c.h.bf16 %v1932
    %v1940 = vunpack.c.l.bf16 %v1933
    %v1941 = vunpack.c.h.bf16 %v1933
    %v1942 = vld [vmem:[#allocation4] sm:$0xff]
    %v1943 = vld [vmem:[#allocation4 + $0x8] sm:$0xff]
    %v1944 = vpack.c.bf16 %v1943, %v1942
    %1945 = vmatpush.bf16.msra.mxu0 %v1656
    %1946 = vmatpush.bf16.msra.mxu0 %v1652
    %1947 = vmatpush.bf16.msra.mxu0 %v1648
    %1948 = vmatpush.bf16.msra.mxu0 %v1644
    %1949 = vmatpush.bf16.msra.mxu0 %v1640
    %1950 = vmatpush.bf16.msra.mxu0 %v1636
    %1951 = vmatpush.bf16.msra.mxu0 %v1632
    %1952 = vmatpush.bf16.msra.mxu0 %v1628
    %1953 = vmatmul.bf16.gmra.mxu0 %v1944
    %v1954 = vpop.f32.mrf.mxu0
    %v1955 = vadd.f32 0.0, %v1954
    %v1956 = vpop.f32.mrf.mxu0
    %v1957 = vadd.f32 0.0, %v1956
    %1958 = vdwg.mxu0
    %1959 = vmatpush.bf16.msra.mxu0 %v1657
    %1960 = vmatpush.bf16.msra.mxu0 %v1653
    %1961 = vmatpush.bf16.msra.mxu0 %v1649
    %1962 = vmatpush.bf16.msra.mxu0 %v1645
    %1963 = vmatpush.bf16.msra.mxu0 %v1641
    %1964 = vmatpush.bf16.msra.mxu0 %v1637
    %1965 = vmatpush.bf16.msra.mxu0 %v1633
    %1966 = vmatpush.bf16.msra.mxu0 %v1629
    %1967 = vmatmul.bf16.gmra.mxu0 %v1944
    %v1968 = vpop.f32.mrf.mxu0
    %v1969 = vadd.f32 0.0, %v1968
    %v1970 = vpop.f32.mrf.mxu0
    %v1971 = vadd.f32 0.0, %v1970
    %1972 = vdwg.mxu0
    %1973 = vmatpush.bf16.msra.mxu0 %v1658
    %1974 = vmatpush.bf16.msra.mxu0 %v1654
    %1975 = vmatpush.bf16.msra.mxu0 %v1650
    %1976 = vmatpush.bf16.msra.mxu0 %v1646
    %1977 = vmatpush.bf16.msra.mxu0 %v1642
    %1978 = vmatpush.bf16.msra.mxu0 %v1638
    %1979 = vmatpush.bf16.msra.mxu0 %v1634
    %1980 = vmatpush.bf16.msra.mxu0 %v1630
    %1981 = vmatmul.bf16.gmra.mxu0 %v1944
    %v1982 = vpop.f32.mrf.mxu0
    %v1983 = vadd.f32 0.0, %v1982
    %v1984 = vpop.f32.mrf.mxu0
    %v1985 = vadd.f32 0.0, %v1984
    %1986 = vdwg.mxu0
    %1987 = vmatpush.bf16.msra.mxu0 %v1659
    %1988 = vmatpush.bf16.msra.mxu0 %v1655
    %1989 = vmatpush.bf16.msra.mxu0 %v1651
    %1990 = vmatpush.bf16.msra.mxu0 %v1647
    %1991 = vmatpush.bf16.msra.mxu0 %v1643
    %1992 = vmatpush.bf16.msra.mxu0 %v1639
    %1993 = vmatpush.bf16.msra.mxu0 %v1635
    %1994 = vmatpush.bf16.msra.mxu0 %v1631
    %1995 = vmatmul.bf16.gmra.mxu0 %v1944
    %v1996 = vpop.f32.mrf.mxu0
    %v1997 = vadd.f32 0.0, %v1996
    %v1998 = vpop.f32.mrf.mxu0
    %v1999 = vadd.f32 0.0, %v1998
    %2000 = vdwg.mxu0
    %v2001 = vadd.f32 %v1934, %v1955
    %v2002 = vadd.f32 %v1935, %v1969
    %v2003 = vadd.f32 %v1936, %v1983
    %v2004 = vadd.f32 %v1937, %v1997
    %v2005 = vadd.f32 %v1938, %v1957
    %v2006 = vadd.f32 %v1939, %v1971
    %v2007 = vadd.f32 %v1940, %v1985
    %v2008 = vadd.f32 %v1941, %v1999
    %v2009 = vld [vmem:[#allocation3] sm:$0xff]
    %v2010 = vld [vmem:[#allocation3 + $0x8] sm:$0xff]
    %v2011 = vmul.f32 %v1921, 0.5
    %v2012 = vmul.f32 %v1925, 0.5
    %v2013 = vtanh.pop %v2011
    %v2014 = vtanh.pop %v2012
    %v2015 = vmul.f32 %v2013, 0.5
    %v2016 = vmul.f32 %v2014, 0.5
    %v2017 = vadd.f32 %v2015, 0.5
    %v2018 = vadd.f32 %v2016, 0.5
    %v2019 = vmul.f32 %v1922, 0.5
    %v2020 = vmul.f32 %v1926, 0.5
    %v2021 = vtanh.pop %v2019
    %v2022 = vtanh.pop %v2020
    %v2023 = vmul.f32 %v2021, 0.5
    %v2024 = vmul.f32 %v2022, 0.5
    %v2025 = vadd.f32 %v2023, 0.5
    %v2026 = vadd.f32 %v2024, 0.5
    %v2027 = vtanh.pop %v1923
    %v2028 = vtanh.pop %v1927
    %v2029 = vmul.f32 %v1924, 0.5
    %v2030 = vmul.f32 %v1928, 0.5
    %v2031 = vtanh.pop %v2029
    %v2032 = vtanh.pop %v2030
    %v2033 = vmul.f32 %v2031, 0.5
    %v2034 = vmul.f32 %v2032, 0.5
    %v2035 = vadd.f32 %v2033, 0.5
    %v2036 = vadd.f32 %v2034, 0.5
    %v2037 = vmul.f32 %v2025, %v2009
    %v2038 = vmul.f32 %v2026, %v2010
    %v2039 = vmul.f32 %v2017, %v2027
    %v2040 = vmul.f32 %v2018, %v2028
    %v2041 = vadd.f32 %v2037, %v2039
    %v2042 = vadd.f32 %v2038, %v2040
    %v2043 = vtanh.pop %v2041
    %v2044 = vtanh.pop %v2042
    %v2045 = vmul.f32 %v2035, %v2043
    %v2046 = vmul.f32 %v2036, %v2044
    %v2047 = vld [vmem:[#allocation5] sm:$0xff]
    %v2048 = vld [vmem:[#allocation5 + $0x8] sm:$0xff]
    %v2049 = vmul.f32 %v2001, 0.5
    %v2050 = vmul.f32 %v2005, 0.5
    %v2051 = vtanh.pop %v2049
    %v2052 = vtanh.pop %v2050
    %v2053 = vmul.f32 %v2051, 0.5
    %v2054 = vmul.f32 %v2052, 0.5
    %v2055 = vadd.f32 %v2053, 0.5
    %v2056 = vadd.f32 %v2054, 0.5
    %v2057 = vmul.f32 %v2002, 0.5
    %v2058 = vmul.f32 %v2006, 0.5
    %v2059 = vtanh.pop %v2057
    %v2060 = vtanh.pop %v2058
    %v2061 = vmul.f32 %v2059, 0.5
    %v2062 = vmul.f32 %v2060, 0.5
    %v2063 = vadd.f32 %v2061, 0.5
    %v2064 = vadd.f32 %v2062, 0.5
    %v2065 = vtanh.pop %v2003
    %v2066 = vtanh.pop %v2007
    %v2067 = vmul.f32 %v2004, 0.5
    %v2068 = vmul.f32 %v2008, 0.5
    %v2069 = vtanh.pop %v2067
    %v2070 = vtanh.pop %v2068
    %v2071 = vmul.f32 %v2069, 0.5
    %v2072 = vmul.f32 %v2070, 0.5
    %v2073 = vadd.f32 %v2071, 0.5
    %v2074 = vadd.f32 %v2072, 0.5
    %v2075 = vmul.f32 %v2063, %v2047
    %v2076 = vmul.f32 %v2064, %v2048
    %v2077 = vmul.f32 %v2055, %v2065
    %v2078 = vmul.f32 %v2056, %v2066
    %v2079 = vadd.f32 %v2075, %v2077
    %v2080 = vadd.f32 %v2076, %v2078
    %v2081 = vtanh.pop %v2079
    %v2082 = vtanh.pop %v2080
    %v2083 = vmul.f32 %v2073, %v2081
    %v2084 = vmul.f32 %v2074, %v2082
    %2085 = vst [vmem:[#allocation2] sm:$0xff] %v2045
    %2086 = vst [vmem:[#allocation2 + $0x8] sm:$0xff] %v2046
    %2087 = vst [vmem:[#allocation3] sm:$0xff] %v2041
    %2088 = vst [vmem:[#allocation3 + $0x8] sm:$0xff] %v2042
    %2089 = vst [vmem:[#allocation4] sm:$0xff] %v2083
    %2090 = vst [vmem:[#allocation4 + $0x8] sm:$0xff] %v2084
    %2091 = vst [vmem:[#allocation5] sm:$0xff] %v2079
    %2092 = vst [vmem:[#allocation5 + $0x8] sm:$0xff] %v2080
    %v2093 = vpack.c.bf16 %v2045, %v2045
    %v2094 = vpack.c.bf16 %v2046, %v2046
    %s2095 = scalar_lea.vmem [#allocation20], 8
    %2096 = vst [vmem:[%s2095] sm:$0xf] %v2093
    %2097 = vst [vmem:[%s2095 + $0x4] sm:$0xf] %v2094
    %v2098 = vpack.c.bf16 %v2083, %v2083
    %v2099 = vpack.c.bf16 %v2084, %v2084
    %s2100 = scalar_lea.vmem [#allocation21], 48
    %2101 = vst [vmem:[%s2100] sm:$0xf] %v2098
    %2102 = vst [vmem:[%s2100 + $0x4] sm:$0xf] %v2099
    %s2103 = scalar_lea.vmem [#allocation6], 64
    %v2104 = vld [vmem:[%s2103] sm:$0xff]
    %v2105 = vld [vmem:[%s2103 + $0x8] sm:$0xff]
    %v2106 = vld [vmem:[%s2103 + $0x10] sm:$0xff]
    %v2107 = vld [vmem:[%s2103 + $0x18] sm:$0xff]
    %v2108 = vunpack.c.l.bf16 %v2104
    %v2109 = vunpack.c.h.bf16 %v2104
    %v2110 = vunpack.c.l.bf16 %v2105
    %v2111 = vunpack.c.h.bf16 %v2105
    %v2112 = vunpack.c.l.bf16 %v2106
    %v2113 = vunpack.c.h.bf16 %v2106
    %v2114 = vunpack.c.l.bf16 %v2107
    %v2115 = vunpack.c.h.bf16 %v2107
    %v2116 = vld [vmem:[#allocation2] sm:$0xff]
    %v2117 = vld [vmem:[#allocation2 + $0x8] sm:$0xff]
    %v2118 = vpack.c.bf16 %v2117, %v2116
    %2119 = vmatpush.bf16.msra.mxu0 %v1416
    %2120 = vmatpush.bf16.msra.mxu0 %v1412
    %2121 = vmatpush.bf16.msra.mxu0 %v1408
    %2122 = vmatpush.bf16.msra.mxu0 %v1404
    %2123 = vmatpush.bf16.msra.mxu0 %v1400
    %2124 = vmatpush.bf16.msra.mxu0 %v1396
    %2125 = vmatpush.bf16.msra.mxu0 %v1392
    %2126 = vmatpush.bf16.msra.mxu0 %v1388
    %2127 = vmatmul.bf16.gmra.mxu0 %v2118
    %v2128 = vpop.f32.mrf.mxu0
    %v2129 = vadd.f32 0.0, %v2128
    %v2130 = vpop.f32.mrf.mxu0
    %v2131 = vadd.f32 0.0, %v2130
    %2132 = vdwg.mxu0
    %2133 = vmatpush.bf16.msra.mxu0 %v1417
    %2134 = vmatpush.bf16.msra.mxu0 %v1413
    %2135 = vmatpush.bf16.msra.mxu0 %v1409
    %2136 = vmatpush.bf16.msra.mxu0 %v1405
    %2137 = vmatpush.bf16.msra.mxu0 %v1401
    %2138 = vmatpush.bf16.msra.mxu0 %v1397
    %2139 = vmatpush.bf16.msra.mxu0 %v1393
    %2140 = vmatpush.bf16.msra.mxu0 %v1389
    %2141 = vmatmul.bf16.gmra.mxu0 %v2118
    %v2142 = vpop.f32.mrf.mxu0
    %v2143 = vadd.f32 0.0, %v2142
    %v2144 = vpop.f32.mrf.mxu0
    %v2145 = vadd.f32 0.0, %v2144
    %2146 = vdwg.mxu0
    %2147 = vmatpush.bf16.msra.mxu0 %v1418
    %2148 = vmatpush.bf16.msra.mxu0 %v1414
    %2149 = vmatpush.bf16.msra.mxu0 %v1410
    %2150 = vmatpush.bf16.msra.mxu0 %v1406
    %2151 = vmatpush.bf16.msra.mxu0 %v1402
    %2152 = vmatpush.bf16.msra.mxu0 %v1398
    %2153 = vmatpush.bf16.msra.mxu0 %v1394
    %2154 = vmatpush.bf16.msra.mxu0 %v1390
    %2155 = vmatmul.bf16.gmra.mxu0 %v2118
    %v2156 = vpop.f32.mrf.mxu0
    %v2157 = vadd.f32 0.0, %v2156
    %v2158 = vpop.f32.mrf.mxu0
    %v2159 = vadd.f32 0.0, %v2158
    %2160 = vdwg.mxu0
    %2161 = vmatpush.bf16.msra.mxu0 %v1419
    %2162 = vmatpush.bf16.msra.mxu0 %v1415
    %2163 = vmatpush.bf16.msra.mxu0 %v1411
    %2164 = vmatpush.bf16.msra.mxu0 %v1407
    %2165 = vmatpush.bf16.msra.mxu0 %v1403
    %2166 = vmatpush.bf16.msra.mxu0 %v1399
    %2167 = vmatpush.bf16.msra.mxu0 %v1395
    %2168 = vmatpush.bf16.msra.mxu0 %v1391
    %2169 = vmatmul.bf16.gmra.mxu0 %v2118
    %v2170 = vpop.f32.mrf.mxu0
    %v2171 = vadd.f32 0.0, %v2170
    %v2172 = vpop.f32.mrf.mxu0
    %v2173 = vadd.f32 0.0, %v2172
    %2174 = vdwg.mxu0
    %v2175 = vadd.f32 %v2108, %v2129
    %v2176 = vadd.f32 %v2109, %v2143
    %v2177 = vadd.f32 %v2110, %v2157
    %v2178 = vadd.f32 %v2111, %v2171
    %v2179 = vadd.f32 %v2112, %v2131
    %v2180 = vadd.f32 %v2113, %v2145
    %v2181 = vadd.f32 %v2114, %v2159
    %v2182 = vadd.f32 %v2115, %v2173
    %s2183 = scalar_lea.vmem [#allocation7], 160
    %v2184 = vld [vmem:[%s2183] sm:$0xff]
    %v2185 = vld [vmem:[%s2183 + $0x8] sm:$0xff]
    %v2186 = vld [vmem:[%s2183 + $0x10] sm:$0xff]
    %v2187 = vld [vmem:[%s2183 + $0x18] sm:$0xff]
    %v2188 = vunpack.c.l.bf16 %v2184
    %v2189 = vunpack.c.h.bf16 %v2184
    %v2190 = vunpack.c.l.bf16 %v2185
    %v2191 = vunpack.c.h.bf16 %v2185
    %v2192 = vunpack.c.l.bf16 %v2186
    %v2193 = vunpack.c.h.bf16 %v2186
    %v2194 = vunpack.c.l.bf16 %v2187
    %v2195 = vunpack.c.h.bf16 %v2187
    %v2196 = vld [vmem:[#allocation4] sm:$0xff]
    %v2197 = vld [vmem:[#allocation4 + $0x8] sm:$0xff]
    %v2198 = vpack.c.bf16 %v2197, %v2196
    %2199 = vmatpush.bf16.msra.mxu0 %v1656
    %2200 = vmatpush.bf16.msra.mxu0 %v1652
    %2201 = vmatpush.bf16.msra.mxu0 %v1648
    %2202 = vmatpush.bf16.msra.mxu0 %v1644
    %2203 = vmatpush.bf16.msra.mxu0 %v1640
    %2204 = vmatpush.bf16.msra.mxu0 %v1636
    %2205 = vmatpush.bf16.msra.mxu0 %v1632
    %2206 = vmatpush.bf16.msra.mxu0 %v1628
    %2207 = vmatmul.bf16.gmra.mxu0 %v2198
    %v2208 = vpop.f32.mrf.mxu0
    %v2209 = vadd.f32 0.0, %v2208
    %v2210 = vpop.f32.mrf.mxu0
    %v2211 = vadd.f32 0.0, %v2210
    %2212 = vdwg.mxu0
    %2213 = vmatpush.bf16.msra.mxu0 %v1657
    %2214 = vmatpush.bf16.msra.mxu0 %v1653
    %2215 = vmatpush.bf16.msra.mxu0 %v1649
    %2216 = vmatpush.bf16.msra.mxu0 %v1645
    %2217 = vmatpush.bf16.msra.mxu0 %v1641
    %2218 = vmatpush.bf16.msra.mxu0 %v1637
    %2219 = vmatpush.bf16.msra.mxu0 %v1633
    %2220 = vmatpush.bf16.msra.mxu0 %v1629
    %2221 = vmatmul.bf16.gmra.mxu0 %v2198
    %v2222 = vpop.f32.mrf.mxu0
    %v2223 = vadd.f32 0.0, %v2222
    %v2224 = vpop.f32.mrf.mxu0
    %v2225 = vadd.f32 0.0, %v2224
    %2226 = vdwg.mxu0
    %2227 = vmatpush.bf16.msra.mxu0 %v1658
    %2228 = vmatpush.bf16.msra.mxu0 %v1654
    %2229 = vmatpush.bf16.msra.mxu0 %v1650
    %2230 = vmatpush.bf16.msra.mxu0 %v1646
    %2231 = vmatpush.bf16.msra.mxu0 %v1642
    %2232 = vmatpush.bf16.msra.mxu0 %v1638
    %2233 = vmatpush.bf16.msra.mxu0 %v1634
    %2234 = vmatpush.bf16.msra.mxu0 %v1630
    %2235 = vmatmul.bf16.gmra.mxu0 %v2198
    %v2236 = vpop.f32.mrf.mxu0
    %v2237 = vadd.f32 0.0, %v2236
    %v2238 = vpop.f32.mrf.mxu0
    %v2239 = vadd.f32 0.0, %v2238
    %2240 = vdwg.mxu0
    %2241 = vmatpush.bf16.msra.mxu0 %v1659
    %2242 = vmatpush.bf16.msra.mxu0 %v1655
    %2243 = vmatpush.bf16.msra.mxu0 %v1651
    %2244 = vmatpush.bf16.msra.mxu0 %v1647
    %2245 = vmatpush.bf16.msra.mxu0 %v1643
    %2246 = vmatpush.bf16.msra.mxu0 %v1639
    %2247 = vmatpush.bf16.msra.mxu0 %v1635
    %2248 = vmatpush.bf16.msra.mxu0 %v1631
    %2249 = vmatmul.bf16.gmra.mxu0 %v2198
    %v2250 = vpop.f32.mrf.mxu0
    %v2251 = vadd.f32 0.0, %v2250
    %v2252 = vpop.f32.mrf.mxu0
    %v2253 = vadd.f32 0.0, %v2252
    %2254 = vdwg.mxu0
    %v2255 = vadd.f32 %v2188, %v2209
    %v2256 = vadd.f32 %v2189, %v2223
    %v2257 = vadd.f32 %v2190, %v2237
    %v2258 = vadd.f32 %v2191, %v2251
    %v2259 = vadd.f32 %v2192, %v2211
    %v2260 = vadd.f32 %v2193, %v2225
    %v2261 = vadd.f32 %v2194, %v2239
    %v2262 = vadd.f32 %v2195, %v2253
    %v2263 = vld [vmem:[#allocation3] sm:$0xff]
    %v2264 = vld [vmem:[#allocation3 + $0x8] sm:$0xff]
    %v2265 = vmul.f32 %v2175, 0.5
    %v2266 = vmul.f32 %v2179, 0.5
    %v2267 = vtanh.pop %v2265
    %v2268 = vtanh.pop %v2266
    %v2269 = vmul.f32 %v2267, 0.5
    %v2270 = vmul.f32 %v2268, 0.5
    %v2271 = vadd.f32 %v2269, 0.5
    %v2272 = vadd.f32 %v2270, 0.5
    %v2273 = vmul.f32 %v2176, 0.5
    %v2274 = vmul.f32 %v2180, 0.5
    %v2275 = vtanh.pop %v2273
    %v2276 = vtanh.pop %v2274
    %v2277 = vmul.f32 %v2275, 0.5
    %v2278 = vmul.f32 %v2276, 0.5
    %v2279 = vadd.f32 %v2277, 0.5
    %v2280 = vadd.f32 %v2278, 0.5
    %v2281 = vtanh.pop %v2177
    %v2282 = vtanh.pop %v2181
    %v2283 = vmul.f32 %v2178, 0.5
    %v2284 = vmul.f32 %v2182, 0.5
    %v2285 = vtanh.pop %v2283
    %v2286 = vtanh.pop %v2284
    %v2287 = vmul.f32 %v2285, 0.5
    %v2288 = vmul.f32 %v2286, 0.5
    %v2289 = vadd.f32 %v2287, 0.5
    %v2290 = vadd.f32 %v2288, 0.5
    %v2291 = vmul.f32 %v2279, %v2263
    %v2292 = vmul.f32 %v2280, %v2264
    %v2293 = vmul.f32 %v2271, %v2281
    %v2294 = vmul.f32 %v2272, %v2282
    %v2295 = vadd.f32 %v2291, %v2293
    %v2296 = vadd.f32 %v2292, %v2294
    %v2297 = vtanh.pop %v2295
    %v2298 = vtanh.pop %v2296
    %v2299 = vmul.f32 %v2289, %v2297
    %v2300 = vmul.f32 %v2290, %v2298
    %v2301 = vld [vmem:[#allocation5] sm:$0xff]
    %v2302 = vld [vmem:[#allocation5 + $0x8] sm:$0xff]
    %v2303 = vmul.f32 %v2255, 0.5
    %v2304 = vmul.f32 %v2259, 0.5
    %v2305 = vtanh.pop %v2303
    %v2306 = vtanh.pop %v2304
    %v2307 = vmul.f32 %v2305, 0.5
    %v2308 = vmul.f32 %v2306, 0.5
    %v2309 = vadd.f32 %v2307, 0.5
    %v2310 = vadd.f32 %v2308, 0.5
    %v2311 = vmul.f32 %v2256, 0.5
    %v2312 = vmul.f32 %v2260, 0.5
    %v2313 = vtanh.pop %v2311
    %v2314 = vtanh.pop %v2312
    %v2315 = vmul.f32 %v2313, 0.5
    %v2316 = vmul.f32 %v2314, 0.5
    %v2317 = vadd.f32 %v2315, 0.5
    %v2318 = vadd.f32 %v2316, 0.5
    %v2319 = vtanh.pop %v2257
    %v2320 = vtanh.pop %v2261
    %v2321 = vmul.f32 %v2258, 0.5
    %v2322 = vmul.f32 %v2262, 0.5
    %v2323 = vtanh.pop %v2321
    %v2324 = vtanh.pop %v2322
    %v2325 = vmul.f32 %v2323, 0.5
    %v2326 = vmul.f32 %v2324, 0.5
    %v2327 = vadd.f32 %v2325, 0.5
    %v2328 = vadd.f32 %v2326, 0.5
    %v2329 = vmul.f32 %v2317, %v2301
    %v2330 = vmul.f32 %v2318, %v2302
    %v2331 = vmul.f32 %v2309, %v2319
    %v2332 = vmul.f32 %v2310, %v2320
    %v2333 = vadd.f32 %v2329, %v2331
    %v2334 = vadd.f32 %v2330, %v2332
    %v2335 = vtanh.pop %v2333
    %v2336 = vtanh.pop %v2334
    %v2337 = vmul.f32 %v2327, %v2335
    %v2338 = vmul.f32 %v2328, %v2336
    %2339 = vst [vmem:[#allocation2] sm:$0xff] %v2299
    %2340 = vst [vmem:[#allocation2 + $0x8] sm:$0xff] %v2300
    %2341 = vst [vmem:[#allocation3] sm:$0xff] %v2295
    %2342 = vst [vmem:[#allocation3 + $0x8] sm:$0xff] %v2296
    %2343 = vst [vmem:[#allocation4] sm:$0xff] %v2337
    %2344 = vst [vmem:[#allocation4 + $0x8] sm:$0xff] %v2338
    %2345 = vst [vmem:[#allocation5] sm:$0xff] %v2333
    %2346 = vst [vmem:[#allocation5 + $0x8] sm:$0xff] %v2334
    %v2347 = vpack.c.bf16 %v2299, %v2299
    %v2348 = vpack.c.bf16 %v2300, %v2300
    %s2349 = scalar_lea.vmem [#allocation20], 16
    %2350 = vst [vmem:[%s2349] sm:$0xf] %v2347
    %2351 = vst [vmem:[%s2349 + $0x4] sm:$0xf] %v2348
    %v2352 = vpack.c.bf16 %v2337, %v2337
    %v2353 = vpack.c.bf16 %v2338, %v2338
    %s2354 = scalar_lea.vmem [#allocation21], 40
    %2355 = vst [vmem:[%s2354] sm:$0xf] %v2352
    %2356 = vst [vmem:[%s2354 + $0x4] sm:$0xf] %v2353
    %s2357 = scalar_lea.vmem [#allocation6], 96
    %v2358 = vld [vmem:[%s2357] sm:$0xff]
    %v2359 = vld [vmem:[%s2357 + $0x8] sm:$0xff]
    %v2360 = vld [vmem:[%s2357 + $0x10] sm:$0xff]
    %v2361 = vld [vmem:[%s2357 + $0x18] sm:$0xff]
    %v2362 = vunpack.c.l.bf16 %v2358
    %v2363 = vunpack.c.h.bf16 %v2358
    %v2364 = vunpack.c.l.bf16 %v2359
    %v2365 = vunpack.c.h.bf16 %v2359
    %v2366 = vunpack.c.l.bf16 %v2360
    %v2367 = vunpack.c.h.bf16 %v2360
    %v2368 = vunpack.c.l.bf16 %v2361
    %v2369 = vunpack.c.h.bf16 %v2361
    %v2370 = vld [vmem:[#allocation2] sm:$0xff]
    %v2371 = vld [vmem:[#allocation2 + $0x8] sm:$0xff]
    %v2372 = vpack.c.bf16 %v2371, %v2370
    %2373 = vmatpush.bf16.msra.mxu0 %v1416
    %2374 = vmatpush.bf16.msra.mxu0 %v1412
    %2375 = vmatpush.bf16.msra.mxu0 %v1408
    %2376 = vmatpush.bf16.msra.mxu0 %v1404
    %2377 = vmatpush.bf16.msra.mxu0 %v1400
    %2378 = vmatpush.bf16.msra.mxu0 %v1396
    %2379 = vmatpush.bf16.msra.mxu0 %v1392
    %2380 = vmatpush.bf16.msra.mxu0 %v1388
    %2381 = vmatmul.bf16.gmra.mxu0 %v2372
    %v2382 = vpop.f32.mrf.mxu0
    %v2383 = vadd.f32 0.0, %v2382
    %v2384 = vpop.f32.mrf.mxu0
    %v2385 = vadd.f32 0.0, %v2384
    %2386 = vdwg.mxu0
    %2387 = vmatpush.bf16.msra.mxu0 %v1417
    %2388 = vmatpush.bf16.msra.mxu0 %v1413
    %2389 = vmatpush.bf16.msra.mxu0 %v1409
    %2390 = vmatpush.bf16.msra.mxu0 %v1405
    %2391 = vmatpush.bf16.msra.mxu0 %v1401
    %2392 = vmatpush.bf16.msra.mxu0 %v1397
    %2393 = vmatpush.bf16.msra.mxu0 %v1393
    %2394 = vmatpush.bf16.msra.mxu0 %v1389
    %2395 = vmatmul.bf16.gmra.mxu0 %v2372
    %v2396 = vpop.f32.mrf.mxu0
    %v2397 = vadd.f32 0.0, %v2396
    %v2398 = vpop.f32.mrf.mxu0
    %v2399 = vadd.f32 0.0, %v2398
    %2400 = vdwg.mxu0
    %2401 = vmatpush.bf16.msra.mxu0 %v1418
    %2402 = vmatpush.bf16.msra.mxu0 %v1414
    %2403 = vmatpush.bf16.msra.mxu0 %v1410
    %2404 = vmatpush.bf16.msra.mxu0 %v1406
    %2405 = vmatpush.bf16.msra.mxu0 %v1402
    %2406 = vmatpush.bf16.msra.mxu0 %v1398
    %2407 = vmatpush.bf16.msra.mxu0 %v1394
    %2408 = vmatpush.bf16.msra.mxu0 %v1390
    %2409 = vmatmul.bf16.gmra.mxu0 %v2372
    %v2410 = vpop.f32.mrf.mxu0
    %v2411 = vadd.f32 0.0, %v2410
    %v2412 = vpop.f32.mrf.mxu0
    %v2413 = vadd.f32 0.0, %v2412
    %2414 = vdwg.mxu0
    %2415 = vmatpush.bf16.msra.mxu0 %v1419
    %2416 = vmatpush.bf16.msra.mxu0 %v1415
    %2417 = vmatpush.bf16.msra.mxu0 %v1411
    %2418 = vmatpush.bf16.msra.mxu0 %v1407
    %2419 = vmatpush.bf16.msra.mxu0 %v1403
    %2420 = vmatpush.bf16.msra.mxu0 %v1399
    %2421 = vmatpush.bf16.msra.mxu0 %v1395
    %2422 = vmatpush.bf16.msra.mxu0 %v1391
    %2423 = vmatmul.bf16.gmra.mxu0 %v2372
    %v2424 = vpop.f32.mrf.mxu0
    %v2425 = vadd.f32 0.0, %v2424
    %v2426 = vpop.f32.mrf.mxu0
    %v2427 = vadd.f32 0.0, %v2426
    %2428 = vdwg.mxu0
    %v2429 = vadd.f32 %v2362, %v2383
    %v2430 = vadd.f32 %v2363, %v2397
    %v2431 = vadd.f32 %v2364, %v2411
    %v2432 = vadd.f32 %v2365, %v2425
    %v2433 = vadd.f32 %v2366, %v2385
    %v2434 = vadd.f32 %v2367, %v2399
    %v2435 = vadd.f32 %v2368, %v2413
    %v2436 = vadd.f32 %v2369, %v2427
    %s2437 = scalar_lea.vmem [#allocation7], 128
    %v2438 = vld [vmem:[%s2437] sm:$0xff]
    %v2439 = vld [vmem:[%s2437 + $0x8] sm:$0xff]
    %v2440 = vld [vmem:[%s2437 + $0x10] sm:$0xff]
    %v2441 = vld [vmem:[%s2437 + $0x18] sm:$0xff]
    %v2442 = vunpack.c.l.bf16 %v2438
    %v2443 = vunpack.c.h.bf16 %v2438
    %v2444 = vunpack.c.l.bf16 %v2439
    %v2445 = vunpack.c.h.bf16 %v2439
    %v2446 = vunpack.c.l.bf16 %v2440
    %v2447 = vunpack.c.h.bf16 %v2440
    %v2448 = vunpack.c.l.bf16 %v2441
    %v2449 = vunpack.c.h.bf16 %v2441
    %v2450 = vld [vmem:[#allocation4] sm:$0xff]
    %v2451 = vld [vmem:[#allocation4 + $0x8] sm:$0xff]
    %v2452 = vpack.c.bf16 %v2451, %v2450
    %2453 = vmatpush.bf16.msra.mxu0 %v1656
    %2454 = vmatpush.bf16.msra.mxu0 %v1652
    %2455 = vmatpush.bf16.msra.mxu0 %v1648
    %2456 = vmatpush.bf16.msra.mxu0 %v1644
    %2457 = vmatpush.bf16.msra.mxu0 %v1640
    %2458 = vmatpush.bf16.msra.mxu0 %v1636
    %2459 = vmatpush.bf16.msra.mxu0 %v1632
    %2460 = vmatpush.bf16.msra.mxu0 %v1628
    %2461 = vmatmul.bf16.gmra.mxu0 %v2452
    %v2462 = vpop.f32.mrf.mxu0
    %v2463 = vadd.f32 0.0, %v2462
    %v2464 = vpop.f32.mrf.mxu0
    %v2465 = vadd.f32 0.0, %v2464
    %2466 = vdwg.mxu0
    %2467 = vmatpush.bf16.msra.mxu0 %v1657
    %2468 = vmatpush.bf16.msra.mxu0 %v1653
    %2469 = vmatpush.bf16.msra.mxu0 %v1649
    %2470 = vmatpush.bf16.msra.mxu0 %v1645
    %2471 = vmatpush.bf16.msra.mxu0 %v1641
    %2472 = vmatpush.bf16.msra.mxu0 %v1637
    %2473 = vmatpush.bf16.msra.mxu0 %v1633
    %2474 = vmatpush.bf16.msra.mxu0 %v1629
    %2475 = vmatmul.bf16.gmra.mxu0 %v2452
    %v2476 = vpop.f32.mrf.mxu0
    %v2477 = vadd.f32 0.0, %v2476
    %v2478 = vpop.f32.mrf.mxu0
    %v2479 = vadd.f32 0.0, %v2478
    %2480 = vdwg.mxu0
    %2481 = vmatpush.bf16.msra.mxu0 %v1658
    %2482 = vmatpush.bf16.msra.mxu0 %v1654
    %2483 = vmatpush.bf16.msra.mxu0 %v1650
    %2484 = vmatpush.bf16.msra.mxu0 %v1646
    %2485 = vmatpush.bf16.msra.mxu0 %v1642
    %2486 = vmatpush.bf16.msra.mxu0 %v1638
    %2487 = vmatpush.bf16.msra.mxu0 %v1634
    %2488 = vmatpush.bf16.msra.mxu0 %v1630
    %2489 = vmatmul.bf16.gmra.mxu0 %v2452
    %v2490 = vpop.f32.mrf.mxu0
    %v2491 = vadd.f32 0.0, %v2490
    %v2492 = vpop.f32.mrf.mxu0
    %v2493 = vadd.f32 0.0, %v2492
    %2494 = vdwg.mxu0
    %2495 = vmatpush.bf16.msra.mxu0 %v1659
    %2496 = vmatpush.bf16.msra.mxu0 %v1655
    %2497 = vmatpush.bf16.msra.mxu0 %v1651
    %2498 = vmatpush.bf16.msra.mxu0 %v1647
    %2499 = vmatpush.bf16.msra.mxu0 %v1643
    %2500 = vmatpush.bf16.msra.mxu0 %v1639
    %2501 = vmatpush.bf16.msra.mxu0 %v1635
    %2502 = vmatpush.bf16.msra.mxu0 %v1631
    %2503 = vmatmul.bf16.gmra.mxu0 %v2452
    %v2504 = vpop.f32.mrf.mxu0
    %v2505 = vadd.f32 0.0, %v2504
    %v2506 = vpop.f32.mrf.mxu0
    %v2507 = vadd.f32 0.0, %v2506
    %2508 = vdwg.mxu0
    %v2509 = vadd.f32 %v2442, %v2463
    %v2510 = vadd.f32 %v2443, %v2477
    %v2511 = vadd.f32 %v2444, %v2491
    %v2512 = vadd.f32 %v2445, %v2505
    %v2513 = vadd.f32 %v2446, %v2465
    %v2514 = vadd.f32 %v2447, %v2479
    %v2515 = vadd.f32 %v2448, %v2493
    %v2516 = vadd.f32 %v2449, %v2507
    %v2517 = vld [vmem:[#allocation3] sm:$0xff]
    %v2518 = vld [vmem:[#allocation3 + $0x8] sm:$0xff]
    %v2519 = vmul.f32 %v2429, 0.5
    %v2520 = vmul.f32 %v2433, 0.5
    %v2521 = vtanh.pop %v2519
    %v2522 = vtanh.pop %v2520
    %v2523 = vmul.f32 %v2521, 0.5
    %v2524 = vmul.f32 %v2522, 0.5
    %v2525 = vadd.f32 %v2523, 0.5
    %v2526 = vadd.f32 %v2524, 0.5
    %v2527 = vmul.f32 %v2430, 0.5
    %v2528 = vmul.f32 %v2434, 0.5
    %v2529 = vtanh.pop %v2527
    %v2530 = vtanh.pop %v2528
    %v2531 = vmul.f32 %v2529, 0.5
    %v2532 = vmul.f32 %v2530, 0.5
    %v2533 = vadd.f32 %v2531, 0.5
    %v2534 = vadd.f32 %v2532, 0.5
    %v2535 = vtanh.pop %v2431
    %v2536 = vtanh.pop %v2435
    %v2537 = vmul.f32 %v2432, 0.5
    %v2538 = vmul.f32 %v2436, 0.5
    %v2539 = vtanh.pop %v2537
    %v2540 = vtanh.pop %v2538
    %v2541 = vmul.f32 %v2539, 0.5
    %v2542 = vmul.f32 %v2540, 0.5
    %v2543 = vadd.f32 %v2541, 0.5
    %v2544 = vadd.f32 %v2542, 0.5
    %v2545 = vmul.f32 %v2533, %v2517
    %v2546 = vmul.f32 %v2534, %v2518
    %v2547 = vmul.f32 %v2525, %v2535
    %v2548 = vmul.f32 %v2526, %v2536
    %v2549 = vadd.f32 %v2545, %v2547
    %v2550 = vadd.f32 %v2546, %v2548
    %v2551 = vtanh.pop %v2549
    %v2552 = vtanh.pop %v2550
    %v2553 = vmul.f32 %v2543, %v2551
    %v2554 = vmul.f32 %v2544, %v2552
    %v2555 = vld [vmem:[#allocation5] sm:$0xff]
    %v2556 = vld [vmem:[#allocation5 + $0x8] sm:$0xff]
    %v2557 = vmul.f32 %v2509, 0.5
    %v2558 = vmul.f32 %v2513, 0.5
    %v2559 = vtanh.pop %v2557
    %v2560 = vtanh.pop %v2558
    %v2561 = vmul.f32 %v2559, 0.5
    %v2562 = vmul.f32 %v2560, 0.5
    %v2563 = vadd.f32 %v2561, 0.5
    %v2564 = vadd.f32 %v2562, 0.5
    %v2565 = vmul.f32 %v2510, 0.5
    %v2566 = vmul.f32 %v2514, 0.5
    %v2567 = vtanh.pop %v2565
    %v2568 = vtanh.pop %v2566
    %v2569 = vmul.f32 %v2567, 0.5
    %v2570 = vmul.f32 %v2568, 0.5
    %v2571 = vadd.f32 %v2569, 0.5
    %v2572 = vadd.f32 %v2570, 0.5
    %v2573 = vtanh.pop %v2511
    %v2574 = vtanh.pop %v2515
    %v2575 = vmul.f32 %v2512, 0.5
    %v2576 = vmul.f32 %v2516, 0.5
    %v2577 = vtanh.pop %v2575
    %v2578 = vtanh.pop %v2576
    %v2579 = vmul.f32 %v2577, 0.5
    %v2580 = vmul.f32 %v2578, 0.5
    %v2581 = vadd.f32 %v2579, 0.5
    %v2582 = vadd.f32 %v2580, 0.5
    %v2583 = vmul.f32 %v2571, %v2555
    %v2584 = vmul.f32 %v2572, %v2556
    %v2585 = vmul.f32 %v2563, %v2573
    %v2586 = vmul.f32 %v2564, %v2574
    %v2587 = vadd.f32 %v2583, %v2585
    %v2588 = vadd.f32 %v2584, %v2586
    %v2589 = vtanh.pop %v2587
    %v2590 = vtanh.pop %v2588
    %v2591 = vmul.f32 %v2581, %v2589
    %v2592 = vmul.f32 %v2582, %v2590
    %2593 = vst [vmem:[#allocation2] sm:$0xff] %v2553
    %2594 = vst [vmem:[#allocation2 + $0x8] sm:$0xff] %v2554
    %2595 = vst [vmem:[#allocation3] sm:$0xff] %v2549
    %2596 = vst [vmem:[#allocation3 + $0x8] sm:$0xff] %v2550
    %2597 = vst [vmem:[#allocation4] sm:$0xff] %v2591
    %2598 = vst [vmem:[#allocation4 + $0x8] sm:$0xff] %v2592
    %2599 = vst [vmem:[#allocation5] sm:$0xff] %v2587
    %2600 = vst [vmem:[#allocation5 + $0x8] sm:$0xff] %v2588
    %v2601 = vpack.c.bf16 %v2553, %v2553
    %v2602 = vpack.c.bf16 %v2554, %v2554
    %s2603 = scalar_lea.vmem [#allocation20], 24
    %2604 = vst [vmem:[%s2603] sm:$0xf] %v2601
    %2605 = vst [vmem:[%s2603 + $0x4] sm:$0xf] %v2602
    %v2606 = vpack.c.bf16 %v2591, %v2591
    %v2607 = vpack.c.bf16 %v2592, %v2592
    %s2608 = scalar_lea.vmem [#allocation21], 32
    %2609 = vst [vmem:[%s2608] sm:$0xf] %v2606
    %2610 = vst [vmem:[%s2608 + $0x4] sm:$0xf] %v2607
    %s2611 = scalar_lea.vmem [#allocation6], 128
    %v2612 = vld [vmem:[%s2611] sm:$0xff]
    %v2613 = vld [vmem:[%s2611 + $0x8] sm:$0xff]
    %v2614 = vld [vmem:[%s2611 + $0x10] sm:$0xff]
    %v2615 = vld [vmem:[%s2611 + $0x18] sm:$0xff]
    %v2616 = vunpack.c.l.bf16 %v2612
    %v2617 = vunpack.c.h.bf16 %v2612
    %v2618 = vunpack.c.l.bf16 %v2613
    %v2619 = vunpack.c.h.bf16 %v2613
    %v2620 = vunpack.c.l.bf16 %v2614
    %v2621 = vunpack.c.h.bf16 %v2614
    %v2622 = vunpack.c.l.bf16 %v2615
    %v2623 = vunpack.c.h.bf16 %v2615
    %v2624 = vld [vmem:[#allocation2] sm:$0xff]
    %v2625 = vld [vmem:[#allocation2 + $0x8] sm:$0xff]
    %v2626 = vpack.c.bf16 %v2625, %v2624
    %2627 = vmatpush.bf16.msra.mxu0 %v1416
    %2628 = vmatpush.bf16.msra.mxu0 %v1412
    %2629 = vmatpush.bf16.msra.mxu0 %v1408
    %2630 = vmatpush.bf16.msra.mxu0 %v1404
    %2631 = vmatpush.bf16.msra.mxu0 %v1400
    %2632 = vmatpush.bf16.msra.mxu0 %v1396
    %2633 = vmatpush.bf16.msra.mxu0 %v1392
    %2634 = vmatpush.bf16.msra.mxu0 %v1388
    %2635 = vmatmul.bf16.gmra.mxu0 %v2626
    %v2636 = vpop.f32.mrf.mxu0
    %v2637 = vadd.f32 0.0, %v2636
    %v2638 = vpop.f32.mrf.mxu0
    %v2639 = vadd.f32 0.0, %v2638
    %2640 = vdwg.mxu0
    %2641 = vmatpush.bf16.msra.mxu0 %v1417
    %2642 = vmatpush.bf16.msra.mxu0 %v1413
    %2643 = vmatpush.bf16.msra.mxu0 %v1409
    %2644 = vmatpush.bf16.msra.mxu0 %v1405
    %2645 = vmatpush.bf16.msra.mxu0 %v1401
    %2646 = vmatpush.bf16.msra.mxu0 %v1397
    %2647 = vmatpush.bf16.msra.mxu0 %v1393
    %2648 = vmatpush.bf16.msra.mxu0 %v1389
    %2649 = vmatmul.bf16.gmra.mxu0 %v2626
    %v2650 = vpop.f32.mrf.mxu0
    %v2651 = vadd.f32 0.0, %v2650
    %v2652 = vpop.f32.mrf.mxu0
    %v2653 = vadd.f32 0.0, %v2652
    %2654 = vdwg.mxu0
    %2655 = vmatpush.bf16.msra.mxu0 %v1418
    %2656 = vmatpush.bf16.msra.mxu0 %v1414
    %2657 = vmatpush.bf16.msra.mxu0 %v1410
    %2658 = vmatpush.bf16.msra.mxu0 %v1406
    %2659 = vmatpush.bf16.msra.mxu0 %v1402
    %2660 = vmatpush.bf16.msra.mxu0 %v1398
    %2661 = vmatpush.bf16.msra.mxu0 %v1394
    %2662 = vmatpush.bf16.msra.mxu0 %v1390
    %2663 = vmatmul.bf16.gmra.mxu0 %v2626
    %v2664 = vpop.f32.mrf.mxu0
    %v2665 = vadd.f32 0.0, %v2664
    %v2666 = vpop.f32.mrf.mxu0
    %v2667 = vadd.f32 0.0, %v2666
    %2668 = vdwg.mxu0
    %2669 = vmatpush.bf16.msra.mxu0 %v1419
    %2670 = vmatpush.bf16.msra.mxu0 %v1415
    %2671 = vmatpush.bf16.msra.mxu0 %v1411
    %2672 = vmatpush.bf16.msra.mxu0 %v1407
    %2673 = vmatpush.bf16.msra.mxu0 %v1403
    %2674 = vmatpush.bf16.msra.mxu0 %v1399
    %2675 = vmatpush.bf16.msra.mxu0 %v1395
    %2676 = vmatpush.bf16.msra.mxu0 %v1391
    %2677 = vmatmul.bf16.gmra.mxu0 %v2626
    %v2678 = vpop.f32.mrf.mxu0
    %v2679 = vadd.f32 0.0, %v2678
    %v2680 = vpop.f32.mrf.mxu0
    %v2681 = vadd.f32 0.0, %v2680
    %2682 = vdwg.mxu0
    %v2683 = vadd.f32 %v2616, %v2637
    %v2684 = vadd.f32 %v2617, %v2651
    %v2685 = vadd.f32 %v2618, %v2665
    %v2686 = vadd.f32 %v2619, %v2679
    %v2687 = vadd.f32 %v2620, %v2639
    %v2688 = vadd.f32 %v2621, %v2653
    %v2689 = vadd.f32 %v2622, %v2667
    %v2690 = vadd.f32 %v2623, %v2681
    %s2691 = scalar_lea.vmem [#allocation7], 96
    %v2692 = vld [vmem:[%s2691] sm:$0xff]
    %v2693 = vld [vmem:[%s2691 + $0x8] sm:$0xff]
    %v2694 = vld [vmem:[%s2691 + $0x10] sm:$0xff]
    %v2695 = vld [vmem:[%s2691 + $0x18] sm:$0xff]
    %v2696 = vunpack.c.l.bf16 %v2692
    %v2697 = vunpack.c.h.bf16 %v2692
    %v2698 = vunpack.c.l.bf16 %v2693
    %v2699 = vunpack.c.h.bf16 %v2693
    %v2700 = vunpack.c.l.bf16 %v2694
    %v2701 = vunpack.c.h.bf16 %v2694
    %v2702 = vunpack.c.l.bf16 %v2695
    %v2703 = vunpack.c.h.bf16 %v2695
    %v2704 = vld [vmem:[#allocation4] sm:$0xff]
    %v2705 = vld [vmem:[#allocation4 + $0x8] sm:$0xff]
    %v2706 = vpack.c.bf16 %v2705, %v2704
    %2707 = vmatpush.bf16.msra.mxu0 %v1656
    %2708 = vmatpush.bf16.msra.mxu0 %v1652
    %2709 = vmatpush.bf16.msra.mxu0 %v1648
    %2710 = vmatpush.bf16.msra.mxu0 %v1644
    %2711 = vmatpush.bf16.msra.mxu0 %v1640
    %2712 = vmatpush.bf16.msra.mxu0 %v1636
    %2713 = vmatpush.bf16.msra.mxu0 %v1632
    %2714 = vmatpush.bf16.msra.mxu0 %v1628
    %2715 = vmatmul.bf16.gmra.mxu0 %v2706
    %v2716 = vpop.f32.mrf.mxu0
    %v2717 = vadd.f32 0.0, %v2716
    %v2718 = vpop.f32.mrf.mxu0
    %v2719 = vadd.f32 0.0, %v2718
    %2720 = vdwg.mxu0
    %2721 = vmatpush.bf16.msra.mxu0 %v1657
    %2722 = vmatpush.bf16.msra.mxu0 %v1653
    %2723 = vmatpush.bf16.msra.mxu0 %v1649
    %2724 = vmatpush.bf16.msra.mxu0 %v1645
    %2725 = vmatpush.bf16.msra.mxu0 %v1641
    %2726 = vmatpush.bf16.msra.mxu0 %v1637
    %2727 = vmatpush.bf16.msra.mxu0 %v1633
    %2728 = vmatpush.bf16.msra.mxu0 %v1629
    %2729 = vmatmul.bf16.gmra.mxu0 %v2706
    %v2730 = vpop.f32.mrf.mxu0
    %v2731 = vadd.f32 0.0, %v2730
    %v2732 = vpop.f32.mrf.mxu0
    %v2733 = vadd.f32 0.0, %v2732
    %2734 = vdwg.mxu0
    %2735 = vmatpush.bf16.msra.mxu0 %v1658
    %2736 = vmatpush.bf16.msra.mxu0 %v1654
    %2737 = vmatpush.bf16.msra.mxu0 %v1650
    %2738 = vmatpush.bf16.msra.mxu0 %v1646
    %2739 = vmatpush.bf16.msra.mxu0 %v1642
    %2740 = vmatpush.bf16.msra.mxu0 %v1638
    %2741 = vmatpush.bf16.msra.mxu0 %v1634
    %2742 = vmatpush.bf16.msra.mxu0 %v1630
    %2743 = vmatmul.bf16.gmra.mxu0 %v2706
    %v2744 = vpop.f32.mrf.mxu0
    %v2745 = vadd.f32 0.0, %v2744
    %v2746 = vpop.f32.mrf.mxu0
    %v2747 = vadd.f32 0.0, %v2746
    %2748 = vdwg.mxu0
    %2749 = vmatpush.bf16.msra.mxu0 %v1659
    %2750 = vmatpush.bf16.msra.mxu0 %v1655
    %2751 = vmatpush.bf16.msra.mxu0 %v1651
    %2752 = vmatpush.bf16.msra.mxu0 %v1647
    %2753 = vmatpush.bf16.msra.mxu0 %v1643
    %2754 = vmatpush.bf16.msra.mxu0 %v1639
    %2755 = vmatpush.bf16.msra.mxu0 %v1635
    %2756 = vmatpush.bf16.msra.mxu0 %v1631
    %2757 = vmatmul.bf16.gmra.mxu0 %v2706
    %v2758 = vpop.f32.mrf.mxu0
    %v2759 = vadd.f32 0.0, %v2758
    %v2760 = vpop.f32.mrf.mxu0
    %v2761 = vadd.f32 0.0, %v2760
    %2762 = vdwg.mxu0
    %v2763 = vadd.f32 %v2696, %v2717
    %v2764 = vadd.f32 %v2697, %v2731
    %v2765 = vadd.f32 %v2698, %v2745
    %v2766 = vadd.f32 %v2699, %v2759
    %v2767 = vadd.f32 %v2700, %v2719
    %v2768 = vadd.f32 %v2701, %v2733
    %v2769 = vadd.f32 %v2702, %v2747
    %v2770 = vadd.f32 %v2703, %v2761
    %v2771 = vld [vmem:[#allocation3] sm:$0xff]
    %v2772 = vld [vmem:[#allocation3 + $0x8] sm:$0xff]
    %v2773 = vmul.f32 %v2683, 0.5
    %v2774 = vmul.f32 %v2687, 0.5
    %v2775 = vtanh.pop %v2773
    %v2776 = vtanh.pop %v2774
    %v2777 = vmul.f32 %v2775, 0.5
    %v2778 = vmul.f32 %v2776, 0.5
    %v2779 = vadd.f32 %v2777, 0.5
    %v2780 = vadd.f32 %v2778, 0.5
    %v2781 = vmul.f32 %v2684, 0.5
    %v2782 = vmul.f32 %v2688, 0.5
    %v2783 = vtanh.pop %v2781
    %v2784 = vtanh.pop %v2782
    %v2785 = vmul.f32 %v2783, 0.5
    %v2786 = vmul.f32 %v2784, 0.5
    %v2787 = vadd.f32 %v2785, 0.5
    %v2788 = vadd.f32 %v2786, 0.5
    %v2789 = vtanh.pop %v2685
    %v2790 = vtanh.pop %v2689
    %v2791 = vmul.f32 %v2686, 0.5
    %v2792 = vmul.f32 %v2690, 0.5
    %v2793 = vtanh.pop %v2791
    %v2794 = vtanh.pop %v2792
    %v2795 = vmul.f32 %v2793, 0.5
    %v2796 = vmul.f32 %v2794, 0.5
    %v2797 = vadd.f32 %v2795, 0.5
    %v2798 = vadd.f32 %v2796, 0.5
    %v2799 = vmul.f32 %v2787, %v2771
    %v2800 = vmul.f32 %v2788, %v2772
    %v2801 = vmul.f32 %v2779, %v2789
    %v2802 = vmul.f32 %v2780, %v2790
    %v2803 = vadd.f32 %v2799, %v2801
    %v2804 = vadd.f32 %v2800, %v2802
    %v2805 = vtanh.pop %v2803
    %v2806 = vtanh.pop %v2804
    %v2807 = vmul.f32 %v2797, %v2805
    %v2808 = vmul.f32 %v2798, %v2806
    %v2809 = vld [vmem:[#allocation5] sm:$0xff]
    %v2810 = vld [vmem:[#allocation5 + $0x8] sm:$0xff]
    %v2811 = vmul.f32 %v2763, 0.5
    %v2812 = vmul.f32 %v2767, 0.5
    %v2813 = vtanh.pop %v2811
    %v2814 = vtanh.pop %v2812
    %v2815 = vmul.f32 %v2813, 0.5
    %v2816 = vmul.f32 %v2814, 0.5
    %v2817 = vadd.f32 %v2815, 0.5
    %v2818 = vadd.f32 %v2816, 0.5
    %v2819 = vmul.f32 %v2764, 0.5
    %v2820 = vmul.f32 %v2768, 0.5
    %v2821 = vtanh.pop %v2819
    %v2822 = vtanh.pop %v2820
    %v2823 = vmul.f32 %v2821, 0.5
    %v2824 = vmul.f32 %v2822, 0.5
    %v2825 = vadd.f32 %v2823, 0.5
    %v2826 = vadd.f32 %v2824, 0.5
    %v2827 = vtanh.pop %v2765
    %v2828 = vtanh.pop %v2769
    %v2829 = vmul.f32 %v2766, 0.5
    %v2830 = vmul.f32 %v2770, 0.5
    %v2831 = vtanh.pop %v2829
    %v2832 = vtanh.pop %v2830
    %v2833 = vmul.f32 %v2831, 0.5
    %v2834 = vmul.f32 %v2832, 0.5
    %v2835 = vadd.f32 %v2833, 0.5
    %v2836 = vadd.f32 %v2834, 0.5
    %v2837 = vmul.f32 %v2825, %v2809
    %v2838 = vmul.f32 %v2826, %v2810
    %v2839 = vmul.f32 %v2817, %v2827
    %v2840 = vmul.f32 %v2818, %v2828
    %v2841 = vadd.f32 %v2837, %v2839
    %v2842 = vadd.f32 %v2838, %v2840
    %v2843 = vtanh.pop %v2841
    %v2844 = vtanh.pop %v2842
    %v2845 = vmul.f32 %v2835, %v2843
    %v2846 = vmul.f32 %v2836, %v2844
    %2847 = vst [vmem:[#allocation2] sm:$0xff] %v2807
    %2848 = vst [vmem:[#allocation2 + $0x8] sm:$0xff] %v2808
    %2849 = vst [vmem:[#allocation3] sm:$0xff] %v2803
    %2850 = vst [vmem:[#allocation3 + $0x8] sm:$0xff] %v2804
    %2851 = vst [vmem:[#allocation4] sm:$0xff] %v2845
    %2852 = vst [vmem:[#allocation4 + $0x8] sm:$0xff] %v2846
    %2853 = vst [vmem:[#allocation5] sm:$0xff] %v2841
    %2854 = vst [vmem:[#allocation5 + $0x8] sm:$0xff] %v2842
    %v2855 = vpack.c.bf16 %v2807, %v2807
    %v2856 = vpack.c.bf16 %v2808, %v2808
    %s2857 = scalar_lea.vmem [#allocation20], 32
    %2858 = vst [vmem:[%s2857] sm:$0xf] %v2855
    %2859 = vst [vmem:[%s2857 + $0x4] sm:$0xf] %v2856
    %v2860 = vpack.c.bf16 %v2845, %v2845
    %v2861 = vpack.c.bf16 %v2846, %v2846
    %s2862 = scalar_lea.vmem [#allocation21], 24
    %2863 = vst [vmem:[%s2862] sm:$0xf] %v2860
    %2864 = vst [vmem:[%s2862 + $0x4] sm:$0xf] %v2861
    %s2865 = scalar_lea.vmem [#allocation6], 160
    %v2866 = vld [vmem:[%s2865] sm:$0xff]
    %v2867 = vld [vmem:[%s2865 + $0x8] sm:$0xff]
    %v2868 = vld [vmem:[%s2865 + $0x10] sm:$0xff]
    %v2869 = vld [vmem:[%s2865 + $0x18] sm:$0xff]
    %v2870 = vunpack.c.l.bf16 %v2866
    %v2871 = vunpack.c.h.bf16 %v2866
    %v2872 = vunpack.c.l.bf16 %v2867
    %v2873 = vunpack.c.h.bf16 %v2867
    %v2874 = vunpack.c.l.bf16 %v2868
    %v2875 = vunpack.c.h.bf16 %v2868
    %v2876 = vunpack.c.l.bf16 %v2869
    %v2877 = vunpack.c.h.bf16 %v2869
    %v2878 = vld [vmem:[#allocation2] sm:$0xff]
    %v2879 = vld [vmem:[#allocation2 + $0x8] sm:$0xff]
    %v2880 = vpack.c.bf16 %v2879, %v2878
    %2881 = vmatpush.bf16.msra.mxu0 %v1416
    %2882 = vmatpush.bf16.msra.mxu0 %v1412
    %2883 = vmatpush.bf16.msra.mxu0 %v1408
    %2884 = vmatpush.bf16.msra.mxu0 %v1404
    %2885 = vmatpush.bf16.msra.mxu0 %v1400
    %2886 = vmatpush.bf16.msra.mxu0 %v1396
    %2887 = vmatpush.bf16.msra.mxu0 %v1392
    %2888 = vmatpush.bf16.msra.mxu0 %v1388
    %2889 = vmatmul.bf16.gmra.mxu0 %v2880
    %v2890 = vpop.f32.mrf.mxu0
    %v2891 = vadd.f32 0.0, %v2890
    %v2892 = vpop.f32.mrf.mxu0
    %v2893 = vadd.f32 0.0, %v2892
    %2894 = vdwg.mxu0
    %2895 = vmatpush.bf16.msra.mxu0 %v1417
    %2896 = vmatpush.bf16.msra.mxu0 %v1413
    %2897 = vmatpush.bf16.msra.mxu0 %v1409
    %2898 = vmatpush.bf16.msra.mxu0 %v1405
    %2899 = vmatpush.bf16.msra.mxu0 %v1401
    %2900 = vmatpush.bf16.msra.mxu0 %v1397
    %2901 = vmatpush.bf16.msra.mxu0 %v1393
    %2902 = vmatpush.bf16.msra.mxu0 %v1389
    %2903 = vmatmul.bf16.gmra.mxu0 %v2880
    %v2904 = vpop.f32.mrf.mxu0
    %v2905 = vadd.f32 0.0, %v2904
    %v2906 = vpop.f32.mrf.mxu0
    %v2907 = vadd.f32 0.0, %v2906
    %2908 = vdwg.mxu0
    %2909 = vmatpush.bf16.msra.mxu0 %v1418
    %2910 = vmatpush.bf16.msra.mxu0 %v1414
    %2911 = vmatpush.bf16.msra.mxu0 %v1410
    %2912 = vmatpush.bf16.msra.mxu0 %v1406
    %2913 = vmatpush.bf16.msra.mxu0 %v1402
    %2914 = vmatpush.bf16.msra.mxu0 %v1398
    %2915 = vmatpush.bf16.msra.mxu0 %v1394
    %2916 = vmatpush.bf16.msra.mxu0 %v1390
    %2917 = vmatmul.bf16.gmra.mxu0 %v2880
    %v2918 = vpop.f32.mrf.mxu0
    %v2919 = vadd.f32 0.0, %v2918
    %v2920 = vpop.f32.mrf.mxu0
    %v2921 = vadd.f32 0.0, %v2920
    %2922 = vdwg.mxu0
    %2923 = vmatpush.bf16.msra.mxu0 %v1419
    %2924 = vmatpush.bf16.msra.mxu0 %v1415
    %2925 = vmatpush.bf16.msra.mxu0 %v1411
    %2926 = vmatpush.bf16.msra.mxu0 %v1407
    %2927 = vmatpush.bf16.msra.mxu0 %v1403
    %2928 = vmatpush.bf16.msra.mxu0 %v1399
    %2929 = vmatpush.bf16.msra.mxu0 %v1395
    %2930 = vmatpush.bf16.msra.mxu0 %v1391
    %2931 = vmatmul.bf16.gmra.mxu0 %v2880
    %v2932 = vpop.f32.mrf.mxu0
    %v2933 = vadd.f32 0.0, %v2932
    %v2934 = vpop.f32.mrf.mxu0
    %v2935 = vadd.f32 0.0, %v2934
    %2936 = vdwg.mxu0
    %v2937 = vadd.f32 %v2870, %v2891
    %v2938 = vadd.f32 %v2871, %v2905
    %v2939 = vadd.f32 %v2872, %v2919
    %v2940 = vadd.f32 %v2873, %v2933
    %v2941 = vadd.f32 %v2874, %v2893
    %v2942 = vadd.f32 %v2875, %v2907
    %v2943 = vadd.f32 %v2876, %v2921
    %v2944 = vadd.f32 %v2877, %v2935
    %s2945 = scalar_lea.vmem [#allocation7], 64
    %v2946 = vld [vmem:[%s2945] sm:$0xff]
    %v2947 = vld [vmem:[%s2945 + $0x8] sm:$0xff]
    %v2948 = vld [vmem:[%s2945 + $0x10] sm:$0xff]
    %v2949 = vld [vmem:[%s2945 + $0x18] sm:$0xff]
    %v2950 = vunpack.c.l.bf16 %v2946
    %v2951 = vunpack.c.h.bf16 %v2946
    %v2952 = vunpack.c.l.bf16 %v2947
    %v2953 = vunpack.c.h.bf16 %v2947
    %v2954 = vunpack.c.l.bf16 %v2948
    %v2955 = vunpack.c.h.bf16 %v2948
    %v2956 = vunpack.c.l.bf16 %v2949
    %v2957 = vunpack.c.h.bf16 %v2949
    %v2958 = vld [vmem:[#allocation4] sm:$0xff]
    %v2959 = vld [vmem:[#allocation4 + $0x8] sm:$0xff]
    %v2960 = vpack.c.bf16 %v2959, %v2958
    %2961 = vmatpush.bf16.msra.mxu0 %v1656
    %2962 = vmatpush.bf16.msra.mxu0 %v1652
    %2963 = vmatpush.bf16.msra.mxu0 %v1648
    %2964 = vmatpush.bf16.msra.mxu0 %v1644
    %2965 = vmatpush.bf16.msra.mxu0 %v1640
    %2966 = vmatpush.bf16.msra.mxu0 %v1636
    %2967 = vmatpush.bf16.msra.mxu0 %v1632
    %2968 = vmatpush.bf16.msra.mxu0 %v1628
    %2969 = vmatmul.bf16.gmra.mxu0 %v2960
    %v2970 = vpop.f32.mrf.mxu0
    %v2971 = vadd.f32 0.0, %v2970
    %v2972 = vpop.f32.mrf.mxu0
    %v2973 = vadd.f32 0.0, %v2972
    %2974 = vdwg.mxu0
    %2975 = vmatpush.bf16.msra.mxu0 %v1657
    %2976 = vmatpush.bf16.msra.mxu0 %v1653
    %2977 = vmatpush.bf16.msra.mxu0 %v1649
    %2978 = vmatpush.bf16.msra.mxu0 %v1645
    %2979 = vmatpush.bf16.msra.mxu0 %v1641
    %2980 = vmatpush.bf16.msra.mxu0 %v1637
    %2981 = vmatpush.bf16.msra.mxu0 %v1633
    %2982 = vmatpush.bf16.msra.mxu0 %v1629
    %2983 = vmatmul.bf16.gmra.mxu0 %v2960
    %v2984 = vpop.f32.mrf.mxu0
    %v2985 = vadd.f32 0.0, %v2984
    %v2986 = vpop.f32.mrf.mxu0
    %v2987 = vadd.f32 0.0, %v2986
    %2988 = vdwg.mxu0
    %2989 = vmatpush.bf16.msra.mxu0 %v1658
    %2990 = vmatpush.bf16.msra.mxu0 %v1654
    %2991 = vmatpush.bf16.msra.mxu0 %v1650
    %2992 = vmatpush.bf16.msra.mxu0 %v1646
    %2993 = vmatpush.bf16.msra.mxu0 %v1642
    %2994 = vmatpush.bf16.msra.mxu0 %v1638
    %2995 = vmatpush.bf16.msra.mxu0 %v1634
    %2996 = vmatpush.bf16.msra.mxu0 %v1630
    %2997 = vmatmul.bf16.gmra.mxu0 %v2960
    %v2998 = vpop.f32.mrf.mxu0
    %v2999 = vadd.f32 0.0, %v2998
    %v3000 = vpop.f32.mrf.mxu0
    %v3001 = vadd.f32 0.0, %v3000
    %3002 = vdwg.mxu0
    %3003 = vmatpush.bf16.msra.mxu0 %v1659
    %3004 = vmatpush.bf16.msra.mxu0 %v1655
    %3005 = vmatpush.bf16.msra.mxu0 %v1651
    %3006 = vmatpush.bf16.msra.mxu0 %v1647
    %3007 = vmatpush.bf16.msra.mxu0 %v1643
    %3008 = vmatpush.bf16.msra.mxu0 %v1639
    %3009 = vmatpush.bf16.msra.mxu0 %v1635
    %3010 = vmatpush.bf16.msra.mxu0 %v1631
    %3011 = vmatmul.bf16.gmra.mxu0 %v2960
    %v3012 = vpop.f32.mrf.mxu0
    %v3013 = vadd.f32 0.0, %v3012
    %v3014 = vpop.f32.mrf.mxu0
    %v3015 = vadd.f32 0.0, %v3014
    %3016 = vdwg.mxu0
    %v3017 = vadd.f32 %v2950, %v2971
    %v3018 = vadd.f32 %v2951, %v2985
    %v3019 = vadd.f32 %v2952, %v2999
    %v3020 = vadd.f32 %v2953, %v3013
    %v3021 = vadd.f32 %v2954, %v2973
    %v3022 = vadd.f32 %v2955, %v2987
    %v3023 = vadd.f32 %v2956, %v3001
    %v3024 = vadd.f32 %v2957, %v3015
    %v3025 = vld [vmem:[#allocation3] sm:$0xff]
    %v3026 = vld [vmem:[#allocation3 + $0x8] sm:$0xff]
    %v3027 = vmul.f32 %v2937, 0.5
    %v3028 = vmul.f32 %v2941, 0.5
    %v3029 = vtanh.pop %v3027
    %v3030 = vtanh.pop %v3028
    %v3031 = vmul.f32 %v3029, 0.5
    %v3032 = vmul.f32 %v3030, 0.5
    %v3033 = vadd.f32 %v3031, 0.5
    %v3034 = vadd.f32 %v3032, 0.5
    %v3035 = vmul.f32 %v2938, 0.5
    %v3036 = vmul.f32 %v2942, 0.5
    %v3037 = vtanh.pop %v3035
    %v3038 = vtanh.pop %v3036
    %v3039 = vmul.f32 %v3037, 0.5
    %v3040 = vmul.f32 %v3038, 0.5
    %v3041 = vadd.f32 %v3039, 0.5
    %v3042 = vadd.f32 %v3040, 0.5
    %v3043 = vtanh.pop %v2939
    %v3044 = vtanh.pop %v2943
    %v3045 = vmul.f32 %v2940, 0.5
    %v3046 = vmul.f32 %v2944, 0.5
    %v3047 = vtanh.pop %v3045
    %v3048 = vtanh.pop %v3046
    %v3049 = vmul.f32 %v3047, 0.5
    %v3050 = vmul.f32 %v3048, 0.5
    %v3051 = vadd.f32 %v3049, 0.5
    %v3052 = vadd.f32 %v3050, 0.5
    %v3053 = vmul.f32 %v3041, %v3025
    %v3054 = vmul.f32 %v3042, %v3026
    %v3055 = vmul.f32 %v3033, %v3043
    %v3056 = vmul.f32 %v3034, %v3044
    %v3057 = vadd.f32 %v3053, %v3055
    %v3058 = vadd.f32 %v3054, %v3056
    %v3059 = vtanh.pop %v3057
    %v3060 = vtanh.pop %v3058
    %v3061 = vmul.f32 %v3051, %v3059
    %v3062 = vmul.f32 %v3052, %v3060
    %v3063 = vld [vmem:[#allocation5] sm:$0xff]
    %v3064 = vld [vmem:[#allocation5 + $0x8] sm:$0xff]
    %v3065 = vmul.f32 %v3017, 0.5
    %v3066 = vmul.f32 %v3021, 0.5
    %v3067 = vtanh.pop %v3065
    %v3068 = vtanh.pop %v3066
    %v3069 = vmul.f32 %v3067, 0.5
    %v3070 = vmul.f32 %v3068, 0.5
    %v3071 = vadd.f32 %v3069, 0.5
    %v3072 = vadd.f32 %v3070, 0.5
    %v3073 = vmul.f32 %v3018, 0.5
    %v3074 = vmul.f32 %v3022, 0.5
    %v3075 = vtanh.pop %v3073
    %v3076 = vtanh.pop %v3074
    %v3077 = vmul.f32 %v3075, 0.5
    %v3078 = vmul.f32 %v3076, 0.5
    %v3079 = vadd.f32 %v3077, 0.5
    %v3080 = vadd.f32 %v3078, 0.5
    %v3081 = vtanh.pop %v3019
    %v3082 = vtanh.pop %v3023
    %v3083 = vmul.f32 %v3020, 0.5
    %v3084 = vmul.f32 %v3024, 0.5
    %v3085 = vtanh.pop %v3083
    %v3086 = vtanh.pop %v3084
    %v3087 = vmul.f32 %v3085, 0.5
    %v3088 = vmul.f32 %v3086, 0.5
    %v3089 = vadd.f32 %v3087, 0.5
    %v3090 = vadd.f32 %v3088, 0.5
    %v3091 = vmul.f32 %v3079, %v3063
    %v3092 = vmul.f32 %v3080, %v3064
    %v3093 = vmul.f32 %v3071, %v3081
    %v3094 = vmul.f32 %v3072, %v3082
    %v3095 = vadd.f32 %v3091, %v3093
    %v3096 = vadd.f32 %v3092, %v3094
    %v3097 = vtanh.pop %v3095
    %v3098 = vtanh.pop %v3096
    %v3099 = vmul.f32 %v3089, %v3097
    %v3100 = vmul.f32 %v3090, %v3098
    %3101 = vst [vmem:[#allocation2] sm:$0xff] %v3061
    %3102 = vst [vmem:[#allocation2 + $0x8] sm:$0xff] %v3062
    %3103 = vst [vmem:[#allocation3] sm:$0xff] %v3057
    %3104 = vst [vmem:[#allocation3 + $0x8] sm:$0xff] %v3058
    %3105 = vst [vmem:[#allocation4] sm:$0xff] %v3099
    %3106 = vst [vmem:[#allocation4 + $0x8] sm:$0xff] %v3100
    %3107 = vst [vmem:[#allocation5] sm:$0xff] %v3095
    %3108 = vst [vmem:[#allocation5 + $0x8] sm:$0xff] %v3096
    %v3109 = vpack.c.bf16 %v3061, %v3061
    %v3110 = vpack.c.bf16 %v3062, %v3062
    %s3111 = scalar_lea.vmem [#allocation20], 40
    %3112 = vst [vmem:[%s3111] sm:$0xf] %v3109
    %3113 = vst [vmem:[%s3111 + $0x4] sm:$0xf] %v3110
    %v3114 = vpack.c.bf16 %v3099, %v3099
    %v3115 = vpack.c.bf16 %v3100, %v3100
    %s3116 = scalar_lea.vmem [#allocation21], 16
    %3117 = vst [vmem:[%s3116] sm:$0xf] %v3114
    %3118 = vst [vmem:[%s3116 + $0x4] sm:$0xf] %v3115
    %s3119 = scalar_lea.vmem [#allocation6], 192
    %v3120 = vld [vmem:[%s3119] sm:$0xff]
    %v3121 = vld [vmem:[%s3119 + $0x8] sm:$0xff]
    %v3122 = vld [vmem:[%s3119 + $0x10] sm:$0xff]
    %v3123 = vld [vmem:[%s3119 + $0x18] sm:$0xff]
    %v3124 = vunpack.c.l.bf16 %v3120
    %v3125 = vunpack.c.h.bf16 %v3120
    %v3126 = vunpack.c.l.bf16 %v3121
    %v3127 = vunpack.c.h.bf16 %v3121
    %v3128 = vunpack.c.l.bf16 %v3122
    %v3129 = vunpack.c.h.bf16 %v3122
    %v3130 = vunpack.c.l.bf16 %v3123
    %v3131 = vunpack.c.h.bf16 %v3123
    %v3132 = vld [vmem:[#allocation2] sm:$0xff]
    %v3133 = vld [vmem:[#allocation2 + $0x8] sm:$0xff]
    %v3134 = vpack.c.bf16 %v3133, %v3132
    %3135 = vmatpush.bf16.msra.mxu0 %v1416
    %3136 = vmatpush.bf16.msra.mxu0 %v1412
    %3137 = vmatpush.bf16.msra.mxu0 %v1408
    %3138 = vmatpush.bf16.msra.mxu0 %v1404
    %3139 = vmatpush.bf16.msra.mxu0 %v1400
    %3140 = vmatpush.bf16.msra.mxu0 %v1396
    %3141 = vmatpush.bf16.msra.mxu0 %v1392
    %3142 = vmatpush.bf16.msra.mxu0 %v1388
    %3143 = vmatmul.bf16.gmra.mxu0 %v3134
    %v3144 = vpop.f32.mrf.mxu0
    %v3145 = vadd.f32 0.0, %v3144
    %v3146 = vpop.f32.mrf.mxu0
    %v3147 = vadd.f32 0.0, %v3146
    %3148 = vdwg.mxu0
    %3149 = vmatpush.bf16.msra.mxu0 %v1417
    %3150 = vmatpush.bf16.msra.mxu0 %v1413
    %3151 = vmatpush.bf16.msra.mxu0 %v1409
    %3152 = vmatpush.bf16.msra.mxu0 %v1405
    %3153 = vmatpush.bf16.msra.mxu0 %v1401
    %3154 = vmatpush.bf16.msra.mxu0 %v1397
    %3155 = vmatpush.bf16.msra.mxu0 %v1393
    %3156 = vmatpush.bf16.msra.mxu0 %v1389
    %3157 = vmatmul.bf16.gmra.mxu0 %v3134
    %v3158 = vpop.f32.mrf.mxu0
    %v3159 = vadd.f32 0.0, %v3158
    %v3160 = vpop.f32.mrf.mxu0
    %v3161 = vadd.f32 0.0, %v3160
    %3162 = vdwg.mxu0
    %3163 = vmatpush.bf16.msra.mxu0 %v1418
    %3164 = vmatpush.bf16.msra.mxu0 %v1414
    %3165 = vmatpush.bf16.msra.mxu0 %v1410
    %3166 = vmatpush.bf16.msra.mxu0 %v1406
    %3167 = vmatpush.bf16.msra.mxu0 %v1402
    %3168 = vmatpush.bf16.msra.mxu0 %v1398
    %3169 = vmatpush.bf16.msra.mxu0 %v1394
    %3170 = vmatpush.bf16.msra.mxu0 %v1390
    %3171 = vmatmul.bf16.gmra.mxu0 %v3134
    %v3172 = vpop.f32.mrf.mxu0
    %v3173 = vadd.f32 0.0, %v3172
    %v3174 = vpop.f32.mrf.mxu0
    %v3175 = vadd.f32 0.0, %v3174
    %3176 = vdwg.mxu0
    %3177 = vmatpush.bf16.msra.mxu0 %v1419
    %3178 = vmatpush.bf16.msra.mxu0 %v1415
    %3179 = vmatpush.bf16.msra.mxu0 %v1411
    %3180 = vmatpush.bf16.msra.mxu0 %v1407
    %3181 = vmatpush.bf16.msra.mxu0 %v1403
    %3182 = vmatpush.bf16.msra.mxu0 %v1399
    %3183 = vmatpush.bf16.msra.mxu0 %v1395
    %3184 = vmatpush.bf16.msra.mxu0 %v1391
    %3185 = vmatmul.bf16.gmra.mxu0 %v3134
    %v3186 = vpop.f32.mrf.mxu0
    %v3187 = vadd.f32 0.0, %v3186
    %v3188 = vpop.f32.mrf.mxu0
    %v3189 = vadd.f32 0.0, %v3188
    %3190 = vdwg.mxu0
    %v3191 = vadd.f32 %v3124, %v3145
    %v3192 = vadd.f32 %v3125, %v3159
    %v3193 = vadd.f32 %v3126, %v3173
    %v3194 = vadd.f32 %v3127, %v3187
    %v3195 = vadd.f32 %v3128, %v3147
    %v3196 = vadd.f32 %v3129, %v3161
    %v3197 = vadd.f32 %v3130, %v3175
    %v3198 = vadd.f32 %v3131, %v3189
    %s3199 = scalar_lea.vmem [#allocation7], 32
    %v3200 = vld [vmem:[%s3199] sm:$0xff]
    %v3201 = vld [vmem:[%s3199 + $0x8] sm:$0xff]
    %v3202 = vld [vmem:[%s3199 + $0x10] sm:$0xff]
    %v3203 = vld [vmem:[%s3199 + $0x18] sm:$0xff]
    %v3204 = vunpack.c.l.bf16 %v3200
    %v3205 = vunpack.c.h.bf16 %v3200
    %v3206 = vunpack.c.l.bf16 %v3201
    %v3207 = vunpack.c.h.bf16 %v3201
    %v3208 = vunpack.c.l.bf16 %v3202
    %v3209 = vunpack.c.h.bf16 %v3202
    %v3210 = vunpack.c.l.bf16 %v3203
    %v3211 = vunpack.c.h.bf16 %v3203
    %v3212 = vld [vmem:[#allocation4] sm:$0xff]
    %v3213 = vld [vmem:[#allocation4 + $0x8] sm:$0xff]
    %v3214 = vpack.c.bf16 %v3213, %v3212
    %3215 = vmatpush.bf16.msra.mxu0 %v1656
    %3216 = vmatpush.bf16.msra.mxu0 %v1652
    %3217 = vmatpush.bf16.msra.mxu0 %v1648
    %3218 = vmatpush.bf16.msra.mxu0 %v1644
    %3219 = vmatpush.bf16.msra.mxu0 %v1640
    %3220 = vmatpush.bf16.msra.mxu0 %v1636
    %3221 = vmatpush.bf16.msra.mxu0 %v1632
    %3222 = vmatpush.bf16.msra.mxu0 %v1628
    %3223 = vmatmul.bf16.gmra.mxu0 %v3214
    %v3224 = vpop.f32.mrf.mxu0
    %v3225 = vadd.f32 0.0, %v3224
    %v3226 = vpop.f32.mrf.mxu0
    %v3227 = vadd.f32 0.0, %v3226
    %3228 = vdwg.mxu0
    %3229 = vmatpush.bf16.msra.mxu0 %v1657
    %3230 = vmatpush.bf16.msra.mxu0 %v1653
    %3231 = vmatpush.bf16.msra.mxu0 %v1649
    %3232 = vmatpush.bf16.msra.mxu0 %v1645
    %3233 = vmatpush.bf16.msra.mxu0 %v1641
    %3234 = vmatpush.bf16.msra.mxu0 %v1637
    %3235 = vmatpush.bf16.msra.mxu0 %v1633
    %3236 = vmatpush.bf16.msra.mxu0 %v1629
    %3237 = vmatmul.bf16.gmra.mxu0 %v3214
    %v3238 = vpop.f32.mrf.mxu0
    %v3239 = vadd.f32 0.0, %v3238
    %v3240 = vpop.f32.mrf.mxu0
    %v3241 = vadd.f32 0.0, %v3240
    %3242 = vdwg.mxu0
    %3243 = vmatpush.bf16.msra.mxu0 %v1658
    %3244 = vmatpush.bf16.msra.mxu0 %v1654
    %3245 = vmatpush.bf16.msra.mxu0 %v1650
    %3246 = vmatpush.bf16.msra.mxu0 %v1646
    %3247 = vmatpush.bf16.msra.mxu0 %v1642
    %3248 = vmatpush.bf16.msra.mxu0 %v1638
    %3249 = vmatpush.bf16.msra.mxu0 %v1634
    %3250 = vmatpush.bf16.msra.mxu0 %v1630
    %3251 = vmatmul.bf16.gmra.mxu0 %v3214
    %v3252 = vpop.f32.mrf.mxu0
    %v3253 = vadd.f32 0.0, %v3252
    %v3254 = vpop.f32.mrf.mxu0
    %v3255 = vadd.f32 0.0, %v3254
    %3256 = vdwg.mxu0
    %3257 = vmatpush.bf16.msra.mxu0 %v1659
    %3258 = vmatpush.bf16.msra.mxu0 %v1655
    %3259 = vmatpush.bf16.msra.mxu0 %v1651
    %3260 = vmatpush.bf16.msra.mxu0 %v1647
    %3261 = vmatpush.bf16.msra.mxu0 %v1643
    %3262 = vmatpush.bf16.msra.mxu0 %v1639
    %3263 = vmatpush.bf16.msra.mxu0 %v1635
    %3264 = vmatpush.bf16.msra.mxu0 %v1631
    %3265 = vmatmul.bf16.gmra.mxu0 %v3214
    %v3266 = vpop.f32.mrf.mxu0
    %v3267 = vadd.f32 0.0, %v3266
    %v3268 = vpop.f32.mrf.mxu0
    %v3269 = vadd.f32 0.0, %v3268
    %3270 = vdwg.mxu0
    %v3271 = vadd.f32 %v3204, %v3225
    %v3272 = vadd.f32 %v3205, %v3239
    %v3273 = vadd.f32 %v3206, %v3253
    %v3274 = vadd.f32 %v3207, %v3267
    %v3275 = vadd.f32 %v3208, %v3227
    %v3276 = vadd.f32 %v3209, %v3241
    %v3277 = vadd.f32 %v3210, %v3255
    %v3278 = vadd.f32 %v3211, %v3269
    %v3279 = vld [vmem:[#allocation3] sm:$0xff]
    %v3280 = vld [vmem:[#allocation3 + $0x8] sm:$0xff]
    %v3281 = vmul.f32 %v3191, 0.5
    %v3282 = vmul.f32 %v3195, 0.5
    %v3283 = vtanh.pop %v3281
    %v3284 = vtanh.pop %v3282
    %v3285 = vmul.f32 %v3283, 0.5
    %v3286 = vmul.f32 %v3284, 0.5
    %v3287 = vadd.f32 %v3285, 0.5
    %v3288 = vadd.f32 %v3286, 0.5
    %v3289 = vmul.f32 %v3192, 0.5
    %v3290 = vmul.f32 %v3196, 0.5
    %v3291 = vtanh.pop %v3289
    %v3292 = vtanh.pop %v3290
    %v3293 = vmul.f32 %v3291, 0.5
    %v3294 = vmul.f32 %v3292, 0.5
    %v3295 = vadd.f32 %v3293, 0.5
    %v3296 = vadd.f32 %v3294, 0.5
    %v3297 = vtanh.pop %v3193
    %v3298 = vtanh.pop %v3197
    %v3299 = vmul.f32 %v3194, 0.5
    %v3300 = vmul.f32 %v3198, 0.5
    %v3301 = vtanh.pop %v3299
    %v3302 = vtanh.pop %v3300
    %v3303 = vmul.f32 %v3301, 0.5
    %v3304 = vmul.f32 %v3302, 0.5
    %v3305 = vadd.f32 %v3303, 0.5
    %v3306 = vadd.f32 %v3304, 0.5
    %v3307 = vmul.f32 %v3295, %v3279
    %v3308 = vmul.f32 %v3296, %v3280
    %v3309 = vmul.f32 %v3287, %v3297
    %v3310 = vmul.f32 %v3288, %v3298
    %v3311 = vadd.f32 %v3307, %v3309
    %v3312 = vadd.f32 %v3308, %v3310
    %v3313 = vtanh.pop %v3311
    %v3314 = vtanh.pop %v3312
    %v3315 = vmul.f32 %v3305, %v3313
    %v3316 = vmul.f32 %v3306, %v3314
    %v3317 = vld [vmem:[#allocation5] sm:$0xff]
    %v3318 = vld [vmem:[#allocation5 + $0x8] sm:$0xff]
    %v3319 = vmul.f32 %v3271, 0.5
    %v3320 = vmul.f32 %v3275, 0.5
    %v3321 = vtanh.pop %v3319
    %v3322 = vtanh.pop %v3320
    %v3323 = vmul.f32 %v3321, 0.5
    %v3324 = vmul.f32 %v3322, 0.5
    %v3325 = vadd.f32 %v3323, 0.5
    %v3326 = vadd.f32 %v3324, 0.5
    %v3327 = vmul.f32 %v3272, 0.5
    %v3328 = vmul.f32 %v3276, 0.5
    %v3329 = vtanh.pop %v3327
    %v3330 = vtanh.pop %v3328
    %v3331 = vmul.f32 %v3329, 0.5
    %v3332 = vmul.f32 %v3330, 0.5
    %v3333 = vadd.f32 %v3331, 0.5
    %v3334 = vadd.f32 %v3332, 0.5
    %v3335 = vtanh.pop %v3273
    %v3336 = vtanh.pop %v3277
    %v3337 = vmul.f32 %v3274, 0.5
    %v3338 = vmul.f32 %v3278, 0.5
    %v3339 = vtanh.pop %v3337
    %v3340 = vtanh.pop %v3338
    %v3341 = vmul.f32 %v3339, 0.5
    %v3342 = vmul.f32 %v3340, 0.5
    %v3343 = vadd.f32 %v3341, 0.5
    %v3344 = vadd.f32 %v3342, 0.5
    %v3345 = vmul.f32 %v3333, %v3317
    %v3346 = vmul.f32 %v3334, %v3318
    %v3347 = vmul.f32 %v3325, %v3335
    %v3348 = vmul.f32 %v3326, %v3336
    %v3349 = vadd.f32 %v3345, %v3347
    %v3350 = vadd.f32 %v3346, %v3348
    %v3351 = vtanh.pop %v3349
    %v3352 = vtanh.pop %v3350
    %v3353 = vmul.f32 %v3343, %v3351
    %v3354 = vmul.f32 %v3344, %v3352
    %3355 = vst [vmem:[#allocation2] sm:$0xff] %v3315
    %3356 = vst [vmem:[#allocation2 + $0x8] sm:$0xff] %v3316
    %3357 = vst [vmem:[#allocation3] sm:$0xff] %v3311
    %3358 = vst [vmem:[#allocation3 + $0x8] sm:$0xff] %v3312
    %3359 = vst [vmem:[#allocation4] sm:$0xff] %v3353
    %3360 = vst [vmem:[#allocation4 + $0x8] sm:$0xff] %v3354
    %3361 = vst [vmem:[#allocation5] sm:$0xff] %v3349
    %3362 = vst [vmem:[#allocation5 + $0x8] sm:$0xff] %v3350
    %v3363 = vpack.c.bf16 %v3315, %v3315
    %v3364 = vpack.c.bf16 %v3316, %v3316
    %s3365 = scalar_lea.vmem [#allocation20], 48
    %3366 = vst [vmem:[%s3365] sm:$0xf] %v3363
    %3367 = vst [vmem:[%s3365 + $0x4] sm:$0xf] %v3364
    %v3368 = vpack.c.bf16 %v3353, %v3353
    %v3369 = vpack.c.bf16 %v3354, %v3354
    %s3370 = scalar_lea.vmem [#allocation21], 8
    %3371 = vst [vmem:[%s3370] sm:$0xf] %v3368
    %3372 = vst [vmem:[%s3370 + $0x4] sm:$0xf] %v3369
    %s3373 = scalar_lea.vmem [#allocation6], 224
    %v3374 = vld [vmem:[%s3373] sm:$0xff]
    %v3375 = vld [vmem:[%s3373 + $0x8] sm:$0xff]
    %v3376 = vld [vmem:[%s3373 + $0x10] sm:$0xff]
    %v3377 = vld [vmem:[%s3373 + $0x18] sm:$0xff]
    %v3378 = vunpack.c.l.bf16 %v3374
    %v3379 = vunpack.c.h.bf16 %v3374
    %v3380 = vunpack.c.l.bf16 %v3375
    %v3381 = vunpack.c.h.bf16 %v3375
    %v3382 = vunpack.c.l.bf16 %v3376
    %v3383 = vunpack.c.h.bf16 %v3376
    %v3384 = vunpack.c.l.bf16 %v3377
    %v3385 = vunpack.c.h.bf16 %v3377
    %v3386 = vld [vmem:[#allocation2] sm:$0xff]
    %v3387 = vld [vmem:[#allocation2 + $0x8] sm:$0xff]
    %v3388 = vpack.c.bf16 %v3387, %v3386
    %3389 = vmatpush.bf16.msra.mxu0 %v1416
    %3390 = vmatpush.bf16.msra.mxu0 %v1412
    %3391 = vmatpush.bf16.msra.mxu0 %v1408
    %3392 = vmatpush.bf16.msra.mxu0 %v1404
    %3393 = vmatpush.bf16.msra.mxu0 %v1400
    %3394 = vmatpush.bf16.msra.mxu0 %v1396
    %3395 = vmatpush.bf16.msra.mxu0 %v1392
    %3396 = vmatpush.bf16.msra.mxu0 %v1388
    %3397 = vmatmul.bf16.gmra.mxu0 %v3388
    %v3398 = vpop.f32.mrf.mxu0
    %v3399 = vadd.f32 0.0, %v3398
    %v3400 = vpop.f32.mrf.mxu0
    %v3401 = vadd.f32 0.0, %v3400
    %3402 = vdwg.mxu0
    %3403 = vmatpush.bf16.msra.mxu0 %v1417
    %3404 = vmatpush.bf16.msra.mxu0 %v1413
    %3405 = vmatpush.bf16.msra.mxu0 %v1409
    %3406 = vmatpush.bf16.msra.mxu0 %v1405
    %3407 = vmatpush.bf16.msra.mxu0 %v1401
    %3408 = vmatpush.bf16.msra.mxu0 %v1397
    %3409 = vmatpush.bf16.msra.mxu0 %v1393
    %3410 = vmatpush.bf16.msra.mxu0 %v1389
    %3411 = vmatmul.bf16.gmra.mxu0 %v3388
    %v3412 = vpop.f32.mrf.mxu0
    %v3413 = vadd.f32 0.0, %v3412
    %v3414 = vpop.f32.mrf.mxu0
    %v3415 = vadd.f32 0.0, %v3414
    %3416 = vdwg.mxu0
    %3417 = vmatpush.bf16.msra.mxu0 %v1418
    %3418 = vmatpush.bf16.msra.mxu0 %v1414
    %3419 = vmatpush.bf16.msra.mxu0 %v1410
    %3420 = vmatpush.bf16.msra.mxu0 %v1406
    %3421 = vmatpush.bf16.msra.mxu0 %v1402
    %3422 = vmatpush.bf16.msra.mxu0 %v1398
    %3423 = vmatpush.bf16.msra.mxu0 %v1394
    %3424 = vmatpush.bf16.msra.mxu0 %v1390
    %3425 = vmatmul.bf16.gmra.mxu0 %v3388
    %v3426 = vpop.f32.mrf.mxu0
    %v3427 = vadd.f32 0.0, %v3426
    %v3428 = vpop.f32.mrf.mxu0
    %v3429 = vadd.f32 0.0, %v3428
    %3430 = vdwg.mxu0
    %3431 = vmatpush.bf16.msra.mxu0 %v1419
    %3432 = vmatpush.bf16.msra.mxu0 %v1415
    %3433 = vmatpush.bf16.msra.mxu0 %v1411
    %3434 = vmatpush.bf16.msra.mxu0 %v1407
    %3435 = vmatpush.bf16.msra.mxu0 %v1403
    %3436 = vmatpush.bf16.msra.mxu0 %v1399
    %3437 = vmatpush.bf16.msra.mxu0 %v1395
    %3438 = vmatpush.bf16.msra.mxu0 %v1391
    %3439 = vmatmul.bf16.gmra.mxu0 %v3388
    %v3440 = vpop.f32.mrf.mxu0
    %v3441 = vadd.f32 0.0, %v3440
    %v3442 = vpop.f32.mrf.mxu0
    %v3443 = vadd.f32 0.0, %v3442
    %3444 = vdwg.mxu0
    %v3445 = vadd.f32 %v3378, %v3399
    %v3446 = vadd.f32 %v3379, %v3413
    %v3447 = vadd.f32 %v3380, %v3427
    %v3448 = vadd.f32 %v3381, %v3441
    %v3449 = vadd.f32 %v3382, %v3401
    %v3450 = vadd.f32 %v3383, %v3415
    %v3451 = vadd.f32 %v3384, %v3429
    %v3452 = vadd.f32 %v3385, %v3443
    %v3453 = vld [vmem:[#allocation7] sm:$0xff]
    %v3454 = vld [vmem:[#allocation7 + $0x8] sm:$0xff]
    %v3455 = vld [vmem:[#allocation7 + $0x10] sm:$0xff]
    %v3456 = vld [vmem:[#allocation7 + $0x18] sm:$0xff]
    %v3457 = vunpack.c.l.bf16 %v3453
    %v3458 = vunpack.c.h.bf16 %v3453
    %v3459 = vunpack.c.l.bf16 %v3454
    %v3460 = vunpack.c.h.bf16 %v3454
    %v3461 = vunpack.c.l.bf16 %v3455
    %v3462 = vunpack.c.h.bf16 %v3455
    %v3463 = vunpack.c.l.bf16 %v3456
    %v3464 = vunpack.c.h.bf16 %v3456
    %v3465 = vld [vmem:[#allocation4] sm:$0xff]
    %v3466 = vld [vmem:[#allocation4 + $0x8] sm:$0xff]
    %v3467 = vpack.c.bf16 %v3466, %v3465
    %3468 = vmatpush.bf16.msra.mxu0 %v1656
    %3469 = vmatpush.bf16.msra.mxu0 %v1652
    %3470 = vmatpush.bf16.msra.mxu0 %v1648
    %3471 = vmatpush.bf16.msra.mxu0 %v1644
    %3472 = vmatpush.bf16.msra.mxu0 %v1640
    %3473 = vmatpush.bf16.msra.mxu0 %v1636
    %3474 = vmatpush.bf16.msra.mxu0 %v1632
    %3475 = vmatpush.bf16.msra.mxu0 %v1628
    %3476 = vmatmul.bf16.gmra.mxu0 %v3467
    %v3477 = vpop.f32.mrf.mxu0
    %v3478 = vadd.f32 0.0, %v3477
    %v3479 = vpop.f32.mrf.mxu0
    %v3480 = vadd.f32 0.0, %v3479
    %3481 = vdwg.mxu0
    %3482 = vmatpush.bf16.msra.mxu0 %v1657
    %3483 = vmatpush.bf16.msra.mxu0 %v1653
    %3484 = vmatpush.bf16.msra.mxu0 %v1649
    %3485 = vmatpush.bf16.msra.mxu0 %v1645
    %3486 = vmatpush.bf16.msra.mxu0 %v1641
    %3487 = vmatpush.bf16.msra.mxu0 %v1637
    %3488 = vmatpush.bf16.msra.mxu0 %v1633
    %3489 = vmatpush.bf16.msra.mxu0 %v1629
    %3490 = vmatmul.bf16.gmra.mxu0 %v3467
    %v3491 = vpop.f32.mrf.mxu0
    %v3492 = vadd.f32 0.0, %v3491
    %v3493 = vpop.f32.mrf.mxu0
    %v3494 = vadd.f32 0.0, %v3493
    %3495 = vdwg.mxu0
    %3496 = vmatpush.bf16.msra.mxu0 %v1658
    %3497 = vmatpush.bf16.msra.mxu0 %v1654
    %3498 = vmatpush.bf16.msra.mxu0 %v1650
    %3499 = vmatpush.bf16.msra.mxu0 %v1646
    %3500 = vmatpush.bf16.msra.mxu0 %v1642
    %3501 = vmatpush.bf16.msra.mxu0 %v1638
    %3502 = vmatpush.bf16.msra.mxu0 %v1634
    %3503 = vmatpush.bf16.msra.mxu0 %v1630
    %3504 = vmatmul.bf16.gmra.mxu0 %v3467
    %v3505 = vpop.f32.mrf.mxu0
    %v3506 = vadd.f32 0.0, %v3505
    %v3507 = vpop.f32.mrf.mxu0
    %v3508 = vadd.f32 0.0, %v3507
    %3509 = vdwg.mxu0
    %3510 = vmatpush.bf16.msra.mxu0 %v1659
    %3511 = vmatpush.bf16.msra.mxu0 %v1655
    %3512 = vmatpush.bf16.msra.mxu0 %v1651
    %3513 = vmatpush.bf16.msra.mxu0 %v1647
    %3514 = vmatpush.bf16.msra.mxu0 %v1643
    %3515 = vmatpush.bf16.msra.mxu0 %v1639
    %3516 = vmatpush.bf16.msra.mxu0 %v1635
    %3517 = vmatpush.bf16.msra.mxu0 %v1631
    %3518 = vmatmul.bf16.gmra.mxu0 %v3467
    %v3519 = vpop.f32.mrf.mxu0
    %v3520 = vadd.f32 0.0, %v3519
    %v3521 = vpop.f32.mrf.mxu0
    %v3522 = vadd.f32 0.0, %v3521
    %3523 = vdwg.mxu0
    %v3524 = vadd.f32 %v3457, %v3478
    %v3525 = vadd.f32 %v3458, %v3492
    %v3526 = vadd.f32 %v3459, %v3506
    %v3527 = vadd.f32 %v3460, %v3520
    %v3528 = vadd.f32 %v3461, %v3480
    %v3529 = vadd.f32 %v3462, %v3494
    %v3530 = vadd.f32 %v3463, %v3508
    %v3531 = vadd.f32 %v3464, %v3522
    %v3532 = vld [vmem:[#allocation3] sm:$0xff]
    %v3533 = vld [vmem:[#allocation3 + $0x8] sm:$0xff]
    %v3534 = vmul.f32 %v3445, 0.5
    %v3535 = vmul.f32 %v3449, 0.5
    %v3536 = vtanh.pop %v3534
    %v3537 = vtanh.pop %v3535
    %v3538 = vmul.f32 %v3536, 0.5
    %v3539 = vmul.f32 %v3537, 0.5
    %v3540 = vadd.f32 %v3538, 0.5
    %v3541 = vadd.f32 %v3539, 0.5
    %v3542 = vmul.f32 %v3446, 0.5
    %v3543 = vmul.f32 %v3450, 0.5
    %v3544 = vtanh.pop %v3542
    %v3545 = vtanh.pop %v3543
    %v3546 = vmul.f32 %v3544, 0.5
    %v3547 = vmul.f32 %v3545, 0.5
    %v3548 = vadd.f32 %v3546, 0.5
    %v3549 = vadd.f32 %v3547, 0.5
    %v3550 = vtanh.pop %v3447
    %v3551 = vtanh.pop %v3451
    %v3552 = vmul.f32 %v3448, 0.5
    %v3553 = vmul.f32 %v3452, 0.5
    %v3554 = vtanh.pop %v3552
    %v3555 = vtanh.pop %v3553
    %v3556 = vmul.f32 %v3554, 0.5
    %v3557 = vmul.f32 %v3555, 0.5
    %v3558 = vadd.f32 %v3556, 0.5
    %v3559 = vadd.f32 %v3557, 0.5
    %v3560 = vmul.f32 %v3548, %v3532
    %v3561 = vmul.f32 %v3549, %v3533
    %v3562 = vmul.f32 %v3540, %v3550
    %v3563 = vmul.f32 %v3541, %v3551
    %v3564 = vadd.f32 %v3560, %v3562
    %v3565 = vadd.f32 %v3561, %v3563
    %v3566 = vtanh.pop %v3564
    %v3567 = vtanh.pop %v3565
    %v3568 = vmul.f32 %v3558, %v3566
    %v3569 = vmul.f32 %v3559, %v3567
    %v3570 = vld [vmem:[#allocation5] sm:$0xff]
    %v3571 = vld [vmem:[#allocation5 + $0x8] sm:$0xff]
    %v3572 = vmul.f32 %v3524, 0.5
    %v3573 = vmul.f32 %v3528, 0.5
    %v3574 = vtanh.pop %v3572
    %v3575 = vtanh.pop %v3573
    %v3576 = vmul.f32 %v3574, 0.5
    %v3577 = vmul.f32 %v3575, 0.5
    %v3578 = vadd.f32 %v3576, 0.5
    %v3579 = vadd.f32 %v3577, 0.5
    %v3580 = vmul.f32 %v3525, 0.5
    %v3581 = vmul.f32 %v3529, 0.5
    %v3582 = vtanh.pop %v3580
    %v3583 = vtanh.pop %v3581
    %v3584 = vmul.f32 %v3582, 0.5
    %v3585 = vmul.f32 %v3583, 0.5
    %v3586 = vadd.f32 %v3584, 0.5
    %v3587 = vadd.f32 %v3585, 0.5
    %v3588 = vtanh.pop %v3526
    %v3589 = vtanh.pop %v3530
    %v3590 = vmul.f32 %v3527, 0.5
    %v3591 = vmul.f32 %v3531, 0.5
    %v3592 = vtanh.pop %v3590
    %v3593 = vtanh.pop %v3591
    %v3594 = vmul.f32 %v3592, 0.5
    %v3595 = vmul.f32 %v3593, 0.5
    %v3596 = vadd.f32 %v3594, 0.5
    %v3597 = vadd.f32 %v3595, 0.5
    %v3598 = vmul.f32 %v3586, %v3570
    %v3599 = vmul.f32 %v3587, %v3571
    %v3600 = vmul.f32 %v3578, %v3588
    %v3601 = vmul.f32 %v3579, %v3589
    %v3602 = vadd.f32 %v3598, %v3600
    %v3603 = vadd.f32 %v3599, %v3601
    %v3604 = vtanh.pop %v3602
    %v3605 = vtanh.pop %v3603
    %v3606 = vmul.f32 %v3596, %v3604
    %v3607 = vmul.f32 %v3597, %v3605
    %3608 = vst [vmem:[#allocation2] sm:$0xff] %v3568
    %3609 = vst [vmem:[#allocation2 + $0x8] sm:$0xff] %v3569
    %3610 = vst [vmem:[#allocation3] sm:$0xff] %v3564
    %3611 = vst [vmem:[#allocation3 + $0x8] sm:$0xff] %v3565
    %3612 = vst [vmem:[#allocation4] sm:$0xff] %v3606
    %3613 = vst [vmem:[#allocation4 + $0x8] sm:$0xff] %v3607
    %3614 = vst [vmem:[#allocation5] sm:$0xff] %v3602
    %3615 = vst [vmem:[#allocation5 + $0x8] sm:$0xff] %v3603
    %v3616 = vpack.c.bf16 %v3568, %v3568
    %v3617 = vpack.c.bf16 %v3569, %v3569
    %s3618 = scalar_lea.vmem [#allocation20], 56
    %3619 = vst [vmem:[%s3618] sm:$0xf] %v3616
    %3620 = vst [vmem:[%s3618 + $0x4] sm:$0xf] %v3617
    %v3621 = vpack.c.bf16 %v3606, %v3606
    %v3622 = vpack.c.bf16 %v3607, %v3607
    %3623 = vst [vmem:[#allocation21] sm:$0xf] %v3621
    %3624 = vst [vmem:[#allocation21 + $0x4] sm:$0xf] %v3622
    // Predicated region
    $region66: #{tpu_custom_call.1} parent=1 // pred_check
      _
    $region67: #{tpu_custom_call.1} parent=1 // pred_check_branch
      %3626 = sbr.rel (0) target = $region69
    $region68: #{tpu_custom_call.1} parent=1 // pred_region
      %3628 = vsyncadd [#allocation10], 0
      %s3629 = sshll.u32 [#allocation20], 4
      %s3630 = int_to_ptr.vmem [resolvable:$true] %s3629
      %s3631 = sshll.u32 %s8, 4
      %s3632 = int_to_ptr.hbm [resolvable:$true] %s3631
      %3637 = dma.vmem_to_hbm [thread:$0]  %s3630, 1024, %s3632, [#allocation10], 64, 64, 4
    $region69: #{tpu_custom_call.1} parent=1 // pred_fallthru
      _
    // Predicated region
    $region70: #{tpu_custom_call.1} parent=1 // pred_check
      _
    $region71: #{tpu_custom_call.1} parent=1 // pred_check_branch
      %3639 = sbr.rel (0) target = $region73
    $region72: #{tpu_custom_call.1} parent=1 // pred_region
      %s3640 = ssub.s32 0, 0
      %s3641 = smul.u32 8, %s3640
      %3643 = vsyncadd [#allocation22], 0
      %s3644 = smul.addr %s3641, 2
      %s3645 = smul.addr %s3644, 4
      %s3646 = scalar_lea.hbm %s9, %s3645
      %s3647 = sshll.u32 [#allocation21], 4
      %s3648 = int_to_ptr.vmem [resolvable:$true] %s3647
      %s3649 = sshll.u32 %s3646, 4
      %s3650 = int_to_ptr.hbm [resolvable:$true] %s3649
      %3655 = dma.vmem_to_hbm [thread:$0]  %s3648, 1024, %s3650, [#allocation22], 64, 64, 4
    $region73: #{tpu_custom_call.1} parent=1 // pred_fallthru
      _
    // Predicated region
    $region74: #{tpu_custom_call.1} parent=1 // pred_check
      _
    $region75: #{tpu_custom_call.1} parent=1 // pred_check_branch
      %3657 = sbr.rel (0) target = $region77
    $region76: #{tpu_custom_call.1} parent=1 // pred_region
      %3659 = dma.done [#allocation10], 1024
    $region77: #{tpu_custom_call.1} parent=1 // pred_fallthru
      _
    // Predicated region
    $region78: #{tpu_custom_call.1} parent=1 // pred_check
      _
    $region79: #{tpu_custom_call.1} parent=1 // pred_check_branch
      %3661 = sbr.rel (0) target = $region81
    $region80: #{tpu_custom_call.1} parent=1 // pred_region
      %3663 = dma.done [#allocation22], 1024
    $region81: #{tpu_custom_call.1} parent=1 // pred_fallthru
      _
    %3664 = vsyncpa [#allocation9], 1
    %3665 = vsyncpa [#allocation12], 1
    %3666 = vsyncpa [#allocation15], 1
    %3667 = vsyncpa [#allocation18], 1
    %3668 = vsyncpa [#allocation10], 1
    %3669 = vsyncpa [#allocation22], 1

// kernel: tpu_custom_call.1
$region0: #{tpu_custom_call.1}
  #allocation0 [shape = 'u32[]', space=smem, size = 0x4, offset = 0x4, fixed_abs, tag = 'smem constant byte address 0x4 - core index']
  #allocation1 [shape = 'u32[72,128]{1,0:T(1,128)}', space=vmem, size = 0x9000, scoped, tag = 'internal scratch']
  #allocation2 [shape = 'f32[16,128]{1,0:T(8,128)}', space=vmem, size = 0x2000, scoped, tag = 'scratch operand']
  #allocation3 [shape = 'f32[16,128]{1,0:T(8,128)}', space=vmem, size = 0x2000, scoped, tag = 'scratch operand']
  #allocation4 [shape = 'f32[16,128]{1,0:T(8,128)}', space=vmem, size = 0x2000, scoped, tag = 'scratch operand']
  #allocation5 [shape = 'f32[16,128]{1,0:T(8,128)}', space=vmem, size = 0x2000, scoped, tag = 'scratch operand']
  #allocation6 [shape = 'bf16[8,16,512]{2,1,0:T(8,128)(2,1)}', space=vmem, size = 0x20000, scoped, tag = 'scratch operand']
  #allocation7 [shape = 'bf16[8,16,512]{2,1,0:T(8,128)(2,1)}', space=vmem, size = 0x20000, scoped, tag = 'scratch operand']
  %s0 = inlined_call_operand.hbm [shape: bf16[8,16,128], index: 0, kind: input, shape index: {}]
  %s1 = inlined_call_operand.hbm [shape: bf16[8,16,128], index: 1, kind: input, shape index: {}]
  %s2 = inlined_call_operand.hbm [shape: bf16[128,512], index: 2, kind: input, shape index: {}]
  %s3 = inlined_call_operand.hbm [shape: bf16[128,512], index: 3, kind: input, shape index: {}]
  %s4 = inlined_call_operand.hbm [shape: bf16[128,512], index: 4, kind: input, shape index: {}]
  %s5 = inlined_call_operand.hbm [shape: bf16[128,512], index: 5, kind: input, shape index: {}]
  %s6 = inlined_call_operand.vmem [shape: f32[1,512], index: 6, kind: input, shape index: {}]
  %s7 = inlined_call_operand.hbm [shape: f32[1,512], index: 7, kind: input, shape index: {}]
  %s8 = inlined_call_operand.hbm [shape: bf16[8,16,128], index: 8, kind: output, shape index: {0}]
  %s9 = inlined_call_operand.hbm [shape: bf16[8,16,128], index: 9, kind: output, shape index: {1}]
  %10 = xla_tuple %s8, %s9
  %s11 = sld [smem:[#allocation0]]
  $region82: #{tpu_custom_call.1} parent=0
    _
  %s13 = ssub.s32 1, %s11
  %s14 = scalar_select 0, %s13, %s11
  $region1: #{tpu_custom_call.1} parent=0
    #allocation8 [shape = 'u8[32768]{0}', space=vmem, size = 0x8000, scoped, tag = 'input window, operand 0, single buffered']
    #allocation9 [shape = 's32[1]{0}', space=sflag, size = 0x4, scoped, tag = 'scoped memory for tpu_custom_call.1']
    #allocation10 [shape = 's32[1]{0}', space=sflag, size = 0x4, scoped, tag = 'scoped memory for tpu_custom_call.1']
    #allocation11 [shape = 'u8[32768]{0}', space=vmem, size = 0x8000, scoped, tag = 'input window, operand 1, single buffered']
    #allocation12 [shape = 's32[1]{0}', space=sflag, size = 0x4, scoped, tag = 'scoped memory for tpu_custom_call.1']
    #allocation13 [shape = 'u8[131072]{0}', space=vmem, size = 0x20000, scoped, tag = 'input window, operand 2, single buffered']
    #allocation14 [shape = 'u8[131072]{0}', space=vmem, size = 0x20000, scoped, tag = 'input window, operand 3, single buffered']
    #allocation15 [shape = 's32[1]{0}', space=sflag, size = 0x4, scoped, tag = 'scoped memory for tpu_custom_call.1']
    #allocation16 [shape = 'u8[131072]{0}', space=vmem, size = 0x20000, scoped, tag = 'input window, operand 4, single buffered']
    #allocation17 [shape = 'u8[131072]{0}', space=vmem, size = 0x20000, scoped, tag = 'input window, operand 5, single buffered']
    #allocation18 [shape = 's32[1]{0}', space=sflag, size = 0x4, scoped, tag = 'scoped memory for tpu_custom_call.1']
    #allocation19 [shape = 'u8[2048]{0}', space=vmem, size = 0x800, scoped, tag = 'input window, operand 7, single buffered']
    #allocation20 [shape = 'u8[32768]{0}', space=vmem, size = 0x8000, scoped, tag = 'output window, operand 0, single buffered']
    #allocation21 [shape = 'u8[32768]{0}', space=vmem, size = 0x8000, scoped, tag = 'output window, operand 1, single buffered']
    #allocation22 [shape = 's32[1]{0}', space=sflag, size = 0x4, scoped, tag = 'scoped memory for tpu_custom_call.1']
    %15 = vsyncpa [#allocation9], 0
    %16 = vsyncpa [#allocation12], 0
    %17 = vsyncpa [#allocation15], 0
    %18 = vsyncpa [#allocation18], 0
    %19 = vsyncpa [#allocation10], 0
    %20 = vsyncpa [#allocation22], 0
    // Predicated region
    $region2: #{tpu_custom_call.1} parent=1 // pred_check
      _
    $region3: #{tpu_custom_call.1} parent=1 // pred_check_branch
      %22 = sbr.rel (0) target = $region5
    $region4: #{tpu_custom_call.1} parent=1 // pred_region
      %24 = vsyncadd [#allocation9], 0
      %s25 = sshll.u32 %s0, 4
      %s26 = int_to_ptr.hbm [resolvable:$true] %s25
      %s27 = sshll.u32 [#allocation8], 4
      %s28 = int_to_ptr.vmem [resolvable:$true] %s27
      %33 = dma.hbm_to_vmem [thread:$0]  %s26, 1024, %s28, [#allocation9], 64, 64, 4
    $region5: #{tpu_custom_call.1} parent=1 // pred_fallthru
      _
    // Predicated region
    $region6: #{tpu_custom_call.1} parent=1 // pred_check
      _
    $region7: #{tpu_custom_call.1} parent=1 // pred_check_branch
      %35 = sbr.rel (0) target = $region9
    $region8: #{tpu_custom_call.1} parent=1 // pred_region
      %s36 = ssub.s32 0, 0
      %s37 = smul.u32 8, %s36
      %39 = vsyncadd [#allocation12], 0
      %s40 = smul.addr %s37, 2
      %s41 = smul.addr %s40, 4
      %s42 = scalar_lea.hbm %s1, %s41
      %s43 = sshll.u32 %s42, 4
      %s44 = int_to_ptr.hbm [resolvable:$true] %s43
      %s45 = sshll.u32 [#allocation11], 4
      %s46 = int_to_ptr.vmem [resolvable:$true] %s45
      %51 = dma.hbm_to_vmem [thread:$0]  %s44, 1024, %s46, [#allocation12], 64, 64, 4
    $region9: #{tpu_custom_call.1} parent=1 // pred_fallthru
      _
    // Predicated region
    $region10: #{tpu_custom_call.1} parent=1 // pred_check
      _
    $region11: #{tpu_custom_call.1} parent=1 // pred_check_branch
      %53 = sbr.rel (0) target = $region13
    $region12: #{tpu_custom_call.1} parent=1 // pred_region
      %55 = vsyncadd [#allocation12], 0
      %s56 = sshll.u32 %s2, 4
      %s57 = int_to_ptr.hbm [resolvable:$true] %s56
      %s58 = sshll.u32 [#allocation13], 4
      %s59 = int_to_ptr.vmem [resolvable:$true] %s58
      %64 = dma.hbm_to_vmem [thread:$0]  %s57, 4096, %s59, [#allocation12], 256, 256, 16
    $region13: #{tpu_custom_call.1} parent=1 // pred_fallthru
      _
    // Predicated region
    $region14: #{tpu_custom_call.1} parent=1 // pred_check
      _
    $region15: #{tpu_custom_call.1} parent=1 // pred_check_branch
      %66 = sbr.rel (0) target = $region17
    $region16: #{tpu_custom_call.1} parent=1 // pred_region
      %68 = vsyncadd [#allocation15], 0
      %s69 = sshll.u32 %s3, 4
      %s70 = int_to_ptr.hbm [resolvable:$true] %s69
      %s71 = sshll.u32 [#allocation14], 4
      %s72 = int_to_ptr.vmem [resolvable:$true] %s71
      %77 = dma.hbm_to_vmem [thread:$0]  %s70, 4096, %s72, [#allocation15], 256, 256, 16
    $region17: #{tpu_custom_call.1} parent=1 // pred_fallthru
      _
    // Predicated region
    $region18: #{tpu_custom_call.1} parent=1 // pred_check
      _
    $region19: #{tpu_custom_call.1} parent=1 // pred_check_branch
      %79 = sbr.rel (0) target = $region21
    $region20: #{tpu_custom_call.1} parent=1 // pred_region
      %81 = vsyncadd [#allocation15], 0
      %s82 = sshll.u32 %s4, 4
      %s83 = int_to_ptr.hbm [resolvable:$true] %s82
      %s84 = sshll.u32 [#allocation16], 4
      %s85 = int_to_ptr.vmem [resolvable:$true] %s84
      %90 = dma.hbm_to_vmem [thread:$0]  %s83, 4096, %s85, [#allocation15], 256, 256, 16
    $region21: #{tpu_custom_call.1} parent=1 // pred_fallthru
      _
    // Predicated region
    $region22: #{tpu_custom_call.1} parent=1 // pred_check
      _
    $region23: #{tpu_custom_call.1} parent=1 // pred_check_branch
      %92 = sbr.rel (0) target = $region25
    $region24: #{tpu_custom_call.1} parent=1 // pred_region
      %94 = vsyncadd [#allocation18], 0
      %s95 = sshll.u32 %s5, 4
      %s96 = int_to_ptr.hbm [resolvable:$true] %s95
      %s97 = sshll.u32 [#allocation17], 4
      %s98 = int_to_ptr.vmem [resolvable:$true] %s97
      %103 = dma.hbm_to_vmem [thread:$0]  %s96, 4096, %s98, [#allocation18], 256, 256, 16
    $region25: #{tpu_custom_call.1} parent=1 // pred_fallthru
      _
    // Predicated region
    $region26: #{tpu_custom_call.1} parent=1 // pred_check
      _
    $region27: #{tpu_custom_call.1} parent=1 // pred_check_branch
      %105 = sbr.rel (0) target = $region29
    $region28: #{tpu_custom_call.1} parent=1 // pred_region
      _
    $region29: #{tpu_custom_call.1} parent=1 // pred_fallthru
      _
    // Predicated region
    $region30: #{tpu_custom_call.1} parent=1 // pred_check
      _
    $region31: #{tpu_custom_call.1} parent=1 // pred_check_branch
      %107 = sbr.rel (0) target = $region33
    $region32: #{tpu_custom_call.1} parent=1 // pred_region
      %109 = vsyncadd [#allocation18], 0
      %s111 = sshll.u32 %s7, 4
      %s112 = int_to_ptr.hbm [resolvable:$true] %s111
      %s113 = sshll.u32 [#allocation19], 4
      %s114 = int_to_ptr.vmem [resolvable:$true] %s113
      %116 = dma.hbm_to_vmem [thread:$0]  %s112, 64, %s114, [#allocation18]
    $region33: #{tpu_custom_call.1} parent=1 // pred_fallthru
      _
    // Predicated region
    $region34: #{tpu_custom_call.1} parent=1 // pred_check
      _
    $region35: #{tpu_custom_call.1} parent=1 // pred_check_branch
      %118 = sbr.rel (0) target = $region37
    $region36: #{tpu_custom_call.1} parent=1 // pred_region
      %120 = dma.done [#allocation9], 1024
    $region37: #{tpu_custom_call.1} parent=1 // pred_fallthru
      _
    // Predicated region
    $region38: #{tpu_custom_call.1} parent=1 // pred_check
      _
    $region39: #{tpu_custom_call.1} parent=1 // pred_check_branch
      %122 = sbr.rel (0) target = $region41
    $region40: #{tpu_custom_call.1} parent=1 // pred_region
      %124 = dma.done [#allocation12], 1024
    $region41: #{tpu_custom_call.1} parent=1 // pred_fallthru
      _
    // Predicated region
    $region42: #{tpu_custom_call.1} parent=1 // pred_check
      _
    $region43: #{tpu_custom_call.1} parent=1 // pred_check_branch
      %126 = sbr.rel (0) target = $region45
    $region44: #{tpu_custom_call.1} parent=1 // pred_region
      %128 = dma.done [#allocation12], 4096
    $region45: #{tpu_custom_call.1} parent=1 // pred_fallthru
      _
    // Predicated region
    $region46: #{tpu_custom_call.1} parent=1 // pred_check
      _
    $region47: #{tpu_custom_call.1} parent=1 // pred_check_branch
      %130 = sbr.rel (0) target = $region49
    $region48: #{tpu_custom_call.1} parent=1 // pred_region
      %132 = dma.done [#allocation15], 4096
    $region49: #{tpu_custom_call.1} parent=1 // pred_fallthru
      _
    // Predicated region
    $region50: #{tpu_custom_call.1} parent=1 // pred_check
      _
    $region51: #{tpu_custom_call.1} parent=1 // pred_check_branch
      %134 = sbr.rel (0) target = $region53
    $region52: #{tpu_custom_call.1} parent=1 // pred_region
      %136 = dma.done [#allocation15], 4096
    $region53: #{tpu_custom_call.1} parent=1 // pred_fallthru
      _
    // Predicated region
    $region54: #{tpu_custom_call.1} parent=1 // pred_check
      _
    $region55: #{tpu_custom_call.1} parent=1 // pred_check_branch
      %138 = sbr.rel (0) target = $region57
    $region56: #{tpu_custom_call.1} parent=1 // pred_region
      %140 = dma.done [#allocation18], 4096
    $region57: #{tpu_custom_call.1} parent=1 // pred_fallthru
      _
    // Predicated region
    $region58: #{tpu_custom_call.1} parent=1 // pred_check
      _
    $region59: #{tpu_custom_call.1} parent=1 // pred_check_branch
      %142 = sbr.rel (0) target = $region61
    $region60: #{tpu_custom_call.1} parent=1 // pred_region
      %144 = dma.done [#allocation18], 64
    $region61: #{tpu_custom_call.1} parent=1 // pred_fallthru
      _
    %s145 = ssub.s32 0, 0
    %s146 = smul.u32 8, %s145
    %s147 = ssub.s32 0, 0
    %s148 = smul.u32 8, %s147
    %p149 = scmp.eq.s32.totalorder 0, 0
    // Predicated region
    $region62: #{tpu_custom_call.1} parent=1 // pred_check
      %p150 = pneg %p149
    $region63: #{tpu_custom_call.1} parent=1 // pred_check_branch
      %152 = sbr.rel (%p150) target = $region65
    $region64: #{tpu_custom_call.1} parent=1 // pred_region
      %153 = vst [vmem:[#allocation2] sm:$0xff] 0.0
      %154 = vst [vmem:[#allocation2 + $0x8] sm:$0xff] 0.0
      %155 = vst [vmem:[#allocation3] sm:$0xff] 0.0
      %156 = vst [vmem:[#allocation3 + $0x8] sm:$0xff] 0.0
      %157 = vst [vmem:[#allocation4] sm:$0xff] 0.0
      %158 = vst [vmem:[#allocation4 + $0x8] sm:$0xff] 0.0
      %159 = vst [vmem:[#allocation5] sm:$0xff] 0.0
      %160 = vst [vmem:[#allocation5 + $0x8] sm:$0xff] 0.0
    $region65: #{tpu_custom_call.1} parent=1 // pred_fallthru
      _
    %v161 = vld [vmem:[#allocation8] sm:$0xf]
    %v162 = vld [vmem:[#allocation8 + $0x4] sm:$0xf]
    %v163 = vld [vmem:[#allocation8 + $0x8] sm:$0xf]
    %v164 = vld [vmem:[#allocation8 + $0xc] sm:$0xf]
    %v165 = vld [vmem:[#allocation8 + $0x10] sm:$0xf]
    %v166 = vld [vmem:[#allocation8 + $0x14] sm:$0xf]
    %v167 = vld [vmem:[#allocation8 + $0x18] sm:$0xf]
    %v168 = vld [vmem:[#allocation8 + $0x1c] sm:$0xf]
    %v169 = vld [vmem:[#allocation8 + $0x20] sm:$0xf]
    %v170 = vld [vmem:[#allocation8 + $0x24] sm:$0xf]
    %v171 = vld [vmem:[#allocation8 + $0x28] sm:$0xf]
    %v172 = vld [vmem:[#allocation8 + $0x2c] sm:$0xf]
    %v173 = vld [vmem:[#allocation8 + $0x30] sm:$0xf]
    %v174 = vld [vmem:[#allocation8 + $0x34] sm:$0xf]
    %v175 = vld [vmem:[#allocation8 + $0x38] sm:$0xf]
    %v176 = vld [vmem:[#allocation8 + $0x3c] sm:$0xf]
    %v177 = vld [vmem:[#allocation13] sm:$0xff]
    %v178 = vld [vmem:[#allocation13 + $0x8] sm:$0xff]
    %v179 = vld [vmem:[#allocation13 + $0x10] sm:$0xff]
    %v180 = vld [vmem:[#allocation13 + $0x18] sm:$0xff]
    %v181 = vld [vmem:[#allocation13 + $0x20] sm:$0xff]
    %v182 = vld [vmem:[#allocation13 + $0x28] sm:$0xff]
    %v183 = vld [vmem:[#allocation13 + $0x30] sm:$0xff]
    %v184 = vld [vmem:[#allocation13 + $0x38] sm:$0xff]
    %v185 = vld [vmem:[#allocation13 + $0x40] sm:$0xff]
    %v186 = vld [vmem:[#allocation13 + $0x48] sm:$0xff]
    %v187 = vld [vmem:[#allocation13 + $0x50] sm:$0xff]
    %v188 = vld [vmem:[#allocation13 + $0x58] sm:$0xff]
    %v189 = vld [vmem:[#allocation13 + $0x60] sm:$0xff]
    %v190 = vld [vmem:[#allocation13 + $0x68] sm:$0xff]
    %v191 = vld [vmem:[#allocation13 + $0x70] sm:$0xff]
    %v192 = vld [vmem:[#allocation13 + $0x78] sm:$0xff]
    %v193 = vld [vmem:[#allocation13 + $0x80] sm:$0xff]
    %v194 = vld [vmem:[#allocation13 + $0x88] sm:$0xff]
    %v195 = vld [vmem:[#allocation13 + $0x90] sm:$0xff]
    %v196 = vld [vmem:[#allocation13 + $0x98] sm:$0xff]
    %v197 = vld [vmem:[#allocation13 + $0xa0] sm:$0xff]
    %v198 = vld [vmem:[#allocation13 + $0xa8] sm:$0xff]
    %v199 = vld [vmem:[#allocation13 + $0xb0] sm:$0xff]
    %v200 = vld [vmem:[#allocation13 + $0xb8] sm:$0xff]
    %v201 = vld [vmem:[#allocation13 + $0xc0] sm:$0xff]
    %v202 = vld [vmem:[#allocation13 + $0xc8] sm:$0xff]
    %v203 = vld [vmem:[#allocation13 + $0xd0] sm:$0xff]
    %v204 = vld [vmem:[#allocation13 + $0xd8] sm:$0xff]
    %v205 = vld [vmem:[#allocation13 + $0xe0] sm:$0xff]
    %v206 = vld [vmem:[#allocation13 + $0xe8] sm:$0xff]
    %v207 = vld [vmem:[#allocation13 + $0xf0] sm:$0xff]
    %v208 = vld [vmem:[#allocation13 + $0xf8] sm:$0xff]
    %v209 = vld [vmem:[%s6] sm:$0xf]
    %v211 = vperm.slane %v209, 0
    %v212 = vperm.slane %v209, 1
    %v213 = vperm.slane %v209, 2
    %v214 = vperm.slane %v209, 3
    %v235 = vunpack.c.l.b16 %v161
    %v236 = vunpack.c.l.b16 %v162
    %v237 = vunpack.c.l.b16 %v163
    %v238 = vunpack.c.l.b16 %v164
    %v239 = vunpack.c.l.b16 %v165
    %v240 = vunpack.c.l.b16 %v166
    %v241 = vunpack.c.l.b16 %v167
    %v242 = vunpack.c.l.b16 %v168
    %v243 = vunpack.c.l.b16 %v169
    %v244 = vunpack.c.l.b16 %v170
    %v245 = vunpack.c.l.b16 %v171
    %v246 = vunpack.c.l.b16 %v172
    %v247 = vunpack.c.l.b16 %v173
    %v248 = vunpack.c.l.b16 %v174
    %v249 = vunpack.c.l.b16 %v175
    %v250 = vunpack.c.l.b16 %v176
    %v251 = vpack.c.b16 %v236, %v235
    %v252 = vpack.c.b16 %v238, %v237
    %v253 = vpack.c.b16 %v240, %v239
    %v254 = vpack.c.b16 %v242, %v241
    %v255 = vpack.c.b16 %v244, %v243
    %v256 = vpack.c.b16 %v246, %v245
    %v257 = vpack.c.b16 %v248, %v247
    %v258 = vpack.c.b16 %v250, %v249
    %v299 = vunpack.c.l.b16 %v177
    %v300 = vunpack.c.h.b16 %v177
    %v301 = vunpack.c.l.b16 %v178
    %v302 = vunpack.c.h.b16 %v178
    %v303 = vunpack.c.l.b16 %v179
    %v304 = vunpack.c.h.b16 %v179
    %v305 = vunpack.c.l.b16 %v180
    %v306 = vunpack.c.h.b16 %v180
    %v307 = vunpack.c.l.b16 %v181
    %v308 = vunpack.c.h.b16 %v181
    %v309 = vunpack.c.l.b16 %v182
    %v310 = vunpack.c.h.b16 %v182
    %v311 = vunpack.c.l.b16 %v183
    %v312 = vunpack.c.h.b16 %v183
    %v313 = vunpack.c.l.b16 %v184
    %v314 = vunpack.c.h.b16 %v184
    %v315 = vunpack.c.l.b16 %v185
    %v316 = vunpack.c.h.b16 %v185
    %v317 = vunpack.c.l.b16 %v186
    %v318 = vunpack.c.h.b16 %v186
    %v319 = vunpack.c.l.b16 %v187
    %v320 = vunpack.c.h.b16 %v187
    %v321 = vunpack.c.l.b16 %v188
    %v322 = vunpack.c.h.b16 %v188
    %v323 = vunpack.c.l.b16 %v189
    %v324 = vunpack.c.h.b16 %v189
    %v325 = vunpack.c.l.b16 %v190
    %v326 = vunpack.c.h.b16 %v190
    %v327 = vunpack.c.l.b16 %v191
    %v328 = vunpack.c.h.b16 %v191
    %v329 = vunpack.c.l.b16 %v192
    %v330 = vunpack.c.h.b16 %v192
    %v331 = vunpack.c.l.b16 %v193
    %v332 = vunpack.c.h.b16 %v193
    %v333 = vunpack.c.l.b16 %v194
    %v334 = vunpack.c.h.b16 %v194
    %v335 = vunpack.c.l.b16 %v195
    %v336 = vunpack.c.h.b16 %v195
    %v337 = vunpack.c.l.b16 %v196
    %v338 = vunpack.c.h.b16 %v196
    %v339 = vunpack.c.l.b16 %v197
    %v340 = vunpack.c.h.b16 %v197
    %v341 = vunpack.c.l.b16 %v198
    %v342 = vunpack.c.h.b16 %v198
    %v343 = vunpack.c.l.b16 %v199
    %v344 = vunpack.c.h.b16 %v199
    %v345 = vunpack.c.l.b16 %v200
    %v346 = vunpack.c.h.b16 %v200
    %v347 = vunpack.c.l.b16 %v201
    %v348 = vunpack.c.h.b16 %v201
    %v349 = vunpack.c.l.b16 %v202
    %v350 = vunpack.c.h.b16 %v202
    %v351 = vunpack.c.l.b16 %v203
    %v352 = vunpack.c.h.b16 %v203
    %v353 = vunpack.c.l.b16 %v204
    %v354 = vunpack.c.h.b16 %v204
    %v355 = vunpack.c.l.b16 %v205
    %v356 = vunpack.c.h.b16 %v205
    %v357 = vunpack.c.l.b16 %v206
    %v358 = vunpack.c.h.b16 %v206
    %v359 = vunpack.c.l.b16 %v207
    %v360 = vunpack.c.h.b16 %v207
    %v361 = vunpack.c.l.b16 %v208
    %v362 = vunpack.c.h.b16 %v208
    %v363 = vpack.c.b16 %v303, %v299
    %v364 = vpack.c.b16 %v304, %v300
    %v365 = vpack.c.b16 %v305, %v301
    %v366 = vpack.c.b16 %v306, %v302
    %v367 = vpack.c.b16 %v311, %v307
    %v368 = vpack.c.b16 %v312, %v308
    %v369 = vpack.c.b16 %v313, %v309
    %v370 = vpack.c.b16 %v314, %v310
    %v371 = vpack.c.b16 %v319, %v315
    %v372 = vpack.c.b16 %v320, %v316
    %v373 = vpack.c.b16 %v321, %v317
    %v374 = vpack.c.b16 %v322, %v318
    %v375 = vpack.c.b16 %v327, %v323
    %v376 = vpack.c.b16 %v328, %v324
    %v377 = vpack.c.b16 %v329, %v325
    %v378 = vpack.c.b16 %v330, %v326
    %v379 = vpack.c.b16 %v335, %v331
    %v380 = vpack.c.b16 %v336, %v332
    %v381 = vpack.c.b16 %v337, %v333
    %v382 = vpack.c.b16 %v338, %v334
    %v383 = vpack.c.b16 %v343, %v339
    %v384 = vpack.c.b16 %v344, %v340
    %v385 = vpack.c.b16 %v345, %v341
    %v386 = vpack.c.b16 %v346, %v342
    %v387 = vpack.c.b16 %v351, %v347
    %v388 = vpack.c.b16 %v352, %v348
    %v389 = vpack.c.b16 %v353, %v349
    %v390 = vpack.c.b16 %v354, %v350
    %v391 = vpack.c.b16 %v359, %v355
    %v392 = vpack.c.b16 %v360, %v356
    %v393 = vpack.c.b16 %v361, %v357
    %v394 = vpack.c.b16 %v362, %v358
    %427 = vmatpush.bf16.msra.mxu0 %v391
    %428 = vmatpush.bf16.msra.mxu0 %v387
    %429 = vmatpush.bf16.msra.mxu0 %v383
    %430 = vmatpush.bf16.msra.mxu0 %v379
    %431 = vmatpush.bf16.msra.mxu0 %v375
    %432 = vmatpush.bf16.msra.mxu0 %v371
    %433 = vmatpush.bf16.msra.mxu0 %v367
    %434 = vmatpush.bf16.msra.mxu0 %v363
    %435 = vmatmul.bf16.gmra.mxu0 %v251
    %v436 = vpop.f32.mrf.mxu0
    %v437 = vadd.f32 %v211, %v436
    %v438 = vpop.f32.mrf.mxu0
    %v439 = vadd.f32 %v211, %v438
    %440 = vmatmul.bf16.gmra.mxu0 %v252
    %v441 = vpop.f32.mrf.mxu0
    %v442 = vadd.f32 %v211, %v441
    %v443 = vpop.f32.mrf.mxu0
    %v444 = vadd.f32 %v211, %v443
    %445 = vmatmul.bf16.gmra.mxu0 %v253
    %v446 = vpop.f32.mrf.mxu0
    %v447 = vadd.f32 %v211, %v446
    %v448 = vpop.f32.mrf.mxu0
    %v449 = vadd.f32 %v211, %v448
    %450 = vmatmul.bf16.gmra.mxu0 %v254
    %v451 = vpop.f32.mrf.mxu0
    %v452 = vadd.f32 %v211, %v451
    %v453 = vpop.f32.mrf.mxu0
    %v454 = vadd.f32 %v211, %v453
    %455 = vmatmul.bf16.gmra.mxu0 %v255
    %v456 = vpop.f32.mrf.mxu0
    %v457 = vadd.f32 %v211, %v456
    %v458 = vpop.f32.mrf.mxu0
    %v459 = vadd.f32 %v211, %v458
    %460 = vmatmul.bf16.gmra.mxu0 %v256
    %v461 = vpop.f32.mrf.mxu0
    %v462 = vadd.f32 %v211, %v461
    %v463 = vpop.f32.mrf.mxu0
    %v464 = vadd.f32 %v211, %v463
    %465 = vmatmul.bf16.gmra.mxu0 %v257
    %v466 = vpop.f32.mrf.mxu0
    %v467 = vadd.f32 %v211, %v466
    %v468 = vpop.f32.mrf.mxu0
    %v469 = vadd.f32 %v211, %v468
    %470 = vmatmul.bf16.gmra.mxu0 %v258
    %v471 = vpop.f32.mrf.mxu0
    %v472 = vadd.f32 %v211, %v471
    %v473 = vpop.f32.mrf.mxu0
    %v474 = vadd.f32 %v211, %v473
    %475 = vdwg.mxu0
    %476 = vmatpush.bf16.msra.mxu0 %v392
    %477 = vmatpush.bf16.msra.mxu0 %v388
    %478 = vmatpush.bf16.msra.mxu0 %v384
    %479 = vmatpush.bf16.msra.mxu0 %v380
    %480 = vmatpush.bf16.msra.mxu0 %v376
    %481 = vmatpush.bf16.msra.mxu0 %v372
    %482 = vmatpush.bf16.msra.mxu0 %v368
    %483 = vmatpush.bf16.msra.mxu0 %v364
    %484 = vmatmul.bf16.gmra.mxu0 %v251
    %v485 = vpop.f32.mrf.mxu0
    %v486 = vadd.f32 %v212, %v485
    %v487 = vpop.f32.mrf.mxu0
    %v488 = vadd.f32 %v212, %v487
    %489 = vmatmul.bf16.gmra.mxu0 %v252
    %v490 = vpop.f32.mrf.mxu0
    %v491 = vadd.f32 %v212, %v490
    %v492 = vpop.f32.mrf.mxu0
    %v493 = vadd.f32 %v212, %v492
    %494 = vmatmul.bf16.gmra.mxu0 %v253
    %v495 = vpop.f32.mrf.mxu0
    %v496 = vadd.f32 %v212, %v495
    %v497 = vpop.f32.mrf.mxu0
    %v498 = vadd.f32 %v212, %v497
    %499 = vmatmul.bf16.gmra.mxu0 %v254
    %v500 = vpop.f32.mrf.mxu0
    %v501 = vadd.f32 %v212, %v500
    %v502 = vpop.f32.mrf.mxu0
    %v503 = vadd.f32 %v212, %v502
    %504 = vmatmul.bf16.gmra.mxu0 %v255
    %v505 = vpop.f32.mrf.mxu0
    %v506 = vadd.f32 %v212, %v505
    %v507 = vpop.f32.mrf.mxu0
    %v508 = vadd.f32 %v212, %v507
    %509 = vmatmul.bf16.gmra.mxu0 %v256
    %v510 = vpop.f32.mrf.mxu0
    %v511 = vadd.f32 %v212, %v510
    %v512 = vpop.f32.mrf.mxu0
    %v513 = vadd.f32 %v212, %v512
    %514 = vmatmul.bf16.gmra.mxu0 %v257
    %v515 = vpop.f32.mrf.mxu0
    %v516 = vadd.f32 %v212, %v515
    %v517 = vpop.f32.mrf.mxu0
    %v518 = vadd.f32 %v212, %v517
    %519 = vmatmul.bf16.gmra.mxu0 %v258
    %v520 = vpop.f32.mrf.mxu0
    %v521 = vadd.f32 %v212, %v520
    %v522 = vpop.f32.mrf.mxu0
    %v523 = vadd.f32 %v212, %v522
    %524 = vdwg.mxu0
    %525 = vmatpush.bf16.msra.mxu0 %v393
    %526 = vmatpush.bf16.msra.mxu0 %v389
    %527 = vmatpush.bf16.msra.mxu0 %v385
    %528 = vmatpush.bf16.msra.mxu0 %v381
    %529 = vmatpush.bf16.msra.mxu0 %v377
    %530 = vmatpush.bf16.msra.mxu0 %v373
    %531 = vmatpush.bf16.msra.mxu0 %v369
    %532 = vmatpush.bf16.msra.mxu0 %v365
    %533 = vmatmul.bf16.gmra.mxu0 %v251
    %v534 = vpop.f32.mrf.mxu0
    %v535 = vadd.f32 %v213, %v534
    %v536 = vpop.f32.mrf.mxu0
    %v537 = vadd.f32 %v213, %v536
    %538 = vmatmul.bf16.gmra.mxu0 %v252
    %v539 = vpop.f32.mrf.mxu0
    %v540 = vadd.f32 %v213, %v539
    %v541 = vpop.f32.mrf.mxu0
    %v542 = vadd.f32 %v213, %v541
    %543 = vmatmul.bf16.gmra.mxu0 %v253
    %v544 = vpop.f32.mrf.mxu0
    %v545 = vadd.f32 %v213, %v544
    %v546 = vpop.f32.mrf.mxu0
    %v547 = vadd.f32 %v213, %v546
    %548 = vmatmul.bf16.gmra.mxu0 %v254
    %v549 = vpop.f32.mrf.mxu0
    %v550 = vadd.f32 %v213, %v549
    %v551 = vpop.f32.mrf.mxu0
    %v552 = vadd.f32 %v213, %v551
    %553 = vmatmul.bf16.gmra.mxu0 %v255
    %v554 = vpop.f32.mrf.mxu0
    %v555 = vadd.f32 %v213, %v554
    %v556 = vpop.f32.mrf.mxu0
    %v557 = vadd.f32 %v213, %v556
    %558 = vmatmul.bf16.gmra.mxu0 %v256
    %v559 = vpop.f32.mrf.mxu0
    %v560 = vadd.f32 %v213, %v559
    %v561 = vpop.f32.mrf.mxu0
    %v562 = vadd.f32 %v213, %v561
    %563 = vmatmul.bf16.gmra.mxu0 %v257
    %v564 = vpop.f32.mrf.mxu0
    %v565 = vadd.f32 %v213, %v564
    %v566 = vpop.f32.mrf.mxu0
    %v567 = vadd.f32 %v213, %v566
    %568 = vmatmul.bf16.gmra.mxu0 %v258
    %v569 = vpop.f32.mrf.mxu0
    %v570 = vadd.f32 %v213, %v569
    %v571 = vpop.f32.mrf.mxu0
    %v572 = vadd.f32 %v213, %v571
    %573 = vdwg.mxu0
    %574 = vmatpush.bf16.msra.mxu0 %v394
    %575 = vmatpush.bf16.msra.mxu0 %v390
    %576 = vmatpush.bf16.msra.mxu0 %v386
    %577 = vmatpush.bf16.msra.mxu0 %v382
    %578 = vmatpush.bf16.msra.mxu0 %v378
    %579 = vmatpush.bf16.msra.mxu0 %v374
    %580 = vmatpush.bf16.msra.mxu0 %v370
    %581 = vmatpush.bf16.msra.mxu0 %v366
    %582 = vmatmul.bf16.gmra.mxu0 %v251
    %v583 = vpop.f32.mrf.mxu0
    %v584 = vadd.f32 %v214, %v583
    %v585 = vpop.f32.mrf.mxu0
    %v586 = vadd.f32 %v214, %v585
    %587 = vmatmul.bf16.gmra.mxu0 %v252
    %v588 = vpop.f32.mrf.mxu0
    %v589 = vadd.f32 %v214, %v588
    %v590 = vpop.f32.mrf.mxu0
    %v591 = vadd.f32 %v214, %v590
    %592 = vmatmul.bf16.gmra.mxu0 %v253
    %v593 = vpop.f32.mrf.mxu0
    %v594 = vadd.f32 %v214, %v593
    %v595 = vpop.f32.mrf.mxu0
    %v596 = vadd.f32 %v214, %v595
    %597 = vmatmul.bf16.gmra.mxu0 %v254
    %v598 = vpop.f32.mrf.mxu0
    %v599 = vadd.f32 %v214, %v598
    %v600 = vpop.f32.mrf.mxu0
    %v601 = vadd.f32 %v214, %v600
    %602 = vmatmul.bf16.gmra.mxu0 %v255
    %v603 = vpop.f32.mrf.mxu0
    %v604 = vadd.f32 %v214, %v603
    %v605 = vpop.f32.mrf.mxu0
    %v606 = vadd.f32 %v214, %v605
    %607 = vmatmul.bf16.gmra.mxu0 %v256
    %v608 = vpop.f32.mrf.mxu0
    %v609 = vadd.f32 %v214, %v608
    %v610 = vpop.f32.mrf.mxu0
    %v611 = vadd.f32 %v214, %v610
    %612 = vmatmul.bf16.gmra.mxu0 %v257
    %v613 = vpop.f32.mrf.mxu0
    %v614 = vadd.f32 %v214, %v613
    %v615 = vpop.f32.mrf.mxu0
    %v616 = vadd.f32 %v214, %v615
    %617 = vmatmul.bf16.gmra.mxu0 %v258
    %v618 = vpop.f32.mrf.mxu0
    %v619 = vadd.f32 %v214, %v618
    %v620 = vpop.f32.mrf.mxu0
    %v621 = vadd.f32 %v214, %v620
    %622 = vdwg.mxu0
    %v623 = vpack.c.bf16 %v486, %v437
    %v624 = vpack.c.bf16 %v584, %v535
    %v625 = vpack.c.bf16 %v488, %v439
    %v626 = vpack.c.bf16 %v586, %v537
    %v627 = vpack.c.bf16 %v491, %v442
    %v628 = vpack.c.bf16 %v589, %v540
    %v629 = vpack.c.bf16 %v493, %v444
    %v630 = vpack.c.bf16 %v591, %v542
    %v631 = vpack.c.bf16 %v496, %v447
    %v632 = vpack.c.bf16 %v594, %v545
    %v633 = vpack.c.bf16 %v498, %v449
    %v634 = vpack.c.bf16 %v596, %v547
    %v635 = vpack.c.bf16 %v501, %v452
    %v636 = vpack.c.bf16 %v599, %v550
    %v637 = vpack.c.bf16 %v503, %v454
    %v638 = vpack.c.bf16 %v601, %v552
    %v639 = vpack.c.bf16 %v506, %v457
    %v640 = vpack.c.bf16 %v604, %v555
    %v641 = vpack.c.bf16 %v508, %v459
    %v642 = vpack.c.bf16 %v606, %v557
    %v643 = vpack.c.bf16 %v511, %v462
    %v644 = vpack.c.bf16 %v609, %v560
    %v645 = vpack.c.bf16 %v513, %v464
    %v646 = vpack.c.bf16 %v611, %v562
    %v647 = vpack.c.bf16 %v516, %v467
    %v648 = vpack.c.bf16 %v614, %v565
    %v649 = vpack.c.bf16 %v518, %v469
    %v650 = vpack.c.bf16 %v616, %v567
    %v651 = vpack.c.bf16 %v521, %v472
    %v652 = vpack.c.bf16 %v619, %v570
    %v653 = vpack.c.bf16 %v523, %v474
    %v654 = vpack.c.bf16 %v621, %v572
    %655 = vst [vmem:[#allocation6] sm:$0xff] %v623
    %656 = vst [vmem:[#allocation6 + $0x8] sm:$0xff] %v624
    %657 = vst [vmem:[#allocation6 + $0x10] sm:$0xff] %v625
    %658 = vst [vmem:[#allocation6 + $0x18] sm:$0xff] %v626
    %659 = vst [vmem:[#allocation6 + $0x20] sm:$0xff] %v627
    %660 = vst [vmem:[#allocation6 + $0x28] sm:$0xff] %v628
    %661 = vst [vmem:[#allocation6 + $0x30] sm:$0xff] %v629
    %662 = vst [vmem:[#allocation6 + $0x38] sm:$0xff] %v630
    %663 = vst [vmem:[#allocation6 + $0x40] sm:$0xff] %v631
    %664 = vst [vmem:[#allocation6 + $0x48] sm:$0xff] %v632
    %665 = vst [vmem:[#allocation6 + $0x50] sm:$0xff] %v633
    %666 = vst [vmem:[#allocation6 + $0x58] sm:$0xff] %v634
    %667 = vst [vmem:[#allocation6 + $0x60] sm:$0xff] %v635
    %668 = vst [vmem:[#allocation6 + $0x68] sm:$0xff] %v636
    %669 = vst [vmem:[#allocation6 + $0x70] sm:$0xff] %v637
    %670 = vst [vmem:[#allocation6 + $0x78] sm:$0xff] %v638
    %671 = vst [vmem:[#allocation6 + $0x80] sm:$0xff] %v639
    %672 = vst [vmem:[#allocation6 + $0x88] sm:$0xff] %v640
    %673 = vst [vmem:[#allocation6 + $0x90] sm:$0xff] %v641
    %674 = vst [vmem:[#allocation6 + $0x98] sm:$0xff] %v642
    %675 = vst [vmem:[#allocation6 + $0xa0] sm:$0xff] %v643
    %676 = vst [vmem:[#allocation6 + $0xa8] sm:$0xff] %v644
    %677 = vst [vmem:[#allocation6 + $0xb0] sm:$0xff] %v645
    %678 = vst [vmem:[#allocation6 + $0xb8] sm:$0xff] %v646
    %679 = vst [vmem:[#allocation6 + $0xc0] sm:$0xff] %v647
    %680 = vst [vmem:[#allocation6 + $0xc8] sm:$0xff] %v648
    %681 = vst [vmem:[#allocation6 + $0xd0] sm:$0xff] %v649
    %682 = vst [vmem:[#allocation6 + $0xd8] sm:$0xff] %v650
    %683 = vst [vmem:[#allocation6 + $0xe0] sm:$0xff] %v651
    %684 = vst [vmem:[#allocation6 + $0xe8] sm:$0xff] %v652
    %685 = vst [vmem:[#allocation6 + $0xf0] sm:$0xff] %v653
    %686 = vst [vmem:[#allocation6 + $0xf8] sm:$0xff] %v654
    %v687 = vld [vmem:[#allocation11] sm:$0xf]
    %v688 = vld [vmem:[#allocation11 + $0x4] sm:$0xf]
    %v689 = vld [vmem:[#allocation11 + $0x8] sm:$0xf]
    %v690 = vld [vmem:[#allocation11 + $0xc] sm:$0xf]
    %v691 = vld [vmem:[#allocation11 + $0x10] sm:$0xf]
    %v692 = vld [vmem:[#allocation11 + $0x14] sm:$0xf]
    %v693 = vld [vmem:[#allocation11 + $0x18] sm:$0xf]
    %v694 = vld [vmem:[#allocation11 + $0x1c] sm:$0xf]
    %v695 = vld [vmem:[#allocation11 + $0x20] sm:$0xf]
    %v696 = vld [vmem:[#allocation11 + $0x24] sm:$0xf]
    %v697 = vld [vmem:[#allocation11 + $0x28] sm:$0xf]
    %v698 = vld [vmem:[#allocation11 + $0x2c] sm:$0xf]
    %v699 = vld [vmem:[#allocation11 + $0x30] sm:$0xf]
    %v700 = vld [vmem:[#allocation11 + $0x34] sm:$0xf]
    %v701 = vld [vmem:[#allocation11 + $0x38] sm:$0xf]
    %v702 = vld [vmem:[#allocation11 + $0x3c] sm:$0xf]
    %v703 = vld [vmem:[#allocation14] sm:$0xff]
    %v704 = vld [vmem:[#allocation14 + $0x8] sm:$0xff]
    %v705 = vld [vmem:[#allocation14 + $0x10] sm:$0xff]
    %v706 = vld [vmem:[#allocation14 + $0x18] sm:$0xff]
    %v707 = vld [vmem:[#allocation14 + $0x20] sm:$0xff]
    %v708 = vld [vmem:[#allocation14 + $0x28] sm:$0xff]
    %v709 = vld [vmem:[#allocation14 + $0x30] sm:$0xff]
    %v710 = vld [vmem:[#allocation14 + $0x38] sm:$0xff]
    %v711 = vld [vmem:[#allocation14 + $0x40] sm:$0xff]
    %v712 = vld [vmem:[#allocation14 + $0x48] sm:$0xff]
    %v713 = vld [vmem:[#allocation14 + $0x50] sm:$0xff]
    %v714 = vld [vmem:[#allocation14 + $0x58] sm:$0xff]
    %v715 = vld [vmem:[#allocation14 + $0x60] sm:$0xff]
    %v716 = vld [vmem:[#allocation14 + $0x68] sm:$0xff]
    %v717 = vld [vmem:[#allocation14 + $0x70] sm:$0xff]
    %v718 = vld [vmem:[#allocation14 + $0x78] sm:$0xff]
    %v719 = vld [vmem:[#allocation14 + $0x80] sm:$0xff]
    %v720 = vld [vmem:[#allocation14 + $0x88] sm:$0xff]
    %v721 = vld [vmem:[#allocation14 + $0x90] sm:$0xff]
    %v722 = vld [vmem:[#allocation14 + $0x98] sm:$0xff]
    %v723 = vld [vmem:[#allocation14 + $0xa0] sm:$0xff]
    %v724 = vld [vmem:[#allocation14 + $0xa8] sm:$0xff]
    %v725 = vld [vmem:[#allocation14 + $0xb0] sm:$0xff]
    %v726 = vld [vmem:[#allocation14 + $0xb8] sm:$0xff]
    %v727 = vld [vmem:[#allocation14 + $0xc0] sm:$0xff]
    %v728 = vld [vmem:[#allocation14 + $0xc8] sm:$0xff]
    %v729 = vld [vmem:[#allocation14 + $0xd0] sm:$0xff]
    %v730 = vld [vmem:[#allocation14 + $0xd8] sm:$0xff]
    %v731 = vld [vmem:[#allocation14 + $0xe0] sm:$0xff]
    %v732 = vld [vmem:[#allocation14 + $0xe8] sm:$0xff]
    %v733 = vld [vmem:[#allocation14 + $0xf0] sm:$0xff]
    %v734 = vld [vmem:[#allocation14 + $0xf8] sm:$0xff]
    %v735 = vld [vmem:[#allocation19] sm:$0xf]
    %v737 = vperm.slane %v735, 0
    %v738 = vperm.slane %v735, 1
    %v739 = vperm.slane %v735, 2
    %v740 = vperm.slane %v735, 3
    %v761 = vunpack.c.l.b16 %v687
    %v762 = vunpack.c.l.b16 %v688
    %v763 = vunpack.c.l.b16 %v689
    %v764 = vunpack.c.l.b16 %v690
    %v765 = vunpack.c.l.b16 %v691
    %v766 = vunpack.c.l.b16 %v692
    %v767 = vunpack.c.l.b16 %v693
    %v768 = vunpack.c.l.b16 %v694
    %v769 = vunpack.c.l.b16 %v695
    %v770 = vunpack.c.l.b16 %v696
    %v771 = vunpack.c.l.b16 %v697
    %v772 = vunpack.c.l.b16 %v698
    %v773 = vunpack.c.l.b16 %v699
    %v774 = vunpack.c.l.b16 %v700
    %v775 = vunpack.c.l.b16 %v701
    %v776 = vunpack.c.l.b16 %v702
    %v777 = vpack.c.b16 %v762, %v761
    %v778 = vpack.c.b16 %v764, %v763
    %v779 = vpack.c.b16 %v766, %v765
    %v780 = vpack.c.b16 %v768, %v767
    %v781 = vpack.c.b16 %v770, %v769
    %v782 = vpack.c.b16 %v772, %v771
    %v783 = vpack.c.b16 %v774, %v773
    %v784 = vpack.c.b16 %v776, %v775
    %v825 = vunpack.c.l.b16 %v703
    %v826 = vunpack.c.h.b16 %v703
    %v827 = vunpack.c.l.b16 %v704
    %v828 = vunpack.c.h.b16 %v704
    %v829 = vunpack.c.l.b16 %v705
    %v830 = vunpack.c.h.b16 %v705
    %v831 = vunpack.c.l.b16 %v706
    %v832 = vunpack.c.h.b16 %v706
    %v833 = vunpack.c.l.b16 %v707
    %v834 = vunpack.c.h.b16 %v707
    %v835 = vunpack.c.l.b16 %v708
    %v836 = vunpack.c.h.b16 %v708
    %v837 = vunpack.c.l.b16 %v709
    %v838 = vunpack.c.h.b16 %v709
    %v839 = vunpack.c.l.b16 %v710
    %v840 = vunpack.c.h.b16 %v710
    %v841 = vunpack.c.l.b16 %v711
    %v842 = vunpack.c.h.b16 %v711
    %v843 = vunpack.c.l.b16 %v712
    %v844 = vunpack.c.h.b16 %v712
    %v845 = vunpack.c.l.b16 %v713
    %v846 = vunpack.c.h.b16 %v713
    %v847 = vunpack.c.l.b16 %v714
    %v848 = vunpack.c.h.b16 %v714
    %v849 = vunpack.c.l.b16 %v715
    %v850 = vunpack.c.h.b16 %v715
    %v851 = vunpack.c.l.b16 %v716
    %v852 = vunpack.c.h.b16 %v716
    %v853 = vunpack.c.l.b16 %v717
    %v854 = vunpack.c.h.b16 %v717
    %v855 = vunpack.c.l.b16 %v718
    %v856 = vunpack.c.h.b16 %v718
    %v857 = vunpack.c.l.b16 %v719
    %v858 = vunpack.c.h.b16 %v719
    %v859 = vunpack.c.l.b16 %v720
    %v860 = vunpack.c.h.b16 %v720
    %v861 = vunpack.c.l.b16 %v721
    %v862 = vunpack.c.h.b16 %v721
    %v863 = vunpack.c.l.b16 %v722
    %v864 = vunpack.c.h.b16 %v722
    %v865 = vunpack.c.l.b16 %v723
    %v866 = vunpack.c.h.b16 %v723
    %v867 = vunpack.c.l.b16 %v724
    %v868 = vunpack.c.h.b16 %v724
    %v869 = vunpack.c.l.b16 %v725
    %v870 = vunpack.c.h.b16 %v725
    %v871 = vunpack.c.l.b16 %v726
    %v872 = vunpack.c.h.b16 %v726
    %v873 = vunpack.c.l.b16 %v727
    %v874 = vunpack.c.h.b16 %v727
    %v875 = vunpack.c.l.b16 %v728
    %v876 = vunpack.c.h.b16 %v728
    %v877 = vunpack.c.l.b16 %v729
    %v878 = vunpack.c.h.b16 %v729
    %v879 = vunpack.c.l.b16 %v730
    %v880 = vunpack.c.h.b16 %v730
    %v881 = vunpack.c.l.b16 %v731
    %v882 = vunpack.c.h.b16 %v731
    %v883 = vunpack.c.l.b16 %v732
    %v884 = vunpack.c.h.b16 %v732
    %v885 = vunpack.c.l.b16 %v733
    %v886 = vunpack.c.h.b16 %v733
    %v887 = vunpack.c.l.b16 %v734
    %v888 = vunpack.c.h.b16 %v734
    %v889 = vpack.c.b16 %v829, %v825
    %v890 = vpack.c.b16 %v830, %v826
    %v891 = vpack.c.b16 %v831, %v827
    %v892 = vpack.c.b16 %v832, %v828
    %v893 = vpack.c.b16 %v837, %v833
    %v894 = vpack.c.b16 %v838, %v834
    %v895 = vpack.c.b16 %v839, %v835
    %v896 = vpack.c.b16 %v840, %v836
    %v897 = vpack.c.b16 %v845, %v841
    %v898 = vpack.c.b16 %v846, %v842
    %v899 = vpack.c.b16 %v847, %v843
    %v900 = vpack.c.b16 %v848, %v844
    %v901 = vpack.c.b16 %v853, %v849
    %v902 = vpack.c.b16 %v854, %v850
    %v903 = vpack.c.b16 %v855, %v851
    %v904 = vpack.c.b16 %v856, %v852
    %v905 = vpack.c.b16 %v861, %v857
    %v906 = vpack.c.b16 %v862, %v858
    %v907 = vpack.c.b16 %v863, %v859
    %v908 = vpack.c.b16 %v864, %v860
    %v909 = vpack.c.b16 %v869, %v865
    %v910 = vpack.c.b16 %v870, %v866
    %v911 = vpack.c.b16 %v871, %v867
    %v912 = vpack.c.b16 %v872, %v868
    %v913 = vpack.c.b16 %v877, %v873
    %v914 = vpack.c.b16 %v878, %v874
    %v915 = vpack.c.b16 %v879, %v875
    %v916 = vpack.c.b16 %v880, %v876
    %v917 = vpack.c.b16 %v885, %v881
    %v918 = vpack.c.b16 %v886, %v882
    %v919 = vpack.c.b16 %v887, %v883
    %v920 = vpack.c.b16 %v888, %v884
    %953 = vmatpush.bf16.msra.mxu0 %v917
    %954 = vmatpush.bf16.msra.mxu0 %v913
    %955 = vmatpush.bf16.msra.mxu0 %v909
    %956 = vmatpush.bf16.msra.mxu0 %v905
    %957 = vmatpush.bf16.msra.mxu0 %v901
    %958 = vmatpush.bf16.msra.mxu0 %v897
    %959 = vmatpush.bf16.msra.mxu0 %v893
    %960 = vmatpush.bf16.msra.mxu0 %v889
    %961 = vmatmul.bf16.gmra.mxu0 %v777
    %v962 = vpop.f32.mrf.mxu0
    %v963 = vadd.f32 %v737, %v962
    %v964 = vpop.f32.mrf.mxu0
    %v965 = vadd.f32 %v737, %v964
    %966 = vmatmul.bf16.gmra.mxu0 %v778
    %v967 = vpop.f32.mrf.mxu0
    %v968 = vadd.f32 %v737, %v967
    %v969 = vpop.f32.mrf.mxu0
    %v970 = vadd.f32 %v737, %v969
    %971 = vmatmul.bf16.gmra.mxu0 %v779
    %v972 = vpop.f32.mrf.mxu0
    %v973 = vadd.f32 %v737, %v972
    %v974 = vpop.f32.mrf.mxu0
    %v975 = vadd.f32 %v737, %v974
    %976 = vmatmul.bf16.gmra.mxu0 %v780
    %v977 = vpop.f32.mrf.mxu0
    %v978 = vadd.f32 %v737, %v977
    %v979 = vpop.f32.mrf.mxu0
    %v980 = vadd.f32 %v737, %v979
    %981 = vmatmul.bf16.gmra.mxu0 %v781
    %v982 = vpop.f32.mrf.mxu0
    %v983 = vadd.f32 %v737, %v982
    %v984 = vpop.f32.mrf.mxu0
    %v985 = vadd.f32 %v737, %v984
    %986 = vmatmul.bf16.gmra.mxu0 %v782
    %v987 = vpop.f32.mrf.mxu0
    %v988 = vadd.f32 %v737, %v987
    %v989 = vpop.f32.mrf.mxu0
    %v990 = vadd.f32 %v737, %v989
    %991 = vmatmul.bf16.gmra.mxu0 %v783
    %v992 = vpop.f32.mrf.mxu0
    %v993 = vadd.f32 %v737, %v992
    %v994 = vpop.f32.mrf.mxu0
    %v995 = vadd.f32 %v737, %v994
    %996 = vmatmul.bf16.gmra.mxu0 %v784
    %v997 = vpop.f32.mrf.mxu0
    %v998 = vadd.f32 %v737, %v997
    %v999 = vpop.f32.mrf.mxu0
    %v1000 = vadd.f32 %v737, %v999
    %1001 = vdwg.mxu0
    %1002 = vmatpush.bf16.msra.mxu0 %v918
    %1003 = vmatpush.bf16.msra.mxu0 %v914
    %1004 = vmatpush.bf16.msra.mxu0 %v910
    %1005 = vmatpush.bf16.msra.mxu0 %v906
    %1006 = vmatpush.bf16.msra.mxu0 %v902
    %1007 = vmatpush.bf16.msra.mxu0 %v898
    %1008 = vmatpush.bf16.msra.mxu0 %v894
    %1009 = vmatpush.bf16.msra.mxu0 %v890
    %1010 = vmatmul.bf16.gmra.mxu0 %v777
    %v1011 = vpop.f32.mrf.mxu0
    %v1012 = vadd.f32 %v738, %v1011
    %v1013 = vpop.f32.mrf.mxu0
    %v1014 = vadd.f32 %v738, %v1013
    %1015 = vmatmul.bf16.gmra.mxu0 %v778
    %v1016 = vpop.f32.mrf.mxu0
    %v1017 = vadd.f32 %v738, %v1016
    %v1018 = vpop.f32.mrf.mxu0
    %v1019 = vadd.f32 %v738, %v1018
    %1020 = vmatmul.bf16.gmra.mxu0 %v779
    %v1021 = vpop.f32.mrf.mxu0
    %v1022 = vadd.f32 %v738, %v1021
    %v1023 = vpop.f32.mrf.mxu0
    %v1024 = vadd.f32 %v738, %v1023
    %1025 = vmatmul.bf16.gmra.mxu0 %v780
    %v1026 = vpop.f32.mrf.mxu0
    %v1027 = vadd.f32 %v738, %v1026
    %v1028 = vpop.f32.mrf.mxu0
    %v1029 = vadd.f32 %v738, %v1028
    %1030 = vmatmul.bf16.gmra.mxu0 %v781
    %v1031 = vpop.f32.mrf.mxu0
    %v1032 = vadd.f32 %v738, %v1031
    %v1033 = vpop.f32.mrf.mxu0
    %v1034 = vadd.f32 %v738, %v1033
    %1035 = vmatmul.bf16.gmra.mxu0 %v782
    %v1036 = vpop.f32.mrf.mxu0
    %v1037 = vadd.f32 %v738, %v1036
    %v1038 = vpop.f32.mrf.mxu0
    %v1039 = vadd.f32 %v738, %v1038
    %1040 = vmatmul.bf16.gmra.mxu0 %v783
    %v1041 = vpop.f32.mrf.mxu0
    %v1042 = vadd.f32 %v738, %v1041
    %v1043 = vpop.f32.mrf.mxu0
    %v1044 = vadd.f32 %v738, %v1043
    %1045 = vmatmul.bf16.gmra.mxu0 %v784
    %v1046 = vpop.f32.mrf.mxu0
    %v1047 = vadd.f32 %v738, %v1046
    %v1048 = vpop.f32.mrf.mxu0
    %v1049 = vadd.f32 %v738, %v1048
    %1050 = vdwg.mxu0
    %1051 = vmatpush.bf16.msra.mxu0 %v919
    %1052 = vmatpush.bf16.msra.mxu0 %v915
    %1053 = vmatpush.bf16.msra.mxu0 %v911
    %1054 = vmatpush.bf16.msra.mxu0 %v907
    %1055 = vmatpush.bf16.msra.mxu0 %v903
    %1056 = vmatpush.bf16.msra.mxu0 %v899
    %1057 = vmatpush.bf16.msra.mxu0 %v895
    %1058 = vmatpush.bf16.msra.mxu0 %v891
    %1059 = vmatmul.bf16.gmra.mxu0 %v777
    %v1060 = vpop.f32.mrf.mxu0
    %v1061 = vadd.f32 %v739, %v1060
    %v1062 = vpop.f32.mrf.mxu0
    %v1063 = vadd.f32 %v739, %v1062
    %1064 = vmatmul.bf16.gmra.mxu0 %v778
    %v1065 = vpop.f32.mrf.mxu0
    %v1066 = vadd.f32 %v739, %v1065
    %v1067 = vpop.f32.mrf.mxu0
    %v1068 = vadd.f32 %v739, %v1067
    %1069 = vmatmul.bf16.gmra.mxu0 %v779
    %v1070 = vpop.f32.mrf.mxu0
    %v1071 = vadd.f32 %v739, %v1070
    %v1072 = vpop.f32.mrf.mxu0
    %v1073 = vadd.f32 %v739, %v1072
    %1074 = vmatmul.bf16.gmra.mxu0 %v780
    %v1075 = vpop.f32.mrf.mxu0
    %v1076 = vadd.f32 %v739, %v1075
    %v1077 = vpop.f32.mrf.mxu0
    %v1078 = vadd.f32 %v739, %v1077
    %1079 = vmatmul.bf16.gmra.mxu0 %v781
    %v1080 = vpop.f32.mrf.mxu0
    %v1081 = vadd.f32 %v739, %v1080
    %v1082 = vpop.f32.mrf.mxu0
    %v1083 = vadd.f32 %v739, %v1082
    %1084 = vmatmul.bf16.gmra.mxu0 %v782
    %v1085 = vpop.f32.mrf.mxu0
    %v1086 = vadd.f32 %v739, %v1085
    %v1087 = vpop.f32.mrf.mxu0
    %v1088 = vadd.f32 %v739, %v1087
    %1089 = vmatmul.bf16.gmra.mxu0 %v783
    %v1090 = vpop.f32.mrf.mxu0
    %v1091 = vadd.f32 %v739, %v1090
    %v1092 = vpop.f32.mrf.mxu0
    %v1093 = vadd.f32 %v739, %v1092
    %1094 = vmatmul.bf16.gmra.mxu0 %v784
    %v1095 = vpop.f32.mrf.mxu0
    %v1096 = vadd.f32 %v739, %v1095
    %v1097 = vpop.f32.mrf.mxu0
    %v1098 = vadd.f32 %v739, %v1097
    %1099 = vdwg.mxu0
    %1100 = vmatpush.bf16.msra.mxu0 %v920
    %1101 = vmatpush.bf16.msra.mxu0 %v916
    %1102 = vmatpush.bf16.msra.mxu0 %v912
    %1103 = vmatpush.bf16.msra.mxu0 %v908
    %1104 = vmatpush.bf16.msra.mxu0 %v904
    %1105 = vmatpush.bf16.msra.mxu0 %v900
    %1106 = vmatpush.bf16.msra.mxu0 %v896
    %1107 = vmatpush.bf16.msra.mxu0 %v892
    %1108 = vmatmul.bf16.gmra.mxu0 %v777
    %v1109 = vpop.f32.mrf.mxu0
    %v1110 = vadd.f32 %v740, %v1109
    %v1111 = vpop.f32.mrf.mxu0
    %v1112 = vadd.f32 %v740, %v1111
    %1113 = vmatmul.bf16.gmra.mxu0 %v778
    %v1114 = vpop.f32.mrf.mxu0
    %v1115 = vadd.f32 %v740, %v1114
    %v1116 = vpop.f32.mrf.mxu0
    %v1117 = vadd.f32 %v740, %v1116
    %1118 = vmatmul.bf16.gmra.mxu0 %v779
    %v1119 = vpop.f32.mrf.mxu0
    %v1120 = vadd.f32 %v740, %v1119
    %v1121 = vpop.f32.mrf.mxu0
    %v1122 = vadd.f32 %v740, %v1121
    %1123 = vmatmul.bf16.gmra.mxu0 %v780
    %v1124 = vpop.f32.mrf.mxu0
    %v1125 = vadd.f32 %v740, %v1124
    %v1126 = vpop.f32.mrf.mxu0
    %v1127 = vadd.f32 %v740, %v1126
    %1128 = vmatmul.bf16.gmra.mxu0 %v781
    %v1129 = vpop.f32.mrf.mxu0
    %v1130 = vadd.f32 %v740, %v1129
    %v1131 = vpop.f32.mrf.mxu0
    %v1132 = vadd.f32 %v740, %v1131
    %1133 = vmatmul.bf16.gmra.mxu0 %v782
    %v1134 = vpop.f32.mrf.mxu0
    %v1135 = vadd.f32 %v740, %v1134
    %v1136 = vpop.f32.mrf.mxu0
    %v1137 = vadd.f32 %v740, %v1136
    %1138 = vmatmul.bf16.gmra.mxu0 %v783
    %v1139 = vpop.f32.mrf.mxu0
    %v1140 = vadd.f32 %v740, %v1139
    %v1141 = vpop.f32.mrf.mxu0
    %v1142 = vadd.f32 %v740, %v1141
    %1143 = vmatmul.bf16.gmra.mxu0 %v784
    %v1144 = vpop.f32.mrf.mxu0
    %v1145 = vadd.f32 %v740, %v1144
    %v1146 = vpop.f32.mrf.mxu0
    %v1147 = vadd.f32 %v740, %v1146
    %1148 = vdwg.mxu0
    %v1149 = vpack.c.bf16 %v1012, %v963
    %v1150 = vpack.c.bf16 %v1110, %v1061
    %v1151 = vpack.c.bf16 %v1014, %v965
    %v1152 = vpack.c.bf16 %v1112, %v1063
    %v1153 = vpack.c.bf16 %v1017, %v968
    %v1154 = vpack.c.bf16 %v1115, %v1066
    %v1155 = vpack.c.bf16 %v1019, %v970
    %v1156 = vpack.c.bf16 %v1117, %v1068
    %v1157 = vpack.c.bf16 %v1022, %v973
    %v1158 = vpack.c.bf16 %v1120, %v1071
    %v1159 = vpack.c.bf16 %v1024, %v975
    %v1160 = vpack.c.bf16 %v1122, %v1073
    %v1161 = vpack.c.bf16 %v1027, %v978
    %v1162 = vpack.c.bf16 %v1125, %v1076
    %v1163 = vpack.c.bf16 %v1029, %v980
    %v1164 = vpack.c.bf16 %v1127, %v1078
    %v1165 = vpack.c.bf16 %v1032, %v983
    %v1166 = vpack.c.bf16 %v1130, %v1081
    %v1167 = vpack.c.bf16 %v1034, %v985
    %v1168 = vpack.c.bf16 %v1132, %v1083
    %v1169 = vpack.c.bf16 %v1037, %v988
    %v1170 = vpack.c.bf16 %v1135, %v1086
    %v1171 = vpack.c.bf16 %v1039, %v990
    %v1172 = vpack.c.bf16 %v1137, %v1088
    %v1173 = vpack.c.bf16 %v1042, %v993
    %v1174 = vpack.c.bf16 %v1140, %v1091
    %v1175 = vpack.c.bf16 %v1044, %v995
    %v1176 = vpack.c.bf16 %v1142, %v1093
    %v1177 = vpack.c.bf16 %v1047, %v998
    %v1178 = vpack.c.bf16 %v1145, %v1096
    %v1179 = vpack.c.bf16 %v1049, %v1000
    %v1180 = vpack.c.bf16 %v1147, %v1098
    %1181 = vst [vmem:[#allocation7] sm:$0xff] %v1149
    %1182 = vst [vmem:[#allocation7 + $0x8] sm:$0xff] %v1150
    %1183 = vst [vmem:[#allocation7 + $0x10] sm:$0xff] %v1151
    %1184 = vst [vmem:[#allocation7 + $0x18] sm:$0xff] %v1152
    %1185 = vst [vmem:[#allocation7 + $0x20] sm:$0xff] %v1153
    %1186 = vst [vmem:[#allocation7 + $0x28] sm:$0xff] %v1154
    %1187 = vst [vmem:[#allocation7 + $0x30] sm:$0xff] %v1155
    %1188 = vst [vmem:[#allocation7 + $0x38] sm:$0xff] %v1156
    %1189 = vst [vmem:[#allocation7 + $0x40] sm:$0xff] %v1157
    %1190 = vst [vmem:[#allocation7 + $0x48] sm:$0xff] %v1158
    %1191 = vst [vmem:[#allocation7 + $0x50] sm:$0xff] %v1159
    %1192 = vst [vmem:[#allocation7 + $0x58] sm:$0xff] %v1160
    %1193 = vst [vmem:[#allocation7 + $0x60] sm:$0xff] %v1161
    %1194 = vst [vmem:[#allocation7 + $0x68] sm:$0xff] %v1162
    %1195 = vst [vmem:[#allocation7 + $0x70] sm:$0xff] %v1163
    %1196 = vst [vmem:[#allocation7 + $0x78] sm:$0xff] %v1164
    %1197 = vst [vmem:[#allocation7 + $0x80] sm:$0xff] %v1165
    %1198 = vst [vmem:[#allocation7 + $0x88] sm:$0xff] %v1166
    %1199 = vst [vmem:[#allocation7 + $0x90] sm:$0xff] %v1167
    %1200 = vst [vmem:[#allocation7 + $0x98] sm:$0xff] %v1168
    %1201 = vst [vmem:[#allocation7 + $0xa0] sm:$0xff] %v1169
    %1202 = vst [vmem:[#allocation7 + $0xa8] sm:$0xff] %v1170
    %1203 = vst [vmem:[#allocation7 + $0xb0] sm:$0xff] %v1171
    %1204 = vst [vmem:[#allocation7 + $0xb8] sm:$0xff] %v1172
    %1205 = vst [vmem:[#allocation7 + $0xc0] sm:$0xff] %v1173
    %1206 = vst [vmem:[#allocation7 + $0xc8] sm:$0xff] %v1174
    %1207 = vst [vmem:[#allocation7 + $0xd0] sm:$0xff] %v1175
    %1208 = vst [vmem:[#allocation7 + $0xd8] sm:$0xff] %v1176
    %1209 = vst [vmem:[#allocation7 + $0xe0] sm:$0xff] %v1177
    %1210 = vst [vmem:[#allocation7 + $0xe8] sm:$0xff] %v1178
    %1211 = vst [vmem:[#allocation7 + $0xf0] sm:$0xff] %v1179
    %1212 = vst [vmem:[#allocation7 + $0xf8] sm:$0xff] %v1180
    %v1213 = vld [vmem:[#allocation16] sm:$0xff]
    %v1214 = vld [vmem:[#allocation16 + $0x8] sm:$0xff]
    %v1215 = vld [vmem:[#allocation16 + $0x10] sm:$0xff]
    %v1216 = vld [vmem:[#allocation16 + $0x18] sm:$0xff]
    %v1217 = vld [vmem:[#allocation16 + $0x20] sm:$0xff]
    %v1218 = vld [vmem:[#allocation16 + $0x28] sm:$0xff]
    %v1219 = vld [vmem:[#allocation16 + $0x30] sm:$0xff]
    %v1220 = vld [vmem:[#allocation16 + $0x38] sm:$0xff]
    %v1221 = vld [vmem:[#allocation16 + $0x40] sm:$0xff]
    %v1222 = vld [vmem:[#allocation16 + $0x48] sm:$0xff]
    %v1223 = vld [vmem:[#allocation16 + $0x50] sm:$0xff]
    %v1224 = vld [vmem:[#allocation16 + $0x58] sm:$0xff]
    %v1225 = vld [vmem:[#allocation16 + $0x60] sm:$0xff]
    %v1226 = vld [vmem:[#allocation16 + $0x68] sm:$0xff]
    %v1227 = vld [vmem:[#allocation16 + $0x70] sm:$0xff]
    %v1228 = vld [vmem:[#allocation16 + $0x78] sm:$0xff]
    %v1229 = vld [vmem:[#allocation16 + $0x80] sm:$0xff]
    %v1230 = vld [vmem:[#allocation16 + $0x88] sm:$0xff]
    %v1231 = vld [vmem:[#allocation16 + $0x90] sm:$0xff]
    %v1232 = vld [vmem:[#allocation16 + $0x98] sm:$0xff]
    %v1233 = vld [vmem:[#allocation16 + $0xa0] sm:$0xff]
    %v1234 = vld [vmem:[#allocation16 + $0xa8] sm:$0xff]
    %v1235 = vld [vmem:[#allocation16 + $0xb0] sm:$0xff]
    %v1236 = vld [vmem:[#allocation16 + $0xb8] sm:$0xff]
    %v1237 = vld [vmem:[#allocation16 + $0xc0] sm:$0xff]
    %v1238 = vld [vmem:[#allocation16 + $0xc8] sm:$0xff]
    %v1239 = vld [vmem:[#allocation16 + $0xd0] sm:$0xff]
    %v1240 = vld [vmem:[#allocation16 + $0xd8] sm:$0xff]
    %v1241 = vld [vmem:[#allocation16 + $0xe0] sm:$0xff]
    %v1242 = vld [vmem:[#allocation16 + $0xe8] sm:$0xff]
    %v1243 = vld [vmem:[#allocation16 + $0xf0] sm:$0xff]
    %v1244 = vld [vmem:[#allocation16 + $0xf8] sm:$0xff]
    %v1245 = vld [vmem:[#allocation17] sm:$0xff]
    %v1246 = vld [vmem:[#allocation17 + $0x8] sm:$0xff]
    %v1247 = vld [vmem:[#allocation17 + $0x10] sm:$0xff]
    %v1248 = vld [vmem:[#allocation17 + $0x18] sm:$0xff]
    %v1249 = vld [vmem:[#allocation17 + $0x20] sm:$0xff]
    %v1250 = vld [vmem:[#allocation17 + $0x28] sm:$0xff]
    %v1251 = vld [vmem:[#allocation17 + $0x30] sm:$0xff]
    %v1252 = vld [vmem:[#allocation17 + $0x38] sm:$0xff]
    %v1253 = vld [vmem:[#allocation17 + $0x40] sm:$0xff]
    %v1254 = vld [vmem:[#allocation17 + $0x48] sm:$0xff]
    %v1255 = vld [vmem:[#allocation17 + $0x50] sm:$0xff]
    %v1256 = vld [vmem:[#allocation17 + $0x58] sm:$0xff]
    %v1257 = vld [vmem:[#allocation17 + $0x60] sm:$0xff]
    %v1258 = vld [vmem:[#allocation17 + $0x68] sm:$0xff]
    %v1259 = vld [vmem:[#allocation17 + $0x70] sm:$0xff]
    %v1260 = vld [vmem:[#allocation17 + $0x78] sm:$0xff]
    %v1261 = vld [vmem:[#allocation17 + $0x80] sm:$0xff]
    %v1262 = vld [vmem:[#allocation17 + $0x88] sm:$0xff]
    %v1263 = vld [vmem:[#allocation17 + $0x90] sm:$0xff]
    %v1264 = vld [vmem:[#allocation17 + $0x98] sm:$0xff]
    %v1265 = vld [vmem:[#allocation17 + $0xa0] sm:$0xff]
    %v1266 = vld [vmem:[#allocation17 + $0xa8] sm:$0xff]
    %v1267 = vld [vmem:[#allocation17 + $0xb0] sm:$0xff]
    %v1268 = vld [vmem:[#allocation17 + $0xb8] sm:$0xff]
    %v1269 = vld [vmem:[#allocation17 + $0xc0] sm:$0xff]
    %v1270 = vld [vmem:[#allocation17 + $0xc8] sm:$0xff]
    %v1271 = vld [vmem:[#allocation17 + $0xd0] sm:$0xff]
    %v1272 = vld [vmem:[#allocation17 + $0xd8] sm:$0xff]
    %v1273 = vld [vmem:[#allocation17 + $0xe0] sm:$0xff]
    %v1274 = vld [vmem:[#allocation17 + $0xe8] sm:$0xff]
    %v1275 = vld [vmem:[#allocation17 + $0xf0] sm:$0xff]
    %v1276 = vld [vmem:[#allocation17 + $0xf8] sm:$0xff]
    %v1277 = vld [vmem:[#allocation6] sm:$0xff]
    %v1278 = vld [vmem:[#allocation6 + $0x8] sm:$0xff]
    %v1279 = vld [vmem:[#allocation6 + $0x10] sm:$0xff]
    %v1280 = vld [vmem:[#allocation6 + $0x18] sm:$0xff]
    %v1281 = vunpack.c.l.bf16 %v1277
    %v1282 = vunpack.c.h.bf16 %v1277
    %v1283 = vunpack.c.l.bf16 %v1278
    %v1284 = vunpack.c.h.bf16 %v1278
    %v1285 = vunpack.c.l.bf16 %v1279
    %v1286 = vunpack.c.h.bf16 %v1279
    %v1287 = vunpack.c.l.bf16 %v1280
    %v1288 = vunpack.c.h.bf16 %v1280
    %v1289 = vld [vmem:[#allocation2] sm:$0xff]
    %v1290 = vld [vmem:[#allocation2 + $0x8] sm:$0xff]
    %v1291 = vpack.c.bf16 %v1290, %v1289
    %v1324 = vunpack.c.l.b16 %v1213
    %v1325 = vunpack.c.h.b16 %v1213
    %v1326 = vunpack.c.l.b16 %v1214
    %v1327 = vunpack.c.h.b16 %v1214
    %v1328 = vunpack.c.l.b16 %v1215
    %v1329 = vunpack.c.h.b16 %v1215
    %v1330 = vunpack.c.l.b16 %v1216
    %v1331 = vunpack.c.h.b16 %v1216
    %v1332 = vunpack.c.l.b16 %v1217
    %v1333 = vunpack.c.h.b16 %v1217
    %v1334 = vunpack.c.l.b16 %v1218
    %v1335 = vunpack.c.h.b16 %v1218
    %v1336 = vunpack.c.l.b16 %v1219
    %v1337 = vunpack.c.h.b16 %v1219
    %v1338 = vunpack.c.l.b16 %v1220
    %v1339 = vunpack.c.h.b16 %v1220
    %v1340 = vunpack.c.l.b16 %v1221
    %v1341 = vunpack.c.h.b16 %v1221
    %v1342 = vunpack.c.l.b16 %v1222
    %v1343 = vunpack.c.h.b16 %v1222
    %v1344 = vunpack.c.l.b16 %v1223
    %v1345 = vunpack.c.h.b16 %v1223
    %v1346 = vunpack.c.l.b16 %v1224
    %v1347 = vunpack.c.h.b16 %v1224
    %v1348 = vunpack.c.l.b16 %v1225
    %v1349 = vunpack.c.h.b16 %v1225
    %v1350 = vunpack.c.l.b16 %v1226
    %v1351 = vunpack.c.h.b16 %v1226
    %v1352 = vunpack.c.l.b16 %v1227
    %v1353 = vunpack.c.h.b16 %v1227
    %v1354 = vunpack.c.l.b16 %v1228
    %v1355 = vunpack.c.h.b16 %v1228
    %v1356 = vunpack.c.l.b16 %v1229
    %v1357 = vunpack.c.h.b16 %v1229
    %v1358 = vunpack.c.l.b16 %v1230
    %v1359 = vunpack.c.h.b16 %v1230
    %v1360 = vunpack.c.l.b16 %v1231
    %v1361 = vunpack.c.h.b16 %v1231
    %v1362 = vunpack.c.l.b16 %v1232
    %v1363 = vunpack.c.h.b16 %v1232
    %v1364 = vunpack.c.l.b16 %v1233
    %v1365 = vunpack.c.h.b16 %v1233
    %v1366 = vunpack.c.l.b16 %v1234
    %v1367 = vunpack.c.h.b16 %v1234
    %v1368 = vunpack.c.l.b16 %v1235
    %v1369 = vunpack.c.h.b16 %v1235
    %v1370 = vunpack.c.l.b16 %v1236
    %v1371 = vunpack.c.h.b16 %v1236
    %v1372 = vunpack.c.l.b16 %v1237
    %v1373 = vunpack.c.h.b16 %v1237
    %v1374 = vunpack.c.l.b16 %v1238
    %v1375 = vunpack.c.h.b16 %v1238
    %v1376 = vunpack.c.l.b16 %v1239
    %v1377 = vunpack.c.h.b16 %v1239
    %v1378 = vunpack.c.l.b16 %v1240
    %v1379 = vunpack.c.h.b16 %v1240
    %v1380 = vunpack.c.l.b16 %v1241
    %v1381 = vunpack.c.h.b16 %v1241
    %v1382 = vunpack.c.l.b16 %v1242
    %v1383 = vunpack.c.h.b16 %v1242
    %v1384 = vunpack.c.l.b16 %v1243
    %v1385 = vunpack.c.h.b16 %v1243
    %v1386 = vunpack.c.l.b16 %v1244
    %v1387 = vunpack.c.h.b16 %v1244
    %v1388 = vpack.c.b16 %v1328, %v1324
    %v1389 = vpack.c.b16 %v1329, %v1325
    %v1390 = vpack.c.b16 %v1330, %v1326
    %v1391 = vpack.c.b16 %v1331, %v1327
    %v1392 = vpack.c.b16 %v1336, %v1332
    %v1393 = vpack.c.b16 %v1337, %v1333
    %v1394 = vpack.c.b16 %v1338, %v1334
    %v1395 = vpack.c.b16 %v1339, %v1335
    %v1396 = vpack.c.b16 %v1344, %v1340
    %v1397 = vpack.c.b16 %v1345, %v1341
    %v1398 = vpack.c.b16 %v1346, %v1342
    %v1399 = vpack.c.b16 %v1347, %v1343
    %v1400 = vpack.c.b16 %v1352, %v1348
    %v1401 = vpack.c.b16 %v1353, %v1349
    %v1402 = vpack.c.b16 %v1354, %v1350
    %v1403 = vpack.c.b16 %v1355, %v1351
    %v1404 = vpack.c.b16 %v1360, %v1356
    %v1405 = vpack.c.b16 %v1361, %v1357
    %v1406 = vpack.c.b16 %v1362, %v1358
    %v1407 = vpack.c.b16 %v1363, %v1359
    %v1408 = vpack.c.b16 %v1368, %v1364
    %v1409 = vpack.c.b16 %v1369, %v1365
    %v1410 = vpack.c.b16 %v1370, %v1366
    %v1411 = vpack.c.b16 %v1371, %v1367
    %v1412 = vpack.c.b16 %v1376, %v1372
    %v1413 = vpack.c.b16 %v1377, %v1373
    %v1414 = vpack.c.b16 %v1378, %v1374
    %v1415 = vpack.c.b16 %v1379, %v1375
    %v1416 = vpack.c.b16 %v1384, %v1380
    %v1417 = vpack.c.b16 %v1385, %v1381
    %v1418 = vpack.c.b16 %v1386, %v1382
    %v1419 = vpack.c.b16 %v1387, %v1383
    %1452 = vmatpush.bf16.msra.mxu0 %v1416
    %1453 = vmatpush.bf16.msra.mxu0 %v1412
    %1454 = vmatpush.bf16.msra.mxu0 %v1408
    %1455 = vmatpush.bf16.msra.mxu0 %v1404
    %1456 = vmatpush.bf16.msra.mxu0 %v1400
    %1457 = vmatpush.bf16.msra.mxu0 %v1396
    %1458 = vmatpush.bf16.msra.mxu0 %v1392
    %1459 = vmatpush.bf16.msra.mxu0 %v1388
    %1460 = vmatmul.bf16.gmra.mxu0 %v1291
    %v1461 = vpop.f32.mrf.mxu0
    %v1462 = vadd.f32 0.0, %v1461
    %v1463 = vpop.f32.mrf.mxu0
    %v1464 = vadd.f32 0.0, %v1463
    %1465 = vdwg.mxu0
    %1466 = vmatpush.bf16.msra.mxu0 %v1417
    %1467 = vmatpush.bf16.msra.mxu0 %v1413
    %1468 = vmatpush.bf16.msra.mxu0 %v1409
    %1469 = vmatpush.bf16.msra.mxu0 %v1405
    %1470 = vmatpush.bf16.msra.mxu0 %v1401
    %1471 = vmatpush.bf16.msra.mxu0 %v1397
    %1472 = vmatpush.bf16.msra.mxu0 %v1393
    %1473 = vmatpush.bf16.msra.mxu0 %v1389
    %1474 = vmatmul.bf16.gmra.mxu0 %v1291
    %v1475 = vpop.f32.mrf.mxu0
    %v1476 = vadd.f32 0.0, %v1475
    %v1477 = vpop.f32.mrf.mxu0
    %v1478 = vadd.f32 0.0, %v1477
    %1479 = vdwg.mxu0
    %1480 = vmatpush.bf16.msra.mxu0 %v1418
    %1481 = vmatpush.bf16.msra.mxu0 %v1414
    %1482 = vmatpush.bf16.msra.mxu0 %v1410
    %1483 = vmatpush.bf16.msra.mxu0 %v1406
    %1484 = vmatpush.bf16.msra.mxu0 %v1402
    %1485 = vmatpush.bf16.msra.mxu0 %v1398
    %1486 = vmatpush.bf16.msra.mxu0 %v1394
    %1487 = vmatpush.bf16.msra.mxu0 %v1390
    %1488 = vmatmul.bf16.gmra.mxu0 %v1291
    %v1489 = vpop.f32.mrf.mxu0
    %v1490 = vadd.f32 0.0, %v1489
    %v1491 = vpop.f32.mrf.mxu0
    %v1492 = vadd.f32 0.0, %v1491
    %1493 = vdwg.mxu0
    %1494 = vmatpush.bf16.msra.mxu0 %v1419
    %1495 = vmatpush.bf16.msra.mxu0 %v1415
    %1496 = vmatpush.bf16.msra.mxu0 %v1411
    %1497 = vmatpush.bf16.msra.mxu0 %v1407
    %1498 = vmatpush.bf16.msra.mxu0 %v1403
    %1499 = vmatpush.bf16.msra.mxu0 %v1399
    %1500 = vmatpush.bf16.msra.mxu0 %v1395
    %1501 = vmatpush.bf16.msra.mxu0 %v1391
    %1502 = vmatmul.bf16.gmra.mxu0 %v1291
    %v1503 = vpop.f32.mrf.mxu0
    %v1504 = vadd.f32 0.0, %v1503
    %v1505 = vpop.f32.mrf.mxu0
    %v1506 = vadd.f32 0.0, %v1505
    %1507 = vdwg.mxu0
    %v1508 = vadd.f32 %v1281, %v1462
    %v1509 = vadd.f32 %v1282, %v1476
    %v1510 = vadd.f32 %v1283, %v1490
    %v1511 = vadd.f32 %v1284, %v1504
    %v1512 = vadd.f32 %v1285, %v1464
    %v1513 = vadd.f32 %v1286, %v1478
    %v1514 = vadd.f32 %v1287, %v1492
    %v1515 = vadd.f32 %v1288, %v1506
    %s1516 = scalar_lea.vmem [#allocation7], 224
    %v1517 = vld [vmem:[%s1516] sm:$0xff]
    %v1518 = vld [vmem:[%s1516 + $0x8] sm:$0xff]
    %v1519 = vld [vmem:[%s1516 + $0x10] sm:$0xff]
    %v1520 = vld [vmem:[%s1516 + $0x18] sm:$0xff]
    %v1521 = vunpack.c.l.bf16 %v1517
    %v1522 = vunpack.c.h.bf16 %v1517
    %v1523 = vunpack.c.l.bf16 %v1518
    %v1524 = vunpack.c.h.bf16 %v1518
    %v1525 = vunpack.c.l.bf16 %v1519
    %v1526 = vunpack.c.h.bf16 %v1519
    %v1527 = vunpack.c.l.bf16 %v1520
    %v1528 = vunpack.c.h.bf16 %v1520
    %v1529 = vld [vmem:[#allocation4] sm:$0xff]
    %v1530 = vld [vmem:[#allocation4 + $0x8] sm:$0xff]
    %v1531 = vpack.c.bf16 %v1530, %v1529
    %v1564 = vunpack.c.l.b16 %v1245
    %v1565 = vunpack.c.h.b16 %v1245
    %v1566 = vunpack.c.l.b16 %v1246
    %v1567 = vunpack.c.h.b16 %v1246
    %v1568 = vunpack.c.l.b16 %v1247
    %v1569 = vunpack.c.h.b16 %v1247
    %v1570 = vunpack.c.l.b16 %v1248
    %v1571 = vunpack.c.h.b16 %v1248
    %v1572 = vunpack.c.l.b16 %v1249
    %v1573 = vunpack.c.h.b16 %v1249
    %v1574 = vunpack.c.l.b16 %v1250
    %v1575 = vunpack.c.h.b16 %v1250
    %v1576 = vunpack.c.l.b16 %v1251
    %v1577 = vunpack.c.h.b16 %v1251
    %v1578 = vunpack.c.l.b16 %v1252
    %v1579 = vunpack.c.h.b16 %v1252
    %v1580 = vunpack.c.l.b16 %v1253
    %v1581 = vunpack.c.h.b16 %v1253
    %v1582 = vunpack.c.l.b16 %v1254
    %v1583 = vunpack.c.h.b16 %v1254
    %v1584 = vunpack.c.l.b16 %v1255
    %v1585 = vunpack.c.h.b16 %v1255
    %v1586 = vunpack.c.l.b16 %v1256
    %v1587 = vunpack.c.h.b16 %v1256
    %v1588 = vunpack.c.l.b16 %v1257
    %v1589 = vunpack.c.h.b16 %v1257
    %v1590 = vunpack.c.l.b16 %v1258
    %v1591 = vunpack.c.h.b16 %v1258
    %v1592 = vunpack.c.l.b16 %v1259
    %v1593 = vunpack.c.h.b16 %v1259
    %v1594 = vunpack.c.l.b16 %v1260
    %v1595 = vunpack.c.h.b16 %v1260
    %v1596 = vunpack.c.l.b16 %v1261
    %v1597 = vunpack.c.h.b16 %v1261
    %v1598 = vunpack.c.l.b16 %v1262
    %v1599 = vunpack.c.h.b16 %v1262
    %v1600 = vunpack.c.l.b16 %v1263
    %v1601 = vunpack.c.h.b16 %v1263
    %v1602 = vunpack.c.l.b16 %v1264
    %v1603 = vunpack.c.h.b16 %v1264
    %v1604 = vunpack.c.l.b16 %v1265
    %v1605 = vunpack.c.h.b16 %v1265
    %v1606 = vunpack.c.l.b16 %v1266
    %v1607 = vunpack.c.h.b16 %v1266
    %v1608 = vunpack.c.l.b16 %v1267
    %v1609 = vunpack.c.h.b16 %v1267
    %v1610 = vunpack.c.l.b16 %v1268
    %v1611 = vunpack.c.h.b16 %v1268
    %v1612 = vunpack.c.l.b16 %v1269
    %v1613 = vunpack.c.h.b16 %v1269
    %v1614 = vunpack.c.l.b16 %v1270
    %v1615 = vunpack.c.h.b16 %v1270
    %v1616 = vunpack.c.l.b16 %v1271
    %v1617 = vunpack.c.h.b16 %v1271
    %v1618 = vunpack.c.l.b16 %v1272
    %v1619 = vunpack.c.h.b16 %v1272
    %v1620 = vunpack.c.l.b16 %v1273
    %v1621 = vunpack.c.h.b16 %v1273
    %v1622 = vunpack.c.l.b16 %v1274
    %v1623 = vunpack.c.h.b16 %v1274
    %v1624 = vunpack.c.l.b16 %v1275
    %v1625 = vunpack.c.h.b16 %v1275
    %v1626 = vunpack.c.l.b16 %v1276
    %v1627 = vunpack.c.h.b16 %v1276
    %v1628 = vpack.c.b16 %v1568, %v1564
    %v1629 = vpack.c.b16 %v1569, %v1565
    %v1630 = vpack.c.b16 %v1570, %v1566
    %v1631 = vpack.c.b16 %v1571, %v1567
    %v1632 = vpack.c.b16 %v1576, %v1572
    %v1633 = vpack.c.b16 %v1577, %v1573
    %v1634 = vpack.c.b16 %v1578, %v1574
    %v1635 = vpack.c.b16 %v1579, %v1575
    %v1636 = vpack.c.b16 %v1584, %v1580
    %v1637 = vpack.c.b16 %v1585, %v1581
    %v1638 = vpack.c.b16 %v1586, %v1582
    %v1639 = vpack.c.b16 %v1587, %v1583
    %v1640 = vpack.c.b16 %v1592, %v1588
    %v1641 = vpack.c.b16 %v1593, %v1589
    %v1642 = vpack.c.b16 %v1594, %v1590
    %v1643 = vpack.c.b16 %v1595, %v1591
    %v1644 = vpack.c.b16 %v1600, %v1596
    %v1645 = vpack.c.b16 %v1601, %v1597
    %v1646 = vpack.c.b16 %v1602, %v1598
    %v1647 = vpack.c.b16 %v1603, %v1599
    %v1648 = vpack.c.b16 %v1608, %v1604
    %v1649 = vpack.c.b16 %v1609, %v1605
    %v1650 = vpack.c.b16 %v1610, %v1606
    %v1651 = vpack.c.b16 %v1611, %v1607
    %v1652 = vpack.c.b16 %v1616, %v1612
    %v1653 = vpack.c.b16 %v1617, %v1613
    %v1654 = vpack.c.b16 %v1618, %v1614
    %v1655 = vpack.c.b16 %v1619, %v1615
    %v1656 = vpack.c.b16 %v1624, %v1620
    %v1657 = vpack.c.b16 %v1625, %v1621
    %v1658 = vpack.c.b16 %v1626, %v1622
    %v1659 = vpack.c.b16 %v1627, %v1623
    %1692 = vmatpush.bf16.msra.mxu0 %v1656
    %1693 = vmatpush.bf16.msra.mxu0 %v1652
    %1694 = vmatpush.bf16.msra.mxu0 %v1648
    %1695 = vmatpush.bf16.msra.mxu0 %v1644
    %1696 = vmatpush.bf16.msra.mxu0 %v1640
    %1697 = vmatpush.bf16.msra.mxu0 %v1636
    %1698 = vmatpush.bf16.msra.mxu0 %v1632
    %1699 = vmatpush.bf16.msra.mxu0 %v1628
    %1700 = vmatmul.bf16.gmra.mxu0 %v1531
    %v1701 = vpop.f32.mrf.mxu0
    %v1702 = vadd.f32 0.0, %v1701
    %v1703 = vpop.f32.mrf.mxu0
    %v1704 = vadd.f32 0.0, %v1703
    %1705 = vdwg.mxu0
    %1706 = vmatpush.bf16.msra.mxu0 %v1657
    %1707 = vmatpush.bf16.msra.mxu0 %v1653
    %1708 = vmatpush.bf16.msra.mxu0 %v1649
    %1709 = vmatpush.bf16.msra.mxu0 %v1645
    %1710 = vmatpush.bf16.msra.mxu0 %v1641
    %1711 = vmatpush.bf16.msra.mxu0 %v1637
    %1712 = vmatpush.bf16.msra.mxu0 %v1633
    %1713 = vmatpush.bf16.msra.mxu0 %v1629
    %1714 = vmatmul.bf16.gmra.mxu0 %v1531
    %v1715 = vpop.f32.mrf.mxu0
    %v1716 = vadd.f32 0.0, %v1715
    %v1717 = vpop.f32.mrf.mxu0
    %v1718 = vadd.f32 0.0, %v1717
    %1719 = vdwg.mxu0
    %1720 = vmatpush.bf16.msra.mxu0 %v1658
    %1721 = vmatpush.bf16.msra.mxu0 %v1654
    %1722 = vmatpush.bf16.msra.mxu0 %v1650
    %1723 = vmatpush.bf16.msra.mxu0 %v1646
    %1724 = vmatpush.bf16.msra.mxu0 %v1642
    %1725 = vmatpush.bf16.msra.mxu0 %v1638
    %1726 = vmatpush.bf16.msra.mxu0 %v1634
    %1727 = vmatpush.bf16.msra.mxu0 %v1630
    %1728 = vmatmul.bf16.gmra.mxu0 %v1531
    %v1729 = vpop.f32.mrf.mxu0
    %v1730 = vadd.f32 0.0, %v1729
    %v1731 = vpop.f32.mrf.mxu0
    %v1732 = vadd.f32 0.0, %v1731
    %1733 = vdwg.mxu0
    %1734 = vmatpush.bf16.msra.mxu0 %v1659
    %1735 = vmatpush.bf16.msra.mxu0 %v1655
    %1736 = vmatpush.bf16.msra.mxu0 %v1651
    %1737 = vmatpush.bf16.msra.mxu0 %v1647
    %1738 = vmatpush.bf16.msra.mxu0 %v1643
    %1739 = vmatpush.bf16.msra.mxu0 %v1639
    %1740 = vmatpush.bf16.msra.mxu0 %v1635
    %1741 = vmatpush.bf16.msra.mxu0 %v1631
    %1742 = vmatmul.bf16.gmra.mxu0 %v1531
    %v1743 = vpop.f32.mrf.mxu0
    %v1744 = vadd.f32 0.0, %v1743
    %v1745 = vpop.f32.mrf.mxu0
    %v1746 = vadd.f32 0.0, %v1745
    %1747 = vdwg.mxu0
    %v1748 = vadd.f32 %v1521, %v1702
    %v1749 = vadd.f32 %v1522, %v1716
    %v1750 = vadd.f32 %v1523, %v1730
    %v1751 = vadd.f32 %v1524, %v1744
    %v1752 = vadd.f32 %v1525, %v1704
    %v1753 = vadd.f32 %v1526, %v1718
    %v1754 = vadd.f32 %v1527, %v1732
    %v1755 = vadd.f32 %v1528, %v1746
    %v1756 = vld [vmem:[#allocation3] sm:$0xff]
    %v1757 = vld [vmem:[#allocation3 + $0x8] sm:$0xff]
    %v1758 = vmul.f32 %v1508, 0.5
    %v1759 = vmul.f32 %v1512, 0.5
    %v1760 = vtanh.pop %v1758
    %v1761 = vtanh.pop %v1759
    %v1762 = vmul.f32 %v1760, 0.5
    %v1763 = vmul.f32 %v1761, 0.5
    %v1764 = vadd.f32 %v1762, 0.5
    %v1765 = vadd.f32 %v1763, 0.5
    %v1766 = vmul.f32 %v1509, 0.5
    %v1767 = vmul.f32 %v1513, 0.5
    %v1768 = vtanh.pop %v1766
    %v1769 = vtanh.pop %v1767
    %v1770 = vmul.f32 %v1768, 0.5
    %v1771 = vmul.f32 %v1769, 0.5
    %v1772 = vadd.f32 %v1770, 0.5
    %v1773 = vadd.f32 %v1771, 0.5
    %v1774 = vtanh.pop %v1510
    %v1775 = vtanh.pop %v1514
    %v1776 = vmul.f32 %v1511, 0.5
    %v1777 = vmul.f32 %v1515, 0.5
    %v1778 = vtanh.pop %v1776
    %v1779 = vtanh.pop %v1777
    %v1780 = vmul.f32 %v1778, 0.5
    %v1781 = vmul.f32 %v1779, 0.5
    %v1782 = vadd.f32 %v1780, 0.5
    %v1783 = vadd.f32 %v1781, 0.5
    %v1784 = vmul.f32 %v1772, %v1756
    %v1785 = vmul.f32 %v1773, %v1757
    %v1786 = vmul.f32 %v1764, %v1774
    %v1787 = vmul.f32 %v1765, %v1775
    %v1788 = vadd.f32 %v1784, %v1786
    %v1789 = vadd.f32 %v1785, %v1787
    %v1790 = vtanh.pop %v1788
    %v1791 = vtanh.pop %v1789
    %v1792 = vmul.f32 %v1782, %v1790
    %v1793 = vmul.f32 %v1783, %v1791
    %v1794 = vld [vmem:[#allocation5] sm:$0xff]
    %v1795 = vld [vmem:[#allocation5 + $0x8] sm:$0xff]
    %v1796 = vmul.f32 %v1748, 0.5
    %v1797 = vmul.f32 %v1752, 0.5
    %v1798 = vtanh.pop %v1796
    %v1799 = vtanh.pop %v1797
    %v1800 = vmul.f32 %v1798, 0.5
    %v1801 = vmul.f32 %v1799, 0.5
    %v1802 = vadd.f32 %v1800, 0.5
    %v1803 = vadd.f32 %v1801, 0.5
    %v1804 = vmul.f32 %v1749, 0.5
    %v1805 = vmul.f32 %v1753, 0.5
    %v1806 = vtanh.pop %v1804
    %v1807 = vtanh.pop %v1805
    %v1808 = vmul.f32 %v1806, 0.5
    %v1809 = vmul.f32 %v1807, 0.5
    %v1810 = vadd.f32 %v1808, 0.5
    %v1811 = vadd.f32 %v1809, 0.5
    %v1812 = vtanh.pop %v1750
    %v1813 = vtanh.pop %v1754
    %v1814 = vmul.f32 %v1751, 0.5
    %v1815 = vmul.f32 %v1755, 0.5
    %v1816 = vtanh.pop %v1814
    %v1817 = vtanh.pop %v1815
    %v1818 = vmul.f32 %v1816, 0.5
    %v1819 = vmul.f32 %v1817, 0.5
    %v1820 = vadd.f32 %v1818, 0.5
    %v1821 = vadd.f32 %v1819, 0.5
    %v1822 = vmul.f32 %v1810, %v1794
    %v1823 = vmul.f32 %v1811, %v1795
    %v1824 = vmul.f32 %v1802, %v1812
    %v1825 = vmul.f32 %v1803, %v1813
    %v1826 = vadd.f32 %v1822, %v1824
    %v1827 = vadd.f32 %v1823, %v1825
    %v1828 = vtanh.pop %v1826
    %v1829 = vtanh.pop %v1827
    %v1830 = vmul.f32 %v1820, %v1828
    %v1831 = vmul.f32 %v1821, %v1829
    %1832 = vst [vmem:[#allocation2] sm:$0xff] %v1792
    %1833 = vst [vmem:[#allocation2 + $0x8] sm:$0xff] %v1793
    %1834 = vst [vmem:[#allocation3] sm:$0xff] %v1788
    %1835 = vst [vmem:[#allocation3 + $0x8] sm:$0xff] %v1789
    %1836 = vst [vmem:[#allocation4] sm:$0xff] %v1830
    %1837 = vst [vmem:[#allocation4 + $0x8] sm:$0xff] %v1831
    %1838 = vst [vmem:[#allocation5] sm:$0xff] %v1826
    %1839 = vst [vmem:[#allocation5 + $0x8] sm:$0xff] %v1827
    %v1840 = vpack.c.bf16 %v1792, %v1792
    %v1841 = vpack.c.bf16 %v1793, %v1793
    %1842 = vst [vmem:[#allocation20] sm:$0xf] %v1840
    %1843 = vst [vmem:[#allocation20 + $0x4] sm:$0xf] %v1841
    %v1844 = vpack.c.bf16 %v1830, %v1830
    %v1845 = vpack.c.bf16 %v1831, %v1831
    %s1846 = scalar_lea.vmem [#allocation21], 56
    %1847 = vst [vmem:[%s1846] sm:$0xf] %v1844
    %1848 = vst [vmem:[%s1846 + $0x4] sm:$0xf] %v1845
    %s1849 = scalar_lea.vmem [#allocation6], 32
    %v1850 = vld [vmem:[%s1849] sm:$0xff]
    %v1851 = vld [vmem:[%s1849 + $0x8] sm:$0xff]
    %v1852 = vld [vmem:[%s1849 + $0x10] sm:$0xff]
    %v1853 = vld [vmem:[%s1849 + $0x18] sm:$0xff]
    %v1854 = vunpack.c.l.bf16 %v1850
    %v1855 = vunpack.c.h.bf16 %v1850
    %v1856 = vunpack.c.l.bf16 %v1851
    %v1857 = vunpack.c.h.bf16 %v1851
    %v1858 = vunpack.c.l.bf16 %v1852
    %v1859 = vunpack.c.h.bf16 %v1852
    %v1860 = vunpack.c.l.bf16 %v1853
    %v1861 = vunpack.c.h.bf16 %v1853
    %v1862 = vld [vmem:[#allocation2] sm:$0xff]
    %v1863 = vld [vmem:[#allocation2 + $0x8] sm:$0xff]
    %v1864 = vpack.c.bf16 %v1863, %v1862
    %1865 = vmatpush.bf16.msra.mxu0 %v1416
    %1866 = vmatpush.bf16.msra.mxu0 %v1412
    %1867 = vmatpush.bf16.msra.mxu0 %v1408
    %1868 = vmatpush.bf16.msra.mxu0 %v1404
    %1869 = vmatpush.bf16.msra.mxu0 %v1400
    %1870 = vmatpush.bf16.msra.mxu0 %v1396
    %1871 = vmatpush.bf16.msra.mxu0 %v1392
    %1872 = vmatpush.bf16.msra.mxu0 %v1388
    %1873 = vmatmul.bf16.gmra.mxu0 %v1864
    %v1874 = vpop.f32.mrf.mxu0
    %v1875 = vadd.f32 0.0, %v1874
    %v1876 = vpop.f32.mrf.mxu0
    %v1877 = vadd.f32 0.0, %v1876
    %1878 = vdwg.mxu0
    %1879 = vmatpush.bf16.msra.mxu0 %v1417
    %1880 = vmatpush.bf16.msra.mxu0 %v1413
    %1881 = vmatpush.bf16.msra.mxu0 %v1409
    %1882 = vmatpush.bf16.msra.mxu0 %v1405
    %1883 = vmatpush.bf16.msra.mxu0 %v1401
    %1884 = vmatpush.bf16.msra.mxu0 %v1397
    %1885 = vmatpush.bf16.msra.mxu0 %v1393
    %1886 = vmatpush.bf16.msra.mxu0 %v1389
    %1887 = vmatmul.bf16.gmra.mxu0 %v1864
    %v1888 = vpop.f32.mrf.mxu0
    %v1889 = vadd.f32 0.0, %v1888
    %v1890 = vpop.f32.mrf.mxu0
    %v1891 = vadd.f32 0.0, %v1890
    %1892 = vdwg.mxu0
    %1893 = vmatpush.bf16.msra.mxu0 %v1418
    %1894 = vmatpush.bf16.msra.mxu0 %v1414
    %1895 = vmatpush.bf16.msra.mxu0 %v1410
    %1896 = vmatpush.bf16.msra.mxu0 %v1406
    %1897 = vmatpush.bf16.msra.mxu0 %v1402
    %1898 = vmatpush.bf16.msra.mxu0 %v1398
    %1899 = vmatpush.bf16.msra.mxu0 %v1394
    %1900 = vmatpush.bf16.msra.mxu0 %v1390
    %1901 = vmatmul.bf16.gmra.mxu0 %v1864
    %v1902 = vpop.f32.mrf.mxu0
    %v1903 = vadd.f32 0.0, %v1902
    %v1904 = vpop.f32.mrf.mxu0
    %v1905 = vadd.f32 0.0, %v1904
    %1906 = vdwg.mxu0
    %1907 = vmatpush.bf16.msra.mxu0 %v1419
    %1908 = vmatpush.bf16.msra.mxu0 %v1415
    %1909 = vmatpush.bf16.msra.mxu0 %v1411
    %1910 = vmatpush.bf16.msra.mxu0 %v1407
    %1911 = vmatpush.bf16.msra.mxu0 %v1403
    %1912 = vmatpush.bf16.msra.mxu0 %v1399
    %1913 = vmatpush.bf16.msra.mxu0 %v1395
    %1914 = vmatpush.bf16.msra.mxu0 %v1391
    %1915 = vmatmul.bf16.gmra.mxu0 %v1864
    %v1916 = vpop.f32.mrf.mxu0
    %v1917 = vadd.f32 0.0, %v1916
    %v1918 = vpop.f32.mrf.mxu0
    %v1919 = vadd.f32 0.0, %v1918
    %1920 = vdwg.mxu0
    %v1921 = vadd.f32 %v1854, %v1875
    %v1922 = vadd.f32 %v1855, %v1889
    %v1923 = vadd.f32 %v1856, %v1903
    %v1924 = vadd.f32 %v1857, %v1917
    %v1925 = vadd.f32 %v1858, %v1877
    %v1926 = vadd.f32 %v1859, %v1891
    %v1927 = vadd.f32 %v1860, %v1905
    %v1928 = vadd.f32 %v1861, %v1919
    %s1929 = scalar_lea.vmem [#allocation7], 192
    %v1930 = vld [vmem:[%s1929] sm:$0xff]
    %v1931 = vld [vmem:[%s1929 + $0x8] sm:$0xff]
    %v1932 = vld [vmem:[%s1929 + $0x10] sm:$0xff]
    %v1933 = vld [vmem:[%s1929 + $0x18] sm:$0xff]
    %v1934 = vunpack.c.l.bf16 %v1930
    %v1935 = vunpack.c.h.bf16 %v1930
    %v1936 = vunpack.c.l.bf16 %v1931
    %v1937 = vunpack.c.h.bf16 %v1931
    %v1938 = vunpack.c.l.bf16 %v1932
    %v1939 = vunpack.c.h.bf16 %v1932
    %v1940 = vunpack.c.l.bf16 %v1933
    %v1941 = vunpack.c.h.bf16 %v1933
    %v1942 = vld [vmem:[#allocation4] sm:$0xff]
    %v1943 = vld [vmem:[#allocation4 + $0x8] sm:$0xff]
    %v1944 = vpack.c.bf16 %v1943, %v1942
    %1945 = vmatpush.bf16.msra.mxu0 %v1656
    %1946 = vmatpush.bf16.msra.mxu0 %v1652
    %1947 = vmatpush.bf16.msra.mxu0 %v1648
    %1948 = vmatpush.bf16.msra.mxu0 %v1644
    %1949 = vmatpush.bf16.msra.mxu0 %v1640
    %1950 = vmatpush.bf16.msra.mxu0 %v1636
    %1951 = vmatpush.bf16.msra.mxu0 %v1632
    %1952 = vmatpush.bf16.msra.mxu0 %v1628
    %1953 = vmatmul.bf16.gmra.mxu0 %v1944
    %v1954 = vpop.f32.mrf.mxu0
    %v1955 = vadd.f32 0.0, %v1954
    %v1956 = vpop.f32.mrf.mxu0
    %v1957 = vadd.f32 0.0, %v1956
    %1958 = vdwg.mxu0
    %1959 = vmatpush.bf16.msra.mxu0 %v1657
    %1960 = vmatpush.bf16.msra.mxu0 %v1653
    %1961 = vmatpush.bf16.msra.mxu0 %v1649
    %1962 = vmatpush.bf16.msra.mxu0 %v1645
    %1963 = vmatpush.bf16.msra.mxu0 %v1641
    %1964 = vmatpush.bf16.msra.mxu0 %v1637
    %1965 = vmatpush.bf16.msra.mxu0 %v1633
    %1966 = vmatpush.bf16.msra.mxu0 %v1629
    %1967 = vmatmul.bf16.gmra.mxu0 %v1944
    %v1968 = vpop.f32.mrf.mxu0
    %v1969 = vadd.f32 0.0, %v1968
    %v1970 = vpop.f32.mrf.mxu0
    %v1971 = vadd.f32 0.0, %v1970
    %1972 = vdwg.mxu0
    %1973 = vmatpush.bf16.msra.mxu0 %v1658
    %1974 = vmatpush.bf16.msra.mxu0 %v1654
    %1975 = vmatpush.bf16.msra.mxu0 %v1650
    %1976 = vmatpush.bf16.msra.mxu0 %v1646
    %1977 = vmatpush.bf16.msra.mxu0 %v1642
    %1978 = vmatpush.bf16.msra.mxu0 %v1638
    %1979 = vmatpush.bf16.msra.mxu0 %v1634
    %1980 = vmatpush.bf16.msra.mxu0 %v1630
    %1981 = vmatmul.bf16.gmra.mxu0 %v1944
    %v1982 = vpop.f32.mrf.mxu0
    %v1983 = vadd.f32 0.0, %v1982
    %v1984 = vpop.f32.mrf.mxu0
    %v1985 = vadd.f32 0.0, %v1984
    %1986 = vdwg.mxu0
    %1987 = vmatpush.bf16.msra.mxu0 %v1659
    %1988 = vmatpush.bf16.msra.mxu0 %v1655
    %1989 = vmatpush.bf16.msra.mxu0 %v1651
    %1990 = vmatpush.bf16.msra.mxu0 %v1647
    %1991 = vmatpush.bf16.msra.mxu0 %v1643
    %1992 = vmatpush.bf16.msra.mxu0 %v1639
    %1993 = vmatpush.bf16.msra.mxu0 %v1635
    %1994 = vmatpush.bf16.msra.mxu0 %v1631
    %1995 = vmatmul.bf16.gmra.mxu0 %v1944
    %v1996 = vpop.f32.mrf.mxu0
    %v1997 = vadd.f32 0.0, %v1996
    %v1998 = vpop.f32.mrf.mxu0
    %v1999 = vadd.f32 0.0, %v1998
    %2000 = vdwg.mxu0
    %v2001 = vadd.f32 %v1934, %v1955
    %v2002 = vadd.f32 %v1935, %v1969
    %v2003 = vadd.f32 %v1936, %v1983
    %v2004 = vadd.f32 %v1937, %v1997
    %v2005 = vadd.f32 %v1938, %v1957
    %v2006 = vadd.f32 %v1939, %v1971
    %v2007 = vadd.f32 %v1940, %v1985
    %v2008 = vadd.f32 %v1941, %v1999
    %v2009 = vld [vmem:[#allocation3] sm:$0xff]
    %v2010 = vld [vmem:[#allocation3 + $0x8] sm:$0xff]
    %v2011 = vmul.f32 %v1921, 0.5
    %v2012 = vmul.f32 %v1925, 0.5
    %v2013 = vtanh.pop %v2011
    %v2014 = vtanh.pop %v2012
    %v2015 = vmul.f32 %v2013, 0.5
    %v2016 = vmul.f32 %v2014, 0.5
    %v2017 = vadd.f32 %v2015, 0.5
    %v2018 = vadd.f32 %v2016, 0.5
    %v2019 = vmul.f32 %v1922, 0.5
    %v2020 = vmul.f32 %v1926, 0.5
    %v2021 = vtanh.pop %v2019
    %v2022 = vtanh.pop %v2020
    %v2023 = vmul.f32 %v2021, 0.5
    %v2024 = vmul.f32 %v2022, 0.5
    %v2025 = vadd.f32 %v2023, 0.5
    %v2026 = vadd.f32 %v2024, 0.5
    %v2027 = vtanh.pop %v1923
    %v2028 = vtanh.pop %v1927
    %v2029 = vmul.f32 %v1924, 0.5
    %v2030 = vmul.f32 %v1928, 0.5
    %v2031 = vtanh.pop %v2029
    %v2032 = vtanh.pop %v2030
    %v2033 = vmul.f32 %v2031, 0.5
    %v2034 = vmul.f32 %v2032, 0.5
    %v2035 = vadd.f32 %v2033, 0.5
    %v2036 = vadd.f32 %v2034, 0.5
    %v2037 = vmul.f32 %v2025, %v2009
    %v2038 = vmul.f32 %v2026, %v2010
    %v2039 = vmul.f32 %v2017, %v2027
    %v2040 = vmul.f32 %v2018, %v2028
    %v2041 = vadd.f32 %v2037, %v2039
    %v2042 = vadd.f32 %v2038, %v2040
    %v2043 = vtanh.pop %v2041
    %v2044 = vtanh.pop %v2042
    %v2045 = vmul.f32 %v2035, %v2043
    %v2046 = vmul.f32 %v2036, %v2044
    %v2047 = vld [vmem:[#allocation5] sm:$0xff]
    %v2048 = vld [vmem:[#allocation5 + $0x8] sm:$0xff]
    %v2049 = vmul.f32 %v2001, 0.5
    %v2050 = vmul.f32 %v2005, 0.5
    %v2051 = vtanh.pop %v2049
    %v2052 = vtanh.pop %v2050
    %v2053 = vmul.f32 %v2051, 0.5
    %v2054 = vmul.f32 %v2052, 0.5
    %v2055 = vadd.f32 %v2053, 0.5
    %v2056 = vadd.f32 %v2054, 0.5
    %v2057 = vmul.f32 %v2002, 0.5
    %v2058 = vmul.f32 %v2006, 0.5
    %v2059 = vtanh.pop %v2057
    %v2060 = vtanh.pop %v2058
    %v2061 = vmul.f32 %v2059, 0.5
    %v2062 = vmul.f32 %v2060, 0.5
    %v2063 = vadd.f32 %v2061, 0.5
    %v2064 = vadd.f32 %v2062, 0.5
    %v2065 = vtanh.pop %v2003
    %v2066 = vtanh.pop %v2007
    %v2067 = vmul.f32 %v2004, 0.5
    %v2068 = vmul.f32 %v2008, 0.5
    %v2069 = vtanh.pop %v2067
    %v2070 = vtanh.pop %v2068
    %v2071 = vmul.f32 %v2069, 0.5
    %v2072 = vmul.f32 %v2070, 0.5
    %v2073 = vadd.f32 %v2071, 0.5
    %v2074 = vadd.f32 %v2072, 0.5
    %v2075 = vmul.f32 %v2063, %v2047
    %v2076 = vmul.f32 %v2064, %v2048
    %v2077 = vmul.f32 %v2055, %v2065
    %v2078 = vmul.f32 %v2056, %v2066
    %v2079 = vadd.f32 %v2075, %v2077
    %v2080 = vadd.f32 %v2076, %v2078
    %v2081 = vtanh.pop %v2079
    %v2082 = vtanh.pop %v2080
    %v2083 = vmul.f32 %v2073, %v2081
    %v2084 = vmul.f32 %v2074, %v2082
    %2085 = vst [vmem:[#allocation2] sm:$0xff] %v2045
    %2086 = vst [vmem:[#allocation2 + $0x8] sm:$0xff] %v2046
    %2087 = vst [vmem:[#allocation3] sm:$0xff] %v2041
    %2088 = vst [vmem:[#allocation3 + $0x8] sm:$0xff] %v2042
    %2089 = vst [vmem:[#allocation4] sm:$0xff] %v2083
    %2090 = vst [vmem:[#allocation4 + $0x8] sm:$0xff] %v2084
    %2091 = vst [vmem:[#allocation5] sm:$0xff] %v2079
    %2092 = vst [vmem:[#allocation5 + $0x8] sm:$0xff] %v2080
    %v2093 = vpack.c.bf16 %v2045, %v2045
    %v2094 = vpack.c.bf16 %v2046, %v2046
    %s2095 = scalar_lea.vmem [#allocation20], 8
    %2096 = vst [vmem:[%s2095] sm:$0xf] %v2093
    %2097 = vst [vmem:[%s2095 + $0x4] sm:$0xf] %v2094
    %v2098 = vpack.c.bf16 %v2083, %v2083
    %v2099 = vpack.c.bf16 %v2084, %v2084
    %s2100 = scalar_lea.vmem [#allocation21], 48
    %2101 = vst [vmem:[%s2100] sm:$0xf] %v2098
    %2102 = vst [vmem:[%s2100 + $0x4] sm:$0xf] %v2099
    %s2103 = scalar_lea.vmem [#allocation6], 64
    %v2104 = vld [vmem:[%s2103] sm:$0xff]
    %v2105 = vld [vmem:[%s2103 + $0x8] sm:$0xff]
    %v2106 = vld [vmem:[%s2103 + $0x10] sm:$0xff]
    %v2107 = vld [vmem:[%s2103 + $0x18] sm:$0xff]
    %v2108 = vunpack.c.l.bf16 %v2104
    %v2109 = vunpack.c.h.bf16 %v2104
    %v2110 = vunpack.c.l.bf16 %v2105
    %v2111 = vunpack.c.h.bf16 %v2105
    %v2112 = vunpack.c.l.bf16 %v2106
    %v2113 = vunpack.c.h.bf16 %v2106
    %v2114 = vunpack.c.l.bf16 %v2107
    %v2115 = vunpack.c.h.bf16 %v2107
    %v2116 = vld [vmem:[#allocation2] sm:$0xff]
    %v2117 = vld [vmem:[#allocation2 + $0x8] sm:$0xff]
    %v2118 = vpack.c.bf16 %v2117, %v2116
    %2119 = vmatpush.bf16.msra.mxu0 %v1416
    %2120 = vmatpush.bf16.msra.mxu0 %v1412
    %2121 = vmatpush.bf16.msra.mxu0 %v1408
    %2122 = vmatpush.bf16.msra.mxu0 %v1404
    %2123 = vmatpush.bf16.msra.mxu0 %v1400
    %2124 = vmatpush.bf16.msra.mxu0 %v1396
    %2125 = vmatpush.bf16.msra.mxu0 %v1392
    %2126 = vmatpush.bf16.msra.mxu0 %v1388
    %2127 = vmatmul.bf16.gmra.mxu0 %v2118
    %v2128 = vpop.f32.mrf.mxu0
    %v2129 = vadd.f32 0.0, %v2128
    %v2130 = vpop.f32.mrf.mxu0
    %v2131 = vadd.f32 0.0, %v2130
    %2132 = vdwg.mxu0
    %2133 = vmatpush.bf16.msra.mxu0 %v1417
    %2134 = vmatpush.bf16.msra.mxu0 %v1413
    %2135 = vmatpush.bf16.msra.mxu0 %v1409
    %2136 = vmatpush.bf16.msra.mxu0 %v1405
    %2137 = vmatpush.bf16.msra.mxu0 %v1401
    %2138 = vmatpush.bf16.msra.mxu0 %v1397
    %2139 = vmatpush.bf16.msra.mxu0 %v1393
    %2140 = vmatpush.bf16.msra.mxu0 %v1389
    %2141 = vmatmul.bf16.gmra.mxu0 %v2118
    %v2142 = vpop.f32.mrf.mxu0
    %v2143 = vadd.f32 0.0, %v2142
    %v2144 = vpop.f32.mrf.mxu0
    %v2145 = vadd.f32 0.0, %v2144
    %2146 = vdwg.mxu0
    %2147 = vmatpush.bf16.msra.mxu0 %v1418
    %2148 = vmatpush.bf16.msra.mxu0 %v1414
    %2149 = vmatpush.bf16.msra.mxu0 %v1410
    %2150 = vmatpush.bf16.msra.mxu0 %v1406
    %2151 = vmatpush.bf16.msra.mxu0 %v1402
    %2152 = vmatpush.bf16.msra.mxu0 %v1398
    %2153 = vmatpush.bf16.msra.mxu0 %v1394
    %2154 = vmatpush.bf16.msra.mxu0 %v1390
    %2155 = vmatmul.bf16.gmra.mxu0 %v2118
    %v2156 = vpop.f32.mrf.mxu0
    %v2157 = vadd.f32 0.0, %v2156
    %v2158 = vpop.f32.mrf.mxu0
    %v2159 = vadd.f32 0.0, %v2158
    %2160 = vdwg.mxu0
    %2161 = vmatpush.bf16.msra.mxu0 %v1419
    %2162 = vmatpush.bf16.msra.mxu0 %v1415
    %2163 = vmatpush.bf16.msra.mxu0 %v1411
    %2164 = vmatpush.bf16.msra.mxu0 %v1407
    %2165 = vmatpush.bf16.msra.mxu0 %v1403
    %2166 = vmatpush.bf16.msra.mxu0 %v1399
    %2167 = vmatpush.bf16.msra.mxu0 %v1395
    %2168 = vmatpush.bf16.msra.mxu0 %v1391
    %2169 = vmatmul.bf16.gmra.mxu0 %v2118
    %v2170 = vpop.f32.mrf.mxu0
    %v2171 = vadd.f32 0.0, %v2170
    %v2172 = vpop.f32.mrf.mxu0
    %v2173 = vadd.f32 0.0, %v2172
    %2174 = vdwg.mxu0
    %v2175 = vadd.f32 %v2108, %v2129
    %v2176 = vadd.f32 %v2109, %v2143
    %v2177 = vadd.f32 %v2110, %v2157
    %v2178 = vadd.f32 %v2111, %v2171
    %v2179 = vadd.f32 %v2112, %v2131
    %v2180 = vadd.f32 %v2113, %v2145
    %v2181 = vadd.f32 %v2114, %v2159
    %v2182 = vadd.f32 %v2115, %v2173
    %s2183 = scalar_lea.vmem [#allocation7], 160
    %v2184 = vld [vmem:[%s2183] sm:$0xff]
    %v2185 = vld [vmem:[%s2183 + $0x8] sm:$0xff]
    %v2186 = vld [vmem:[%s2183 + $0x10] sm:$0xff]
    %v2187 = vld [vmem:[%s2183 + $0x18] sm:$0xff]
    %v2188 = vunpack.c.l.bf16 %v2184
    %v2189 = vunpack.c.h.bf16 %v2184
    %v2190 = vunpack.c.l.bf16 %v2185
    %v2191 = vunpack.c.h.bf16 %v2185
    %v2192 = vunpack.c.l.bf16 %v2186
    %v2193 = vunpack.c.h.bf16 %v2186
    %v2194 = vunpack.c.l.bf16 %v2187
    %v2195 = vunpack.c.h.bf16 %v2187
    %v2196 = vld [vmem:[#allocation4] sm:$0xff]
    %v2197 = vld [vmem:[#allocation4 + $0x8] sm:$0xff]
    %v2198 = vpack.c.bf16 %v2197, %v2196
    %2199 = vmatpush.bf16.msra.mxu0 %v1656
    %2200 = vmatpush.bf16.msra.mxu0 %v1652
    %2201 = vmatpush.bf16.msra.mxu0 %v1648
    %2202 = vmatpush.bf16.msra.mxu0 %v1644
    %2203 = vmatpush.bf16.msra.mxu0 %v1640
    %2204 = vmatpush.bf16.msra.mxu0 %v1636
    %2205 = vmatpush.bf16.msra.mxu0 %v1632
    %2206 = vmatpush.bf16.msra.mxu0 %v1628
    %2207 = vmatmul.bf16.gmra.mxu0 %v2198
    %v2208 = vpop.f32.mrf.mxu0
    %v2209 = vadd.f32 0.0, %v2208
    %v2210 = vpop.f32.mrf.mxu0
    %v2211 = vadd.f32 0.0, %v2210
    %2212 = vdwg.mxu0
    %2213 = vmatpush.bf16.msra.mxu0 %v1657
    %2214 = vmatpush.bf16.msra.mxu0 %v1653
    %2215 = vmatpush.bf16.msra.mxu0 %v1649
    %2216 = vmatpush.bf16.msra.mxu0 %v1645
    %2217 = vmatpush.bf16.msra.mxu0 %v1641
    %2218 = vmatpush.bf16.msra.mxu0 %v1637
    %2219 = vmatpush.bf16.msra.mxu0 %v1633
    %2220 = vmatpush.bf16.msra.mxu0 %v1629
    %2221 = vmatmul.bf16.gmra.mxu0 %v2198
    %v2222 = vpop.f32.mrf.mxu0
    %v2223 = vadd.f32 0.0, %v2222
    %v2224 = vpop.f32.mrf.mxu0
    %v2225 = vadd.f32 0.0, %v2224
    %2226 = vdwg.mxu0
    %2227 = vmatpush.bf16.msra.mxu0 %v1658
    %2228 = vmatpush.bf16.msra.mxu0 %v1654
    %2229 = vmatpush.bf16.msra.mxu0 %v1650
    %2230 = vmatpush.bf16.msra.mxu0 %v1646
    %2231 = vmatpush.bf16.msra.mxu0 %v1642
    %2232 = vmatpush.bf16.msra.mxu0 %v1638
    %2233 = vmatpush.bf16.msra.mxu0 %v1634
    %2234 = vmatpush.bf16.msra.mxu0 %v1630
    %2235 = vmatmul.bf16.gmra.mxu0 %v2198
    %v2236 = vpop.f32.mrf.mxu0
    %v2237 = vadd.f32 0.0, %v2236
    %v2238 = vpop.f32.mrf.mxu0
    %v2239 = vadd.f32 0.0, %v2238
    %2240 = vdwg.mxu0
    %2241 = vmatpush.bf16.msra.mxu0 %v1659
    %2242 = vmatpush.bf16.msra.mxu0 %v1655
    %2243 = vmatpush.bf16.msra.mxu0 %v1651
    %2244 = vmatpush.bf16.msra.mxu0 %v1647
    %2245 = vmatpush.bf16.msra.mxu0 %v1643
    %2246 = vmatpush.bf16.msra.mxu0 %v1639
    %2247 = vmatpush.bf16.msra.mxu0 %v1635
    %2248 = vmatpush.bf16.msra.mxu0 %v1631
    %2249 = vmatmul.bf16.gmra.mxu0 %v2198
    %v2250 = vpop.f32.mrf.mxu0
    %v2251 = vadd.f32 0.0, %v2250
    %v2252 = vpop.f32.mrf.mxu0
    %v2253 = vadd.f32 0.0, %v2252
    %2254 = vdwg.mxu0
    %v2255 = vadd.f32 %v2188, %v2209
    %v2256 = vadd.f32 %v2189, %v2223
    %v2257 = vadd.f32 %v2190, %v2237
    %v2258 = vadd.f32 %v2191, %v2251
    %v2259 = vadd.f32 %v2192, %v2211
    %v2260 = vadd.f32 %v2193, %v2225
    %v2261 = vadd.f32 %v2194, %v2239
    %v2262 = vadd.f32 %v2195, %v2253
    %v2263 = vld [vmem:[#allocation3] sm:$0xff]
    %v2264 = vld [vmem:[#allocation3 + $0x8] sm:$0xff]
    %v2265 = vmul.f32 %v2175, 0.5
    %v2266 = vmul.f32 %v2179, 0.5
    %v2267 = vtanh.pop %v2265
    %v2268 = vtanh.pop %v2266
    %v2269 = vmul.f32 %v2267, 0.5
    %v2270 = vmul.f32 %v2268, 0.5
    %v2271 = vadd.f32 %v2269, 0.5
    %v2272 = vadd.f32 %v2270, 0.5
    %v2273 = vmul.f32 %v2176, 0.5
    %v2274 = vmul.f32 %v2180, 0.5
    %v2275 = vtanh.pop %v2273
    %v2276 = vtanh.pop %v2274
    %v2277 = vmul.f32 %v2275, 0.5
    %v2278 = vmul.f32 %v2276, 0.5
    %v2279 = vadd.f32 %v2277, 0.5
    %v2280 = vadd.f32 %v2278, 0.5
    %v2281 = vtanh.pop %v2177
    %v2282 = vtanh.pop %v2181
    %v2283 = vmul.f32 %v2178, 0.5
    %v2284 = vmul.f32 %v2182, 0.5
    %v2285 = vtanh.pop %v2283
    %v2286 = vtanh.pop %v2284
    %v2287 = vmul.f32 %v2285, 0.5
    %v2288 = vmul.f32 %v2286, 0.5
    %v2289 = vadd.f32 %v2287, 0.5
    %v2290 = vadd.f32 %v2288, 0.5
    %v2291 = vmul.f32 %v2279, %v2263
    %v2292 = vmul.f32 %v2280, %v2264
    %v2293 = vmul.f32 %v2271, %v2281
    %v2294 = vmul.f32 %v2272, %v2282
    %v2295 = vadd.f32 %v2291, %v2293
    %v2296 = vadd.f32 %v2292, %v2294
    %v2297 = vtanh.pop %v2295
    %v2298 = vtanh.pop %v2296
    %v2299 = vmul.f32 %v2289, %v2297
    %v2300 = vmul.f32 %v2290, %v2298
    %v2301 = vld [vmem:[#allocation5] sm:$0xff]
    %v2302 = vld [vmem:[#allocation5 + $0x8] sm:$0xff]
    %v2303 = vmul.f32 %v2255, 0.5
    %v2304 = vmul.f32 %v2259, 0.5
    %v2305 = vtanh.pop %v2303
    %v2306 = vtanh.pop %v2304
    %v2307 = vmul.f32 %v2305, 0.5
    %v2308 = vmul.f32 %v2306, 0.5
    %v2309 = vadd.f32 %v2307, 0.5
    %v2310 = vadd.f32 %v2308, 0.5
    %v2311 = vmul.f32 %v2256, 0.5
    %v2312 = vmul.f32 %v2260, 0.5
    %v2313 = vtanh.pop %v2311
    %v2314 = vtanh.pop %v2312
    %v2315 = vmul.f32 %v2313, 0.5
    %v2316 = vmul.f32 %v2314, 0.5
    %v2317 = vadd.f32 %v2315, 0.5
    %v2318 = vadd.f32 %v2316, 0.5
    %v2319 = vtanh.pop %v2257
    %v2320 = vtanh.pop %v2261
    %v2321 = vmul.f32 %v2258, 0.5
    %v2322 = vmul.f32 %v2262, 0.5
    %v2323 = vtanh.pop %v2321
    %v2324 = vtanh.pop %v2322
    %v2325 = vmul.f32 %v2323, 0.5
    %v2326 = vmul.f32 %v2324, 0.5
    %v2327 = vadd.f32 %v2325, 0.5
    %v2328 = vadd.f32 %v2326, 0.5
    %v2329 = vmul.f32 %v2317, %v2301
    %v2330 = vmul.f32 %v2318, %v2302
    %v2331 = vmul.f32 %v2309, %v2319
    %v2332 = vmul.f32 %v2310, %v2320
    %v2333 = vadd.f32 %v2329, %v2331
    %v2334 = vadd.f32 %v2330, %v2332
    %v2335 = vtanh.pop %v2333
    %v2336 = vtanh.pop %v2334
    %v2337 = vmul.f32 %v2327, %v2335
    %v2338 = vmul.f32 %v2328, %v2336
    %2339 = vst [vmem:[#allocation2] sm:$0xff] %v2299
    %2340 = vst [vmem:[#allocation2 + $0x8] sm:$0xff] %v2300
    %2341 = vst [vmem:[#allocation3] sm:$0xff] %v2295
    %2342 = vst [vmem:[#allocation3 + $0x8] sm:$0xff] %v2296
    %2343 = vst [vmem:[#allocation4] sm:$0xff] %v2337
    %2344 = vst [vmem:[#allocation4 + $0x8] sm:$0xff] %v2338
    %2345 = vst [vmem:[#allocation5] sm:$0xff] %v2333
    %2346 = vst [vmem:[#allocation5 + $0x8] sm:$0xff] %v2334
    %v2347 = vpack.c.bf16 %v2299, %v2299
    %v2348 = vpack.c.bf16 %v2300, %v2300
    %s2349 = scalar_lea.vmem [#allocation20], 16
    %2350 = vst [vmem:[%s2349] sm:$0xf] %v2347
    %2351 = vst [vmem:[%s2349 + $0x4] sm:$0xf] %v2348
    %v2352 = vpack.c.bf16 %v2337, %v2337
    %v2353 = vpack.c.bf16 %v2338, %v2338
    %s2354 = scalar_lea.vmem [#allocation21], 40
    %2355 = vst [vmem:[%s2354] sm:$0xf] %v2352
    %2356 = vst [vmem:[%s2354 + $0x4] sm:$0xf] %v2353
    %s2357 = scalar_lea.vmem [#allocation6], 96
    %v2358 = vld [vmem:[%s2357] sm:$0xff]
    %v2359 = vld [vmem:[%s2357 + $0x8] sm:$0xff]
    %v2360 = vld [vmem:[%s2357 + $0x10] sm:$0xff]
    %v2361 = vld [vmem:[%s2357 + $0x18] sm:$0xff]
    %v2362 = vunpack.c.l.bf16 %v2358
    %v2363 = vunpack.c.h.bf16 %v2358
    %v2364 = vunpack.c.l.bf16 %v2359
    %v2365 = vunpack.c.h.bf16 %v2359
    %v2366 = vunpack.c.l.bf16 %v2360
    %v2367 = vunpack.c.h.bf16 %v2360
    %v2368 = vunpack.c.l.bf16 %v2361
    %v2369 = vunpack.c.h.bf16 %v2361
    %v2370 = vld [vmem:[#allocation2] sm:$0xff]
    %v2371 = vld [vmem:[#allocation2 + $0x8] sm:$0xff]
    %v2372 = vpack.c.bf16 %v2371, %v2370
    %2373 = vmatpush.bf16.msra.mxu0 %v1416
    %2374 = vmatpush.bf16.msra.mxu0 %v1412
    %2375 = vmatpush.bf16.msra.mxu0 %v1408
    %2376 = vmatpush.bf16.msra.mxu0 %v1404
    %2377 = vmatpush.bf16.msra.mxu0 %v1400
    %2378 = vmatpush.bf16.msra.mxu0 %v1396
    %2379 = vmatpush.bf16.msra.mxu0 %v1392
    %2380 = vmatpush.bf16.msra.mxu0 %v1388
    %2381 = vmatmul.bf16.gmra.mxu0 %v2372
    %v2382 = vpop.f32.mrf.mxu0
    %v2383 = vadd.f32 0.0, %v2382
    %v2384 = vpop.f32.mrf.mxu0
    %v2385 = vadd.f32 0.0, %v2384
    %2386 = vdwg.mxu0
    %2387 = vmatpush.bf16.msra.mxu0 %v1417
    %2388 = vmatpush.bf16.msra.mxu0 %v1413
    %2389 = vmatpush.bf16.msra.mxu0 %v1409
    %2390 = vmatpush.bf16.msra.mxu0 %v1405
    %2391 = vmatpush.bf16.msra.mxu0 %v1401
    %2392 = vmatpush.bf16.msra.mxu0 %v1397
    %2393 = vmatpush.bf16.msra.mxu0 %v1393
    %2394 = vmatpush.bf16.msra.mxu0 %v1389
    %2395 = vmatmul.bf16.gmra.mxu0 %v2372
    %v2396 = vpop.f32.mrf.mxu0
    %v2397 = vadd.f32 0.0, %v2396
    %v2398 = vpop.f32.mrf.mxu0
    %v2399 = vadd.f32 0.0, %v2398
    %2400 = vdwg.mxu0
    %2401 = vmatpush.bf16.msra.mxu0 %v1418
    %2402 = vmatpush.bf16.msra.mxu0 %v1414
    %2403 = vmatpush.bf16.msra.mxu0 %v1410
    %2404 = vmatpush.bf16.msra.mxu0 %v1406
    %2405 = vmatpush.bf16.msra.mxu0 %v1402
    %2406 = vmatpush.bf16.msra.mxu0 %v1398
    %2407 = vmatpush.bf16.msra.mxu0 %v1394
    %2408 = vmatpush.bf16.msra.mxu0 %v1390
    %2409 = vmatmul.bf16.gmra.mxu0 %v2372
    %v2410 = vpop.f32.mrf.mxu0
    %v2411 = vadd.f32 0.0, %v2410
    %v2412 = vpop.f32.mrf.mxu0
    %v2413 = vadd.f32 0.0, %v2412
    %2414 = vdwg.mxu0
    %2415 = vmatpush.bf16.msra.mxu0 %v1419
    %2416 = vmatpush.bf16.msra.mxu0 %v1415
    %2417 = vmatpush.bf16.msra.mxu0 %v1411
    %2418 = vmatpush.bf16.msra.mxu0 %v1407
    %2419 = vmatpush.bf16.msra.mxu0 %v1403
    %2420 = vmatpush.bf16.msra.mxu0 %v1399
    %2421 = vmatpush.bf16.msra.mxu0 %v1395
    %2422 = vmatpush.bf16.msra.mxu0 %v1391
    %2423 = vmatmul.bf16.gmra.mxu0 %v2372
    %v2424 = vpop.f32.mrf.mxu0
    %v2425 = vadd.f32 0.0, %v2424
    %v2426 = vpop.f32.mrf.mxu0
    %v2427 = vadd.f32 0.0, %v2426
    %2428 = vdwg.mxu0
    %v2429 = vadd.f32 %v2362, %v2383
    %v2430 = vadd.f32 %v2363, %v2397
    %v2431 = vadd.f32 %v2364, %v2411
    %v2432 = vadd.f32 %v2365, %v2425
    %v2433 = vadd.f32 %v2366, %v2385
    %v2434 = vadd.f32 %v2367, %v2399
    %v2435 = vadd.f32 %v2368, %v2413
    %v2436 = vadd.f32 %v2369, %v2427
    %s2437 = scalar_lea.vmem [#allocation7], 128
    %v2438 = vld [vmem:[%s2437] sm:$0xff]
    %v2439 = vld [vmem:[%s2437 + $0x8] sm:$0xff]
    %v2440 = vld [vmem:[%s2437 + $0x10] sm:$0xff]
    %v2441 = vld [vmem:[%s2437 + $0x18] sm:$0xff]
    %v2442 = vunpack.c.l.bf16 %v2438
    %v2443 = vunpack.c.h.bf16 %v2438
    %v2444 = vunpack.c.l.bf16 %v2439
    %v2445 = vunpack.c.h.bf16 %v2439
    %v2446 = vunpack.c.l.bf16 %v2440
    %v2447 = vunpack.c.h.bf16 %v2440
    %v2448 = vunpack.c.l.bf16 %v2441
    %v2449 = vunpack.c.h.bf16 %v2441
    %v2450 = vld [vmem:[#allocation4] sm:$0xff]
    %v2451 = vld [vmem:[#allocation4 + $0x8] sm:$0xff]
    %v2452 = vpack.c.bf16 %v2451, %v2450
    %2453 = vmatpush.bf16.msra.mxu0 %v1656
    %2454 = vmatpush.bf16.msra.mxu0 %v1652
    %2455 = vmatpush.bf16.msra.mxu0 %v1648
    %2456 = vmatpush.bf16.msra.mxu0 %v1644
    %2457 = vmatpush.bf16.msra.mxu0 %v1640
    %2458 = vmatpush.bf16.msra.mxu0 %v1636
    %2459 = vmatpush.bf16.msra.mxu0 %v1632
    %2460 = vmatpush.bf16.msra.mxu0 %v1628
    %2461 = vmatmul.bf16.gmra.mxu0 %v2452
    %v2462 = vpop.f32.mrf.mxu0
    %v2463 = vadd.f32 0.0, %v2462
    %v2464 = vpop.f32.mrf.mxu0
    %v2465 = vadd.f32 0.0, %v2464
    %2466 = vdwg.mxu0
    %2467 = vmatpush.bf16.msra.mxu0 %v1657
    %2468 = vmatpush.bf16.msra.mxu0 %v1653
    %2469 = vmatpush.bf16.msra.mxu0 %v1649
    %2470 = vmatpush.bf16.msra.mxu0 %v1645
    %2471 = vmatpush.bf16.msra.mxu0 %v1641
    %2472 = vmatpush.bf16.msra.mxu0 %v1637
    %2473 = vmatpush.bf16.msra.mxu0 %v1633
    %2474 = vmatpush.bf16.msra.mxu0 %v1629
    %2475 = vmatmul.bf16.gmra.mxu0 %v2452
    %v2476 = vpop.f32.mrf.mxu0
    %v2477 = vadd.f32 0.0, %v2476
    %v2478 = vpop.f32.mrf.mxu0
    %v2479 = vadd.f32 0.0, %v2478
    %2480 = vdwg.mxu0
    %2481 = vmatpush.bf16.msra.mxu0 %v1658
    %2482 = vmatpush.bf16.msra.mxu0 %v1654
    %2483 = vmatpush.bf16.msra.mxu0 %v1650
    %2484 = vmatpush.bf16.msra.mxu0 %v1646
    %2485 = vmatpush.bf16.msra.mxu0 %v1642
    %2486 = vmatpush.bf16.msra.mxu0 %v1638
    %2487 = vmatpush.bf16.msra.mxu0 %v1634
    %2488 = vmatpush.bf16.msra.mxu0 %v1630
    %2489 = vmatmul.bf16.gmra.mxu0 %v2452
    %v2490 = vpop.f32.mrf.mxu0
    %v2491 = vadd.f32 0.0, %v2490
    %v2492 = vpop.f32.mrf.mxu0
    %v2493 = vadd.f32 0.0, %v2492
    %2494 = vdwg.mxu0
    %2495 = vmatpush.bf16.msra.mxu0 %v1659
    %2496 = vmatpush.bf16.msra.mxu0 %v1655
    %2497 = vmatpush.bf16.msra.mxu0 %v1651
    %2498 = vmatpush.bf16.msra.mxu0 %v1647
    %2499 = vmatpush.bf16.msra.mxu0 %v1643
    %2500 = vmatpush.bf16.msra.mxu0 %v1639
    %2501 = vmatpush.bf16.msra.mxu0 %v1635
    %2502 = vmatpush.bf16.msra.mxu0 %v1631
    %2503 = vmatmul.bf16.gmra.mxu0 %v2452
    %v2504 = vpop.f32.mrf.mxu0
    %v2505 = vadd.f32 0.0, %v2504
    %v2506 = vpop.f32.mrf.mxu0
    %v2507 = vadd.f32 0.0, %v2506
    %2508 = vdwg.mxu0
    %v2509 = vadd.f32 %v2442, %v2463
    %v2510 = vadd.f32 %v2443, %v2477
    %v2511 = vadd.f32 %v2444, %v2491
    %v2512 = vadd.f32 %v2445, %v2505
    %v2513 = vadd.f32 %v2446, %v2465
    %v2514 = vadd.f32 %v2447, %v2479
    %v2515 = vadd.f32 %v2448, %v2493
    %v2516 = vadd.f32 %v2449, %v2507
    %v2517 = vld [vmem:[#allocation3] sm:$0xff]
    %v2518 = vld [vmem:[#allocation3 + $0x8] sm:$0xff]
    %v2519 = vmul.f32 %v2429, 0.5
    %v2520 = vmul.f32 %v2433, 0.5
    %v2521 = vtanh.pop %v2519
    %v2522 = vtanh.pop %v2520
    %v2523 = vmul.f32 %v2521, 0.5
    %v2524 = vmul.f32 %v2522, 0.5
    %v2525 = vadd.f32 %v2523, 0.5
    %v2526 = vadd.f32 %v2524, 0.5
    %v2527 = vmul.f32 %v2430, 0.5
    %v2528 = vmul.f32 %v2434, 0.5
    %v2529 = vtanh.pop %v2527
    %v2530 = vtanh.pop %v2528
    %v2531 = vmul.f32 %v2529, 0.5
    %v2532 = vmul.f32 %v2530, 0.5
    %v2533 = vadd.f32 %v2531, 0.5
    %v2534 = vadd.f32 %v2532, 0.5
    %v2535 = vtanh.pop %v2431
    %v2536 = vtanh.pop %v2435
    %v2537 = vmul.f32 %v2432, 0.5
    %v2538 = vmul.f32 %v2436, 0.5
    %v2539 = vtanh.pop %v2537
    %v2540 = vtanh.pop %v2538
    %v2541 = vmul.f32 %v2539, 0.5
    %v2542 = vmul.f32 %v2540, 0.5
    %v2543 = vadd.f32 %v2541, 0.5
    %v2544 = vadd.f32 %v2542, 0.5
    %v2545 = vmul.f32 %v2533, %v2517
    %v2546 = vmul.f32 %v2534, %v2518
    %v2547 = vmul.f32 %v2525, %v2535
    %v2548 = vmul.f32 %v2526, %v2536
    %v2549 = vadd.f32 %v2545, %v2547
    %v2550 = vadd.f32 %v2546, %v2548
    %v2551 = vtanh.pop %v2549
    %v2552 = vtanh.pop %v2550
    %v2553 = vmul.f32 %v2543, %v2551
    %v2554 = vmul.f32 %v2544, %v2552
    %v2555 = vld [vmem:[#allocation5] sm:$0xff]
    %v2556 = vld [vmem:[#allocation5 + $0x8] sm:$0xff]
    %v2557 = vmul.f32 %v2509, 0.5
    %v2558 = vmul.f32 %v2513, 0.5
    %v2559 = vtanh.pop %v2557
    %v2560 = vtanh.pop %v2558
    %v2561 = vmul.f32 %v2559, 0.5
    %v2562 = vmul.f32 %v2560, 0.5
    %v2563 = vadd.f32 %v2561, 0.5
    %v2564 = vadd.f32 %v2562, 0.5
    %v2565 = vmul.f32 %v2510, 0.5
    %v2566 = vmul.f32 %v2514, 0.5
    %v2567 = vtanh.pop %v2565
    %v2568 = vtanh.pop %v2566
    %v2569 = vmul.f32 %v2567, 0.5
    %v2570 = vmul.f32 %v2568, 0.5
    %v2571 = vadd.f32 %v2569, 0.5
    %v2572 = vadd.f32 %v2570, 0.5
    %v2573 = vtanh.pop %v2511
    %v2574 = vtanh.pop %v2515
    %v2575 = vmul.f32 %v2512, 0.5
    %v2576 = vmul.f32 %v2516, 0.5
    %v2577 = vtanh.pop %v2575
    %v2578 = vtanh.pop %v2576
    %v2579 = vmul.f32 %v2577, 0.5
    %v2580 = vmul.f32 %v2578, 0.5
    %v2581 = vadd.f32 %v2579, 0.5
    %v2582 = vadd.f32 %v2580, 0.5
    %v2583 = vmul.f32 %v2571, %v2555
    %v2584 = vmul.f32 %v2572, %v2556
    %v2585 = vmul.f32 %v2563, %v2573
    %v2586 = vmul.f32 %v2564, %v2574
    %v2587 = vadd.f32 %v2583, %v2585
    %v2588 = vadd.f32 %v2584, %v2586
    %v2589 = vtanh.pop %v2587
    %v2590 = vtanh.pop %v2588
    %v2591 = vmul.f32 %v2581, %v2589
    %v2592 = vmul.f32 %v2582, %v2590
    %2593 = vst [vmem:[#allocation2] sm:$0xff] %v2553
    %2594 = vst [vmem:[#allocation2 + $0x8] sm:$0xff] %v2554
    %2595 = vst [vmem:[#allocation3] sm:$0xff] %v2549
    %2596 = vst [vmem:[#allocation3 + $0x8] sm:$0xff] %v2550
    %2597 = vst [vmem:[#allocation4] sm:$0xff] %v2591
    %2598 = vst [vmem:[#allocation4 + $0x8] sm:$0xff] %v2592
    %2599 = vst [vmem:[#allocation5] sm:$0xff] %v2587
    %2600 = vst [vmem:[#allocation5 + $0x8] sm:$0xff] %v2588
    %v2601 = vpack.c.bf16 %v2553, %v2553
    %v2602 = vpack.c.bf16 %v2554, %v2554
    %s2603 = scalar_lea.vmem [#allocation20], 24
    %2604 = vst [vmem:[%s2603] sm:$0xf] %v2601
    %2605 = vst [vmem:[%s2603 + $0x4] sm:$0xf] %v2602
    %v2606 = vpack.c.bf16 %v2591, %v2591
    %v2607 = vpack.c.bf16 %v2592, %v2592
    %s2608 = scalar_lea.vmem [#allocation21], 32
    %2609 = vst [vmem:[%s2608] sm:$0xf] %v2606
    %2610 = vst [vmem:[%s2608 + $0x4] sm:$0xf] %v2607
    %s2611 = scalar_lea.vmem [#allocation6], 128
    %v2612 = vld [vmem:[%s2611] sm:$0xff]
    %v2613 = vld [vmem:[%s2611 + $0x8] sm:$0xff]
    %v2614 = vld [vmem:[%s2611 + $0x10] sm:$0xff]
    %v2615 = vld [vmem:[%s2611 + $0x18] sm:$0xff]
    %v2616 = vunpack.c.l.bf16 %v2612
    %v2617 = vunpack.c.h.bf16 %v2612
    %v2618 = vunpack.c.l.bf16 %v2613
    %v2619 = vunpack.c.h.bf16 %v2613
    %v2620 = vunpack.c.l.bf16 %v2614
    %v2621 = vunpack.c.h.bf16 %v2614
    %v2622 = vunpack.c.l.bf16 %v2615
    %v2623 = vunpack.c.h.bf16 %v2615
    %v2624 = vld [vmem:[#allocation2] sm:$0xff]
    %v2625 = vld [vmem:[#allocation2 + $0x8] sm:$0xff]
    %v2626 = vpack.c.bf16 %v2625, %v2624
    %2627 = vmatpush.bf16.msra.mxu0 %v1416
    %2628 = vmatpush.bf16.msra.mxu0 %v1412
    %2629 = vmatpush.bf16.msra.mxu0 %v1408
    %2630 = vmatpush.bf16.msra.mxu0 %v1404
    %2631 = vmatpush.bf16.msra.mxu0 %v1400
    %2632 = vmatpush.bf16.msra.mxu0 %v1396
    %2633 = vmatpush.bf16.msra.mxu0 %v1392
    %2634 = vmatpush.bf16.msra.mxu0 %v1388
    %2635 = vmatmul.bf16.gmra.mxu0 %v2626
    %v2636 = vpop.f32.mrf.mxu0
    %v2637 = vadd.f32 0.0, %v2636
    %v2638 = vpop.f32.mrf.mxu0
    %v2639 = vadd.f32 0.0, %v2638
    %2640 = vdwg.mxu0
    %2641 = vmatpush.bf16.msra.mxu0 %v1417
    %2642 = vmatpush.bf16.msra.mxu0 %v1413
    %2643 = vmatpush.bf16.msra.mxu0 %v1409
    %2644 = vmatpush.bf16.msra.mxu0 %v1405
    %2645 = vmatpush.bf16.msra.mxu0 %v1401
    %2646 = vmatpush.bf16.msra.mxu0 %v1397
    %2647 = vmatpush.bf16.msra.mxu0 %v1393
    %2648 = vmatpush.bf16.msra.mxu0 %v1389
    %2649 = vmatmul.bf16.gmra.mxu0 %v2626
    %v2650 = vpop.f32.mrf.mxu0
    %v2651 = vadd.f32 0.0, %v2650
    %v2652 = vpop.f32.mrf.mxu0
    %v2653 = vadd.f32 0.0, %v2652
    %2654 = vdwg.mxu0
    %2655 = vmatpush.bf16.msra.mxu0 %v1418
    %2656 = vmatpush.bf16.msra.mxu0 %v1414
    %2657 = vmatpush.bf16.msra.mxu0 %v1410
    %2658 = vmatpush.bf16.msra.mxu0 %v1406
    %2659 = vmatpush.bf16.msra.mxu0 %v1402
    %2660 = vmatpush.bf16.msra.mxu0 %v1398
    %2661 = vmatpush.bf16.msra.mxu0 %v1394
    %2662 = vmatpush.bf16.msra.mxu0 %v1390
    %2663 = vmatmul.bf16.gmra.mxu0 %v2626
    %v2664 = vpop.f32.mrf.mxu0
    %v2665 = vadd.f32 0.0, %v2664
    %v2666 = vpop.f32.mrf.mxu0
    %v2667 = vadd.f32 0.0, %v2666
    %2668 = vdwg.mxu0
    %2669 = vmatpush.bf16.msra.mxu0 %v1419
    %2670 = vmatpush.bf16.msra.mxu0 %v1415
    %2671 = vmatpush.bf16.msra.mxu0 %v1411
    %2672 = vmatpush.bf16.msra.mxu0 %v1407
    %2673 = vmatpush.bf16.msra.mxu0 %v1403
    %2674 = vmatpush.bf16.msra.mxu0 %v1399
    %2675 = vmatpush.bf16.msra.mxu0 %v1395
    %2676 = vmatpush.bf16.msra.mxu0 %v1391
    %2677 = vmatmul.bf16.gmra.mxu0 %v2626
    %v2678 = vpop.f32.mrf.mxu0
    %v2679 = vadd.f32 0.0, %v2678
    %v2680 = vpop.f32.mrf.mxu0
    %v2681 = vadd.f32 0.0, %v2680
    %2682 = vdwg.mxu0
    %v2683 = vadd.f32 %v2616, %v2637
    %v2684 = vadd.f32 %v2617, %v2651
    %v2685 = vadd.f32 %v2618, %v2665
    %v2686 = vadd.f32 %v2619, %v2679
    %v2687 = vadd.f32 %v2620, %v2639
    %v2688 = vadd.f32 %v2621, %v2653
    %v2689 = vadd.f32 %v2622, %v2667
    %v2690 = vadd.f32 %v2623, %v2681
    %s2691 = scalar_lea.vmem [#allocation7], 96
    %v2692 = vld [vmem:[%s2691] sm:$0xff]
    %v2693 = vld [vmem:[%s2691 + $0x8] sm:$0xff]
    %v2694 = vld [vmem:[%s2691 + $0x10] sm:$0xff]
    %v2695 = vld [vmem:[%s2691 + $0x18] sm:$0xff]
    %v2696 = vunpack.c.l.bf16 %v2692
    %v2697 = vunpack.c.h.bf16 %v2692
    %v2698 = vunpack.c.l.bf16 %v2693
    %v2699 = vunpack.c.h.bf16 %v2693
    %v2700 = vunpack.c.l.bf16 %v2694
    %v2701 = vunpack.c.h.bf16 %v2694
    %v2702 = vunpack.c.l.bf16 %v2695
    %v2703 = vunpack.c.h.bf16 %v2695
    %v2704 = vld [vmem:[#allocation4] sm:$0xff]
    %v2705 = vld [vmem:[#allocation4 + $0x8] sm:$0xff]
    %v2706 = vpack.c.bf16 %v2705, %v2704
    %2707 = vmatpush.bf16.msra.mxu0 %v1656
    %2708 = vmatpush.bf16.msra.mxu0 %v1652
    %2709 = vmatpush.bf16.msra.mxu0 %v1648
    %2710 = vmatpush.bf16.msra.mxu0 %v1644
    %2711 = vmatpush.bf16.msra.mxu0 %v1640
    %2712 = vmatpush.bf16.msra.mxu0 %v1636
    %2713 = vmatpush.bf16.msra.mxu0 %v1632
    %2714 = vmatpush.bf16.msra.mxu0 %v1628
    %2715 = vmatmul.bf16.gmra.mxu0 %v2706
    %v2716 = vpop.f32.mrf.mxu0
    %v2717 = vadd.f32 0.0, %v2716
    %v2718 = vpop.f32.mrf.mxu0
    %v2719 = vadd.f32 0.0, %v2718
    %2720 = vdwg.mxu0
    %2721 = vmatpush.bf16.msra.mxu0 %v1657
    %2722 = vmatpush.bf16.msra.mxu0 %v1653
    %2723 = vmatpush.bf16.msra.mxu0 %v1649
    %2724 = vmatpush.bf16.msra.mxu0 %v1645
    %2725 = vmatpush.bf16.msra.mxu0 %v1641
    %2726 = vmatpush.bf16.msra.mxu0 %v1637
    %2727 = vmatpush.bf16.msra.mxu0 %v1633
    %2728 = vmatpush.bf16.msra.mxu0 %v1629
    %2729 = vmatmul.bf16.gmra.mxu0 %v2706
    %v2730 = vpop.f32.mrf.mxu0
    %v2731 = vadd.f32 0.0, %v2730
    %v2732 = vpop.f32.mrf.mxu0
    %v2733 = vadd.f32 0.0, %v2732
    %2734 = vdwg.mxu0
    %2735 = vmatpush.bf16.msra.mxu0 %v1658
    %2736 = vmatpush.bf16.msra.mxu0 %v1654
    %2737 = vmatpush.bf16.msra.mxu0 %v1650
    %2738 = vmatpush.bf16.msra.mxu0 %v1646
    %2739 = vmatpush.bf16.msra.mxu0 %v1642
    %2740 = vmatpush.bf16.msra.mxu0 %v1638
    %2741 = vmatpush.bf16.msra.mxu0 %v1634
    %2742 = vmatpush.bf16.msra.mxu0 %v1630
    %2743 = vmatmul.bf16.gmra.mxu0 %v2706
    %v2744 = vpop.f32.mrf.mxu0
    %v2745 = vadd.f32 0.0, %v2744
    %v2746 = vpop.f32.mrf.mxu0
    %v2747 = vadd.f32 0.0, %v2746
    %2748 = vdwg.mxu0
    %2749 = vmatpush.bf16.msra.mxu0 %v1659
    %2750 = vmatpush.bf16.msra.mxu0 %v1655
    %2751 = vmatpush.bf16.msra.mxu0 %v1651
    %2752 = vmatpush.bf16.msra.mxu0 %v1647
    %2753 = vmatpush.bf16.msra.mxu0 %v1643
    %2754 = vmatpush.bf16.msra.mxu0 %v1639
    %2755 = vmatpush.bf16.msra.mxu0 %v1635
    %2756 = vmatpush.bf16.msra.mxu0 %v1631
    %2757 = vmatmul.bf16.gmra.mxu0 %v2706
    %v2758 = vpop.f32.mrf.mxu0
    %v2759 = vadd.f32 0.0, %v2758
    %v2760 = vpop.f32.mrf.mxu0
    %v2761 = vadd.f32 0.0, %v2760
    %2762 = vdwg.mxu0
    %v2763 = vadd.f32 %v2696, %v2717
    %v2764 = vadd.f32 %v2697, %v2731
    %v2765 = vadd.f32 %v2698, %v2745
    %v2766 = vadd.f32 %v2699, %v2759
    %v2767 = vadd.f32 %v2700, %v2719
    %v2768 = vadd.f32 %v2701, %v2733
    %v2769 = vadd.f32 %v2702, %v2747
    %v2770 = vadd.f32 %v2703, %v2761
    %v2771 = vld [vmem:[#allocation3] sm:$0xff]
    %v2772 = vld [vmem:[#allocation3 + $0x8] sm:$0xff]
    %v2773 = vmul.f32 %v2683, 0.5
    %v2774 = vmul.f32 %v2687, 0.5
    %v2775 = vtanh.pop %v2773
    %v2776 = vtanh.pop %v2774
    %v2777 = vmul.f32 %v2775, 0.5
    %v2778 = vmul.f32 %v2776, 0.5
    %v2779 = vadd.f32 %v2777, 0.5
    %v2780 = vadd.f32 %v2778, 0.5
    %v2781 = vmul.f32 %v2684, 0.5
    %v2782 = vmul.f32 %v2688, 0.5
    %v2783 = vtanh.pop %v2781
    %v2784 = vtanh.pop %v2782
    %v2785 = vmul.f32 %v2783, 0.5
    %v2786 = vmul.f32 %v2784, 0.5
    %v2787 = vadd.f32 %v2785, 0.5
    %v2788 = vadd.f32 %v2786, 0.5
    %v2789 = vtanh.pop %v2685
    %v2790 = vtanh.pop %v2689
    %v2791 = vmul.f32 %v2686, 0.5
    %v2792 = vmul.f32 %v2690, 0.5
    %v2793 = vtanh.pop %v2791
    %v2794 = vtanh.pop %v2792
    %v2795 = vmul.f32 %v2793, 0.5
    %v2796 = vmul.f32 %v2794, 0.5
    %v2797 = vadd.f32 %v2795, 0.5
    %v2798 = vadd.f32 %v2796, 0.5
    %v2799 = vmul.f32 %v2787, %v2771
    %v2800 = vmul.f32 %v2788, %v2772
    %v2801 = vmul.f32 %v2779, %v2789
    %v2802 = vmul.f32 %v2780, %v2790
    %v2803 = vadd.f32 %v2799, %v2801
    %v2804 = vadd.f32 %v2800, %v2802
    %v2805 = vtanh.pop %v2803
    %v2806 = vtanh.pop %v2804
    %v2807 = vmul.f32 %v2797, %v2805
    %v2808 = vmul.f32 %v2798, %v2806
    %v2809 = vld [vmem:[#allocation5] sm:$0xff]
    %v2810 = vld [vmem:[#allocation5 + $0x8] sm:$0xff]
    %v2811 = vmul.f32 %v2763, 0.5
    %v2812 = vmul.f32 %v2767, 0.5
    %v2813 = vtanh.pop %v2811
    %v2814 = vtanh.pop %v2812
    %v2815 = vmul.f32 %v2813, 0.5
    %v2816 = vmul.f32 %v2814, 0.5
    %v2817 = vadd.f32 %v2815, 0.5
    %v2818 = vadd.f32 %v2816, 0.5
    %v2819 = vmul.f32 %v2764, 0.5
    %v2820 = vmul.f32 %v2768, 0.5
    %v2821 = vtanh.pop %v2819
    %v2822 = vtanh.pop %v2820
    %v2823 = vmul.f32 %v2821, 0.5
    %v2824 = vmul.f32 %v2822, 0.5
    %v2825 = vadd.f32 %v2823, 0.5
    %v2826 = vadd.f32 %v2824, 0.5
    %v2827 = vtanh.pop %v2765
    %v2828 = vtanh.pop %v2769
    %v2829 = vmul.f32 %v2766, 0.5
    %v2830 = vmul.f32 %v2770, 0.5
    %v2831 = vtanh.pop %v2829
    %v2832 = vtanh.pop %v2830
    %v2833 = vmul.f32 %v2831, 0.5
    %v2834 = vmul.f32 %v2832, 0.5
    %v2835 = vadd.f32 %v2833, 0.5
    %v2836 = vadd.f32 %v2834, 0.5
    %v2837 = vmul.f32 %v2825, %v2809
    %v2838 = vmul.f32 %v2826, %v2810
    %v2839 = vmul.f32 %v2817, %v2827
    %v2840 = vmul.f32 %v2818, %v2828
    %v2841 = vadd.f32 %v2837, %v2839
    %v2842 = vadd.f32 %v2838, %v2840
    %v2843 = vtanh.pop %v2841
    %v2844 = vtanh.pop %v2842
    %v2845 = vmul.f32 %v2835, %v2843
    %v2846 = vmul.f32 %v2836, %v2844
    %2847 = vst [vmem:[#allocation2] sm:$0xff] %v2807
    %2848 = vst [vmem:[#allocation2 + $0x8] sm:$0xff] %v2808
    %2849 = vst [vmem:[#allocation3] sm:$0xff] %v2803
    %2850 = vst [vmem:[#allocation3 + $0x8] sm:$0xff] %v2804
    %2851 = vst [vmem:[#allocation4] sm:$0xff] %v2845
    %2852 = vst [vmem:[#allocation4 + $0x8] sm:$0xff] %v2846
    %2853 = vst [vmem:[#allocation5] sm:$0xff] %v2841
    %2854 = vst [vmem:[#allocation5 + $0x8] sm:$0xff] %v2842
    %v2855 = vpack.c.bf16 %v2807, %v2807
    %v2856 = vpack.c.bf16 %v2808, %v2808
    %s2857 = scalar_lea.vmem [#allocation20], 32
    %2858 = vst [vmem:[%s2857] sm:$0xf] %v2855
    %2859 = vst [vmem:[%s2857 + $0x4] sm:$0xf] %v2856
    %v2860 = vpack.c.bf16 %v2845, %v2845
    %v2861 = vpack.c.bf16 %v2846, %v2846
    %s2862 = scalar_lea.vmem [#allocation21], 24
    %2863 = vst [vmem:[%s2862] sm:$0xf] %v2860
    %2864 = vst [vmem:[%s2862 + $0x4] sm:$0xf] %v2861
    %s2865 = scalar_lea.vmem [#allocation6], 160
    %v2866 = vld [vmem:[%s2865] sm:$0xff]
    %v2867 = vld [vmem:[%s2865 + $0x8] sm:$0xff]
    %v2868 = vld [vmem:[%s2865 + $0x10] sm:$0xff]
    %v2869 = vld [vmem:[%s2865 + $0x18] sm:$0xff]
    %v2870 = vunpack.c.l.bf16 %v2866
    %v2871 = vunpack.c.h.bf16 %v2866
    %v2872 = vunpack.c.l.bf16 %v2867
    %v2873 = vunpack.c.h.bf16 %v2867
    %v2874 = vunpack.c.l.bf16 %v2868
    %v2875 = vunpack.c.h.bf16 %v2868
    %v2876 = vunpack.c.l.bf16 %v2869
    %v2877 = vunpack.c.h.bf16 %v2869
    %v2878 = vld [vmem:[#allocation2] sm:$0xff]
    %v2879 = vld [vmem:[#allocation2 + $0x8] sm:$0xff]
    %v2880 = vpack.c.bf16 %v2879, %v2878
    %2881 = vmatpush.bf16.msra.mxu0 %v1416
    %2882 = vmatpush.bf16.msra.mxu0 %v1412
    %2883 = vmatpush.bf16.msra.mxu0 %v1408
    %2884 = vmatpush.bf16.msra.mxu0 %v1404
    %2885 = vmatpush.bf16.msra.mxu0 %v1400
    %2886 = vmatpush.bf16.msra.mxu0 %v1396
    %2887 = vmatpush.bf16.msra.mxu0 %v1392
    %2888 = vmatpush.bf16.msra.mxu0 %v1388
    %2889 = vmatmul.bf16.gmra.mxu0 %v2880
    %v2890 = vpop.f32.mrf.mxu0
    %v2891 = vadd.f32 0.0, %v2890
    %v2892 = vpop.f32.mrf.mxu0
    %v2893 = vadd.f32 0.0, %v2892
    %2894 = vdwg.mxu0
    %2895 = vmatpush.bf16.msra.mxu0 %v1417
    %2896 = vmatpush.bf16.msra.mxu0 %v1413
    %2897 = vmatpush.bf16.msra.mxu0 %v1409
    %2898 = vmatpush.bf16.msra.mxu0 %v1405
    %2899 = vmatpush.bf16.msra.mxu0 %v1401
    %2900 = vmatpush.bf16.msra.mxu0 %v1397
    %2901 = vmatpush.bf16.msra.mxu0 %v1393
    %2902 = vmatpush.bf16.msra.mxu0 %v1389
    %2903 = vmatmul.bf16.gmra.mxu0 %v2880
    %v2904 = vpop.f32.mrf.mxu0
    %v2905 = vadd.f32 0.0, %v2904
    %v2906 = vpop.f32.mrf.mxu0
    %v2907 = vadd.f32 0.0, %v2906
    %2908 = vdwg.mxu0
    %2909 = vmatpush.bf16.msra.mxu0 %v1418
    %2910 = vmatpush.bf16.msra.mxu0 %v1414
    %2911 = vmatpush.bf16.msra.mxu0 %v1410
    %2912 = vmatpush.bf16.msra.mxu0 %v1406
    %2913 = vmatpush.bf16.msra.mxu0 %v1402
    %2914 = vmatpush.bf16.msra.mxu0 %v1398
    %2915 = vmatpush.bf16.msra.mxu0 %v1394
    %2916 = vmatpush.bf16.msra.mxu0 %v1390
    %2917 = vmatmul.bf16.gmra.mxu0 %v2880
    %v2918 = vpop.f32.mrf.mxu0
    %v2919 = vadd.f32 0.0, %v2918
    %v2920 = vpop.f32.mrf.mxu0
    %v2921 = vadd.f32 0.0, %v2920
    %2922 = vdwg.mxu0
    %2923 = vmatpush.bf16.msra.mxu0 %v1419
    %2924 = vmatpush.bf16.msra.mxu0 %v1415
    %2925 = vmatpush.bf16.msra.mxu0 %v1411
    %2926 = vmatpush.bf16.msra.mxu0 %v1407
    %2927 = vmatpush.bf16.msra.mxu0 %v1403
    %2928 = vmatpush.bf16.msra.mxu0 %v1399
    %2929 = vmatpush.bf16.msra.mxu0 %v1395
    %2930 = vmatpush.bf16.msra.mxu0 %v1391
    %2931 = vmatmul.bf16.gmra.mxu0 %v2880
    %v2932 = vpop.f32.mrf.mxu0
    %v2933 = vadd.f32 0.0, %v2932
    %v2934 = vpop.f32.mrf.mxu0
    %v2935 = vadd.f32 0.0, %v2934
    %2936 = vdwg.mxu0
    %v2937 = vadd.f32 %v2870, %v2891
    %v2938 = vadd.f32 %v2871, %v2905
    %v2939 = vadd.f32 %v2872, %v2919
    %v2940 = vadd.f32 %v2873, %v2933
    %v2941 = vadd.f32 %v2874, %v2893
    %v2942 = vadd.f32 %v2875, %v2907
    %v2943 = vadd.f32 %v2876, %v2921
    %v2944 = vadd.f32 %v2877, %v2935
    %s2945 = scalar_lea.vmem [#allocation7], 64
    %v2946 = vld [vmem:[%s2945] sm:$0xff]
    %v2947 = vld [vmem:[%s2945 + $0x8] sm:$0xff]
    %v2948 = vld [vmem:[%s2945 + $0x10] sm:$0xff]
    %v2949 = vld [vmem:[%s2945 + $0x18] sm:$0xff]
    %v2950 = vunpack.c.l.bf16 %v2946
    %v2951 = vunpack.c.h.bf16 %v2946
    %v2952 = vunpack.c.l.bf16 %v2947
    %v2953 = vunpack.c.h.bf16 %v2947
    %v2954 = vunpack.c.l.bf16 %v2948
    %v2955 = vunpack.c.h.bf16 %v2948
    %v2956 = vunpack.c.l.bf16 %v2949
    %v2957 = vunpack.c.h.bf16 %v2949
    %v2958 = vld [vmem:[#allocation4] sm:$0xff]
    %v2959 = vld [vmem:[#allocation4 + $0x8] sm:$0xff]
    %v2960 = vpack.c.bf16 %v2959, %v2958
    %2961 = vmatpush.bf16.msra.mxu0 %v1656
    %2962 = vmatpush.bf16.msra.mxu0 %v1652
    %2963 = vmatpush.bf16.msra.mxu0 %v1648
    %2964 = vmatpush.bf16.msra.mxu0 %v1644
    %2965 = vmatpush.bf16.msra.mxu0 %v1640
    %2966 = vmatpush.bf16.msra.mxu0 %v1636
    %2967 = vmatpush.bf16.msra.mxu0 %v1632
    %2968 = vmatpush.bf16.msra.mxu0 %v1628
    %2969 = vmatmul.bf16.gmra.mxu0 %v2960
    %v2970 = vpop.f32.mrf.mxu0
    %v2971 = vadd.f32 0.0, %v2970
    %v2972 = vpop.f32.mrf.mxu0
    %v2973 = vadd.f32 0.0, %v2972
    %2974 = vdwg.mxu0
    %2975 = vmatpush.bf16.msra.mxu0 %v1657
    %2976 = vmatpush.bf16.msra.mxu0 %v1653
    %2977 = vmatpush.bf16.msra.mxu0 %v1649
    %2978 = vmatpush.bf16.msra.mxu0 %v1645
    %2979 = vmatpush.bf16.msra.mxu0 %v1641
    %2980 = vmatpush.bf16.msra.mxu0 %v1637
    %2981 = vmatpush.bf16.msra.mxu0 %v1633
    %2982 = vmatpush.bf16.msra.mxu0 %v1629
    %2983 = vmatmul.bf16.gmra.mxu0 %v2960
    %v2984 = vpop.f32.mrf.mxu0
    %v2985 = vadd.f32 0.0, %v2984
    %v2986 = vpop.f32.mrf.mxu0
    %v2987 = vadd.f32 0.0, %v2986
    %2988 = vdwg.mxu0
    %2989 = vmatpush.bf16.msra.mxu0 %v1658
    %2990 = vmatpush.bf16.msra.mxu0 %v1654
    %2991 = vmatpush.bf16.msra.mxu0 %v1650
    %2992 = vmatpush.bf16.msra.mxu0 %v1646
    %2993 = vmatpush.bf16.msra.mxu0 %v1642
    %2994 = vmatpush.bf16.msra.mxu0 %v1638
    %2995 = vmatpush.bf16.msra.mxu0 %v1634
    %2996 = vmatpush.bf16.msra.mxu0 %v1630
    %2997 = vmatmul.bf16.gmra.mxu0 %v2960
    %v2998 = vpop.f32.mrf.mxu0
    %v2999 = vadd.f32 0.0, %v2998
    %v3000 = vpop.f32.mrf.mxu0
    %v3001 = vadd.f32 0.0, %v3000
    %3002 = vdwg.mxu0
    %3003 = vmatpush.bf16.msra.mxu0 %v1659
    %3004 = vmatpush.bf16.msra.mxu0 %v1655
    %3005 = vmatpush.bf16.msra.mxu0 %v1651
    %3006 = vmatpush.bf16.msra.mxu0 %v1647
    %3007 = vmatpush.bf16.msra.mxu0 %v1643
    %3008 = vmatpush.bf16.msra.mxu0 %v1639
    %3009 = vmatpush.bf16.msra.mxu0 %v1635
    %3010 = vmatpush.bf16.msra.mxu0 %v1631
    %3011 = vmatmul.bf16.gmra.mxu0 %v2960
    %v3012 = vpop.f32.mrf.mxu0
    %v3013 = vadd.f32 0.0, %v3012
    %v3014 = vpop.f32.mrf.mxu0
    %v3015 = vadd.f32 0.0, %v3014
    %3016 = vdwg.mxu0
    %v3017 = vadd.f32 %v2950, %v2971
    %v3018 = vadd.f32 %v2951, %v2985
    %v3019 = vadd.f32 %v2952, %v2999
    %v3020 = vadd.f32 %v2953, %v3013
    %v3021 = vadd.f32 %v2954, %v2973
    %v3022 = vadd.f32 %v2955, %v2987
    %v3023 = vadd.f32 %v2956, %v3001
    %v3024 = vadd.f32 %v2957, %v3015
    %v3025 = vld [vmem:[#allocation3] sm:$0xff]
    %v3026 = vld [vmem:[#allocation3 + $0x8] sm:$0xff]
    %v3027 = vmul.f32 %v2937, 0.5
    %v3028 = vmul.f32 %v2941, 0.5
    %v3029 = vtanh.pop %v3027
    %v3030 = vtanh.pop %v3028
    %v3031 = vmul.f32 %v3029, 0.5
    %v3032 = vmul.f32 %v3030, 0.5
    %v3033 = vadd.f32 %v3031, 0.5
    %v3034 = vadd.f32 %v3032, 0.5
    %v3035 = vmul.f32 %v2938, 0.5
    %v3036 = vmul.f32 %v2942, 0.5
    %v3037 = vtanh.pop %v3035
    %v3038 = vtanh.pop %v3036
    %v3039 = vmul.f32 %v3037, 0.5
    %v3040 = vmul.f32 %v3038, 0.5
    %v3041 = vadd.f32 %v3039, 0.5
    %v3042 = vadd.f32 %v3040, 0.5
    %v3043 = vtanh.pop %v2939
    %v3044 = vtanh.pop %v2943
    %v3045 = vmul.f32 %v2940, 0.5
    %v3046 = vmul.f32 %v2944, 0.5
    %v3047 = vtanh.pop %v3045
    %v3048 = vtanh.pop %v3046
    %v3049 = vmul.f32 %v3047, 0.5
    %v3050 = vmul.f32 %v3048, 0.5
    %v3051 = vadd.f32 %v3049, 0.5
    %v3052 = vadd.f32 %v3050, 0.5
    %v3053 = vmul.f32 %v3041, %v3025
    %v3054 = vmul.f32 %v3042, %v3026
    %v3055 = vmul.f32 %v3033, %v3043
    %v3056 = vmul.f32 %v3034, %v3044
    %v3057 = vadd.f32 %v3053, %v3055
    %v3058 = vadd.f32 %v3054, %v3056
    %v3059 = vtanh.pop %v3057
    %v3060 = vtanh.pop %v3058
    %v3061 = vmul.f32 %v3051, %v3059
    %v3062 = vmul.f32 %v3052, %v3060
    %v3063 = vld [vmem:[#allocation5] sm:$0xff]
    %v3064 = vld [vmem:[#allocation5 + $0x8] sm:$0xff]
    %v3065 = vmul.f32 %v3017, 0.5
    %v3066 = vmul.f32 %v3021, 0.5
    %v3067 = vtanh.pop %v3065
    %v3068 = vtanh.pop %v3066
    %v3069 = vmul.f32 %v3067, 0.5
    %v3070 = vmul.f32 %v3068, 0.5
    %v3071 = vadd.f32 %v3069, 0.5
    %v3072 = vadd.f32 %v3070, 0.5
    %v3073 = vmul.f32 %v3018, 0.5
    %v3074 = vmul.f32 %v3022, 0.5
    %v3075 = vtanh.pop %v3073
    %v3076 = vtanh.pop %v3074
    %v3077 = vmul.f32 %v3075, 0.5
    %v3078 = vmul.f32 %v3076, 0.5
    %v3079 = vadd.f32 %v3077, 0.5
    %v3080 = vadd.f32 %v3078, 0.5
    %v3081 = vtanh.pop %v3019
    %v3082 = vtanh.pop %v3023
    %v3083 = vmul.f32 %v3020, 0.5
    %v3084 = vmul.f32 %v3024, 0.5
    %v3085 = vtanh.pop %v3083
    %v3086 = vtanh.pop %v3084
    %v3087 = vmul.f32 %v3085, 0.5
    %v3088 = vmul.f32 %v3086, 0.5
    %v3089 = vadd.f32 %v3087, 0.5
    %v3090 = vadd.f32 %v3088, 0.5
    %v3091 = vmul.f32 %v3079, %v3063
    %v3092 = vmul.f32 %v3080, %v3064
    %v3093 = vmul.f32 %v3071, %v3081
    %v3094 = vmul.f32 %v3072, %v3082
    %v3095 = vadd.f32 %v3091, %v3093
    %v3096 = vadd.f32 %v3092, %v3094
    %v3097 = vtanh.pop %v3095
    %v3098 = vtanh.pop %v3096
    %v3099 = vmul.f32 %v3089, %v3097
    %v3100 = vmul.f32 %v3090, %v3098
    %3101 = vst [vmem:[#allocation2] sm:$0xff] %v3061
    %3102 = vst [vmem:[#allocation2 + $0x8] sm:$0xff] %v3062
    %3103 = vst [vmem:[#allocation3] sm:$0xff] %v3057
    %3104 = vst [vmem:[#allocation3 + $0x8] sm:$0xff] %v3058
    %3105 = vst [vmem:[#allocation4] sm:$0xff] %v3099
    %3106 = vst [vmem:[#allocation4 + $0x8] sm:$0xff] %v3100
    %3107 = vst [vmem:[#allocation5] sm:$0xff] %v3095
    %3108 = vst [vmem:[#allocation5 + $0x8] sm:$0xff] %v3096
    %v3109 = vpack.c.bf16 %v3061, %v3061
    %v3110 = vpack.c.bf16 %v3062, %v3062
    %s3111 = scalar_lea.vmem [#allocation20], 40
    %3112 = vst [vmem:[%s3111] sm:$0xf] %v3109
    %3113 = vst [vmem:[%s3111 + $0x4] sm:$0xf] %v3110
    %v3114 = vpack.c.bf16 %v3099, %v3099
    %v3115 = vpack.c.bf16 %v3100, %v3100
    %s3116 = scalar_lea.vmem [#allocation21], 16
    %3117 = vst [vmem:[%s3116] sm:$0xf] %v3114
    %3118 = vst [vmem:[%s3116 + $0x4] sm:$0xf] %v3115
    %s3119 = scalar_lea.vmem [#allocation6], 192
    %v3120 = vld [vmem:[%s3119] sm:$0xff]
    %v3121 = vld [vmem:[%s3119 + $0x8] sm:$0xff]
    %v3122 = vld [vmem:[%s3119 + $0x10] sm:$0xff]
    %v3123 = vld [vmem:[%s3119 + $0x18] sm:$0xff]
    %v3124 = vunpack.c.l.bf16 %v3120
    %v3125 = vunpack.c.h.bf16 %v3120
    %v3126 = vunpack.c.l.bf16 %v3121
    %v3127 = vunpack.c.h.bf16 %v3121
    %v3128 = vunpack.c.l.bf16 %v3122
    %v3129 = vunpack.c.h.bf16 %v3122
    %v3130 = vunpack.c.l.bf16 %v3123
    %v3131 = vunpack.c.h.bf16 %v3123
    %v3132 = vld [vmem:[#allocation2] sm:$0xff]
    %v3133 = vld [vmem:[#allocation2 + $0x8] sm:$0xff]
    %v3134 = vpack.c.bf16 %v3133, %v3132
    %3135 = vmatpush.bf16.msra.mxu0 %v1416
    %3136 = vmatpush.bf16.msra.mxu0 %v1412
    %3137 = vmatpush.bf16.msra.mxu0 %v1408
    %3138 = vmatpush.bf16.msra.mxu0 %v1404
    %3139 = vmatpush.bf16.msra.mxu0 %v1400
    %3140 = vmatpush.bf16.msra.mxu0 %v1396
    %3141 = vmatpush.bf16.msra.mxu0 %v1392
    %3142 = vmatpush.bf16.msra.mxu0 %v1388
    %3143 = vmatmul.bf16.gmra.mxu0 %v3134
    %v3144 = vpop.f32.mrf.mxu0
    %v3145 = vadd.f32 0.0, %v3144
    %v3146 = vpop.f32.mrf.mxu0
    %v3147 = vadd.f32 0.0, %v3146
    %3148 = vdwg.mxu0
    %3149 = vmatpush.bf16.msra.mxu0 %v1417
    %3150 = vmatpush.bf16.msra.mxu0 %v1413
    %3151 = vmatpush.bf16.msra.mxu0 %v1409
    %3152 = vmatpush.bf16.msra.mxu0 %v1405
    %3153 = vmatpush.bf16.msra.mxu0 %v1401
    %3154 = vmatpush.bf16.msra.mxu0 %v1397
    %3155 = vmatpush.bf16.msra.mxu0 %v1393
    %3156 = vmatpush.bf16.msra.mxu0 %v1389
    %3157 = vmatmul.bf16.gmra.mxu0 %v3134
    %v3158 = vpop.f32.mrf.mxu0
    %v3159 = vadd.f32 0.0, %v3158
    %v3160 = vpop.f32.mrf.mxu0
    %v3161 = vadd.f32 0.0, %v3160
    %3162 = vdwg.mxu0
    %3163 = vmatpush.bf16.msra.mxu0 %v1418
    %3164 = vmatpush.bf16.msra.mxu0 %v1414
    %3165 = vmatpush.bf16.msra.mxu0 %v1410
    %3166 = vmatpush.bf16.msra.mxu0 %v1406
    %3167 = vmatpush.bf16.msra.mxu0 %v1402
    %3168 = vmatpush.bf16.msra.mxu0 %v1398
    %3169 = vmatpush.bf16.msra.mxu0 %v1394
    %3170 = vmatpush.bf16.msra.mxu0 %v1390
    %3171 = vmatmul.bf16.gmra.mxu0 %v3134
    %v3172 = vpop.f32.mrf.mxu0
    %v3173 = vadd.f32 0.0, %v3172
    %v3174 = vpop.f32.mrf.mxu0
    %v3175 = vadd.f32 0.0, %v3174
    %3176 = vdwg.mxu0
    %3177 = vmatpush.bf16.msra.mxu0 %v1419
    %3178 = vmatpush.bf16.msra.mxu0 %v1415
    %3179 = vmatpush.bf16.msra.mxu0 %v1411
    %3180 = vmatpush.bf16.msra.mxu0 %v1407
    %3181 = vmatpush.bf16.msra.mxu0 %v1403
    %3182 = vmatpush.bf16.msra.mxu0 %v1399
    %3183 = vmatpush.bf16.msra.mxu0 %v1395
    %3184 = vmatpush.bf16.msra.mxu0 %v1391
    %3185 = vmatmul.bf16.gmra.mxu0 %v3134
    %v3186 = vpop.f32.mrf.mxu0
    %v3187 = vadd.f32 0.0, %v3186
    %v3188 = vpop.f32.mrf.mxu0
    %v3189 = vadd.f32 0.0, %v3188
    %3190 = vdwg.mxu0
    %v3191 = vadd.f32 %v3124, %v3145
    %v3192 = vadd.f32 %v3125, %v3159
    %v3193 = vadd.f32 %v3126, %v3173
    %v3194 = vadd.f32 %v3127, %v3187
    %v3195 = vadd.f32 %v3128, %v3147
    %v3196 = vadd.f32 %v3129, %v3161
    %v3197 = vadd.f32 %v3130, %v3175
    %v3198 = vadd.f32 %v3131, %v3189
    %s3199 = scalar_lea.vmem [#allocation7], 32
    %v3200 = vld [vmem:[%s3199] sm:$0xff]
    %v3201 = vld [vmem:[%s3199 + $0x8] sm:$0xff]
    %v3202 = vld [vmem:[%s3199 + $0x10] sm:$0xff]
    %v3203 = vld [vmem:[%s3199 + $0x18] sm:$0xff]
    %v3204 = vunpack.c.l.bf16 %v3200
    %v3205 = vunpack.c.h.bf16 %v3200
    %v3206 = vunpack.c.l.bf16 %v3201
    %v3207 = vunpack.c.h.bf16 %v3201
    %v3208 = vunpack.c.l.bf16 %v3202
    %v3209 = vunpack.c.h.bf16 %v3202
    %v3210 = vunpack.c.l.bf16 %v3203
    %v3211 = vunpack.c.h.bf16 %v3203
    %v3212 = vld [vmem:[#allocation4] sm:$0xff]
    %v3213 = vld [vmem:[#allocation4 + $0x8] sm:$0xff]
    %v3214 = vpack.c.bf16 %v3213, %v3212
    %3215 = vmatpush.bf16.msra.mxu0 %v1656
    %3216 = vmatpush.bf16.msra.mxu0 %v1652
    %3217 = vmatpush.bf16.msra.mxu0 %v1648
    %3218 = vmatpush.bf16.msra.mxu0 %v1644
    %3219 = vmatpush.bf16.msra.mxu0 %v1640
    %3220 = vmatpush.bf16.msra.mxu0 %v1636
    %3221 = vmatpush.bf16.msra.mxu0 %v1632
    %3222 = vmatpush.bf16.msra.mxu0 %v1628
    %3223 = vmatmul.bf16.gmra.mxu0 %v3214
    %v3224 = vpop.f32.mrf.mxu0
    %v3225 = vadd.f32 0.0, %v3224
    %v3226 = vpop.f32.mrf.mxu0
    %v3227 = vadd.f32 0.0, %v3226
    %3228 = vdwg.mxu0
    %3229 = vmatpush.bf16.msra.mxu0 %v1657
    %3230 = vmatpush.bf16.msra.mxu0 %v1653
    %3231 = vmatpush.bf16.msra.mxu0 %v1649
    %3232 = vmatpush.bf16.msra.mxu0 %v1645
    %3233 = vmatpush.bf16.msra.mxu0 %v1641
    %3234 = vmatpush.bf16.msra.mxu0 %v1637
    %3235 = vmatpush.bf16.msra.mxu0 %v1633
    %3236 = vmatpush.bf16.msra.mxu0 %v1629
    %3237 = vmatmul.bf16.gmra.mxu0 %v3214
    %v3238 = vpop.f32.mrf.mxu0
    %v3239 = vadd.f32 0.0, %v3238
    %v3240 = vpop.f32.mrf.mxu0
    %v3241 = vadd.f32 0.0, %v3240
    %3242 = vdwg.mxu0
    %3243 = vmatpush.bf16.msra.mxu0 %v1658
    %3244 = vmatpush.bf16.msra.mxu0 %v1654
    %3245 = vmatpush.bf16.msra.mxu0 %v1650
    %3246 = vmatpush.bf16.msra.mxu0 %v1646
    %3247 = vmatpush.bf16.msra.mxu0 %v1642
    %3248 = vmatpush.bf16.msra.mxu0 %v1638
    %3249 = vmatpush.bf16.msra.mxu0 %v1634
    %3250 = vmatpush.bf16.msra.mxu0 %v1630
    %3251 = vmatmul.bf16.gmra.mxu0 %v3214
    %v3252 = vpop.f32.mrf.mxu0
    %v3253 = vadd.f32 0.0, %v3252
    %v3254 = vpop.f32.mrf.mxu0
    %v3255 = vadd.f32 0.0, %v3254
    %3256 = vdwg.mxu0
    %3257 = vmatpush.bf16.msra.mxu0 %v1659
    %3258 = vmatpush.bf16.msra.mxu0 %v1655
    %3259 = vmatpush.bf16.msra.mxu0 %v1651
    %3260 = vmatpush.bf16.msra.mxu0 %v1647
    %3261 = vmatpush.bf16.msra.mxu0 %v1643
    %3262 = vmatpush.bf16.msra.mxu0 %v1639
    %3263 = vmatpush.bf16.msra.mxu0 %v1635
    %3264 = vmatpush.bf16.msra.mxu0 %v1631
    %3265 = vmatmul.bf16.gmra.mxu0 %v3214
    %v3266 = vpop.f32.mrf.mxu0
    %v3267 = vadd.f32 0.0, %v3266
    %v3268 = vpop.f32.mrf.mxu0
    %v3269 = vadd.f32 0.0, %v3268
    %3270 = vdwg.mxu0
    %v3271 = vadd.f32 %v3204, %v3225
    %v3272 = vadd.f32 %v3205, %v3239
    %v3273 = vadd.f32 %v3206, %v3253
    %v3274 = vadd.f32 %v3207, %v3267
    %v3275 = vadd.f32 %v3208, %v3227
    %v3276 = vadd.f32 %v3209, %v3241
    %v3277 = vadd.f32 %v3210, %v3255
    %v3278 = vadd.f32 %v3211, %v3269
    %v3279 = vld [vmem:[#allocation3] sm:$0xff]
    %v3280 = vld [vmem:[#allocation3 + $0x8] sm:$0xff]
    %v3281 = vmul.f32 %v3191, 0.5
    %v3282 = vmul.f32 %v3195, 0.5
    %v3283 = vtanh.pop %v3281
    %v3284 = vtanh.pop %v3282
    %v3285 = vmul.f32 %v3283, 0.5
    %v3286 = vmul.f32 %v3284, 0.5
    %v3287 = vadd.f32 %v3285, 0.5
    %v3288 = vadd.f32 %v3286, 0.5
    %v3289 = vmul.f32 %v3192, 0.5
    %v3290 = vmul.f32 %v3196, 0.5
    %v3291 = vtanh.pop %v3289
    %v3292 = vtanh.pop %v3290
    %v3293 = vmul.f32 %v3291, 0.5
    %v3294 = vmul.f32 %v3292, 0.5
    %v3295 = vadd.f32 %v3293, 0.5
    %v3296 = vadd.f32 %v3294, 0.5
    %v3297 = vtanh.pop %v3193
    %v3298 = vtanh.pop %v3197
    %v3299 = vmul.f32 %v3194, 0.5
    %v3300 = vmul.f32 %v3198, 0.5
    %v3301 = vtanh.pop %v3299
    %v3302 = vtanh.pop %v3300
    %v3303 = vmul.f32 %v3301, 0.5
    %v3304 = vmul.f32 %v3302, 0.5
    %v3305 = vadd.f32 %v3303, 0.5
    %v3306 = vadd.f32 %v3304, 0.5
    %v3307 = vmul.f32 %v3295, %v3279
    %v3308 = vmul.f32 %v3296, %v3280
    %v3309 = vmul.f32 %v3287, %v3297
    %v3310 = vmul.f32 %v3288, %v3298
    %v3311 = vadd.f32 %v3307, %v3309
    %v3312 = vadd.f32 %v3308, %v3310
    %v3313 = vtanh.pop %v3311
    %v3314 = vtanh.pop %v3312
    %v3315 = vmul.f32 %v3305, %v3313
    %v3316 = vmul.f32 %v3306, %v3314
    %v3317 = vld [vmem:[#allocation5] sm:$0xff]
    %v3318 = vld [vmem:[#allocation5 + $0x8] sm:$0xff]
    %v3319 = vmul.f32 %v3271, 0.5
    %v3320 = vmul.f32 %v3275, 0.5
    %v3321 = vtanh.pop %v3319
    %v3322 = vtanh.pop %v3320
    %v3323 = vmul.f32 %v3321, 0.5
    %v3324 = vmul.f32 %v3322, 0.5
    %v3325 = vadd.f32 %v3323, 0.5
    %v3326 = vadd.f32 %v3324, 0.5
    %v3327 = vmul.f32 %v3272, 0.5
    %v3328 = vmul.f32 %v3276, 0.5
    %v3329 = vtanh.pop %v3327
    %v3330 = vtanh.pop %v3328
    %v3331 = vmul.f32 %v3329, 0.5
    %v3332 = vmul.f32 %v3330, 0.5
    %v3333 = vadd.f32 %v3331, 0.5
    %v3334 = vadd.f32 %v3332, 0.5
    %v3335 = vtanh.pop %v3273
    %v3336 = vtanh.pop %v3277
    %v3337 = vmul.f32 %v3274, 0.5
    %v3338 = vmul.f32 %v3278, 0.5
    %v3339 = vtanh.pop %v3337
    %v3340 = vtanh.pop %v3338
    %v3341 = vmul.f32 %v3339, 0.5
    %v3342 = vmul.f32 %v3340, 0.5
    %v3343 = vadd.f32 %v3341, 0.5
    %v3344 = vadd.f32 %v3342, 0.5
    %v3345 = vmul.f32 %v3333, %v3317
    %v3346 = vmul.f32 %v3334, %v3318
    %v3347 = vmul.f32 %v3325, %v3335
    %v3348 = vmul.f32 %v3326, %v3336
    %v3349 = vadd.f32 %v3345, %v3347
    %v3350 = vadd.f32 %v3346, %v3348
    %v3351 = vtanh.pop %v3349
    %v3352 = vtanh.pop %v3350
    %v3353 = vmul.f32 %v3343, %v3351
    %v3354 = vmul.f32 %v3344, %v3352
    %3355 = vst [vmem:[#allocation2] sm:$0xff] %v3315
    %3356 = vst [vmem:[#allocation2 + $0x8] sm:$0xff] %v3316
    %3357 = vst [vmem:[#allocation3] sm:$0xff] %v3311
    %3358 = vst [vmem:[#allocation3 + $0x8] sm:$0xff] %v3312
    %3359 = vst [vmem:[#allocation4] sm:$0xff] %v3353
    %3360 = vst [vmem:[#allocation4 + $0x8] sm:$0xff] %v3354
    %3361 = vst [vmem:[#allocation5] sm:$0xff] %v3349
    %3362 = vst [vmem:[#allocation5 + $0x8] sm:$0xff] %v3350
    %v3363 = vpack.c.bf16 %v3315, %v3315
    %v3364 = vpack.c.bf16 %v3316, %v3316
    %s3365 = scalar_lea.vmem [#allocation20], 48
    %3366 = vst [vmem:[%s3365] sm:$0xf] %v3363
    %3367 = vst [vmem:[%s3365 + $0x4] sm:$0xf] %v3364
    %v3368 = vpack.c.bf16 %v3353, %v3353
    %v3369 = vpack.c.bf16 %v3354, %v3354
    %s3370 = scalar_lea.vmem [#allocation21], 8
    %3371 = vst [vmem:[%s3370] sm:$0xf] %v3368
    %3372 = vst [vmem:[%s3370 + $0x4] sm:$0xf] %v3369
    %s3373 = scalar_lea.vmem [#allocation6], 224
    %v3374 = vld [vmem:[%s3373] sm:$0xff]
    %v3375 = vld [vmem:[%s3373 + $0x8] sm:$0xff]
    %v3376 = vld [vmem:[%s3373 + $0x10] sm:$0xff]
    %v3377 = vld [vmem:[%s3373 + $0x18] sm:$0xff]
    %v3378 = vunpack.c.l.bf16 %v3374
    %v3379 = vunpack.c.h.bf16 %v3374
    %v3380 = vunpack.c.l.bf16 %v3375
    %v3381 = vunpack.c.h.bf16 %v3375
    %v3382 = vunpack.c.l.bf16 %v3376
    %v3383 = vunpack.c.h.bf16 %v3376
    %v3384 = vunpack.c.l.bf16 %v3377
    %v3385 = vunpack.c.h.bf16 %v3377
    %v3386 = vld [vmem:[#allocation2] sm:$0xff]
    %v3387 = vld [vmem:[#allocation2 + $0x8] sm:$0xff]
    %v3388 = vpack.c.bf16 %v3387, %v3386
    %3389 = vmatpush.bf16.msra.mxu0 %v1416
    %3390 = vmatpush.bf16.msra.mxu0 %v1412
    %3391 = vmatpush.bf16.msra.mxu0 %v1408
    %3392 = vmatpush.bf16.msra.mxu0 %v1404
    %3393 = vmatpush.bf16.msra.mxu0 %v1400
    %3394 = vmatpush.bf16.msra.mxu0 %v1396
    %3395 = vmatpush.bf16.msra.mxu0 %v1392
    %3396 = vmatpush.bf16.msra.mxu0 %v1388
    %3397 = vmatmul.bf16.gmra.mxu0 %v3388
    %v3398 = vpop.f32.mrf.mxu0
    %v3399 = vadd.f32 0.0, %v3398
    %v3400 = vpop.f32.mrf.mxu0
    %v3401 = vadd.f32 0.0, %v3400
    %3402 = vdwg.mxu0
    %3403 = vmatpush.bf16.msra.mxu0 %v1417
    %3404 = vmatpush.bf16.msra.mxu0 %v1413
    %3405 = vmatpush.bf16.msra.mxu0 %v1409
    %3406 = vmatpush.bf16.msra.mxu0 %v1405
    %3407 = vmatpush.bf16.msra.mxu0 %v1401
    %3408 = vmatpush.bf16.msra.mxu0 %v1397
    %3409 = vmatpush.bf16.msra.mxu0 %v1393
    %3410 = vmatpush.bf16.msra.mxu0 %v1389
    %3411 = vmatmul.bf16.gmra.mxu0 %v3388
    %v3412 = vpop.f32.mrf.mxu0
    %v3413 = vadd.f32 0.0, %v3412
    %v3414 = vpop.f32.mrf.mxu0
    %v3415 = vadd.f32 0.0, %v3414
    %3416 = vdwg.mxu0
    %3417 = vmatpush.bf16.msra.mxu0 %v1418
    %3418 = vmatpush.bf16.msra.mxu0 %v1414
    %3419 = vmatpush.bf16.msra.mxu0 %v1410
    %3420 = vmatpush.bf16.msra.mxu0 %v1406
    %3421 = vmatpush.bf16.msra.mxu0 %v1402
    %3422 = vmatpush.bf16.msra.mxu0 %v1398
    %3423 = vmatpush.bf16.msra.mxu0 %v1394
    %3424 = vmatpush.bf16.msra.mxu0 %v1390
    %3425 = vmatmul.bf16.gmra.mxu0 %v3388
    %v3426 = vpop.f32.mrf.mxu0
    %v3427 = vadd.f32 0.0, %v3426
    %v3428 = vpop.f32.mrf.mxu0
    %v3429 = vadd.f32 0.0, %v3428
    %3430 = vdwg.mxu0
    %3431 = vmatpush.bf16.msra.mxu0 %v1419
    %3432 = vmatpush.bf16.msra.mxu0 %v1415
    %3433 = vmatpush.bf16.msra.mxu0 %v1411
    %3434 = vmatpush.bf16.msra.mxu0 %v1407
    %3435 = vmatpush.bf16.msra.mxu0 %v1403
    %3436 = vmatpush.bf16.msra.mxu0 %v1399
    %3437 = vmatpush.bf16.msra.mxu0 %v1395
    %3438 = vmatpush.bf16.msra.mxu0 %v1391
    %3439 = vmatmul.bf16.gmra.mxu0 %v3388
    %v3440 = vpop.f32.mrf.mxu0
    %v3441 = vadd.f32 0.0, %v3440
    %v3442 = vpop.f32.mrf.mxu0
    %v3443 = vadd.f32 0.0, %v3442
    %3444 = vdwg.mxu0
    %v3445 = vadd.f32 %v3378, %v3399
    %v3446 = vadd.f32 %v3379, %v3413
    %v3447 = vadd.f32 %v3380, %v3427
    %v3448 = vadd.f32 %v3381, %v3441
    %v3449 = vadd.f32 %v3382, %v3401
    %v3450 = vadd.f32 %v3383, %v3415
    %v3451 = vadd.f32 %v3384, %v3429
    %v3452 = vadd.f32 %v3385, %v3443
    %v3453 = vld [vmem:[#allocation7] sm:$0xff]
    %v3454 = vld [vmem:[#allocation7 + $0x8] sm:$0xff]
    %v3455 = vld [vmem:[#allocation7 + $0x10] sm:$0xff]
    %v3456 = vld [vmem:[#allocation7 + $0x18] sm:$0xff]
    %v3457 = vunpack.c.l.bf16 %v3453
    %v3458 = vunpack.c.h.bf16 %v3453
    %v3459 = vunpack.c.l.bf16 %v3454
    %v3460 = vunpack.c.h.bf16 %v3454
    %v3461 = vunpack.c.l.bf16 %v3455
    %v3462 = vunpack.c.h.bf16 %v3455
    %v3463 = vunpack.c.l.bf16 %v3456
    %v3464 = vunpack.c.h.bf16 %v3456
    %v3465 = vld [vmem:[#allocation4] sm:$0xff]
    %v3466 = vld [vmem:[#allocation4 + $0x8] sm:$0xff]
    %v3467 = vpack.c.bf16 %v3466, %v3465
    %3468 = vmatpush.bf16.msra.mxu0 %v1656
    %3469 = vmatpush.bf16.msra.mxu0 %v1652
    %3470 = vmatpush.bf16.msra.mxu0 %v1648
    %3471 = vmatpush.bf16.msra.mxu0 %v1644
    %3472 = vmatpush.bf16.msra.mxu0 %v1640
    %3473 = vmatpush.bf16.msra.mxu0 %v1636
    %3474 = vmatpush.bf16.msra.mxu0 %v1632
    %3475 = vmatpush.bf16.msra.mxu0 %v1628
    %3476 = vmatmul.bf16.gmra.mxu0 %v3467
    %v3477 = vpop.f32.mrf.mxu0
    %v3478 = vadd.f32 0.0, %v3477
    %v3479 = vpop.f32.mrf.mxu0
    %v3480 = vadd.f32 0.0, %v3479
    %3481 = vdwg.mxu0
    %3482 = vmatpush.bf16.msra.mxu0 %v1657
    %3483 = vmatpush.bf16.msra.mxu0 %v1653
    %3484 = vmatpush.bf16.msra.mxu0 %v1649
    %3485 = vmatpush.bf16.msra.mxu0 %v1645
    %3486 = vmatpush.bf16.msra.mxu0 %v1641
    %3487 = vmatpush.bf16.msra.mxu0 %v1637
    %3488 = vmatpush.bf16.msra.mxu0 %v1633
    %3489 = vmatpush.bf16.msra.mxu0 %v1629
    %3490 = vmatmul.bf16.gmra.mxu0 %v3467
    %v3491 = vpop.f32.mrf.mxu0
    %v3492 = vadd.f32 0.0, %v3491
    %v3493 = vpop.f32.mrf.mxu0
    %v3494 = vadd.f32 0.0, %v3493
    %3495 = vdwg.mxu0
    %3496 = vmatpush.bf16.msra.mxu0 %v1658
    %3497 = vmatpush.bf16.msra.mxu0 %v1654
    %3498 = vmatpush.bf16.msra.mxu0 %v1650
    %3499 = vmatpush.bf16.msra.mxu0 %v1646
    %3500 = vmatpush.bf16.msra.mxu0 %v1642
    %3501 = vmatpush.bf16.msra.mxu0 %v1638
    %3502 = vmatpush.bf16.msra.mxu0 %v1634
    %3503 = vmatpush.bf16.msra.mxu0 %v1630
    %3504 = vmatmul.bf16.gmra.mxu0 %v3467
    %v3505 = vpop.f32.mrf.mxu0
    %v3506 = vadd.f32 0.0, %v3505
    %v3507 = vpop.f32.mrf.mxu0
    %v3508 = vadd.f32 0.0, %v3507
    %3509 = vdwg.mxu0
    %3510 = vmatpush.bf16.msra.mxu0 %v1659
    %3511 = vmatpush.bf16.msra.mxu0 %v1655
    %3512 = vmatpush.bf16.msra.mxu0 %v1651
    %3513 = vmatpush.bf16.msra.mxu0 %v1647
    %3514 = vmatpush.bf16.msra.mxu0 %v1643
    %3515 = vmatpush.bf16.msra.mxu0 %v1639
    %3516 = vmatpush.bf16.msra.mxu0 %v1635
    %3517 = vmatpush.bf16.msra.mxu0 %v1631
    %3518 = vmatmul.bf16.gmra.mxu0 %v3467
    %v3519 = vpop.f32.mrf.mxu0
    %v3520 = vadd.f32 0.0, %v3519
    %v3521 = vpop.f32.mrf.mxu0
    %v3522 = vadd.f32 0.0, %v3521
    %3523 = vdwg.mxu0
    %v3524 = vadd.f32 %v3457, %v3478
    %v3525 = vadd.f32 %v3458, %v3492
    %v3526 = vadd.f32 %v3459, %v3506
    %v3527 = vadd.f32 %v3460, %v3520
    %v3528 = vadd.f32 %v3461, %v3480
    %v3529 = vadd.f32 %v3462, %v3494
    %v3530 = vadd.f32 %v3463, %v3508
    %v3531 = vadd.f32 %v3464, %v3522
    %v3532 = vld [vmem:[#allocation3] sm:$0xff]
    %v3533 = vld [vmem:[#allocation3 + $0x8] sm:$0xff]
    %v3534 = vmul.f32 %v3445, 0.5
    %v3535 = vmul.f32 %v3449, 0.5
    %v3536 = vtanh.pop %v3534
    %v3537 = vtanh.pop %v3535
    %v3538 = vmul.f32 %v3536, 0.5
    %v3539 = vmul.f32 %v3537, 0.5
    %v3540 = vadd.f32 %v3538, 0.5
    %v3541 = vadd.f32 %v3539, 0.5
    %v3542 = vmul.f32 %v3446, 0.5
    %v3543 = vmul.f32 %v3450, 0.5
    %v3544 = vtanh.pop %v3542
    %v3545 = vtanh.pop %v3543
    %v3546 = vmul.f32 %v3544, 0.5
    %v3547 = vmul.f32 %v3545, 0.5
    %v3548 = vadd.f32 %v3546, 0.5
    %v3549 = vadd.f32 %v3547, 0.5
    %v3550 = vtanh.pop %v3447
    %v3551 = vtanh.pop %v3451
    %v3552 = vmul.f32 %v3448, 0.5
    %v3553 = vmul.f32 %v3452, 0.5
    %v3554 = vtanh.pop %v3552
    %v3555 = vtanh.pop %v3553
    %v3556 = vmul.f32 %v3554, 0.5
    %v3557 = vmul.f32 %v3555, 0.5
    %v3558 = vadd.f32 %v3556, 0.5
    %v3559 = vadd.f32 %v3557, 0.5
    %v3560 = vmul.f32 %v3548, %v3532
    %v3561 = vmul.f32 %v3549, %v3533
    %v3562 = vmul.f32 %v3540, %v3550
    %v3563 = vmul.f32 %v3541, %v3551
    %v3564 = vadd.f32 %v3560, %v3562
    %v3565 = vadd.f32 %v3561, %v3563
    %v3566 = vtanh.pop %v3564
    %v3567 = vtanh.pop %v3565
    %v3568 = vmul.f32 %v3558, %v3566
    %v3569 = vmul.f32 %v3559, %v3567
    %v3570 = vld [vmem:[#allocation5] sm:$0xff]
    %v3571 = vld [vmem:[#allocation5 + $0x8] sm:$0xff]
    %v3572 = vmul.f32 %v3524, 0.5
    %v3573 = vmul.f32 %v3528, 0.5
    %v3574 = vtanh.pop %v3572
    %v3575 = vtanh.pop %v3573
    %v3576 = vmul.f32 %v3574, 0.5
    %v3577 = vmul.f32 %v3575, 0.5
    %v3578 = vadd.f32 %v3576, 0.5
    %v3579 = vadd.f32 %v3577, 0.5
    %v3580 = vmul.f32 %v3525, 0.5
    %v3581 = vmul.f32 %v3529, 0.5
    %v3582 = vtanh.pop %v3580
    %v3583 = vtanh.pop %v3581
    %v3584 = vmul.f32 %v3582, 0.5
    %v3585 = vmul.f32 %v3583, 0.5
    %v3586 = vadd.f32 %v3584, 0.5
    %v3587 = vadd.f32 %v3585, 0.5
    %v3588 = vtanh.pop %v3526
    %v3589 = vtanh.pop %v3530
    %v3590 = vmul.f32 %v3527, 0.5
    %v3591 = vmul.f32 %v3531, 0.5
    %v3592 = vtanh.pop %v3590
    %v3593 = vtanh.pop %v3591
    %v3594 = vmul.f32 %v3592, 0.5
    %v3595 = vmul.f32 %v3593, 0.5
    %v3596 = vadd.f32 %v3594, 0.5
    %v3597 = vadd.f32 %v3595, 0.5
    %v3598 = vmul.f32 %v3586, %v3570
    %v3599 = vmul.f32 %v3587, %v3571
    %v3600 = vmul.f32 %v3578, %v3588
    %v3601 = vmul.f32 %v3579, %v3589
    %v3602 = vadd.f32 %v3598, %v3600
    %v3603 = vadd.f32 %v3599, %v3601
    %v3604 = vtanh.pop %v3602
    %v3605 = vtanh.pop %v3603
    %v3606 = vmul.f32 %v3596, %v3604
    %v3607 = vmul.f32 %v3597, %v3605
    %3608 = vst [vmem:[#allocation2] sm:$0xff] %v3568
    %3609 = vst [vmem:[#allocation2 + $0x8] sm:$0xff] %v3569
    %3610 = vst [vmem:[#allocation3] sm:$0xff] %v3564
    %3611 = vst [vmem:[#allocation3 + $0x8] sm:$0xff] %v3565
    %3612 = vst [vmem:[#allocation4] sm:$0xff] %v3606
    %3613 = vst [vmem:[#allocation4 + $0x8] sm:$0xff] %v3607
    %3614 = vst [vmem:[#allocation5] sm:$0xff] %v3602
    %3615 = vst [vmem:[#allocation5 + $0x8] sm:$0xff] %v3603
    %v3616 = vpack.c.bf16 %v3568, %v3568
    %v3617 = vpack.c.bf16 %v3569, %v3569
    %s3618 = scalar_lea.vmem [#allocation20], 56
    %3619 = vst [vmem:[%s3618] sm:$0xf] %v3616
    %3620 = vst [vmem:[%s3618 + $0x4] sm:$0xf] %v3617
    %v3621 = vpack.c.bf16 %v3606, %v3606
    %v3622 = vpack.c.bf16 %v3607, %v3607
    %3623 = vst [vmem:[#allocation21] sm:$0xf] %v3621
    %3624 = vst [vmem:[#allocation21 + $0x4] sm:$0xf] %v3622
    // Predicated region
    $region66: #{tpu_custom_call.1} parent=1 // pred_check
      _
    $region67: #{tpu_custom_call.1} parent=1 // pred_check_branch
      %3626 = sbr.rel (0) target = $region69
    $region68: #{tpu_custom_call.1} parent=1 // pred_region
      %3628 = vsyncadd [#allocation10], 0
      %s3629 = sshll.u32 [#allocation20], 4
      %s3630 = int_to_ptr.vmem [resolvable:$true] %s3629
      %s3631 = sshll.u32 %s8, 4
      %s3632 = int_to_ptr.hbm [resolvable:$true] %s3631
      %3637 = dma.vmem_to_hbm [thread:$0]  %s3630, 1024, %s3632, [#allocation10], 64, 64, 4
    $region69: #{tpu_custom_call.1} parent=1 // pred_fallthru
      _
    // Predicated region
    $region70: #{tpu_custom_call.1} parent=1 // pred_check
      _
    $region71: #{tpu_custom_call.1} parent=1 // pred_check_branch
      %3639 = sbr.rel (0) target = $region73
    $region72: #{tpu_custom_call.1} parent=1 // pred_region
      %s3640 = ssub.s32 0, 0
      %s3641 = smul.u32 8, %s3640
      %3643 = vsyncadd [#allocation22], 0
      %s3644 = smul.addr %s3641, 2
      %s3645 = smul.addr %s3644, 4
      %s3646 = scalar_lea.hbm %s9, %s3645
      %s3647 = sshll.u32 [#allocation21], 4
      %s3648 = int_to_ptr.vmem [resolvable:$true] %s3647
      %s3649 = sshll.u32 %s3646, 4
      %s3650 = int_to_ptr.hbm [resolvable:$true] %s3649
      %3655 = dma.vmem_to_hbm [thread:$0]  %s3648, 1024, %s3650, [#allocation22], 64, 64, 4
    $region73: #{tpu_custom_call.1} parent=1 // pred_fallthru
      _
    // Predicated region
    $region74: #{tpu_custom_call.1} parent=1 // pred_check
      _
    $region75: #{tpu_custom_call.1} parent=1 // pred_check_branch
      %3657 = sbr.rel (0) target = $region77
    $region76: #{tpu_custom_call.1} parent=1 // pred_region
      %3659 = dma.done [#allocation10], 1024
    $region77: #{tpu_custom_call.1} parent=1 // pred_fallthru
      _
    // Predicated region
    $region78: #{tpu_custom_call.1} parent=1 // pred_check
      _
    $region79: #{tpu_custom_call.1} parent=1 // pred_check_branch
      %3661 = sbr.rel (0) target = $region81
    $region80: #{tpu_custom_call.1} parent=1 // pred_region
      %3663 = dma.done [#allocation22], 1024
    $region81: #{tpu_custom_call.1} parent=1 // pred_fallthru
      _
    %3664 = vsyncpa [#allocation9], 1
    %3665 = vsyncpa [#allocation12], 1
    %3666 = vsyncpa [#allocation15], 1
    %3667 = vsyncpa [#allocation18], 1
    %3668 = vsyncpa [#allocation10], 1
    %3669 = vsyncpa [#allocation22], 1

</llo_original>
